<compile_context>
chip_gen: v7x
topology: tpu7x:2x2x1
jax: 0.10.0
libtpu: 0.0.40
codegen_flags: <defaults>
</compile_context>

<pallas_src>
import jax
import jax.numpy as jnp
from jax import lax
from jax.experimental import pallas as pl
from jax.experimental.pallas import tpu as pltpu

N_EMBD = 384               # matches the module's global n_embd
N_HEAD = 6                 # matches the module's global n_head
HEAD_SIZE = N_EMBD // N_HEAD
LN_EPS = 1e-5              # PyTorch nn.LayerNorm default
NEG_BIG = -1e30            # finite "minus infinity" for the causal mask


def _layernorm(x, gamma, beta):
    # Single-pass variance: E[x^2] - mean^2 (one reduction pass fewer).
    mean = jnp.mean(x, axis=-1, keepdims=True)
    mean2 = jnp.mean(x * x, axis=-1, keepdims=True)
    var = mean2 - mean * mean
    return (x - mean) * lax.rsqrt(var + LN_EPS) * gamma + beta


def block_kernel(x_ref,
                 ln1_g_ref, ln1_b_ref,
                 wqkv_ref, wproj_ref, bproj_ref,
                 ln2_g_ref, ln2_b_ref,
                 w1_ref, b1_ref, w2_ref, b2_ref,
                 out_ref, head_buf):
    Bb, T, C = x_ref.shape
    hs = C // N_HEAD
    M = Bb * T

    x = x_ref[...].reshape(M, C)               # flatten rows for dense matmuls

    # ---- x = ln1(x) ----  (f32 element-wise)
    h1 = _layernorm(x, ln1_g_ref[0], ln1_b_ref[0])

    # ---- fused QKV projection: one lane-dense (M,C)@(C,3C) bf16 matmul ----
    # (the n_embd**-0.5 score scale is already folded into the Q weights)
    qkv = jnp.dot(h1.astype(jnp.bfloat16), wqkv_ref[...],
                  preferred_element_type=jnp.float32)
    qkv = qkv.astype(jnp.bfloat16).reshape(Bb, T, 3 * C)   # single bf16 cast

    # causal mask, shared across batch elements / heads
    rows = lax.broadcasted_iota(jnp.int32, (T, T), 0)
    cols = lax.broadcasted_iota(jnp.int32, (T, T), 1)
    causal = (rows >= cols)[None, :, :]

    for h in range(N_HEAD):                     # 6 bodies, batched over Bb
        c0 = h * hs
        qh = qkv[:, :, c0:c0 + hs]              # (Bb, T, hs) bf16
        kh = qkv[:, :, C + c0:C + c0 + hs]
        vh = qkv[:, :, 2 * C + c0:2 * C + c0 + hs]

        wei = jnp.einsum('bqd,bkd->bqk', qh, kh,
                         preferred_element_type=jnp.float32)
        wei = jnp.where(causal, wei, NEG_BIG)   # finite mask: no -inf lanes
        wei = wei - jnp.max(wei, axis=-1, keepdims=True)
        p = jnp.exp(wei)                        # masked lanes underflow to 0
        p = p * pl.reciprocal(jnp.sum(p, axis=-1, keepdims=True), approx=True)
        # TODO(synk): attention-weight dropout skipped (eval-mode identity).

        head_out = jnp.einsum('bqk,bkd->bqd', p.astype(jnp.bfloat16), vh,
                              preferred_element_type=jnp.float32)
        head_buf[:, :, c0:c0 + hs] = head_out.astype(jnp.bfloat16)

    # ---- output projection: one (M,C)@(C,C) bf16 matmul (K=384 fills MXU) --
    attn = jnp.dot(head_buf[...].reshape(M, C), wproj_ref[...],
                   preferred_element_type=jnp.float32) + bproj_ref[0]
    # TODO(synk): projection dropout skipped (eval-mode identity).

    # ---- x = x + sa(x)  (x here is the LN1 output, as in the module) ----
    h2 = h1 + attn

    # ---- x = ln2(x) ----
    h3 = _layernorm(h2, ln2_g_ref[0], ln2_b_ref[0])

    # ---- feed-forward: Linear(C,4C) -> ReLU -> Linear(4C,C) ----
    f = jnp.dot(h3.astype(jnp.bfloat16), w1_ref[...],
                preferred_element_type=jnp.float32) + b1_ref[0]
    f = jnp.maximum(f, 0.0)
    f = jnp.dot(f.astype(jnp.bfloat16), w2_ref[...],
                preferred_element_type=jnp.float32) + b2_ref[0]
    # TODO(synk): feed-forward dropout skipped (eval-mode identity).

    # ---- x = x + ffwd(x) ----
    out_ref[...] = (h3 + f).reshape(Bb, T, C)


def _pick_batch_block(B, T, max_rows=512):
    """Batch elements per grid step.

    Largest Bb dividing B such that (a) Bb*T <= max_rows (keeps f32
    intermediates well inside v7x's 64 MiB VMEM) and (b) the grid keeps at
    least 2 steps so both v7x TensorCores get parallel work."""
    bb_cap = max(1, B // 2)
    best = 1
    for cand in range(1, bb_cap + 1):
        if B % cand == 0 and cand * T <= max_rows:
            best = cand
    return best


def transformer_block(x, params):
    (ln1_g, ln1_b, wq, wk, wv, wproj, bproj,
     ln2_g, ln2_b, w1, b1, w2, b2) = params
    B, T, C = x.shape
    H, _, hs = wq.shape
    scale = C ** (-0.5)                        # module scales by n_embd**-0.5

    # Fuse per-head Q/K/V weights into one (C, 3C) bf16 matrix, head-major
    # columns; fold the score scale into the Q block (in f32, before the cast).
    wq_all = (wq * scale).transpose(1, 0, 2).reshape(C, H * hs)
    wk_all = wk.transpose(1, 0, 2).reshape(C, H * hs)
    wv_all = wv.transpose(1, 0, 2).reshape(C, H * hs)
    w_qkv = jnp.concatenate([wq_all, wk_all, wv_all], axis=-1).astype(jnp.bfloat16)

    kernel_params = (
        ln1_g, ln1_b,
        w_qkv, wproj.astype(jnp.bfloat16), bproj,
        ln2_g, ln2_b,
        w1.astype(jnp.bfloat16), b1, w2.astype(jnp.bfloat16), b2,
    )

    Bb = _pick_batch_block(B, T)
    grid = (B // Bb,)

    in_specs = [pl.BlockSpec((Bb, T, C), lambda i: (i, 0, 0))]
    in_specs += [pl.BlockSpec(p.shape, lambda i, _nd=p.ndim: (0,) * _nd)
                 for p in kernel_params]
    out_spec = pl.BlockSpec((Bb, T, C), lambda i: (i, 0, 0))

    return pl.pallas_call(
        block_kernel,
        out_shape=jax.ShapeDtypeStruct((B, T, C), jnp.float32),
        grid_spec=pltpu.PrefetchScalarGridSpec(
            num_scalar_prefetch=0,
            grid=grid,
            in_specs=in_specs,
            out_specs=out_spec,
            scratch_shapes=[pltpu.VMEM((Bb, T, C), jnp.bfloat16)],
        ),
        compiler_params=pltpu.CompilerParams(
            dimension_semantics=("parallel",),
            vmem_limit_bytes=48 << 20,
        ),
    )(x, *kernel_params)


def reference_block(x, params):
    """Pure-JAX reference mirroring the PyTorch forward (eval mode)."""
    (ln1_g, ln1_b, wq, wk, wv, wproj, bproj,
     ln2_g, ln2_b, w1, b1, w2, b2) = params
    B, T, C = x.shape

    def ln(y, g, b):
        m = y.mean(-1, keepdims=True)
        v = ((y - m) ** 2).mean(-1, keepdims=True)
        return (y - m) / jnp.sqrt(v + LN_EPS) * g[0] + b[0]

    h1 = ln(x, ln1_g, ln1_b)
    q = jnp.einsum('btc,hcd->bhtd', h1, wq)
    k = jnp.einsum('btc,hcd->bhtd', h1, wk)
    v = jnp.einsum('btc,hcd->bhtd', h1, wv)
    wei = jnp.einsum('bhtd,bhsd->bhts', q, k) * C ** (-0.5)
    mask = jnp.tril(jnp.ones((T, T), bool))
    wei = jnp.where(mask, wei, -jnp.inf)
    wei = jax.nn.softmax(wei, axis=-1)
    out = jnp.einsum('bhts,bhsd->bhtd', wei, v)
    out = out.transpose(0, 2, 1, 3).reshape(B, T, C)
    attn = out @ wproj + bproj[0]
    h2 = h1 + attn
    h3 = ln(h2, ln2_g, ln2_b)
    f = jnp.maximum(h3 @ w1 + b1[0], 0.0) @ w2 + b2[0]
    return h3 + f


def make_params(key):
    C, H, HS = N_EMBD, N_HEAD, HEAD_SIZE
    ks = jax.random.split(key, 16)
    n = lambda k, shape, s: (jax.random.normal(k, shape, jnp.float32) * s)
    params = (
        1.0 + n(ks[0], (1, C), 0.1),          # ln1 gamma
        n(ks[1], (1, C), 0.1),                # ln1 beta
        n(ks[2], (H, C, HS), 0.02),           # Wq (per head, x @ Wq)
        n(ks[3], (H, C, HS), 0.02),           # Wk
        n(ks[4], (H, C, HS), 0.02),           # Wv
        n(ks[5], (C, C), 0.02),               # Wproj
        n(ks[6], (1, C), 0.02),               # bproj
        1.0 + n(ks[7], (1, C), 0.1),          # ln2 gamma
        n(ks[8], (1, C), 0.1),                # ln2 beta
        n(ks[9], (C, 4 * C), 0.02),           # FFN W1
        n(ks[10], (1, 4 * C), 0.02),          # FFN b1
        n(ks[11], (4 * C, C), 0.02),          # FFN W2
        n(ks[12], (1, C), 0.02),              # FFN b2
    )
    return params


if __name__ == "__main__":
    key = jax.random.PRNGKey(0)
    kx, kp = jax.random.split(key)

    B, T = 2, 8                                # small shapes; T <= block_size (256)
    x = jax.random.normal(kx, (B, T, N_EMBD), jnp.float32)
    params = make_params(kp)

    out = transformer_block(x, params)
    out = jax.block_until_ready(out)

    ref = jax.block_until_ready(reference_block(x, params))
    assert out.shape == (B, T, N_EMBD)
    assert jnp.allclose(out, ref, atol=2e-2, rtol=2e-2), (
        float(jnp.max(jnp.abs(out - ref))))

    print("KERNEL_OK")
</pallas_src>

<mosaic_0001>
module attributes {stable_mosaic.version = 11 : i64} {
  func.func @block_kernel(%arg0: i32, %arg1: memref<1x8x384xf32, #tpu.memory_space<vmem>>, %arg2: memref<1x384xf32, #tpu.memory_space<vmem>>, %arg3: memref<1x384xf32, #tpu.memory_space<vmem>>, %arg4: memref<384x1152xbf16, #tpu.memory_space<vmem>>, %arg5: memref<384x384xbf16, #tpu.memory_space<vmem>>, %arg6: memref<1x384xf32, #tpu.memory_space<vmem>>, %arg7: memref<1x384xf32, #tpu.memory_space<vmem>>, %arg8: memref<1x384xf32, #tpu.memory_space<vmem>>, %arg9: memref<384x1536xbf16, #tpu.memory_space<vmem>>, %arg10: memref<1x1536xf32, #tpu.memory_space<vmem>>, %arg11: memref<1536x384xbf16, #tpu.memory_space<vmem>>, %arg12: memref<1x384xf32, #tpu.memory_space<vmem>>, %arg13: memref<1x8x384xf32, #tpu.memory_space<vmem>>, %arg14: memref<1x8x384xbf16, #tpu.memory_space<vmem>>) attributes {dimension_semantics = [#tpu.dimension_semantics<parallel>], iteration_bounds = array<i64: 2>, scalar_prefetch = 0 : i64, scratch_operands = 1 : i64, tpu.core_type = #tpu.core_type<tc>, window_params = [{transform_indices = @transform_0, window_bounds = array<i64: 1, 8, 384>}, {pipeline_mode = #tpu.pipeline_mode<synchronous>, transform_indices = @transform_1, window_bounds = array<i64: 1, 384>}, {pipeline_mode = #tpu.pipeline_mode<synchronous>, transform_indices = @transform_2, window_bounds = array<i64: 1, 384>}, {pipeline_mode = #tpu.pipeline_mode<synchronous>, transform_indices = @transform_3, window_bounds = array<i64: 384, 1152>}, {pipeline_mode = #tpu.pipeline_mode<synchronous>, transform_indices = @transform_4, window_bounds = array<i64: 384, 384>}, {pipeline_mode = #tpu.pipeline_mode<synchronous>, transform_indices = @transform_5, window_bounds = array<i64: 1, 384>}, {pipeline_mode = #tpu.pipeline_mode<synchronous>, transform_indices = @transform_6, window_bounds = array<i64: 1, 384>}, {pipeline_mode = #tpu.pipeline_mode<synchronous>, transform_indices = @transform_7, window_bounds = array<i64: 1, 384>}, {pipeline_mode = #tpu.pipeline_mode<synchronous>, transform_indices = @transform_8, window_bounds = array<i64: 384, 1536>}, {pipeline_mode = #tpu.pipeline_mode<synchronous>, transform_indices = @transform_9, window_bounds = array<i64: 1, 1536>}, {pipeline_mode = #tpu.pipeline_mode<synchronous>, transform_indices = @transform_10, window_bounds = array<i64: 1536, 384>}, {pipeline_mode = #tpu.pipeline_mode<synchronous>, transform_indices = @transform_11, window_bounds = array<i64: 1, 384>}, {transform_indices = @transform_12, window_bounds = array<i64: 1, 8, 384>}]} {
    %c0 = arith.constant 0 : index
    %c0_0 = arith.constant 0 : index
    %c0_1 = arith.constant 0 : index
    %0 = vector.load %arg1[%c0, %c0_0, %c0_1] : memref<1x8x384xf32, #tpu.memory_space<vmem>>, vector<1x8x384xf32>
    %1 = vector.shape_cast %0 : vector<1x8x384xf32> to vector<8x384xf32>
    %c0_2 = arith.constant 0 : index
    %c0_3 = arith.constant 0 : index
    %2 = vector.load %arg2[%c0_2, %c0_3] : memref<1x384xf32, #tpu.memory_space<vmem>>, vector<1x384xf32>
    %3 = vector.shape_cast %2 : vector<1x384xf32> to vector<384xf32>
    %c0_4 = arith.constant 0 : index
    %c0_5 = arith.constant 0 : index
    %4 = vector.load %arg3[%c0_4, %c0_5] : memref<1x384xf32, #tpu.memory_space<vmem>>, vector<1x384xf32>
    %5 = vector.shape_cast %4 : vector<1x384xf32> to vector<384xf32>
    %cst = arith.constant dense<0.000000e+00> : vector<8xf32>
    %6 = vector.multi_reduction <add>, %1, %cst [1] : vector<8x384xf32> to vector<8xf32>
    %7 = vector.shape_cast %6 : vector<8xf32> to vector<8x1xf32>
    %cst_6 = arith.constant 3.840000e+02 : f32
    %8 = vector.broadcast %cst_6 : f32 to vector<8x1xf32>
    %9 = arith.divf %7, %8 : vector<8x1xf32>
    %10 = arith.mulf %1, %1 : vector<8x384xf32>
    %cst_7 = arith.constant dense<0.000000e+00> : vector<8xf32>
    %11 = vector.multi_reduction <add>, %10, %cst_7 [1] : vector<8x384xf32> to vector<8xf32>
    %12 = vector.shape_cast %11 : vector<8xf32> to vector<8x1xf32>
    %cst_8 = arith.constant 3.840000e+02 : f32
    %13 = vector.broadcast %cst_8 : f32 to vector<8x1xf32>
    %14 = arith.divf %12, %13 : vector<8x1xf32>
    %15 = arith.mulf %9, %9 : vector<8x1xf32>
    %16 = arith.subf %14, %15 : vector<8x1xf32>
    %17 = vector.broadcast %9 : vector<8x1xf32> to vector<8x384xf32>
    %18 = arith.subf %1, %17 : vector<8x384xf32>
    %cst_9 = arith.constant 9.99999974E-6 : f32
    %19 = vector.broadcast %cst_9 : f32 to vector<8x1xf32>
    %20 = arith.addf %16, %19 : vector<8x1xf32>
    %21 = math.rsqrt %20 : vector<8x1xf32>
    %22 = vector.broadcast %21 : vector<8x1xf32> to vector<8x384xf32>
    %23 = arith.mulf %18, %22 : vector<8x384xf32>
    %24 = vector.shape_cast %3 : vector<384xf32> to vector<1x384xf32>
    %25 = vector.broadcast %24 : vector<1x384xf32> to vector<8x384xf32>
    %26 = arith.mulf %23, %25 : vector<8x384xf32>
    %27 = vector.shape_cast %5 : vector<384xf32> to vector<1x384xf32>
    %28 = vector.broadcast %27 : vector<1x384xf32> to vector<8x384xf32>
    %29 = arith.addf %26, %28 : vector<8x384xf32>
    %30 = arith.truncf %29 : vector<8x384xf32> to vector<8x384xbf16>
    %c0_10 = arith.constant 0 : index
    %c0_11 = arith.constant 0 : index
    %31 = vector.load %arg4[%c0_10, %c0_11] : memref<384x1152xbf16, #tpu.memory_space<vmem>>, vector<384x1152xbf16>
    %cst_12 = arith.constant dense<0.000000e+00> : vector<8x1152xf32>
    %32 = tpu.matmul %30, %31, %cst_12 {dimension_numbers = #tpu.dot_dimension_numbers<[1], [0], [0], [1], [0, 0, 1, 1], [], []>} : vector<8x384xbf16>, vector<384x1152xbf16>, vector<8x1152xf32> -> vector<8x1152xf32>
    %33 = arith.truncf %32 : vector<8x1152xf32> to vector<8x1152xbf16>
    %34 = vector.shape_cast %33 : vector<8x1152xbf16> to vector<1x8x1152xbf16>
    %35 = tpu.iota {dimensions = array<i32: 0>} : vector<8x8xi32>
    %36 = tpu.iota {dimensions = array<i32: 1>} : vector<8x8xi32>
    %37 = arith.cmpi sge, %35, %36 : vector<8x8xi32>
    %38 = vector.shape_cast %37 : vector<8x8xi1> to vector<1x8x8xi1>
    %39 = vector.extract_strided_slice %34 {offsets = [0, 0, 0], sizes = [1, 8, 64], strides = [1, 1, 1]} : vector<1x8x1152xbf16> to vector<1x8x64xbf16>
    %40 = vector.extract_strided_slice %34 {offsets = [0, 0, 384], sizes = [1, 8, 64], strides = [1, 1, 1]} : vector<1x8x1152xbf16> to vector<1x8x64xbf16>
    %41 = vector.extract_strided_slice %34 {offsets = [0, 0, 768], sizes = [1, 8, 64], strides = [1, 1, 1]} : vector<1x8x1152xbf16> to vector<1x8x64xbf16>
    "tpu.trace_start"() <{level = 10 : i32, message = "bqd,bkd->bqk"}> : () -> ()
    %cst_13 = arith.constant dense<0.000000e+00> : vector<1x8x8xf32>
    %42 = tpu.matmul %39, %40, %cst_13 {dimension_numbers = #tpu.dot_dimension_numbers<[2], [2], [1], [1], [0, 0, 0, 1, 1, 1], [0], [0]>} : vector<1x8x64xbf16>, vector<1x8x64xbf16>, vector<1x8x8xf32> -> vector<1x8x8xf32>
    %cst_14 = arith.constant -1.000000e+30 : f32
    "tpu.trace_stop"() : () -> ()
    %43 = vector.broadcast %cst_14 : f32 to vector<1x8x8xf32>
    %44 = arith.select %38, %42, %43 : vector<1x8x8xi1>, vector<1x8x8xf32>
    %cst_15 = arith.constant dense<0xFF800000> : vector<1x8xf32>
    %45 = vector.multi_reduction <maximumf>, %44, %cst_15 [2] : vector<1x8x8xf32> to vector<1x8xf32>
    %46 = vector.shape_cast %45 : vector<1x8xf32> to vector<1x8x1xf32>
    %47 = vector.broadcast %46 : vector<1x8x1xf32> to vector<1x8x8xf32>
    %48 = arith.subf %44, %47 : vector<1x8x8xf32>
    %49 = math.exp %48 : vector<1x8x8xf32>
    %cst_16 = arith.constant dense<0.000000e+00> : vector<1x8xf32>
    %50 = vector.multi_reduction <add>, %49, %cst_16 [2] : vector<1x8x8xf32> to vector<1x8xf32>
    %51 = vector.shape_cast %50 : vector<1x8xf32> to vector<1x8x1xf32>
    %52 = tpu.reciprocal %51 {approx = true} : vector<1x8x1xf32> -> vector<1x8x1xf32>
    %53 = vector.broadcast %52 : vector<1x8x1xf32> to vector<1x8x8xf32>
    %54 = arith.mulf %49, %53 : vector<1x8x8xf32>
    %55 = arith.truncf %54 : vector<1x8x8xf32> to vector<1x8x8xbf16>
    "tpu.trace_start"() <{level = 10 : i32, message = "bqk,bkd->bqd"}> : () -> ()
    %cst_17 = arith.constant dense<0.000000e+00> : vector<1x8x64xf32>
    %56 = tpu.matmul %55, %41, %cst_17 {dimension_numbers = #tpu.dot_dimension_numbers<[2], [1], [1], [2], [0, 0, 0, 1, 1, 2], [0], [0]>} : vector<1x8x8xbf16>, vector<1x8x64xbf16>, vector<1x8x64xf32> -> vector<1x8x64xf32>
    "tpu.trace_stop"() : () -> ()
    %57 = arith.truncf %56 : vector<1x8x64xf32> to vector<1x8x64xbf16>
    %c0_18 = arith.constant 0 : index
    %c0_19 = arith.constant 0 : index
    %c0_20 = arith.constant 0 : index
    %58 = vector.load %arg14[%c0_18, %c0_19, %c0_20] : memref<1x8x384xbf16, #tpu.memory_space<vmem>>, vector<1x8x64xbf16>
    tpu.vector_store %arg14[%c0_18, %c0_19, %c0_20], %57 {strides = array<i32>} : memref<1x8x384xbf16, #tpu.memory_space<vmem>>, vector<1x8x64xbf16>,
    %59 = vector.extract_strided_slice %34 {offsets = [0, 0, 64], sizes = [1, 8, 64], strides = [1, 1, 1]} : vector<1x8x1152xbf16> to vector<1x8x64xbf16>
    %60 = vector.extract_strided_slice %34 {offsets = [0, 0, 448], sizes = [1, 8, 64], strides = [1, 1, 1]} : vector<1x8x1152xbf16> to vector<1x8x64xbf16>
    %61 = vector.extract_strided_slice %34 {offsets = [0, 0, 832], sizes = [1, 8, 64], strides = [1, 1, 1]} : vector<1x8x1152xbf16> to vector<1x8x64xbf16>
    "tpu.trace_start"() <{level = 10 : i32, message = "bqd,bkd->bqk"}> : () -> ()
    %cst_21 = arith.constant dense<0.000000e+00> : vector<1x8x8xf32>
    %62 = tpu.matmul %59, %60, %cst_21 {dimension_numbers = #tpu.dot_dimension_numbers<[2], [2], [1], [1], [0, 0, 0, 1, 1, 1], [0], [0]>} : vector<1x8x64xbf16>, vector<1x8x64xbf16>, vector<1x8x8xf32> -> vector<1x8x8xf32>
    %cst_22 = arith.constant -1.000000e+30 : f32
    "tpu.trace_stop"() : () -> ()
    %63 = vector.broadcast %cst_22 : f32 to vector<1x8x8xf32>
    %64 = arith.select %38, %62, %63 : vector<1x8x8xi1>, vector<1x8x8xf32>
    %cst_23 = arith.constant dense<0xFF800000> : vector<1x8xf32>
    %65 = vector.multi_reduction <maximumf>, %64, %cst_23 [2] : vector<1x8x8xf32> to vector<1x8xf32>
    %66 = vector.shape_cast %65 : vector<1x8xf32> to vector<1x8x1xf32>
    %67 = vector.broadcast %66 : vector<1x8x1xf32> to vector<1x8x8xf32>
    %68 = arith.subf %64, %67 : vector<1x8x8xf32>
    %69 = math.exp %68 : vector<1x8x8xf32>
    %cst_24 = arith.constant dense<0.000000e+00> : vector<1x8xf32>
    %70 = vector.multi_reduction <add>, %69, %cst_24 [2] : vector<1x8x8xf32> to vector<1x8xf32>
    %71 = vector.shape_cast %70 : vector<1x8xf32> to vector<1x8x1xf32>
    %72 = tpu.reciprocal %71 {approx = true} : vector<1x8x1xf32> -> vector<1x8x1xf32>
    %73 = vector.broadcast %72 : vector<1x8x1xf32> to vector<1x8x8xf32>
    %74 = arith.mulf %69, %73 : vector<1x8x8xf32>
    %75 = arith.truncf %74 : vector<1x8x8xf32> to vector<1x8x8xbf16>
    "tpu.trace_start"() <{level = 10 : i32, message = "bqk,bkd->bqd"}> : () -> ()
    %cst_25 = arith.constant dense<0.000000e+00> : vector<1x8x64xf32>
    %76 = tpu.matmul %75, %61, %cst_25 {dimension_numbers = #tpu.dot_dimension_numbers<[2], [1], [1], [2], [0, 0, 0, 1, 1, 2], [0], [0]>} : vector<1x8x8xbf16>, vector<1x8x64xbf16>, vector<1x8x64xf32> -> vector<1x8x64xf32>
    "tpu.trace_stop"() : () -> ()
    %77 = arith.truncf %76 : vector<1x8x64xf32> to vector<1x8x64xbf16>
    %c0_26 = arith.constant 0 : index
    %c0_27 = arith.constant 0 : index
    %c64 = arith.constant 64 : index
    %78 = vector.load %arg14[%c0_26, %c0_27, %c64] : memref<1x8x384xbf16, #tpu.memory_space<vmem>>, vector<1x8x64xbf16>
    tpu.vector_store %arg14[%c0_26, %c0_27, %c64], %77 {strides = array<i32>} : memref<1x8x384xbf16, #tpu.memory_space<vmem>>, vector<1x8x64xbf16>,
    %79 = vector.extract_strided_slice %34 {offsets = [0, 0, 128], sizes = [1, 8, 64], strides = [1, 1, 1]} : vector<1x8x1152xbf16> to vector<1x8x64xbf16>
    %80 = vector.extract_strided_slice %34 {offsets = [0, 0, 512], sizes = [1, 8, 64], strides = [1, 1, 1]} : vector<1x8x1152xbf16> to vector<1x8x64xbf16>
    %81 = vector.extract_strided_slice %34 {offsets = [0, 0, 896], sizes = [1, 8, 64], strides = [1, 1, 1]} : vector<1x8x1152xbf16> to vector<1x8x64xbf16>
    "tpu.trace_start"() <{level = 10 : i32, message = "bqd,bkd->bqk"}> : () -> ()
    %cst_28 = arith.constant dense<0.000000e+00> : vector<1x8x8xf32>
    %82 = tpu.matmul %79, %80, %cst_28 {dimension_numbers = #tpu.dot_dimension_numbers<[2], [2], [1], [1], [0, 0, 0, 1, 1, 1], [0], [0]>} : vector<1x8x64xbf16>, vector<1x8x64xbf16>, vector<1x8x8xf32> -> vector<1x8x8xf32>
    %cst_29 = arith.constant -1.000000e+30 : f32
    "tpu.trace_stop"() : () -> ()
    %83 = vector.broadcast %cst_29 : f32 to vector<1x8x8xf32>
    %84 = arith.select %38, %82, %83 : vector<1x8x8xi1>, vector<1x8x8xf32>
    %cst_30 = arith.constant dense<0xFF800000> : vector<1x8xf32>
    %85 = vector.multi_reduction <maximumf>, %84, %cst_30 [2] : vector<1x8x8xf32> to vector<1x8xf32>
    %86 = vector.shape_cast %85 : vector<1x8xf32> to vector<1x8x1xf32>
    %87 = vector.broadcast %86 : vector<1x8x1xf32> to vector<1x8x8xf32>
    %88 = arith.subf %84, %87 : vector<1x8x8xf32>
    %89 = math.exp %88 : vector<1x8x8xf32>
    %cst_31 = arith.constant dense<0.000000e+00> : vector<1x8xf32>
    %90 = vector.multi_reduction <add>, %89, %cst_31 [2] : vector<1x8x8xf32> to vector<1x8xf32>
    %91 = vector.shape_cast %90 : vector<1x8xf32> to vector<1x8x1xf32>
    %92 = tpu.reciprocal %91 {approx = true} : vector<1x8x1xf32> -> vector<1x8x1xf32>
    %93 = vector.broadcast %92 : vector<1x8x1xf32> to vector<1x8x8xf32>
    %94 = arith.mulf %89, %93 : vector<1x8x8xf32>
    %95 = arith.truncf %94 : vector<1x8x8xf32> to vector<1x8x8xbf16>
    "tpu.trace_start"() <{level = 10 : i32, message = "bqk,bkd->bqd"}> : () -> ()
    %cst_32 = arith.constant dense<0.000000e+00> : vector<1x8x64xf32>
    %96 = tpu.matmul %95, %81, %cst_32 {dimension_numbers = #tpu.dot_dimension_numbers<[2], [1], [1], [2], [0, 0, 0, 1, 1, 2], [0], [0]>} : vector<1x8x8xbf16>, vector<1x8x64xbf16>, vector<1x8x64xf32> -> vector<1x8x64xf32>
    "tpu.trace_stop"() : () -> ()
    %97 = arith.truncf %96 : vector<1x8x64xf32> to vector<1x8x64xbf16>
    %c0_33 = arith.constant 0 : index
    %c0_34 = arith.constant 0 : index
    %c128 = arith.constant 128 : index
    %98 = vector.load %arg14[%c0_33, %c0_34, %c128] : memref<1x8x384xbf16, #tpu.memory_space<vmem>>, vector<1x8x64xbf16>
    tpu.vector_store %arg14[%c0_33, %c0_34, %c128], %97 {strides = array<i32>} : memref<1x8x384xbf16, #tpu.memory_space<vmem>>, vector<1x8x64xbf16>,
    %99 = vector.extract_strided_slice %34 {offsets = [0, 0, 192], sizes = [1, 8, 64], strides = [1, 1, 1]} : vector<1x8x1152xbf16> to vector<1x8x64xbf16>
    %100 = vector.extract_strided_slice %34 {offsets = [0, 0, 576], sizes = [1, 8, 64], strides = [1, 1, 1]} : vector<1x8x1152xbf16> to vector<1x8x64xbf16>
    %101 = vector.extract_strided_slice %34 {offsets = [0, 0, 960], sizes = [1, 8, 64], strides = [1, 1, 1]} : vector<1x8x1152xbf16> to vector<1x8x64xbf16>
    "tpu.trace_start"() <{level = 10 : i32, message = "bqd,bkd->bqk"}> : () -> ()
    %cst_35 = arith.constant dense<0.000000e+00> : vector<1x8x8xf32>
    %102 = tpu.matmul %99, %100, %cst_35 {dimension_numbers = #tpu.dot_dimension_numbers<[2], [2], [1], [1], [0, 0, 0, 1, 1, 1], [0], [0]>} : vector<1x8x64xbf16>, vector<1x8x64xbf16>, vector<1x8x8xf32> -> vector<1x8x8xf32>
    %cst_36 = arith.constant -1.000000e+30 : f32
    "tpu.trace_stop"() : () -> ()
    %103 = vector.broadcast %cst_36 : f32 to vector<1x8x8xf32>
    %104 = arith.select %38, %102, %103 : vector<1x8x8xi1>, vector<1x8x8xf32>
    %cst_37 = arith.constant dense<0xFF800000> : vector<1x8xf32>
    %105 = vector.multi_reduction <maximumf>, %104, %cst_37 [2] : vector<1x8x8xf32> to vector<1x8xf32>
    %106 = vector.shape_cast %105 : vector<1x8xf32> to vector<1x8x1xf32>
    %107 = vector.broadcast %106 : vector<1x8x1xf32> to vector<1x8x8xf32>
    %108 = arith.subf %104, %107 : vector<1x8x8xf32>
    %109 = math.exp %108 : vector<1x8x8xf32>
    %cst_38 = arith.constant dense<0.000000e+00> : vector<1x8xf32>
    %110 = vector.multi_reduction <add>, %109, %cst_38 [2] : vector<1x8x8xf32> to vector<1x8xf32>
    %111 = vector.shape_cast %110 : vector<1x8xf32> to vector<1x8x1xf32>
    %112 = tpu.reciprocal %111 {approx = true} : vector<1x8x1xf32> -> vector<1x8x1xf32>
    %113 = vector.broadcast %112 : vector<1x8x1xf32> to vector<1x8x8xf32>
    %114 = arith.mulf %109, %113 : vector<1x8x8xf32>
    %115 = arith.truncf %114 : vector<1x8x8xf32> to vector<1x8x8xbf16>
    "tpu.trace_start"() <{level = 10 : i32, message = "bqk,bkd->bqd"}> : () -> ()
    %cst_39 = arith.constant dense<0.000000e+00> : vector<1x8x64xf32>
    %116 = tpu.matmul %115, %101, %cst_39 {dimension_numbers = #tpu.dot_dimension_numbers<[2], [1], [1], [2], [0, 0, 0, 1, 1, 2], [0], [0]>} : vector<1x8x8xbf16>, vector<1x8x64xbf16>, vector<1x8x64xf32> -> vector<1x8x64xf32>
    "tpu.trace_stop"() : () -> ()
    %117 = arith.truncf %116 : vector<1x8x64xf32> to vector<1x8x64xbf16>
    %c0_40 = arith.constant 0 : index
    %c0_41 = arith.constant 0 : index
    %c192 = arith.constant 192 : index
    %118 = vector.load %arg14[%c0_40, %c0_41, %c192] : memref<1x8x384xbf16, #tpu.memory_space<vmem>>, vector<1x8x64xbf16>
    tpu.vector_store %arg14[%c0_40, %c0_41, %c192], %117 {strides = array<i32>} : memref<1x8x384xbf16, #tpu.memory_space<vmem>>, vector<1x8x64xbf16>,
    %119 = vector.extract_strided_slice %34 {offsets = [0, 0, 256], sizes = [1, 8, 64], strides = [1, 1, 1]} : vector<1x8x1152xbf16> to vector<1x8x64xbf16>
    %120 = vector.extract_strided_slice %34 {offsets = [0, 0, 640], sizes = [1, 8, 64], strides = [1, 1, 1]} : vector<1x8x1152xbf16> to vector<1x8x64xbf16>
    %121 = vector.extract_strided_slice %34 {offsets = [0, 0, 1024], sizes = [1, 8, 64], strides = [1, 1, 1]} : vector<1x8x1152xbf16> to vector<1x8x64xbf16>
    "tpu.trace_start"() <{level = 10 : i32, message = "bqd,bkd->bqk"}> : () -> ()
    %cst_42 = arith.constant dense<0.000000e+00> : vector<1x8x8xf32>
    %122 = tpu.matmul %119, %120, %cst_42 {dimension_numbers = #tpu.dot_dimension_numbers<[2], [2], [1], [1], [0, 0, 0, 1, 1, 1], [0], [0]>} : vector<1x8x64xbf16>, vector<1x8x64xbf16>, vector<1x8x8xf32> -> vector<1x8x8xf32>
    %cst_43 = arith.constant -1.000000e+30 : f32
    "tpu.trace_stop"() : () -> ()
    %123 = vector.broadcast %cst_43 : f32 to vector<1x8x8xf32>
    %124 = arith.select %38, %122, %123 : vector<1x8x8xi1>, vector<1x8x8xf32>
    %cst_44 = arith.constant dense<0xFF800000> : vector<1x8xf32>
    %125 = vector.multi_reduction <maximumf>, %124, %cst_44 [2] : vector<1x8x8xf32> to vector<1x8xf32>
    %126 = vector.shape_cast %125 : vector<1x8xf32> to vector<1x8x1xf32>
    %127 = vector.broadcast %126 : vector<1x8x1xf32> to vector<1x8x8xf32>
    %128 = arith.subf %124, %127 : vector<1x8x8xf32>
    %129 = math.exp %128 : vector<1x8x8xf32>
    %cst_45 = arith.constant dense<0.000000e+00> : vector<1x8xf32>
    %130 = vector.multi_reduction <add>, %129, %cst_45 [2] : vector<1x8x8xf32> to vector<1x8xf32>
    %131 = vector.shape_cast %130 : vector<1x8xf32> to vector<1x8x1xf32>
    %132 = tpu.reciprocal %131 {approx = true} : vector<1x8x1xf32> -> vector<1x8x1xf32>
    %133 = vector.broadcast %132 : vector<1x8x1xf32> to vector<1x8x8xf32>
    %134 = arith.mulf %129, %133 : vector<1x8x8xf32>
    %135 = arith.truncf %134 : vector<1x8x8xf32> to vector<1x8x8xbf16>
    "tpu.trace_start"() <{level = 10 : i32, message = "bqk,bkd->bqd"}> : () -> ()
    %cst_46 = arith.constant dense<0.000000e+00> : vector<1x8x64xf32>
    %136 = tpu.matmul %135, %121, %cst_46 {dimension_numbers = #tpu.dot_dimension_numbers<[2], [1], [1], [2], [0, 0, 0, 1, 1, 2], [0], [0]>} : vector<1x8x8xbf16>, vector<1x8x64xbf16>, vector<1x8x64xf32> -> vector<1x8x64xf32>
    "tpu.trace_stop"() : () -> ()
    %137 = arith.truncf %136 : vector<1x8x64xf32> to vector<1x8x64xbf16>
    %c0_47 = arith.constant 0 : index
    %c0_48 = arith.constant 0 : index
    %c256 = arith.constant 256 : index
    %138 = vector.load %arg14[%c0_47, %c0_48, %c256] : memref<1x8x384xbf16, #tpu.memory_space<vmem>>, vector<1x8x64xbf16>
    tpu.vector_store %arg14[%c0_47, %c0_48, %c256], %137 {strides = array<i32>} : memref<1x8x384xbf16, #tpu.memory_space<vmem>>, vector<1x8x64xbf16>,
    %139 = vector.extract_strided_slice %34 {offsets = [0, 0, 320], sizes = [1, 8, 64], strides = [1, 1, 1]} : vector<1x8x1152xbf16> to vector<1x8x64xbf16>
    %140 = vector.extract_strided_slice %34 {offsets = [0, 0, 704], sizes = [1, 8, 64], strides = [1, 1, 1]} : vector<1x8x1152xbf16> to vector<1x8x64xbf16>
    %141 = vector.extract_strided_slice %34 {offsets = [0, 0, 1088], sizes = [1, 8, 64], strides = [1, 1, 1]} : vector<1x8x1152xbf16> to vector<1x8x64xbf16>
    "tpu.trace_start"() <{level = 10 : i32, message = "bqd,bkd->bqk"}> : () -> ()
    %cst_49 = arith.constant dense<0.000000e+00> : vector<1x8x8xf32>
    %142 = tpu.matmul %139, %140, %cst_49 {dimension_numbers = #tpu.dot_dimension_numbers<[2], [2], [1], [1], [0, 0, 0, 1, 1, 1], [0], [0]>} : vector<1x8x64xbf16>, vector<1x8x64xbf16>, vector<1x8x8xf32> -> vector<1x8x8xf32>
    %cst_50 = arith.constant -1.000000e+30 : f32
    "tpu.trace_stop"() : () -> ()
    %143 = vector.broadcast %cst_50 : f32 to vector<1x8x8xf32>
    %144 = arith.select %38, %142, %143 : vector<1x8x8xi1>, vector<1x8x8xf32>
    %cst_51 = arith.constant dense<0xFF800000> : vector<1x8xf32>
    %145 = vector.multi_reduction <maximumf>, %144, %cst_51 [2] : vector<1x8x8xf32> to vector<1x8xf32>
    %146 = vector.shape_cast %145 : vector<1x8xf32> to vector<1x8x1xf32>
    %147 = vector.broadcast %146 : vector<1x8x1xf32> to vector<1x8x8xf32>
    %148 = arith.subf %144, %147 : vector<1x8x8xf32>
    %149 = math.exp %148 : vector<1x8x8xf32>
    %cst_52 = arith.constant dense<0.000000e+00> : vector<1x8xf32>
    %150 = vector.multi_reduction <add>, %149, %cst_52 [2] : vector<1x8x8xf32> to vector<1x8xf32>
    %151 = vector.shape_cast %150 : vector<1x8xf32> to vector<1x8x1xf32>
    %152 = tpu.reciprocal %151 {approx = true} : vector<1x8x1xf32> -> vector<1x8x1xf32>
    %153 = vector.broadcast %152 : vector<1x8x1xf32> to vector<1x8x8xf32>
    %154 = arith.mulf %149, %153 : vector<1x8x8xf32>
    %155 = arith.truncf %154 : vector<1x8x8xf32> to vector<1x8x8xbf16>
    "tpu.trace_start"() <{level = 10 : i32, message = "bqk,bkd->bqd"}> : () -> ()
    %cst_53 = arith.constant dense<0.000000e+00> : vector<1x8x64xf32>
    %156 = tpu.matmul %155, %141, %cst_53 {dimension_numbers = #tpu.dot_dimension_numbers<[2], [1], [1], [2], [0, 0, 0, 1, 1, 2], [0], [0]>} : vector<1x8x8xbf16>, vector<1x8x64xbf16>, vector<1x8x64xf32> -> vector<1x8x64xf32>
    "tpu.trace_stop"() : () -> ()
    %157 = arith.truncf %156 : vector<1x8x64xf32> to vector<1x8x64xbf16>
    %c0_54 = arith.constant 0 : index
    %c0_55 = arith.constant 0 : index
    %c320 = arith.constant 320 : index
    %158 = vector.load %arg14[%c0_54, %c0_55, %c320] : memref<1x8x384xbf16, #tpu.memory_space<vmem>>, vector<1x8x64xbf16>
    tpu.vector_store %arg14[%c0_54, %c0_55, %c320], %157 {strides = array<i32>} : memref<1x8x384xbf16, #tpu.memory_space<vmem>>, vector<1x8x64xbf16>,
    %c0_56 = arith.constant 0 : index
    %c0_57 = arith.constant 0 : index
    %c0_58 = arith.constant 0 : index
    %159 = vector.load %arg14[%c0_56, %c0_57, %c0_58] : memref<1x8x384xbf16, #tpu.memory_space<vmem>>, vector<1x8x384xbf16>
    %160 = vector.shape_cast %159 : vector<1x8x384xbf16> to vector<8x384xbf16>
    %c0_59 = arith.constant 0 : index
    %c0_60 = arith.constant 0 : index
    %161 = vector.load %arg5[%c0_59, %c0_60] : memref<384x384xbf16, #tpu.memory_space<vmem>>, vector<384x384xbf16>
    %cst_61 = arith.constant dense<0.000000e+00> : vector<8x384xf32>
    %162 = tpu.matmul %160, %161, %cst_61 {dimension_numbers = #tpu.dot_dimension_numbers<[1], [0], [0], [1], [0, 0, 1, 1], [], []>} : vector<8x384xbf16>, vector<384x384xbf16>, vector<8x384xf32> -> vector<8x384xf32>
    %c0_62 = arith.constant 0 : index
    %c0_63 = arith.constant 0 : index
    %163 = vector.load %arg6[%c0_62, %c0_63] : memref<1x384xf32, #tpu.memory_space<vmem>>, vector<1x384xf32>
    %164 = vector.shape_cast %163 : vector<1x384xf32> to vector<384xf32>
    %165 = vector.shape_cast %164 : vector<384xf32> to vector<1x384xf32>
    %166 = vector.broadcast %165 : vector<1x384xf32> to vector<8x384xf32>
    %167 = arith.addf %162, %166 : vector<8x384xf32>
    %168 = arith.addf %29, %167 : vector<8x384xf32>
    %c0_64 = arith.constant 0 : index
    %c0_65 = arith.constant 0 : index
    %169 = vector.load %arg7[%c0_64, %c0_65] : memref<1x384xf32, #tpu.memory_space<vmem>>, vector<1x384xf32>
    %170 = vector.shape_cast %169 : vector<1x384xf32> to vector<384xf32>
    %c0_66 = arith.constant 0 : index
    %c0_67 = arith.constant 0 : index
    %171 = vector.load %arg8[%c0_66, %c0_67] : memref<1x384xf32, #tpu.memory_space<vmem>>, vector<1x384xf32>
    %172 = vector.shape_cast %171 : vector<1x384xf32> to vector<384xf32>
    %cst_68 = arith.constant dense<0.000000e+00> : vector<8xf32>
    %173 = vector.multi_reduction <add>, %168, %cst_68 [1] : vector<8x384xf32> to vector<8xf32>
    %174 = vector.shape_cast %173 : vector<8xf32> to vector<8x1xf32>
    %cst_69 = arith.constant 3.840000e+02 : f32
    %175 = vector.broadcast %cst_69 : f32 to vector<8x1xf32>
    %176 = arith.divf %174, %175 : vector<8x1xf32>
    %177 = arith.mulf %168, %168 : vector<8x384xf32>
    %cst_70 = arith.constant dense<0.000000e+00> : vector<8xf32>
    %178 = vector.multi_reduction <add>, %177, %cst_70 [1] : vector<8x384xf32> to vector<8xf32>
    %179 = vector.shape_cast %178 : vector<8xf32> to vector<8x1xf32>
    %cst_71 = arith.constant 3.840000e+02 : f32
    %180 = vector.broadcast %cst_71 : f32 to vector<8x1xf32>
    %181 = arith.divf %179, %180 : vector<8x1xf32>
    %182 = arith.mulf %176, %176 : vector<8x1xf32>
    %183 = arith.subf %181, %182 : vector<8x1xf32>
    %184 = vector.broadcast %176 : vector<8x1xf32> to vector<8x384xf32>
    %185 = arith.subf %168, %184 : vector<8x384xf32>
    %cst_72 = arith.constant 9.99999974E-6 : f32
    %186 = vector.broadcast %cst_72 : f32 to vector<8x1xf32>
    %187 = arith.addf %183, %186 : vector<8x1xf32>
    %188 = math.rsqrt %187 : vector<8x1xf32>
    %189 = vector.broadcast %188 : vector<8x1xf32> to vector<8x384xf32>
    %190 = arith.mulf %185, %189 : vector<8x384xf32>
    %191 = vector.shape_cast %170 : vector<384xf32> to vector<1x384xf32>
    %192 = vector.broadcast %191 : vector<1x384xf32> to vector<8x384xf32>
    %193 = arith.mulf %190, %192 : vector<8x384xf32>
    %194 = vector.shape_cast %172 : vector<384xf32> to vector<1x384xf32>
    %195 = vector.broadcast %194 : vector<1x384xf32> to vector<8x384xf32>
    %196 = arith.addf %193, %195 : vector<8x384xf32>
    %197 = arith.truncf %196 : vector<8x384xf32> to vector<8x384xbf16>
    %c0_73 = arith.constant 0 : index
    %c0_74 = arith.constant 0 : index
    %198 = vector.load %arg9[%c0_73, %c0_74] : memref<384x1536xbf16, #tpu.memory_space<vmem>>, vector<384x1536xbf16>
    %cst_75 = arith.constant dense<0.000000e+00> : vector<8x1536xf32>
    %199 = tpu.matmul %197, %198, %cst_75 {dimension_numbers = #tpu.dot_dimension_numbers<[1], [0], [0], [1], [0, 0, 1, 1], [], []>} : vector<8x384xbf16>, vector<384x1536xbf16>, vector<8x1536xf32> -> vector<8x1536xf32>
    %c0_76 = arith.constant 0 : index
    %c0_77 = arith.constant 0 : index
    %200 = vector.load %arg10[%c0_76, %c0_77] : memref<1x1536xf32, #tpu.memory_space<vmem>>, vector<1x1536xf32>
    %201 = vector.shape_cast %200 : vector<1x1536xf32> to vector<1536xf32>
    %202 = vector.shape_cast %201 : vector<1536xf32> to vector<1x1536xf32>
    %203 = vector.broadcast %202 : vector<1x1536xf32> to vector<8x1536xf32>
    %204 = arith.addf %199, %203 : vector<8x1536xf32>
    %cst_78 = arith.constant 0.000000e+00 : f32
    %205 = vector.broadcast %cst_78 : f32 to vector<8x1536xf32>
    %206 = arith.maximumf %204, %205 : vector<8x1536xf32>
    %207 = arith.truncf %206 : vector<8x1536xf32> to vector<8x1536xbf16>
    %c0_79 = arith.constant 0 : index
    %c0_80 = arith.constant 0 : index
    %208 = vector.load %arg11[%c0_79, %c0_80] : memref<1536x384xbf16, #tpu.memory_space<vmem>>, vector<1536x384xbf16>
    %cst_81 = arith.constant dense<0.000000e+00> : vector<8x384xf32>
    %209 = tpu.matmul %207, %208, %cst_81 {dimension_numbers = #tpu.dot_dimension_numbers<[1], [0], [0], [1], [0, 0, 1, 1], [], []>} : vector<8x1536xbf16>, vector<1536x384xbf16>, vector<8x384xf32> -> vector<8x384xf32>
    %c0_82 = arith.constant 0 : index
    %c0_83 = arith.constant 0 : index
    %210 = vector.load %arg12[%c0_82, %c0_83] : memref<1x384xf32, #tpu.memory_space<vmem>>, vector<1x384xf32>
    %211 = vector.shape_cast %210 : vector<1x384xf32> to vector<384xf32>
    %212 = vector.shape_cast %211 : vector<384xf32> to vector<1x384xf32>
    %213 = vector.broadcast %212 : vector<1x384xf32> to vector<8x384xf32>
    %214 = arith.addf %209, %213 : vector<8x384xf32>
    %215 = arith.addf %196, %214 : vector<8x384xf32>
    %216 = vector.shape_cast %215 : vector<8x384xf32> to vector<1x8x384xf32>
    %c0_84 = arith.constant 0 : index
    %c0_85 = arith.constant 0 : index
    %c0_86 = arith.constant 0 : index
    %217 = vector.load %arg13[%c0_84, %c0_85, %c0_86] : memref<1x8x384xf32, #tpu.memory_space<vmem>>, vector<1x8x384xf32>
    tpu.vector_store %arg13[%c0_84, %c0_85, %c0_86], %216 {strides = array<i32>} : memref<1x8x384xf32, #tpu.memory_space<vmem>>, vector<1x8x384xf32>,
    return
  }
  func.func @transform_0(%arg0: i32) -> (i32, i32, i32) {
    %c0_i32 = arith.constant 0 : i32
    %c0_i32_0 = arith.constant 0 : i32
    %c0_i32_1 = arith.constant 0 : i32
    return %arg0, %c0_i32, %c0_i32_0 : i32, i32, i32
  }
  func.func @transform_1(%arg0: i32) -> (i32, i32) {
    %c0_i32 = arith.constant 0 : i32
    %c0_i32_0 = arith.constant 0 : i32
    %c0_i32_1 = arith.constant 0 : i32
    return %c0_i32, %c0_i32_0 : i32, i32
  }
  func.func @transform_2(%arg0: i32) -> (i32, i32) {
    %c0_i32 = arith.constant 0 : i32
    %c0_i32_0 = arith.constant 0 : i32
    %c0_i32_1 = arith.constant 0 : i32
    return %c0_i32, %c0_i32_0 : i32, i32
  }
  func.func @transform_3(%arg0: i32) -> (i32, i32) {
    %c0_i32 = arith.constant 0 : i32
    %c0_i32_0 = arith.constant 0 : i32
    %c0_i32_1 = arith.constant 0 : i32
    return %c0_i32, %c0_i32_0 : i32, i32
  }
  func.func @transform_4(%arg0: i32) -> (i32, i32) {
    %c0_i32 = arith.constant 0 : i32
    %c0_i32_0 = arith.constant 0 : i32
    %c0_i32_1 = arith.constant 0 : i32
    return %c0_i32, %c0_i32_0 : i32, i32
  }
  func.func @transform_5(%arg0: i32) -> (i32, i32) {
    %c0_i32 = arith.constant 0 : i32
    %c0_i32_0 = arith.constant 0 : i32
    %c0_i32_1 = arith.constant 0 : i32
    return %c0_i32, %c0_i32_0 : i32, i32
  }
  func.func @transform_6(%arg0: i32) -> (i32, i32) {
    %c0_i32 = arith.constant 0 : i32
    %c0_i32_0 = arith.constant 0 : i32
    %c0_i32_1 = arith.constant 0 : i32
    return %c0_i32, %c0_i32_0 : i32, i32
  }
  func.func @transform_7(%arg0: i32) -> (i32, i32) {
    %c0_i32 = arith.constant 0 : i32
    %c0_i32_0 = arith.constant 0 : i32
    %c0_i32_1 = arith.constant 0 : i32
    return %c0_i32, %c0_i32_0 : i32, i32
  }
  func.func @transform_8(%arg0: i32) -> (i32, i32) {
    %c0_i32 = arith.constant 0 : i32
    %c0_i32_0 = arith.constant 0 : i32
    %c0_i32_1 = arith.constant 0 : i32
    return %c0_i32, %c0_i32_0 : i32, i32
  }
  func.func @transform_9(%arg0: i32) -> (i32, i32) {
    %c0_i32 = arith.constant 0 : i32
    %c0_i32_0 = arith.constant 0 : i32
    %c0_i32_1 = arith.constant 0 : i32
    return %c0_i32, %c0_i32_0 : i32, i32
  }
  func.func @transform_10(%arg0: i32) -> (i32, i32) {
    %c0_i32 = arith.constant 0 : i32
    %c0_i32_0 = arith.constant 0 : i32
    %c0_i32_1 = arith.constant 0 : i32
    return %c0_i32, %c0_i32_0 : i32, i32
  }
  func.func @transform_11(%arg0: i32) -> (i32, i32) {
    %c0_i32 = arith.constant 0 : i32
    %c0_i32_0 = arith.constant 0 : i32
    %c0_i32_1 = arith.constant 0 : i32
    return %c0_i32, %c0_i32_0 : i32, i32
  }
  func.func @transform_12(%arg0: i32) -> (i32, i32, i32) {
    %c0_i32 = arith.constant 0 : i32
    %c0_i32_0 = arith.constant 0 : i32
    %c0_i32_1 = arith.constant 0 : i32
    return %arg0, %c0_i32, %c0_i32_0 : i32, i32, i32
  }
}

</mosaic_0001>

<llo_original>
// kernel: tpu_custom_call.1
$region0: #{tpu_custom_call.1}
  #allocation0 [shape = 'u32[]', space=smem, size = 0x4, offset = 0x4, fixed_abs, tag = 'smem constant byte address 0x4 - core index']
  #allocation1 [shape = 'u32[144,128]{1,0:T(1,128)}', space=vmem, size = 0x12000, scoped, tag = 'internal scratch']
  #allocation2 [shape = 'bf16[1,8,384]{2,1,0:T(8,128)(2,1)}', space=vmem, size = 0x1800, scoped, tag = 'scratch operand']
  %s0 = inlined_call_operand.hbm [shape: f32[2,8,384], index: 0, kind: input, shape index: {}]
  %s1 = inlined_call_operand.hbm [shape: f32[1,384], index: 1, kind: input, shape index: {}]
  %s2 = inlined_call_operand.hbm [shape: f32[1,384], index: 2, kind: input, shape index: {}]
  %s3 = inlined_call_operand.hbm [shape: bf16[384,1152], index: 3, kind: input, shape index: {}]
  %s4 = inlined_call_operand.hbm [shape: bf16[384,384], index: 4, kind: input, shape index: {}]
  %s5 = inlined_call_operand.hbm [shape: f32[1,384], index: 5, kind: input, shape index: {}]
  %s6 = inlined_call_operand.hbm [shape: f32[1,384], index: 6, kind: input, shape index: {}]
  %s7 = inlined_call_operand.hbm [shape: f32[1,384], index: 7, kind: input, shape index: {}]
  %s8 = inlined_call_operand.hbm [shape: bf16[384,1536], index: 8, kind: input, shape index: {}]
  %s9 = inlined_call_operand.hbm [shape: f32[1,1536], index: 9, kind: input, shape index: {}]
  %s10 = inlined_call_operand.hbm [shape: bf16[1536,384], index: 10, kind: input, shape index: {}]
  %s11 = inlined_call_operand.hbm [shape: f32[1,384], index: 11, kind: input, shape index: {}]
  %s12 = inlined_call_operand.hbm [shape: f32[2,8,384], index: 12, kind: output, shape index: {}]
  %s13 = sld [smem:[#allocation0]]
  $region129: #{tpu_custom_call.1} parent=0
    _
  %s15 = ssub.s32 1, %s13
  %s16 = scalar_select 0, %s15, %s13
  $region1: #{tpu_custom_call.1} parent=0
    #allocation3 [shape = 'u8[24576]{0}', space=vmem, size = 0x6000, scoped, tag = 'input window, operand 0']
    #allocation4 [shape = 's32[2]{0}', space=sflag, size = 0x8, scoped, tag = 'scoped memory for tpu_custom_call.1']
    #allocation5 [shape = 's32[2]{0}', space=sflag, size = 0x8, scoped, tag = 'scoped memory for tpu_custom_call.1']
    #allocation6 [shape = 'u8[1536]{0}', space=vmem, size = 0x800, scoped, tag = 'input window, operand 1, single buffered']
    #allocation7 [shape = 's32[1]{0}', space=sflag, size = 0x4, scoped, tag = 'scoped memory for tpu_custom_call.1']
    #allocation8 [shape = 'u8[1536]{0}', space=vmem, size = 0x800, scoped, tag = 'input window, operand 2, single buffered']
    #allocation9 [shape = 'u8[884736]{0}', space=vmem, size = 0xd8000, scoped, tag = 'input window, operand 3, single buffered']
    #allocation10 [shape = 's32[1]{0}', space=sflag, size = 0x4, scoped, tag = 'scoped memory for tpu_custom_call.1']
    #allocation11 [shape = 'u8[294912]{0}', space=vmem, size = 0x48000, scoped, tag = 'input window, operand 4, single buffered']
    #allocation12 [shape = 'u8[1536]{0}', space=vmem, size = 0x800, scoped, tag = 'input window, operand 5, single buffered']
    #allocation13 [shape = 's32[1]{0}', space=sflag, size = 0x4, scoped, tag = 'scoped memory for tpu_custom_call.1']
    #allocation14 [shape = 'u8[1536]{0}', space=vmem, size = 0x800, scoped, tag = 'input window, operand 6, single buffered']
    #allocation15 [shape = 'u8[1536]{0}', space=vmem, size = 0x800, scoped, tag = 'input window, operand 7, single buffered']
    #allocation16 [shape = 's32[1]{0}', space=sflag, size = 0x4, scoped, tag = 'scoped memory for tpu_custom_call.1']
    #allocation17 [shape = 'u8[1179648]{0}', space=vmem, size = 0x120000, scoped, tag = 'input window, operand 8, single buffered']
    #allocation18 [shape = 'u8[6144]{0}', space=vmem, size = 0x1800, scoped, tag = 'input window, operand 9, single buffered']
    #allocation19 [shape = 's32[1]{0}', space=sflag, size = 0x4, scoped, tag = 'scoped memory for tpu_custom_call.1']
    #allocation20 [shape = 'u8[1179648]{0}', space=vmem, size = 0x120000, scoped, tag = 'input window, operand 10, single buffered']
    #allocation21 [shape = 'u8[1536]{0}', space=vmem, size = 0x800, scoped, tag = 'input window, operand 11, single buffered']
    #allocation22 [shape = 's32[1]{0}', space=sflag, size = 0x4, scoped, tag = 'scoped memory for tpu_custom_call.1']
    #allocation23 [shape = 'u8[24576]{0}', space=vmem, size = 0x6000, scoped, tag = 'output window, operand 0']
    %17 = vsyncpa [#allocation4], 0
    %s18 = scalar_lea.sflag [#allocation4], 1
    %19 = vsyncpa %s18, 0
    %20 = vsyncpa [#allocation7], 0
    %21 = vsyncpa [#allocation10], 0
    %22 = vsyncpa [#allocation13], 0
    %23 = vsyncpa [#allocation16], 0
    %24 = vsyncpa [#allocation19], 0
    %25 = vsyncpa [#allocation22], 0
    %26 = vsyncpa [#allocation5], 0
    %s27 = scalar_lea.sflag [#allocation5], 1
    %28 = vsyncpa %s27, 0
    loop: start=0, step=1, limit=4
    $region2: #{tpu_custom_call.1} parent=1 // loop_pre_header
      _
    $region3: #{tpu_custom_call.1} parent=1 // loop_header
      %s30 = sphi 0, %s34
      %p31 = scmp.ge.s32.totalorder %s30, 4
      %s40 = sphi 0, %s42
      %s43 = sphi 0, %s40
      %s44 = sphi 0, %s43
      %s60 = sphi 0, %s44
      %s64 = sphi 0, %s64
      %s66 = sphi 0, %s64
      %s67 = sphi 0, %s66
      %s81 = sphi 0, %s67
      %s85 = sphi 0, %s85
      %s87 = sphi 0, %s85
      %s88 = sphi 0, %s87
      %s102 = sphi 0, %s88
      %s106 = sphi 0, %s106
      %s108 = sphi 0, %s106
      %s109 = sphi 0, %s108
      %s123 = sphi 0, %s109
      %s127 = sphi 0, %s127
      %s129 = sphi 0, %s127
      %s130 = sphi 0, %s129
      %s144 = sphi 0, %s130
      %s148 = sphi 0, %s148
      %s150 = sphi 0, %s148
      %s151 = sphi 0, %s150
      %s165 = sphi 0, %s151
      %s169 = sphi 0, %s169
      %s171 = sphi 0, %s169
      %s172 = sphi 0, %s171
      %s186 = sphi 0, %s172
      %s190 = sphi 0, %s190
      %s192 = sphi 0, %s190
      %s193 = sphi 0, %s192
      %s207 = sphi 0, %s193
      %s211 = sphi 0, %s211
      %s213 = sphi 0, %s211
      %s214 = sphi 0, %s213
      %s228 = sphi 0, %s214
      %s232 = sphi 0, %s232
      %s234 = sphi 0, %s232
      %s235 = sphi 0, %s234
      %s249 = sphi 0, %s235
      %s253 = sphi 0, %s253
      %s255 = sphi 0, %s253
      %s256 = sphi 0, %s255
      %s270 = sphi 0, %s256
      %s274 = sphi 0, %s274
      %s276 = sphi 0, %s274
      %s277 = sphi 0, %s276
      %s291 = sphi 0, %s277
      %s297 = sphi 0, %s299
      %s300 = sphi 0, %s297
      %s301 = sphi 0, %s300
      %s317 = sphi 0, %s301
    $region4: #{tpu_custom_call.1} parent=1 // loop_header_branch
      %33 = sbr.rel (%p31) target = $region8
    $region5: #{tpu_custom_call.1} parent=1 // loop_body
      %s35 = ssub.s32 %s30, 1
      %s36 = ssub.s32 %s30, 2
      %s37 = sadd.s32 %s30, 1
      %s38 = ssub.s32 %s30, %s37
      %p39 = scmp.eq.s32.totalorder %s38, 0
      %s41 = sadd.s32 %s40, 1
      %s42 = scalar_select %p39, %s40, %s41
      %p45 = pneg %p39
      %p46 = scmp.eq.s32.totalorder %s30, 1
      %p47 = por %p45, %p46
      %p48 = scmp.ne.s32.totalorder %s40, %s43
      %p49 = scmp.eq.s32.totalorder %s30, 0
      %p50 = por %p48, %p49
      %p51 = scmp.ne.s32.totalorder %s40, %s43
      %p52 = scmp.eq.s32.totalorder %s35, 1
      %p53 = por %p51, %p52
      %p54 = scmp.ne.s32.totalorder %s43, %s44
      %p55 = scmp.eq.s32.totalorder %s35, 0
      %p56 = por %p54, %p55
      %p57 = scmp.ne.s32.totalorder %s43, %s44
      %p58 = scmp.eq.s32.totalorder %s36, 1
      %p59 = por %p57, %p58
      %p61 = scmp.ne.s32.totalorder %s44, %s60
      %p62 = scmp.eq.s32.totalorder %s36, 0
      %p63 = por %p61, %p62
      %s65 = sadd.s32 %s64, 1
      %p68 = scmp.eq.s32.totalorder %s30, 1
      %p69 = scmp.ne.s32.totalorder %s64, %s66
      %p70 = scmp.eq.s32.totalorder %s30, 0
      %p71 = por %p69, %p70
      %p72 = scmp.ne.s32.totalorder %s64, %s66
      %p73 = scmp.eq.s32.totalorder %s35, 1
      %p74 = por %p72, %p73
      %p75 = scmp.ne.s32.totalorder %s66, %s67
      %p76 = scmp.eq.s32.totalorder %s35, 0
      %p77 = por %p75, %p76
      %p78 = scmp.ne.s32.totalorder %s66, %s67
      %p79 = scmp.eq.s32.totalorder %s36, 1
      %p80 = por %p78, %p79
      %p82 = scmp.ne.s32.totalorder %s67, %s81
      %p83 = scmp.eq.s32.totalorder %s36, 0
      %p84 = por %p82, %p83
      %s86 = sadd.s32 %s85, 1
      %p89 = scmp.eq.s32.totalorder %s30, 1
      %p90 = scmp.ne.s32.totalorder %s85, %s87
      %p91 = scmp.eq.s32.totalorder %s30, 0
      %p92 = por %p90, %p91
      %p93 = scmp.ne.s32.totalorder %s85, %s87
      %p94 = scmp.eq.s32.totalorder %s35, 1
      %p95 = por %p93, %p94
      %p96 = scmp.ne.s32.totalorder %s87, %s88
      %p97 = scmp.eq.s32.totalorder %s35, 0
      %p98 = por %p96, %p97
      %p99 = scmp.ne.s32.totalorder %s87, %s88
      %p100 = scmp.eq.s32.totalorder %s36, 1
      %p101 = por %p99, %p100
      %p103 = scmp.ne.s32.totalorder %s88, %s102
      %p104 = scmp.eq.s32.totalorder %s36, 0
      %p105 = por %p103, %p104
      %s107 = sadd.s32 %s106, 1
      %p110 = scmp.eq.s32.totalorder %s30, 1
      %p111 = scmp.ne.s32.totalorder %s106, %s108
      %p112 = scmp.eq.s32.totalorder %s30, 0
      %p113 = por %p111, %p112
      %p114 = scmp.ne.s32.totalorder %s106, %s108
      %p115 = scmp.eq.s32.totalorder %s35, 1
      %p116 = por %p114, %p115
      %p117 = scmp.ne.s32.totalorder %s108, %s109
      %p118 = scmp.eq.s32.totalorder %s35, 0
      %p119 = por %p117, %p118
      %p120 = scmp.ne.s32.totalorder %s108, %s109
      %p121 = scmp.eq.s32.totalorder %s36, 1
      %p122 = por %p120, %p121
      %p124 = scmp.ne.s32.totalorder %s109, %s123
      %p125 = scmp.eq.s32.totalorder %s36, 0
      %p126 = por %p124, %p125
      %s128 = sadd.s32 %s127, 1
      %p131 = scmp.eq.s32.totalorder %s30, 1
      %p132 = scmp.ne.s32.totalorder %s127, %s129
      %p133 = scmp.eq.s32.totalorder %s30, 0
      %p134 = por %p132, %p133
      %p135 = scmp.ne.s32.totalorder %s127, %s129
      %p136 = scmp.eq.s32.totalorder %s35, 1
      %p137 = por %p135, %p136
      %p138 = scmp.ne.s32.totalorder %s129, %s130
      %p139 = scmp.eq.s32.totalorder %s35, 0
      %p140 = por %p138, %p139
      %p141 = scmp.ne.s32.totalorder %s129, %s130
      %p142 = scmp.eq.s32.totalorder %s36, 1
      %p143 = por %p141, %p142
      %p145 = scmp.ne.s32.totalorder %s130, %s144
      %p146 = scmp.eq.s32.totalorder %s36, 0
      %p147 = por %p145, %p146
      %s149 = sadd.s32 %s148, 1
      %p152 = scmp.eq.s32.totalorder %s30, 1
      %p153 = scmp.ne.s32.totalorder %s148, %s150
      %p154 = scmp.eq.s32.totalorder %s30, 0
      %p155 = por %p153, %p154
      %p156 = scmp.ne.s32.totalorder %s148, %s150
      %p157 = scmp.eq.s32.totalorder %s35, 1
      %p158 = por %p156, %p157
      %p159 = scmp.ne.s32.totalorder %s150, %s151
      %p160 = scmp.eq.s32.totalorder %s35, 0
      %p161 = por %p159, %p160
      %p162 = scmp.ne.s32.totalorder %s150, %s151
      %p163 = scmp.eq.s32.totalorder %s36, 1
      %p164 = por %p162, %p163
      %p166 = scmp.ne.s32.totalorder %s151, %s165
      %p167 = scmp.eq.s32.totalorder %s36, 0
      %p168 = por %p166, %p167
      %s170 = sadd.s32 %s169, 1
      %p173 = scmp.eq.s32.totalorder %s30, 1
      %p174 = scmp.ne.s32.totalorder %s169, %s171
      %p175 = scmp.eq.s32.totalorder %s30, 0
      %p176 = por %p174, %p175
      %p177 = scmp.ne.s32.totalorder %s169, %s171
      %p178 = scmp.eq.s32.totalorder %s35, 1
      %p179 = por %p177, %p178
      %p180 = scmp.ne.s32.totalorder %s171, %s172
      %p181 = scmp.eq.s32.totalorder %s35, 0
      %p182 = por %p180, %p181
      %p183 = scmp.ne.s32.totalorder %s171, %s172
      %p184 = scmp.eq.s32.totalorder %s36, 1
      %p185 = por %p183, %p184
      %p187 = scmp.ne.s32.totalorder %s172, %s186
      %p188 = scmp.eq.s32.totalorder %s36, 0
      %p189 = por %p187, %p188
      %s191 = sadd.s32 %s190, 1
      %p194 = scmp.eq.s32.totalorder %s30, 1
      %p195 = scmp.ne.s32.totalorder %s190, %s192
      %p196 = scmp.eq.s32.totalorder %s30, 0
      %p197 = por %p195, %p196
      %p198 = scmp.ne.s32.totalorder %s190, %s192
      %p199 = scmp.eq.s32.totalorder %s35, 1
      %p200 = por %p198, %p199
      %p201 = scmp.ne.s32.totalorder %s192, %s193
      %p202 = scmp.eq.s32.totalorder %s35, 0
      %p203 = por %p201, %p202
      %p204 = scmp.ne.s32.totalorder %s192, %s193
      %p205 = scmp.eq.s32.totalorder %s36, 1
      %p206 = por %p204, %p205
      %p208 = scmp.ne.s32.totalorder %s193, %s207
      %p209 = scmp.eq.s32.totalorder %s36, 0
      %p210 = por %p208, %p209
      %s212 = sadd.s32 %s211, 1
      %p215 = scmp.eq.s32.totalorder %s30, 1
      %p216 = scmp.ne.s32.totalorder %s211, %s213
      %p217 = scmp.eq.s32.totalorder %s30, 0
      %p218 = por %p216, %p217
      %p219 = scmp.ne.s32.totalorder %s211, %s213
      %p220 = scmp.eq.s32.totalorder %s35, 1
      %p221 = por %p219, %p220
      %p222 = scmp.ne.s32.totalorder %s213, %s214
      %p223 = scmp.eq.s32.totalorder %s35, 0
      %p224 = por %p222, %p223
      %p225 = scmp.ne.s32.totalorder %s213, %s214
      %p226 = scmp.eq.s32.totalorder %s36, 1
      %p227 = por %p225, %p226
      %p229 = scmp.ne.s32.totalorder %s214, %s228
      %p230 = scmp.eq.s32.totalorder %s36, 0
      %p231 = por %p229, %p230
      %s233 = sadd.s32 %s232, 1
      %p236 = scmp.eq.s32.totalorder %s30, 1
      %p237 = scmp.ne.s32.totalorder %s232, %s234
      %p238 = scmp.eq.s32.totalorder %s30, 0
      %p239 = por %p237, %p238
      %p240 = scmp.ne.s32.totalorder %s232, %s234
      %p241 = scmp.eq.s32.totalorder %s35, 1
      %p242 = por %p240, %p241
      %p243 = scmp.ne.s32.totalorder %s234, %s235
      %p244 = scmp.eq.s32.totalorder %s35, 0
      %p245 = por %p243, %p244
      %p246 = scmp.ne.s32.totalorder %s234, %s235
      %p247 = scmp.eq.s32.totalorder %s36, 1
      %p248 = por %p246, %p247
      %p250 = scmp.ne.s32.totalorder %s235, %s249
      %p251 = scmp.eq.s32.totalorder %s36, 0
      %p252 = por %p250, %p251
      %s254 = sadd.s32 %s253, 1
      %p257 = scmp.eq.s32.totalorder %s30, 1
      %p258 = scmp.ne.s32.totalorder %s253, %s255
      %p259 = scmp.eq.s32.totalorder %s30, 0
      %p260 = por %p258, %p259
      %p261 = scmp.ne.s32.totalorder %s253, %s255
      %p262 = scmp.eq.s32.totalorder %s35, 1
      %p263 = por %p261, %p262
      %p264 = scmp.ne.s32.totalorder %s255, %s256
      %p265 = scmp.eq.s32.totalorder %s35, 0
      %p266 = por %p264, %p265
      %p267 = scmp.ne.s32.totalorder %s255, %s256
      %p268 = scmp.eq.s32.totalorder %s36, 1
      %p269 = por %p267, %p268
      %p271 = scmp.ne.s32.totalorder %s256, %s270
      %p272 = scmp.eq.s32.totalorder %s36, 0
      %p273 = por %p271, %p272
      %s275 = sadd.s32 %s274, 1
      %p278 = scmp.eq.s32.totalorder %s30, 1
      %p279 = scmp.ne.s32.totalorder %s274, %s276
      %p280 = scmp.eq.s32.totalorder %s30, 0
      %p281 = por %p279, %p280
      %p282 = scmp.ne.s32.totalorder %s274, %s276
      %p283 = scmp.eq.s32.totalorder %s35, 1
      %p284 = por %p282, %p283
      %p285 = scmp.ne.s32.totalorder %s276, %s277
      %p286 = scmp.eq.s32.totalorder %s35, 0
      %p287 = por %p285, %p286
      %p288 = scmp.ne.s32.totalorder %s276, %s277
      %p289 = scmp.eq.s32.totalorder %s36, 1
      %p290 = por %p288, %p289
      %p292 = scmp.ne.s32.totalorder %s277, %s291
      %p293 = scmp.eq.s32.totalorder %s36, 0
      %p294 = por %p292, %p293
      %s295 = ssub.s32 %s30, %s37
      %p296 = scmp.eq.s32.totalorder %s295, 0
      %s298 = sadd.s32 %s297, 1
      %s299 = scalar_select %p296, %s297, %s298
      %p302 = pneg %p296
      %p303 = scmp.eq.s32.totalorder %s30, 1
      %p304 = por %p302, %p303
      %p305 = scmp.ne.s32.totalorder %s297, %s300
      %p306 = scmp.eq.s32.totalorder %s30, 0
      %p307 = por %p305, %p306
      %p308 = scmp.ne.s32.totalorder %s297, %s300
      %p309 = scmp.eq.s32.totalorder %s35, 1
      %p310 = por %p308, %p309
      %p311 = scmp.ne.s32.totalorder %s300, %s301
      %p312 = scmp.eq.s32.totalorder %s35, 0
      %p313 = por %p311, %p312
      %p314 = scmp.ne.s32.totalorder %s300, %s301
      %p315 = scmp.eq.s32.totalorder %s36, 1
      %p316 = por %p314, %p315
      %p318 = scmp.ne.s32.totalorder %s301, %s317
      %p319 = scmp.eq.s32.totalorder %s36, 0
      %p320 = por %p318, %p319
      %p321 = scmp.le.s32.totalorder 1, %s30
      %p322 = scmp.lt.s32.totalorder %s30, 3
      %p323 = pnand %p321, %p322
      %p324 = pneg %p323
      // Predicated region
      $region9: #{tpu_custom_call.1} parent=5 // pred_check
        _
      $region10: #{tpu_custom_call.1} parent=5 // pred_check_branch
        %326 = sbr.rel (%p323) target = $region12
      $region11: #{tpu_custom_call.1} parent=5 // pred_region
        %s327 = ssub.s32 %s30, 1
        // Predicated region
        $region13: #{tpu_custom_call.1} parent=11 // pred_check
          %p328 = pneg %p77
        $region14: #{tpu_custom_call.1} parent=11 // pred_check_branch
          %330 = sbr.rel (%p328) target = $region16
        $region15: #{tpu_custom_call.1} parent=11 // pred_region
          %s332 = ssub.s32 48, 48
          %333 = vsyncadd [#allocation7], %s332
          %s335 = sshll.u32 [#allocation6], 4
          %s336 = int_to_ptr.vmem [resolvable:$true] %s335
          %338 = dma.hbm_to_vmem [thread:$0]  %s1, 48, %s336, [#allocation7]
        $region16: #{tpu_custom_call.1} parent=11 // pred_fallthru
          _
        // Predicated region
        $region17: #{tpu_custom_call.1} parent=11 // pred_check
          %p339 = pneg %p98
        $region18: #{tpu_custom_call.1} parent=11 // pred_check_branch
          %341 = sbr.rel (%p339) target = $region20
        $region19: #{tpu_custom_call.1} parent=11 // pred_region
          %s343 = ssub.s32 48, 48
          %344 = vsyncadd [#allocation7], %s343
          %s346 = sshll.u32 [#allocation8], 4
          %s347 = int_to_ptr.vmem [resolvable:$true] %s346
          %349 = dma.hbm_to_vmem [thread:$0]  %s2, 48, %s347, [#allocation7]
        $region20: #{tpu_custom_call.1} parent=11 // pred_fallthru
          _
        // Predicated region
        $region21: #{tpu_custom_call.1} parent=11 // pred_check
          %p350 = pneg %p119
        $region22: #{tpu_custom_call.1} parent=11 // pred_check_branch
          %352 = sbr.rel (%p350) target = $region24
        $region23: #{tpu_custom_call.1} parent=11 // pred_region
          %s354 = ssub.s32 27648, 27648
          %355 = vsyncadd [#allocation10], %s354
          %s356 = sshll.u32 [#allocation9], 4
          %s357 = int_to_ptr.vmem [resolvable:$true] %s356
          %362 = dma.hbm_to_vmem [thread:$0]  %s3, 27648, %s357, [#allocation10], 576, 576, 36
        $region24: #{tpu_custom_call.1} parent=11 // pred_fallthru
          _
        // Predicated region
        $region25: #{tpu_custom_call.1} parent=11 // pred_check
          %p363 = pneg %p140
        $region26: #{tpu_custom_call.1} parent=11 // pred_check_branch
          %365 = sbr.rel (%p363) target = $region28
        $region27: #{tpu_custom_call.1} parent=11 // pred_region
          %s367 = ssub.s32 9216, 9216
          %368 = vsyncadd [#allocation10], %s367
          %s369 = sshll.u32 [#allocation11], 4
          %s370 = int_to_ptr.vmem [resolvable:$true] %s369
          %375 = dma.hbm_to_vmem [thread:$0]  %s4, 9216, %s370, [#allocation10], 192, 192, 12
        $region28: #{tpu_custom_call.1} parent=11 // pred_fallthru
          _
        // Predicated region
        $region29: #{tpu_custom_call.1} parent=11 // pred_check
          %p376 = pneg %p161
        $region30: #{tpu_custom_call.1} parent=11 // pred_check_branch
          %378 = sbr.rel (%p376) target = $region32
        $region31: #{tpu_custom_call.1} parent=11 // pred_region
          %s380 = ssub.s32 48, 48
          %381 = vsyncadd [#allocation13], %s380
          %s383 = sshll.u32 [#allocation12], 4
          %s384 = int_to_ptr.vmem [resolvable:$true] %s383
          %386 = dma.hbm_to_vmem [thread:$0]  %s5, 48, %s384, [#allocation13]
        $region32: #{tpu_custom_call.1} parent=11 // pred_fallthru
          _
        // Predicated region
        $region33: #{tpu_custom_call.1} parent=11 // pred_check
          %p387 = pneg %p182
        $region34: #{tpu_custom_call.1} parent=11 // pred_check_branch
          %389 = sbr.rel (%p387) target = $region36
        $region35: #{tpu_custom_call.1} parent=11 // pred_region
          %s391 = ssub.s32 48, 48
          %392 = vsyncadd [#allocation13], %s391
          %s394 = sshll.u32 [#allocation14], 4
          %s395 = int_to_ptr.vmem [resolvable:$true] %s394
          %397 = dma.hbm_to_vmem [thread:$0]  %s6, 48, %s395, [#allocation13]
        $region36: #{tpu_custom_call.1} parent=11 // pred_fallthru
          _
        // Predicated region
        $region37: #{tpu_custom_call.1} parent=11 // pred_check
          %p398 = pneg %p203
        $region38: #{tpu_custom_call.1} parent=11 // pred_check_branch
          %400 = sbr.rel (%p398) target = $region40
        $region39: #{tpu_custom_call.1} parent=11 // pred_region
          %s402 = ssub.s32 48, 48
          %403 = vsyncadd [#allocation16], %s402
          %s405 = sshll.u32 [#allocation15], 4
          %s406 = int_to_ptr.vmem [resolvable:$true] %s405
          %408 = dma.hbm_to_vmem [thread:$0]  %s7, 48, %s406, [#allocation16]
        $region40: #{tpu_custom_call.1} parent=11 // pred_fallthru
          _
        // Predicated region
        $region41: #{tpu_custom_call.1} parent=11 // pred_check
          %p409 = pneg %p224
        $region42: #{tpu_custom_call.1} parent=11 // pred_check_branch
          %411 = sbr.rel (%p409) target = $region44
        $region43: #{tpu_custom_call.1} parent=11 // pred_region
          %s413 = ssub.s32 36864, 36864
          %414 = vsyncadd [#allocation16], %s413
          %s415 = sshll.u32 [#allocation17], 4
          %s416 = int_to_ptr.vmem [resolvable:$true] %s415
          %421 = dma.hbm_to_vmem [thread:$0]  %s8, 36864, %s416, [#allocation16], 768, 768, 48
        $region44: #{tpu_custom_call.1} parent=11 // pred_fallthru
          _
        // Predicated region
        $region45: #{tpu_custom_call.1} parent=11 // pred_check
          %p422 = pneg %p245
        $region46: #{tpu_custom_call.1} parent=11 // pred_check_branch
          %424 = sbr.rel (%p422) target = $region48
        $region47: #{tpu_custom_call.1} parent=11 // pred_region
          %s426 = ssub.s32 192, 192
          %427 = vsyncadd [#allocation19], %s426
          %s429 = sshll.u32 [#allocation18], 4
          %s430 = int_to_ptr.vmem [resolvable:$true] %s429
          %432 = dma.hbm_to_vmem [thread:$0]  %s9, 192, %s430, [#allocation19]
        $region48: #{tpu_custom_call.1} parent=11 // pred_fallthru
          _
        // Predicated region
        $region49: #{tpu_custom_call.1} parent=11 // pred_check
          %p433 = pneg %p266
        $region50: #{tpu_custom_call.1} parent=11 // pred_check_branch
          %435 = sbr.rel (%p433) target = $region52
        $region51: #{tpu_custom_call.1} parent=11 // pred_region
          %s437 = ssub.s32 36864, 36864
          %438 = vsyncadd [#allocation19], %s437
          %s439 = sshll.u32 [#allocation20], 4
          %s440 = int_to_ptr.vmem [resolvable:$true] %s439
          %445 = dma.hbm_to_vmem [thread:$0]  %s10, 36864, %s440, [#allocation19], 192, 192, 12
        $region52: #{tpu_custom_call.1} parent=11 // pred_fallthru
          _
        // Predicated region
        $region53: #{tpu_custom_call.1} parent=11 // pred_check
          %p446 = pneg %p287
        $region54: #{tpu_custom_call.1} parent=11 // pred_check_branch
          %448 = sbr.rel (%p446) target = $region56
        $region55: #{tpu_custom_call.1} parent=11 // pred_region
          %s450 = ssub.s32 48, 48
          %451 = vsyncadd [#allocation22], %s450
          %s453 = sshll.u32 [#allocation21], 4
          %s454 = int_to_ptr.vmem [resolvable:$true] %s453
          %456 = dma.hbm_to_vmem [thread:$0]  %s11, 48, %s454, [#allocation22]
        $region56: #{tpu_custom_call.1} parent=11 // pred_fallthru
          _
      $region12: #{tpu_custom_call.1} parent=5 // pred_fallthru
        _
      %p457 = scmp.lt.s32.totalorder %s30, 2
      // Predicated region
      $region57: #{tpu_custom_call.1} parent=5 // pred_check
        %p458 = pneg %p457
      $region58: #{tpu_custom_call.1} parent=5 // pred_check_branch
        %460 = sbr.rel (%p458) target = $region60
      $region59: #{tpu_custom_call.1} parent=5 // pred_region
        // Predicated region
        $region61: #{tpu_custom_call.1} parent=59 // pred_check
          %p461 = pneg %p50
        $region62: #{tpu_custom_call.1} parent=59 // pred_check_branch
          %463 = sbr.rel (%p461) target = $region64
        $region63: #{tpu_custom_call.1} parent=59 // pred_region
          %s464 = sand.u32 %s40, 1
          %s465 = scalar_lea.sflag [#allocation4], %s464
          %s466 = sand.u32 %s40, 1
          %s467 = smul.addr %s466, 24
          %s468 = scalar_lea.vmem [#allocation3], %s467
          %s470 = ssub.s32 384, 384
          %471 = vsyncadd %s465, %s470
          %s472 = smul.addr %s30, 3
          %s473 = smul.addr %s472, 128
          %s474 = scalar_lea.hbm %s0, %s473
          %s476 = sshll.u32 %s468, 4
          %s477 = int_to_ptr.vmem [resolvable:$true] %s476
          %479 = dma.hbm_to_vmem [thread:$0]  %s474, 384, %s477, %s465
        $region64: #{tpu_custom_call.1} parent=59 // pred_fallthru
          _
      $region60: #{tpu_custom_call.1} parent=5 // pred_fallthru
        _
      %p480 = scmp.le.s32.totalorder 1, %s30
      %p481 = scmp.lt.s32.totalorder %s30, 3
      %p482 = pnand %p480, %p481
      %p483 = pneg %p482
      // Predicated region
      $region65: #{tpu_custom_call.1} parent=5 // pred_check
        _
      $region66: #{tpu_custom_call.1} parent=5 // pred_check_branch
        %485 = sbr.rel (%p482) target = $region68
      $region67: #{tpu_custom_call.1} parent=5 // pred_region
        %s486 = ssub.s32 %s30, 1
        %s487 = sand.u32 %s43, 1
        %s488 = scalar_lea.sflag [#allocation4], %s487
        %s489 = sand.u32 %s43, 1
        %s490 = smul.addr %s489, 24
        %s491 = scalar_lea.vmem [#allocation3], %s490
        // Predicated region
        $region69: #{tpu_custom_call.1} parent=67 // pred_check
          %p492 = pneg %p56
        $region70: #{tpu_custom_call.1} parent=67 // pred_check_branch
          %494 = sbr.rel (%p492) target = $region72
        $region71: #{tpu_custom_call.1} parent=67 // pred_region
          %495 = dma.done %s488, 384
        $region72: #{tpu_custom_call.1} parent=67 // pred_fallthru
          _
        // Predicated region
        $region73: #{tpu_custom_call.1} parent=67 // pred_check
          %p496 = pneg %p77
        $region74: #{tpu_custom_call.1} parent=67 // pred_check_branch
          %498 = sbr.rel (%p496) target = $region76
        $region75: #{tpu_custom_call.1} parent=67 // pred_region
          %499 = dma.done [#allocation7], 48
        $region76: #{tpu_custom_call.1} parent=67 // pred_fallthru
          _
        // Predicated region
        $region77: #{tpu_custom_call.1} parent=67 // pred_check
          %p500 = pneg %p98
        $region78: #{tpu_custom_call.1} parent=67 // pred_check_branch
          %502 = sbr.rel (%p500) target = $region80
        $region79: #{tpu_custom_call.1} parent=67 // pred_region
          %503 = dma.done [#allocation7], 48
        $region80: #{tpu_custom_call.1} parent=67 // pred_fallthru
          _
        // Predicated region
        $region81: #{tpu_custom_call.1} parent=67 // pred_check
          %p504 = pneg %p119
        $region82: #{tpu_custom_call.1} parent=67 // pred_check_branch
          %506 = sbr.rel (%p504) target = $region84
        $region83: #{tpu_custom_call.1} parent=67 // pred_region
          %507 = dma.done [#allocation10], 27648
        $region84: #{tpu_custom_call.1} parent=67 // pred_fallthru
          _
        // Predicated region
        $region85: #{tpu_custom_call.1} parent=67 // pred_check
          %p508 = pneg %p140
        $region86: #{tpu_custom_call.1} parent=67 // pred_check_branch
          %510 = sbr.rel (%p508) target = $region88
        $region87: #{tpu_custom_call.1} parent=67 // pred_region
          %511 = dma.done [#allocation10], 9216
        $region88: #{tpu_custom_call.1} parent=67 // pred_fallthru
          _
        // Predicated region
        $region89: #{tpu_custom_call.1} parent=67 // pred_check
          %p512 = pneg %p161
        $region90: #{tpu_custom_call.1} parent=67 // pred_check_branch
          %514 = sbr.rel (%p512) target = $region92
        $region91: #{tpu_custom_call.1} parent=67 // pred_region
          %515 = dma.done [#allocation13], 48
        $region92: #{tpu_custom_call.1} parent=67 // pred_fallthru
          _
        // Predicated region
        $region93: #{tpu_custom_call.1} parent=67 // pred_check
          %p516 = pneg %p182
        $region94: #{tpu_custom_call.1} parent=67 // pred_check_branch
          %518 = sbr.rel (%p516) target = $region96
        $region95: #{tpu_custom_call.1} parent=67 // pred_region
          %519 = dma.done [#allocation13], 48
        $region96: #{tpu_custom_call.1} parent=67 // pred_fallthru
          _
        // Predicated region
        $region97: #{tpu_custom_call.1} parent=67 // pred_check
          %p520 = pneg %p203
        $region98: #{tpu_custom_call.1} parent=67 // pred_check_branch
          %522 = sbr.rel (%p520) target = $region100
        $region99: #{tpu_custom_call.1} parent=67 // pred_region
          %523 = dma.done [#allocation16], 48
        $region100: #{tpu_custom_call.1} parent=67 // pred_fallthru
          _
        // Predicated region
        $region101: #{tpu_custom_call.1} parent=67 // pred_check
          %p524 = pneg %p224
        $region102: #{tpu_custom_call.1} parent=67 // pred_check_branch
          %526 = sbr.rel (%p524) target = $region104
        $region103: #{tpu_custom_call.1} parent=67 // pred_region
          %527 = dma.done [#allocation16], 36864
        $region104: #{tpu_custom_call.1} parent=67 // pred_fallthru
          _
        // Predicated region
        $region105: #{tpu_custom_call.1} parent=67 // pred_check
          %p528 = pneg %p245
        $region106: #{tpu_custom_call.1} parent=67 // pred_check_branch
          %530 = sbr.rel (%p528) target = $region108
        $region107: #{tpu_custom_call.1} parent=67 // pred_region
          %531 = dma.done [#allocation19], 192
        $region108: #{tpu_custom_call.1} parent=67 // pred_fallthru
          _
        // Predicated region
        $region109: #{tpu_custom_call.1} parent=67 // pred_check
          %p532 = pneg %p266
        $region110: #{tpu_custom_call.1} parent=67 // pred_check_branch
          %534 = sbr.rel (%p532) target = $region112
        $region111: #{tpu_custom_call.1} parent=67 // pred_region
          %535 = dma.done [#allocation19], 36864
        $region112: #{tpu_custom_call.1} parent=67 // pred_fallthru
          _
        // Predicated region
        $region113: #{tpu_custom_call.1} parent=67 // pred_check
          %p536 = pneg %p287
        $region114: #{tpu_custom_call.1} parent=67 // pred_check_branch
          %538 = sbr.rel (%p536) target = $region116
        $region115: #{tpu_custom_call.1} parent=67 // pred_region
          %539 = dma.done [#allocation22], 48
        $region116: #{tpu_custom_call.1} parent=67 // pred_fallthru
          _
        %s540 = sand.u32 %s43, 1
        %s541 = scalar_lea.sflag [#allocation4], %s540
        %s542 = sand.u32 %s43, 1
        %s543 = smul.addr %s542, 24
        %s544 = scalar_lea.vmem [#allocation3], %s543
        %p545 = pneg %p56
        %p546 = pneg %p53
        %p547 = pneg %p77
        %p548 = pneg %p74
        %p549 = pneg %p98
        %p550 = pneg %p95
        %p551 = pneg %p119
        %p552 = pneg %p116
        %p553 = pneg %p140
        %p554 = pneg %p137
        %p555 = pneg %p161
        %p556 = pneg %p158
        %p557 = pneg %p182
        %p558 = pneg %p179
        %p559 = pneg %p203
        %p560 = pneg %p200
        %p561 = pneg %p224
        %p562 = pneg %p221
        %p563 = pneg %p245
        %p564 = pneg %p242
        %p565 = pneg %p266
        %p566 = pneg %p263
        %p567 = pneg %p287
        %p568 = pneg %p284
        %p569 = pneg %p313
        %p570 = pneg %p310
        %s571 = sand.u32 %s300, 1
        %s572 = scalar_lea.sflag [#allocation5], %s571
        %s573 = sand.u32 %s300, 1
        %s574 = smul.addr %s573, 24
        %s575 = scalar_lea.vmem [#allocation23], %s574
        %v577 = vld [vmem:[%s491] sm:$0xff]
        %v578 = vld [vmem:[%s491 + $0x8] sm:$0xff]
        %v579 = vld [vmem:[%s491 + $0x10] sm:$0xff]
        %v580 = vld [vmem:[#allocation6] sm:$0x7]
        %v581 = vld [vmem:[#allocation8] sm:$0x7]
        %v582 = vadd.f32 %v577, %v578
        %v583 = vadd.f32 %v582, %v579
        %584 = vadd.xlane.f32.xlu0 %v583
        %v585 = vpop.xlane.xlu0 %584
        %v586 = vrcp.pop 384.0
        %v587 = vmul.f32 %v585, %v586
        %v588 = vmul.f32 %v577, %v577
        %v589 = vmul.f32 %v578, %v578
        %v590 = vmul.f32 %v579, %v579
        %v591 = vadd.f32 %v588, %v589
        %v592 = vadd.f32 %v591, %v590
        %593 = vadd.xlane.f32.xlu0 %v592
        %v594 = vpop.xlane.xlu0 %593
        %v595 = vmul.f32 %v594, %v586
        %v596 = vmul.f32 %v587, %v587
        %v597 = vsub.f32 %v595, %v596
        %v598 = vsub.f32 %v577, %v587
        %v599 = vsub.f32 %v578, %v587
        %v600 = vsub.f32 %v579, %v587
        %v601 = vadd.f32 %v597, 1e-05
        %v602 = vrsqrt.pop %v601
        %v603 = vmul.f32 %v598, %v602
        %v604 = vmul.f32 %v599, %v602
        %v605 = vmul.f32 %v600, %v602
        %v607 = vlaneseq
        %v608 = vshrl.u32 %v607, 7
        %v609 = vsub.s32 0, %v608
        %v610 = vrot.slane %v580, %v609
        %v611 = vlaneseq
        %v612 = vshrl.u32 %v611, 7
        %v613 = vsub.s32 1, %v612
        %v614 = vrot.slane %v580, %v613
        %v615 = vlaneseq
        %v616 = vshrl.u32 %v615, 7
        %v617 = vsub.s32 2, %v616
        %v618 = vrot.slane %v580, %v617
        %v622 = vmul.f32 %v603, %v610
        %v623 = vmul.f32 %v604, %v614
        %v624 = vmul.f32 %v605, %v618
        %v626 = vlaneseq
        %v627 = vshrl.u32 %v626, 7
        %v628 = vsub.s32 0, %v627
        %v629 = vrot.slane %v581, %v628
        %v630 = vlaneseq
        %v631 = vshrl.u32 %v630, 7
        %v632 = vsub.s32 1, %v631
        %v633 = vrot.slane %v581, %v632
        %v634 = vlaneseq
        %v635 = vshrl.u32 %v634, 7
        %v636 = vsub.s32 2, %v635
        %v637 = vrot.slane %v581, %v636
        %v641 = vadd.f32 %v622, %v629
        %v642 = vadd.f32 %v623, %v633
        %v643 = vadd.f32 %v624, %v637
        %v644 = vpack.c.bf16 %v641, %v641
        %v645 = vpack.c.bf16 %v642, %v642
        %v646 = vpack.c.bf16 %v643, %v643
        %v647 = vld [vmem:[#allocation9] sm:$0xff]
        %v648 = vld [vmem:[#allocation9 + $0x8] sm:$0xff]
        %v649 = vld [vmem:[#allocation9 + $0x10] sm:$0xff]
        %v650 = vld [vmem:[#allocation9 + $0x18] sm:$0xff]
        %v651 = vld [vmem:[#allocation9 + $0x20] sm:$0xf]
        %v652 = vld [vmem:[#allocation9 + $0x24] sm:$0xff]
        %v653 = vld [vmem:[#allocation9 + $0x2c] sm:$0xff]
        %v654 = vld [vmem:[#allocation9 + $0x34] sm:$0xff]
        %v655 = vld [vmem:[#allocation9 + $0x3c] sm:$0xff]
        %v656 = vld [vmem:[#allocation9 + $0x44] sm:$0xf]
        %v657 = vld [vmem:[#allocation9 + $0x48] sm:$0xff]
        %v658 = vld [vmem:[#allocation9 + $0x50] sm:$0xff]
        %v659 = vld [vmem:[#allocation9 + $0x58] sm:$0xff]
        %v660 = vld [vmem:[#allocation9 + $0x60] sm:$0xff]
        %v661 = vld [vmem:[#allocation9 + $0x68] sm:$0xf]
        %v662 = vld [vmem:[#allocation9 + $0x6c] sm:$0xff]
        %v663 = vld [vmem:[#allocation9 + $0x74] sm:$0xff]
        %v664 = vld [vmem:[#allocation9 + $0x7c] sm:$0xff]
        %v665 = vld [vmem:[#allocation9 + $0x84] sm:$0xff]
        %v666 = vld [vmem:[#allocation9 + $0x8c] sm:$0xf]
        %v667 = vld [vmem:[#allocation9 + $0x90] sm:$0xff]
        %v668 = vld [vmem:[#allocation9 + $0x98] sm:$0xff]
        %v669 = vld [vmem:[#allocation9 + $0xa0] sm:$0xff]
        %v670 = vld [vmem:[#allocation9 + $0xa8] sm:$0xff]
        %v671 = vld [vmem:[#allocation9 + $0xb0] sm:$0xf]
        %v672 = vld [vmem:[#allocation9 + $0xb4] sm:$0xff]
        %v673 = vld [vmem:[#allocation9 + $0xbc] sm:$0xff]
        %v674 = vld [vmem:[#allocation9 + $0xc4] sm:$0xff]
        %v675 = vld [vmem:[#allocation9 + $0xcc] sm:$0xff]
        %v676 = vld [vmem:[#allocation9 + $0xd4] sm:$0xf]
        %v677 = vld [vmem:[#allocation9 + $0xd8] sm:$0xff]
        %v678 = vld [vmem:[#allocation9 + $0xe0] sm:$0xff]
        %v679 = vld [vmem:[#allocation9 + $0xe8] sm:$0xff]
        %v680 = vld [vmem:[#allocation9 + $0xf0] sm:$0xff]
        %v681 = vld [vmem:[#allocation9 + $0xf8] sm:$0xf]
        %v682 = vld [vmem:[#allocation9 + $0xfc] sm:$0xff]
        %v683 = vld [vmem:[#allocation9 + $0x104] sm:$0xff]
        %v684 = vld [vmem:[#allocation9 + $0x10c] sm:$0xff]
        %v685 = vld [vmem:[#allocation9 + $0x114] sm:$0xff]
        %v686 = vld [vmem:[#allocation9 + $0x11c] sm:$0xf]
        %v687 = vld [vmem:[#allocation9 + $0x120] sm:$0xff]
        %v688 = vld [vmem:[#allocation9 + $0x128] sm:$0xff]
        %v689 = vld [vmem:[#allocation9 + $0x130] sm:$0xff]
        %v690 = vld [vmem:[#allocation9 + $0x138] sm:$0xff]
        %v691 = vld [vmem:[#allocation9 + $0x140] sm:$0xf]
        %v692 = vld [vmem:[#allocation9 + $0x144] sm:$0xff]
        %v693 = vld [vmem:[#allocation9 + $0x14c] sm:$0xff]
        %v694 = vld [vmem:[#allocation9 + $0x154] sm:$0xff]
        %v695 = vld [vmem:[#allocation9 + $0x15c] sm:$0xff]
        %v696 = vld [vmem:[#allocation9 + $0x164] sm:$0xf]
        %v697 = vld [vmem:[#allocation9 + $0x168] sm:$0xff]
        %v698 = vld [vmem:[#allocation9 + $0x170] sm:$0xff]
        %v699 = vld [vmem:[#allocation9 + $0x178] sm:$0xff]
        %v700 = vld [vmem:[#allocation9 + $0x180] sm:$0xff]
        %v701 = vld [vmem:[#allocation9 + $0x188] sm:$0xf]
        %v702 = vld [vmem:[#allocation9 + $0x18c] sm:$0xff]
        %v703 = vld [vmem:[#allocation9 + $0x194] sm:$0xff]
        %v704 = vld [vmem:[#allocation9 + $0x19c] sm:$0xff]
        %v705 = vld [vmem:[#allocation9 + $0x1a4] sm:$0xff]
        %v706 = vld [vmem:[#allocation9 + $0x1ac] sm:$0xf]
        %v707 = vld [vmem:[#allocation9 + $0x1b0] sm:$0xff]
        %v708 = vld [vmem:[#allocation9 + $0x1b8] sm:$0xff]
        %v709 = vld [vmem:[#allocation9 + $0x1c0] sm:$0xff]
        %v710 = vld [vmem:[#allocation9 + $0x1c8] sm:$0xff]
        %v711 = vld [vmem:[#allocation9 + $0x1d0] sm:$0xf]
        %v712 = vld [vmem:[#allocation9 + $0x1d4] sm:$0xff]
        %v713 = vld [vmem:[#allocation9 + $0x1dc] sm:$0xff]
        %v714 = vld [vmem:[#allocation9 + $0x1e4] sm:$0xff]
        %v715 = vld [vmem:[#allocation9 + $0x1ec] sm:$0xff]
        %v716 = vld [vmem:[#allocation9 + $0x1f4] sm:$0xf]
        %v717 = vld [vmem:[#allocation9 + $0x1f8] sm:$0xff]
        %v718 = vld [vmem:[#allocation9 + $0x200] sm:$0xff]
        %v719 = vld [vmem:[#allocation9 + $0x208] sm:$0xff]
        %v720 = vld [vmem:[#allocation9 + $0x210] sm:$0xff]
        %v721 = vld [vmem:[#allocation9 + $0x218] sm:$0xf]
        %v722 = vld [vmem:[#allocation9 + $0x21c] sm:$0xff]
        %v723 = vld [vmem:[#allocation9 + $0x224] sm:$0xff]
        %v724 = vld [vmem:[#allocation9 + $0x22c] sm:$0xff]
        %v725 = vld [vmem:[#allocation9 + $0x234] sm:$0xff]
        %v726 = vld [vmem:[#allocation9 + $0x23c] sm:$0xf]
        %v727 = vld [vmem:[#allocation9 + $0x240] sm:$0xff]
        %v728 = vld [vmem:[#allocation9 + $0x248] sm:$0xff]
        %v729 = vld [vmem:[#allocation9 + $0x250] sm:$0xff]
        %v730 = vld [vmem:[#allocation9 + $0x258] sm:$0xff]
        %v731 = vld [vmem:[#allocation9 + $0x260] sm:$0xf]
        %v732 = vld [vmem:[#allocation9 + $0x264] sm:$0xff]
        %v733 = vld [vmem:[#allocation9 + $0x26c] sm:$0xff]
        %v734 = vld [vmem:[#allocation9 + $0x274] sm:$0xff]
        %v735 = vld [vmem:[#allocation9 + $0x27c] sm:$0xff]
        %v736 = vld [vmem:[#allocation9 + $0x284] sm:$0xf]
        %v737 = vld [vmem:[#allocation9 + $0x288] sm:$0xff]
        %v738 = vld [vmem:[#allocation9 + $0x290] sm:$0xff]
        %v739 = vld [vmem:[#allocation9 + $0x298] sm:$0xff]
        %v740 = vld [vmem:[#allocation9 + $0x2a0] sm:$0xff]
        %v741 = vld [vmem:[#allocation9 + $0x2a8] sm:$0xf]
        %v742 = vld [vmem:[#allocation9 + $0x2ac] sm:$0xff]
        %v743 = vld [vmem:[#allocation9 + $0x2b4] sm:$0xff]
        %v744 = vld [vmem:[#allocation9 + $0x2bc] sm:$0xff]
        %v745 = vld [vmem:[#allocation9 + $0x2c4] sm:$0xff]
        %v746 = vld [vmem:[#allocation9 + $0x2cc] sm:$0xf]
        %v747 = vld [vmem:[#allocation9 + $0x2d0] sm:$0xff]
        %v748 = vld [vmem:[#allocation9 + $0x2d8] sm:$0xff]
        %v749 = vld [vmem:[#allocation9 + $0x2e0] sm:$0xff]
        %v750 = vld [vmem:[#allocation9 + $0x2e8] sm:$0xff]
        %v751 = vld [vmem:[#allocation9 + $0x2f0] sm:$0xf]
        %v752 = vld [vmem:[#allocation9 + $0x2f4] sm:$0xff]
        %v753 = vld [vmem:[#allocation9 + $0x2fc] sm:$0xff]
        %v754 = vld [vmem:[#allocation9 + $0x304] sm:$0xff]
        %v755 = vld [vmem:[#allocation9 + $0x30c] sm:$0xff]
        %v756 = vld [vmem:[#allocation9 + $0x314] sm:$0xf]
        %v757 = vld [vmem:[#allocation9 + $0x318] sm:$0xff]
        %v758 = vld [vmem:[#allocation9 + $0x320] sm:$0xff]
        %v759 = vld [vmem:[#allocation9 + $0x328] sm:$0xff]
        %v760 = vld [vmem:[#allocation9 + $0x330] sm:$0xff]
        %v761 = vld [vmem:[#allocation9 + $0x338] sm:$0xf]
        %v762 = vld [vmem:[#allocation9 + $0x33c] sm:$0xff]
        %v763 = vld [vmem:[#allocation9 + $0x344] sm:$0xff]
        %v764 = vld [vmem:[#allocation9 + $0x34c] sm:$0xff]
        %v765 = vld [vmem:[#allocation9 + $0x354] sm:$0xff]
        %v766 = vld [vmem:[#allocation9 + $0x35c] sm:$0xf]
        %v767 = vld [vmem:[#allocation9 + $0x360] sm:$0xff]
        %v768 = vld [vmem:[#allocation9 + $0x368] sm:$0xff]
        %v769 = vld [vmem:[#allocation9 + $0x370] sm:$0xff]
        %v770 = vld [vmem:[#allocation9 + $0x378] sm:$0xff]
        %v771 = vld [vmem:[#allocation9 + $0x380] sm:$0xf]
        %v772 = vld [vmem:[#allocation9 + $0x384] sm:$0xff]
        %v773 = vld [vmem:[#allocation9 + $0x38c] sm:$0xff]
        %v774 = vld [vmem:[#allocation9 + $0x394] sm:$0xff]
        %v775 = vld [vmem:[#allocation9 + $0x39c] sm:$0xff]
        %v776 = vld [vmem:[#allocation9 + $0x3a4] sm:$0xf]
        %v777 = vld [vmem:[#allocation9 + $0x3a8] sm:$0xff]
        %v778 = vld [vmem:[#allocation9 + $0x3b0] sm:$0xff]
        %v779 = vld [vmem:[#allocation9 + $0x3b8] sm:$0xff]
        %v780 = vld [vmem:[#allocation9 + $0x3c0] sm:$0xff]
        %v781 = vld [vmem:[#allocation9 + $0x3c8] sm:$0xf]
        %v782 = vld [vmem:[#allocation9 + $0x3cc] sm:$0xff]
        %v783 = vld [vmem:[#allocation9 + $0x3d4] sm:$0xff]
        %v784 = vld [vmem:[#allocation9 + $0x3dc] sm:$0xff]
        %v785 = vld [vmem:[#allocation9 + $0x3e4] sm:$0xff]
        %v786 = vld [vmem:[#allocation9 + $0x3ec] sm:$0xf]
        %v787 = vld [vmem:[#allocation9 + $0x3f0] sm:$0xff]
        %v788 = vld [vmem:[#allocation9 + $0x3f8] sm:$0xff]
        %v789 = vld [vmem:[#allocation9 + $0x400] sm:$0xff]
        %v790 = vld [vmem:[#allocation9 + $0x408] sm:$0xff]
        %v791 = vld [vmem:[#allocation9 + $0x410] sm:$0xf]
        %v792 = vld [vmem:[#allocation9 + $0x414] sm:$0xff]
        %v793 = vld [vmem:[#allocation9 + $0x41c] sm:$0xff]
        %v794 = vld [vmem:[#allocation9 + $0x424] sm:$0xff]
        %v795 = vld [vmem:[#allocation9 + $0x42c] sm:$0xff]
        %v796 = vld [vmem:[#allocation9 + $0x434] sm:$0xf]
        %v797 = vld [vmem:[#allocation9 + $0x438] sm:$0xff]
        %v798 = vld [vmem:[#allocation9 + $0x440] sm:$0xff]
        %v799 = vld [vmem:[#allocation9 + $0x448] sm:$0xff]
        %v800 = vld [vmem:[#allocation9 + $0x450] sm:$0xff]
        %v801 = vld [vmem:[#allocation9 + $0x458] sm:$0xf]
        %v802 = vld [vmem:[#allocation9 + $0x45c] sm:$0xff]
        %v803 = vld [vmem:[#allocation9 + $0x464] sm:$0xff]
        %v804 = vld [vmem:[#allocation9 + $0x46c] sm:$0xff]
        %v805 = vld [vmem:[#allocation9 + $0x474] sm:$0xff]
        %v806 = vld [vmem:[#allocation9 + $0x47c] sm:$0xf]
        %v807 = vld [vmem:[#allocation9 + $0x480] sm:$0xff]
        %v808 = vld [vmem:[#allocation9 + $0x488] sm:$0xff]
        %v809 = vld [vmem:[#allocation9 + $0x490] sm:$0xff]
        %v810 = vld [vmem:[#allocation9 + $0x498] sm:$0xff]
        %v811 = vld [vmem:[#allocation9 + $0x4a0] sm:$0xf]
        %v812 = vld [vmem:[#allocation9 + $0x4a4] sm:$0xff]
        %v813 = vld [vmem:[#allocation9 + $0x4ac] sm:$0xff]
        %v814 = vld [vmem:[#allocation9 + $0x4b4] sm:$0xff]
        %v815 = vld [vmem:[#allocation9 + $0x4bc] sm:$0xff]
        %v816 = vld [vmem:[#allocation9 + $0x4c4] sm:$0xf]
        %v817 = vld [vmem:[#allocation9 + $0x4c8] sm:$0xff]
        %v818 = vld [vmem:[#allocation9 + $0x4d0] sm:$0xff]
        %v819 = vld [vmem:[#allocation9 + $0x4d8] sm:$0xff]
        %v820 = vld [vmem:[#allocation9 + $0x4e0] sm:$0xff]
        %v821 = vld [vmem:[#allocation9 + $0x4e8] sm:$0xf]
        %v822 = vld [vmem:[#allocation9 + $0x4ec] sm:$0xff]
        %v823 = vld [vmem:[#allocation9 + $0x4f4] sm:$0xff]
        %v824 = vld [vmem:[#allocation9 + $0x4fc] sm:$0xff]
        %v825 = vld [vmem:[#allocation9 + $0x504] sm:$0xff]
        %v826 = vld [vmem:[#allocation9 + $0x50c] sm:$0xf]
        %v827 = vld [vmem:[#allocation9 + $0x510] sm:$0xff]
        %v828 = vld [vmem:[#allocation9 + $0x518] sm:$0xff]
        %v829 = vld [vmem:[#allocation9 + $0x520] sm:$0xff]
        %v830 = vld [vmem:[#allocation9 + $0x528] sm:$0xff]
        %v831 = vld [vmem:[#allocation9 + $0x530] sm:$0xf]
        %v832 = vld [vmem:[#allocation9 + $0x534] sm:$0xff]
        %v833 = vld [vmem:[#allocation9 + $0x53c] sm:$0xff]
        %v834 = vld [vmem:[#allocation9 + $0x544] sm:$0xff]
        %v835 = vld [vmem:[#allocation9 + $0x54c] sm:$0xff]
        %v836 = vld [vmem:[#allocation9 + $0x554] sm:$0xf]
        %v837 = vld [vmem:[#allocation9 + $0x558] sm:$0xff]
        %v838 = vld [vmem:[#allocation9 + $0x560] sm:$0xff]
        %v839 = vld [vmem:[#allocation9 + $0x568] sm:$0xff]
        %v840 = vld [vmem:[#allocation9 + $0x570] sm:$0xff]
        %v841 = vld [vmem:[#allocation9 + $0x578] sm:$0xf]
        %v842 = vld [vmem:[#allocation9 + $0x57c] sm:$0xff]
        %v843 = vld [vmem:[#allocation9 + $0x584] sm:$0xff]
        %v844 = vld [vmem:[#allocation9 + $0x58c] sm:$0xff]
        %v845 = vld [vmem:[#allocation9 + $0x594] sm:$0xff]
        %v846 = vld [vmem:[#allocation9 + $0x59c] sm:$0xf]
        %v847 = vld [vmem:[#allocation9 + $0x5a0] sm:$0xff]
        %v848 = vld [vmem:[#allocation9 + $0x5a8] sm:$0xff]
        %v849 = vld [vmem:[#allocation9 + $0x5b0] sm:$0xff]
        %v850 = vld [vmem:[#allocation9 + $0x5b8] sm:$0xff]
        %v851 = vld [vmem:[#allocation9 + $0x5c0] sm:$0xf]
        %v852 = vld [vmem:[#allocation9 + $0x5c4] sm:$0xff]
        %v853 = vld [vmem:[#allocation9 + $0x5cc] sm:$0xff]
        %v854 = vld [vmem:[#allocation9 + $0x5d4] sm:$0xff]
        %v855 = vld [vmem:[#allocation9 + $0x5dc] sm:$0xff]
        %v856 = vld [vmem:[#allocation9 + $0x5e4] sm:$0xf]
        %v857 = vld [vmem:[#allocation9 + $0x5e8] sm:$0xff]
        %v858 = vld [vmem:[#allocation9 + $0x5f0] sm:$0xff]
        %v859 = vld [vmem:[#allocation9 + $0x5f8] sm:$0xff]
        %v860 = vld [vmem:[#allocation9 + $0x600] sm:$0xff]
        %v861 = vld [vmem:[#allocation9 + $0x608] sm:$0xf]
        %v862 = vld [vmem:[#allocation9 + $0x60c] sm:$0xff]
        %v863 = vld [vmem:[#allocation9 + $0x614] sm:$0xff]
        %v864 = vld [vmem:[#allocation9 + $0x61c] sm:$0xff]
        %v865 = vld [vmem:[#allocation9 + $0x624] sm:$0xff]
        %v866 = vld [vmem:[#allocation9 + $0x62c] sm:$0xf]
        %v867 = vld [vmem:[#allocation9 + $0x630] sm:$0xff]
        %v868 = vld [vmem:[#allocation9 + $0x638] sm:$0xff]
        %v869 = vld [vmem:[#allocation9 + $0x640] sm:$0xff]
        %v870 = vld [vmem:[#allocation9 + $0x648] sm:$0xff]
        %v871 = vld [vmem:[#allocation9 + $0x650] sm:$0xf]
        %v872 = vld [vmem:[#allocation9 + $0x654] sm:$0xff]
        %v873 = vld [vmem:[#allocation9 + $0x65c] sm:$0xff]
        %v874 = vld [vmem:[#allocation9 + $0x664] sm:$0xff]
        %v875 = vld [vmem:[#allocation9 + $0x66c] sm:$0xff]
        %v876 = vld [vmem:[#allocation9 + $0x674] sm:$0xf]
        %v877 = vld [vmem:[#allocation9 + $0x678] sm:$0xff]
        %v878 = vld [vmem:[#allocation9 + $0x680] sm:$0xff]
        %v879 = vld [vmem:[#allocation9 + $0x688] sm:$0xff]
        %v880 = vld [vmem:[#allocation9 + $0x690] sm:$0xff]
        %v881 = vld [vmem:[#allocation9 + $0x698] sm:$0xf]
        %v882 = vld [vmem:[#allocation9 + $0x69c] sm:$0xff]
        %v883 = vld [vmem:[#allocation9 + $0x6a4] sm:$0xff]
        %v884 = vld [vmem:[#allocation9 + $0x6ac] sm:$0xff]
        %v885 = vld [vmem:[#allocation9 + $0x6b4] sm:$0xff]
        %v886 = vld [vmem:[#allocation9 + $0x6bc] sm:$0xf]
        %v1127 = vunpack.c.l.b16 %v647
        %v1128 = vunpack.c.h.b16 %v647
        %v1129 = vunpack.c.l.b16 %v648
        %v1130 = vunpack.c.h.b16 %v648
        %v1131 = vunpack.c.l.b16 %v649
        %v1132 = vunpack.c.h.b16 %v649
        %v1133 = vunpack.c.l.b16 %v650
        %v1134 = vunpack.c.h.b16 %v650
        %v1135 = vunpack.c.l.b16 %v651
        %v1136 = vunpack.c.l.b16 %v652
        %v1137 = vunpack.c.h.b16 %v652
        %v1138 = vunpack.c.l.b16 %v653
        %v1139 = vunpack.c.h.b16 %v653
        %v1140 = vunpack.c.l.b16 %v654
        %v1141 = vunpack.c.h.b16 %v654
        %v1142 = vunpack.c.l.b16 %v655
        %v1143 = vunpack.c.h.b16 %v655
        %v1144 = vunpack.c.l.b16 %v656
        %v1145 = vunpack.c.l.b16 %v657
        %v1146 = vunpack.c.h.b16 %v657
        %v1147 = vunpack.c.l.b16 %v658
        %v1148 = vunpack.c.h.b16 %v658
        %v1149 = vunpack.c.l.b16 %v659
        %v1150 = vunpack.c.h.b16 %v659
        %v1151 = vunpack.c.l.b16 %v660
        %v1152 = vunpack.c.h.b16 %v660
        %v1153 = vunpack.c.l.b16 %v661
        %v1154 = vunpack.c.l.b16 %v662
        %v1155 = vunpack.c.h.b16 %v662
        %v1156 = vunpack.c.l.b16 %v663
        %v1157 = vunpack.c.h.b16 %v663
        %v1158 = vunpack.c.l.b16 %v664
        %v1159 = vunpack.c.h.b16 %v664
        %v1160 = vunpack.c.l.b16 %v665
        %v1161 = vunpack.c.h.b16 %v665
        %v1162 = vunpack.c.l.b16 %v666
        %v1163 = vunpack.c.l.b16 %v667
        %v1164 = vunpack.c.h.b16 %v667
        %v1165 = vunpack.c.l.b16 %v668
        %v1166 = vunpack.c.h.b16 %v668
        %v1167 = vunpack.c.l.b16 %v669
        %v1168 = vunpack.c.h.b16 %v669
        %v1169 = vunpack.c.l.b16 %v670
        %v1170 = vunpack.c.h.b16 %v670
        %v1171 = vunpack.c.l.b16 %v671
        %v1172 = vunpack.c.l.b16 %v672
        %v1173 = vunpack.c.h.b16 %v672
        %v1174 = vunpack.c.l.b16 %v673
        %v1175 = vunpack.c.h.b16 %v673
        %v1176 = vunpack.c.l.b16 %v674
        %v1177 = vunpack.c.h.b16 %v674
        %v1178 = vunpack.c.l.b16 %v675
        %v1179 = vunpack.c.h.b16 %v675
        %v1180 = vunpack.c.l.b16 %v676
        %v1181 = vunpack.c.l.b16 %v677
        %v1182 = vunpack.c.h.b16 %v677
        %v1183 = vunpack.c.l.b16 %v678
        %v1184 = vunpack.c.h.b16 %v678
        %v1185 = vunpack.c.l.b16 %v679
        %v1186 = vunpack.c.h.b16 %v679
        %v1187 = vunpack.c.l.b16 %v680
        %v1188 = vunpack.c.h.b16 %v680
        %v1189 = vunpack.c.l.b16 %v681
        %v1190 = vunpack.c.l.b16 %v682
        %v1191 = vunpack.c.h.b16 %v682
        %v1192 = vunpack.c.l.b16 %v683
        %v1193 = vunpack.c.h.b16 %v683
        %v1194 = vunpack.c.l.b16 %v684
        %v1195 = vunpack.c.h.b16 %v684
        %v1196 = vunpack.c.l.b16 %v685
        %v1197 = vunpack.c.h.b16 %v685
        %v1198 = vunpack.c.l.b16 %v686
        %v1199 = vunpack.c.l.b16 %v687
        %v1200 = vunpack.c.h.b16 %v687
        %v1201 = vunpack.c.l.b16 %v688
        %v1202 = vunpack.c.h.b16 %v688
        %v1203 = vunpack.c.l.b16 %v689
        %v1204 = vunpack.c.h.b16 %v689
        %v1205 = vunpack.c.l.b16 %v690
        %v1206 = vunpack.c.h.b16 %v690
        %v1207 = vunpack.c.l.b16 %v691
        %v1208 = vunpack.c.l.b16 %v692
        %v1209 = vunpack.c.h.b16 %v692
        %v1210 = vunpack.c.l.b16 %v693
        %v1211 = vunpack.c.h.b16 %v693
        %v1212 = vunpack.c.l.b16 %v694
        %v1213 = vunpack.c.h.b16 %v694
        %v1214 = vunpack.c.l.b16 %v695
        %v1215 = vunpack.c.h.b16 %v695
        %v1216 = vunpack.c.l.b16 %v696
        %v1217 = vunpack.c.l.b16 %v697
        %v1218 = vunpack.c.h.b16 %v697
        %v1219 = vunpack.c.l.b16 %v698
        %v1220 = vunpack.c.h.b16 %v698
        %v1221 = vunpack.c.l.b16 %v699
        %v1222 = vunpack.c.h.b16 %v699
        %v1223 = vunpack.c.l.b16 %v700
        %v1224 = vunpack.c.h.b16 %v700
        %v1225 = vunpack.c.l.b16 %v701
        %v1226 = vunpack.c.l.b16 %v702
        %v1227 = vunpack.c.h.b16 %v702
        %v1228 = vunpack.c.l.b16 %v703
        %v1229 = vunpack.c.h.b16 %v703
        %v1230 = vunpack.c.l.b16 %v704
        %v1231 = vunpack.c.h.b16 %v704
        %v1232 = vunpack.c.l.b16 %v705
        %v1233 = vunpack.c.h.b16 %v705
        %v1234 = vunpack.c.l.b16 %v706
        %v1235 = vunpack.c.l.b16 %v707
        %v1236 = vunpack.c.h.b16 %v707
        %v1237 = vunpack.c.l.b16 %v708
        %v1238 = vunpack.c.h.b16 %v708
        %v1239 = vunpack.c.l.b16 %v709
        %v1240 = vunpack.c.h.b16 %v709
        %v1241 = vunpack.c.l.b16 %v710
        %v1242 = vunpack.c.h.b16 %v710
        %v1243 = vunpack.c.l.b16 %v711
        %v1244 = vunpack.c.l.b16 %v712
        %v1245 = vunpack.c.h.b16 %v712
        %v1246 = vunpack.c.l.b16 %v713
        %v1247 = vunpack.c.h.b16 %v713
        %v1248 = vunpack.c.l.b16 %v714
        %v1249 = vunpack.c.h.b16 %v714
        %v1250 = vunpack.c.l.b16 %v715
        %v1251 = vunpack.c.h.b16 %v715
        %v1252 = vunpack.c.l.b16 %v716
        %v1253 = vunpack.c.l.b16 %v717
        %v1254 = vunpack.c.h.b16 %v717
        %v1255 = vunpack.c.l.b16 %v718
        %v1256 = vunpack.c.h.b16 %v718
        %v1257 = vunpack.c.l.b16 %v719
        %v1258 = vunpack.c.h.b16 %v719
        %v1259 = vunpack.c.l.b16 %v720
        %v1260 = vunpack.c.h.b16 %v720
        %v1261 = vunpack.c.l.b16 %v721
        %v1262 = vunpack.c.l.b16 %v722
        %v1263 = vunpack.c.h.b16 %v722
        %v1264 = vunpack.c.l.b16 %v723
        %v1265 = vunpack.c.h.b16 %v723
        %v1266 = vunpack.c.l.b16 %v724
        %v1267 = vunpack.c.h.b16 %v724
        %v1268 = vunpack.c.l.b16 %v725
        %v1269 = vunpack.c.h.b16 %v725
        %v1270 = vunpack.c.l.b16 %v726
        %v1271 = vunpack.c.l.b16 %v727
        %v1272 = vunpack.c.h.b16 %v727
        %v1273 = vunpack.c.l.b16 %v728
        %v1274 = vunpack.c.h.b16 %v728
        %v1275 = vunpack.c.l.b16 %v729
        %v1276 = vunpack.c.h.b16 %v729
        %v1277 = vunpack.c.l.b16 %v730
        %v1278 = vunpack.c.h.b16 %v730
        %v1279 = vunpack.c.l.b16 %v731
        %v1280 = vunpack.c.l.b16 %v732
        %v1281 = vunpack.c.h.b16 %v732
        %v1282 = vunpack.c.l.b16 %v733
        %v1283 = vunpack.c.h.b16 %v733
        %v1284 = vunpack.c.l.b16 %v734
        %v1285 = vunpack.c.h.b16 %v734
        %v1286 = vunpack.c.l.b16 %v735
        %v1287 = vunpack.c.h.b16 %v735
        %v1288 = vunpack.c.l.b16 %v736
        %v1289 = vunpack.c.l.b16 %v737
        %v1290 = vunpack.c.h.b16 %v737
        %v1291 = vunpack.c.l.b16 %v738
        %v1292 = vunpack.c.h.b16 %v738
        %v1293 = vunpack.c.l.b16 %v739
        %v1294 = vunpack.c.h.b16 %v739
        %v1295 = vunpack.c.l.b16 %v740
        %v1296 = vunpack.c.h.b16 %v740
        %v1297 = vunpack.c.l.b16 %v741
        %v1298 = vunpack.c.l.b16 %v742
        %v1299 = vunpack.c.h.b16 %v742
        %v1300 = vunpack.c.l.b16 %v743
        %v1301 = vunpack.c.h.b16 %v743
        %v1302 = vunpack.c.l.b16 %v744
        %v1303 = vunpack.c.h.b16 %v744
        %v1304 = vunpack.c.l.b16 %v745
        %v1305 = vunpack.c.h.b16 %v745
        %v1306 = vunpack.c.l.b16 %v746
        %v1307 = vunpack.c.l.b16 %v747
        %v1308 = vunpack.c.h.b16 %v747
        %v1309 = vunpack.c.l.b16 %v748
        %v1310 = vunpack.c.h.b16 %v748
        %v1311 = vunpack.c.l.b16 %v749
        %v1312 = vunpack.c.h.b16 %v749
        %v1313 = vunpack.c.l.b16 %v750
        %v1314 = vunpack.c.h.b16 %v750
        %v1315 = vunpack.c.l.b16 %v751
        %v1316 = vunpack.c.l.b16 %v752
        %v1317 = vunpack.c.h.b16 %v752
        %v1318 = vunpack.c.l.b16 %v753
        %v1319 = vunpack.c.h.b16 %v753
        %v1320 = vunpack.c.l.b16 %v754
        %v1321 = vunpack.c.h.b16 %v754
        %v1322 = vunpack.c.l.b16 %v755
        %v1323 = vunpack.c.h.b16 %v755
        %v1324 = vunpack.c.l.b16 %v756
        %v1325 = vunpack.c.l.b16 %v757
        %v1326 = vunpack.c.h.b16 %v757
        %v1327 = vunpack.c.l.b16 %v758
        %v1328 = vunpack.c.h.b16 %v758
        %v1329 = vunpack.c.l.b16 %v759
        %v1330 = vunpack.c.h.b16 %v759
        %v1331 = vunpack.c.l.b16 %v760
        %v1332 = vunpack.c.h.b16 %v760
        %v1333 = vunpack.c.l.b16 %v761
        %v1334 = vunpack.c.l.b16 %v762
        %v1335 = vunpack.c.h.b16 %v762
        %v1336 = vunpack.c.l.b16 %v763
        %v1337 = vunpack.c.h.b16 %v763
        %v1338 = vunpack.c.l.b16 %v764
        %v1339 = vunpack.c.h.b16 %v764
        %v1340 = vunpack.c.l.b16 %v765
        %v1341 = vunpack.c.h.b16 %v765
        %v1342 = vunpack.c.l.b16 %v766
        %v1343 = vunpack.c.l.b16 %v767
        %v1344 = vunpack.c.h.b16 %v767
        %v1345 = vunpack.c.l.b16 %v768
        %v1346 = vunpack.c.h.b16 %v768
        %v1347 = vunpack.c.l.b16 %v769
        %v1348 = vunpack.c.h.b16 %v769
        %v1349 = vunpack.c.l.b16 %v770
        %v1350 = vunpack.c.h.b16 %v770
        %v1351 = vunpack.c.l.b16 %v771
        %v1352 = vunpack.c.l.b16 %v772
        %v1353 = vunpack.c.h.b16 %v772
        %v1354 = vunpack.c.l.b16 %v773
        %v1355 = vunpack.c.h.b16 %v773
        %v1356 = vunpack.c.l.b16 %v774
        %v1357 = vunpack.c.h.b16 %v774
        %v1358 = vunpack.c.l.b16 %v775
        %v1359 = vunpack.c.h.b16 %v775
        %v1360 = vunpack.c.l.b16 %v776
        %v1361 = vunpack.c.l.b16 %v777
        %v1362 = vunpack.c.h.b16 %v777
        %v1363 = vunpack.c.l.b16 %v778
        %v1364 = vunpack.c.h.b16 %v778
        %v1365 = vunpack.c.l.b16 %v779
        %v1366 = vunpack.c.h.b16 %v779
        %v1367 = vunpack.c.l.b16 %v780
        %v1368 = vunpack.c.h.b16 %v780
        %v1369 = vunpack.c.l.b16 %v781
        %v1370 = vunpack.c.l.b16 %v782
        %v1371 = vunpack.c.h.b16 %v782
        %v1372 = vunpack.c.l.b16 %v783
        %v1373 = vunpack.c.h.b16 %v783
        %v1374 = vunpack.c.l.b16 %v784
        %v1375 = vunpack.c.h.b16 %v784
        %v1376 = vunpack.c.l.b16 %v785
        %v1377 = vunpack.c.h.b16 %v785
        %v1378 = vunpack.c.l.b16 %v786
        %v1379 = vunpack.c.l.b16 %v787
        %v1380 = vunpack.c.h.b16 %v787
        %v1381 = vunpack.c.l.b16 %v788
        %v1382 = vunpack.c.h.b16 %v788
        %v1383 = vunpack.c.l.b16 %v789
        %v1384 = vunpack.c.h.b16 %v789
        %v1385 = vunpack.c.l.b16 %v790
        %v1386 = vunpack.c.h.b16 %v790
        %v1387 = vunpack.c.l.b16 %v791
        %v1388 = vunpack.c.l.b16 %v792
        %v1389 = vunpack.c.h.b16 %v792
        %v1390 = vunpack.c.l.b16 %v793
        %v1391 = vunpack.c.h.b16 %v793
        %v1392 = vunpack.c.l.b16 %v794
        %v1393 = vunpack.c.h.b16 %v794
        %v1394 = vunpack.c.l.b16 %v795
        %v1395 = vunpack.c.h.b16 %v795
        %v1396 = vunpack.c.l.b16 %v796
        %v1397 = vunpack.c.l.b16 %v797
        %v1398 = vunpack.c.h.b16 %v797
        %v1399 = vunpack.c.l.b16 %v798
        %v1400 = vunpack.c.h.b16 %v798
        %v1401 = vunpack.c.l.b16 %v799
        %v1402 = vunpack.c.h.b16 %v799
        %v1403 = vunpack.c.l.b16 %v800
        %v1404 = vunpack.c.h.b16 %v800
        %v1405 = vunpack.c.l.b16 %v801
        %v1406 = vunpack.c.l.b16 %v802
        %v1407 = vunpack.c.h.b16 %v802
        %v1408 = vunpack.c.l.b16 %v803
        %v1409 = vunpack.c.h.b16 %v803
        %v1410 = vunpack.c.l.b16 %v804
        %v1411 = vunpack.c.h.b16 %v804
        %v1412 = vunpack.c.l.b16 %v805
        %v1413 = vunpack.c.h.b16 %v805
        %v1414 = vunpack.c.l.b16 %v806
        %v1415 = vunpack.c.l.b16 %v807
        %v1416 = vunpack.c.h.b16 %v807
        %v1417 = vunpack.c.l.b16 %v808
        %v1418 = vunpack.c.h.b16 %v808
        %v1419 = vunpack.c.l.b16 %v809
        %v1420 = vunpack.c.h.b16 %v809
        %v1421 = vunpack.c.l.b16 %v810
        %v1422 = vunpack.c.h.b16 %v810
        %v1423 = vunpack.c.l.b16 %v811
        %v1424 = vunpack.c.l.b16 %v812
        %v1425 = vunpack.c.h.b16 %v812
        %v1426 = vunpack.c.l.b16 %v813
        %v1427 = vunpack.c.h.b16 %v813
        %v1428 = vunpack.c.l.b16 %v814
        %v1429 = vunpack.c.h.b16 %v814
        %v1430 = vunpack.c.l.b16 %v815
        %v1431 = vunpack.c.h.b16 %v815
        %v1432 = vunpack.c.l.b16 %v816
        %v1433 = vunpack.c.l.b16 %v817
        %v1434 = vunpack.c.h.b16 %v817
        %v1435 = vunpack.c.l.b16 %v818
        %v1436 = vunpack.c.h.b16 %v818
        %v1437 = vunpack.c.l.b16 %v819
        %v1438 = vunpack.c.h.b16 %v819
        %v1439 = vunpack.c.l.b16 %v820
        %v1440 = vunpack.c.h.b16 %v820
        %v1441 = vunpack.c.l.b16 %v821
        %v1442 = vunpack.c.l.b16 %v822
        %v1443 = vunpack.c.h.b16 %v822
        %v1444 = vunpack.c.l.b16 %v823
        %v1445 = vunpack.c.h.b16 %v823
        %v1446 = vunpack.c.l.b16 %v824
        %v1447 = vunpack.c.h.b16 %v824
        %v1448 = vunpack.c.l.b16 %v825
        %v1449 = vunpack.c.h.b16 %v825
        %v1450 = vunpack.c.l.b16 %v826
        %v1451 = vunpack.c.l.b16 %v827
        %v1452 = vunpack.c.h.b16 %v827
        %v1453 = vunpack.c.l.b16 %v828
        %v1454 = vunpack.c.h.b16 %v828
        %v1455 = vunpack.c.l.b16 %v829
        %v1456 = vunpack.c.h.b16 %v829
        %v1457 = vunpack.c.l.b16 %v830
        %v1458 = vunpack.c.h.b16 %v830
        %v1459 = vunpack.c.l.b16 %v831
        %v1460 = vunpack.c.l.b16 %v832
        %v1461 = vunpack.c.h.b16 %v832
        %v1462 = vunpack.c.l.b16 %v833
        %v1463 = vunpack.c.h.b16 %v833
        %v1464 = vunpack.c.l.b16 %v834
        %v1465 = vunpack.c.h.b16 %v834
        %v1466 = vunpack.c.l.b16 %v835
        %v1467 = vunpack.c.h.b16 %v835
        %v1468 = vunpack.c.l.b16 %v836
        %v1469 = vunpack.c.l.b16 %v837
        %v1470 = vunpack.c.h.b16 %v837
        %v1471 = vunpack.c.l.b16 %v838
        %v1472 = vunpack.c.h.b16 %v838
        %v1473 = vunpack.c.l.b16 %v839
        %v1474 = vunpack.c.h.b16 %v839
        %v1475 = vunpack.c.l.b16 %v840
        %v1476 = vunpack.c.h.b16 %v840
        %v1477 = vunpack.c.l.b16 %v841
        %v1478 = vunpack.c.l.b16 %v842
        %v1479 = vunpack.c.h.b16 %v842
        %v1480 = vunpack.c.l.b16 %v843
        %v1481 = vunpack.c.h.b16 %v843
        %v1482 = vunpack.c.l.b16 %v844
        %v1483 = vunpack.c.h.b16 %v844
        %v1484 = vunpack.c.l.b16 %v845
        %v1485 = vunpack.c.h.b16 %v845
        %v1486 = vunpack.c.l.b16 %v846
        %v1487 = vunpack.c.l.b16 %v847
        %v1488 = vunpack.c.h.b16 %v847
        %v1489 = vunpack.c.l.b16 %v848
        %v1490 = vunpack.c.h.b16 %v848
        %v1491 = vunpack.c.l.b16 %v849
        %v1492 = vunpack.c.h.b16 %v849
        %v1493 = vunpack.c.l.b16 %v850
        %v1494 = vunpack.c.h.b16 %v850
        %v1495 = vunpack.c.l.b16 %v851
        %v1496 = vunpack.c.l.b16 %v852
        %v1497 = vunpack.c.h.b16 %v852
        %v1498 = vunpack.c.l.b16 %v853
        %v1499 = vunpack.c.h.b16 %v853
        %v1500 = vunpack.c.l.b16 %v854
        %v1501 = vunpack.c.h.b16 %v854
        %v1502 = vunpack.c.l.b16 %v855
        %v1503 = vunpack.c.h.b16 %v855
        %v1504 = vunpack.c.l.b16 %v856
        %v1505 = vunpack.c.l.b16 %v857
        %v1506 = vunpack.c.h.b16 %v857
        %v1507 = vunpack.c.l.b16 %v858
        %v1508 = vunpack.c.h.b16 %v858
        %v1509 = vunpack.c.l.b16 %v859
        %v1510 = vunpack.c.h.b16 %v859
        %v1511 = vunpack.c.l.b16 %v860
        %v1512 = vunpack.c.h.b16 %v860
        %v1513 = vunpack.c.l.b16 %v861
        %v1514 = vunpack.c.l.b16 %v862
        %v1515 = vunpack.c.h.b16 %v862
        %v1516 = vunpack.c.l.b16 %v863
        %v1517 = vunpack.c.h.b16 %v863
        %v1518 = vunpack.c.l.b16 %v864
        %v1519 = vunpack.c.h.b16 %v864
        %v1520 = vunpack.c.l.b16 %v865
        %v1521 = vunpack.c.h.b16 %v865
        %v1522 = vunpack.c.l.b16 %v866
        %v1523 = vunpack.c.l.b16 %v867
        %v1524 = vunpack.c.h.b16 %v867
        %v1525 = vunpack.c.l.b16 %v868
        %v1526 = vunpack.c.h.b16 %v868
        %v1527 = vunpack.c.l.b16 %v869
        %v1528 = vunpack.c.h.b16 %v869
        %v1529 = vunpack.c.l.b16 %v870
        %v1530 = vunpack.c.h.b16 %v870
        %v1531 = vunpack.c.l.b16 %v871
        %v1532 = vunpack.c.l.b16 %v872
        %v1533 = vunpack.c.h.b16 %v872
        %v1534 = vunpack.c.l.b16 %v873
        %v1535 = vunpack.c.h.b16 %v873
        %v1536 = vunpack.c.l.b16 %v874
        %v1537 = vunpack.c.h.b16 %v874
        %v1538 = vunpack.c.l.b16 %v875
        %v1539 = vunpack.c.h.b16 %v875
        %v1540 = vunpack.c.l.b16 %v876
        %v1541 = vunpack.c.l.b16 %v877
        %v1542 = vunpack.c.h.b16 %v877
        %v1543 = vunpack.c.l.b16 %v878
        %v1544 = vunpack.c.h.b16 %v878
        %v1545 = vunpack.c.l.b16 %v879
        %v1546 = vunpack.c.h.b16 %v879
        %v1547 = vunpack.c.l.b16 %v880
        %v1548 = vunpack.c.h.b16 %v880
        %v1549 = vunpack.c.l.b16 %v881
        %v1550 = vunpack.c.l.b16 %v882
        %v1551 = vunpack.c.h.b16 %v882
        %v1552 = vunpack.c.l.b16 %v883
        %v1553 = vunpack.c.h.b16 %v883
        %v1554 = vunpack.c.l.b16 %v884
        %v1555 = vunpack.c.h.b16 %v884
        %v1556 = vunpack.c.l.b16 %v885
        %v1557 = vunpack.c.h.b16 %v885
        %v1558 = vunpack.c.l.b16 %v886
        %v1559 = vpack.c.b16 %v1136, %v1127
        %v1560 = vpack.c.b16 %v1137, %v1128
        %v1561 = vpack.c.b16 %v1138, %v1129
        %v1562 = vpack.c.b16 %v1139, %v1130
        %v1563 = vpack.c.b16 %v1140, %v1131
        %v1564 = vpack.c.b16 %v1141, %v1132
        %v1565 = vpack.c.b16 %v1142, %v1133
        %v1566 = vpack.c.b16 %v1143, %v1134
        %v1567 = vpack.c.b16 %v1144, %v1135
        %v1568 = vpack.c.b16 %v1154, %v1145
        %v1569 = vpack.c.b16 %v1155, %v1146
        %v1570 = vpack.c.b16 %v1156, %v1147
        %v1571 = vpack.c.b16 %v1157, %v1148
        %v1572 = vpack.c.b16 %v1158, %v1149
        %v1573 = vpack.c.b16 %v1159, %v1150
        %v1574 = vpack.c.b16 %v1160, %v1151
        %v1575 = vpack.c.b16 %v1161, %v1152
        %v1576 = vpack.c.b16 %v1162, %v1153
        %v1577 = vpack.c.b16 %v1172, %v1163
        %v1578 = vpack.c.b16 %v1173, %v1164
        %v1579 = vpack.c.b16 %v1174, %v1165
        %v1580 = vpack.c.b16 %v1175, %v1166
        %v1581 = vpack.c.b16 %v1176, %v1167
        %v1582 = vpack.c.b16 %v1177, %v1168
        %v1583 = vpack.c.b16 %v1178, %v1169
        %v1584 = vpack.c.b16 %v1179, %v1170
        %v1585 = vpack.c.b16 %v1180, %v1171
        %v1586 = vpack.c.b16 %v1190, %v1181
        %v1587 = vpack.c.b16 %v1191, %v1182
        %v1588 = vpack.c.b16 %v1192, %v1183
        %v1589 = vpack.c.b16 %v1193, %v1184
        %v1590 = vpack.c.b16 %v1194, %v1185
        %v1591 = vpack.c.b16 %v1195, %v1186
        %v1592 = vpack.c.b16 %v1196, %v1187
        %v1593 = vpack.c.b16 %v1197, %v1188
        %v1594 = vpack.c.b16 %v1198, %v1189
        %v1595 = vpack.c.b16 %v1208, %v1199
        %v1596 = vpack.c.b16 %v1209, %v1200
        %v1597 = vpack.c.b16 %v1210, %v1201
        %v1598 = vpack.c.b16 %v1211, %v1202
        %v1599 = vpack.c.b16 %v1212, %v1203
        %v1600 = vpack.c.b16 %v1213, %v1204
        %v1601 = vpack.c.b16 %v1214, %v1205
        %v1602 = vpack.c.b16 %v1215, %v1206
        %v1603 = vpack.c.b16 %v1216, %v1207
        %v1604 = vpack.c.b16 %v1226, %v1217
        %v1605 = vpack.c.b16 %v1227, %v1218
        %v1606 = vpack.c.b16 %v1228, %v1219
        %v1607 = vpack.c.b16 %v1229, %v1220
        %v1608 = vpack.c.b16 %v1230, %v1221
        %v1609 = vpack.c.b16 %v1231, %v1222
        %v1610 = vpack.c.b16 %v1232, %v1223
        %v1611 = vpack.c.b16 %v1233, %v1224
        %v1612 = vpack.c.b16 %v1234, %v1225
        %v1613 = vpack.c.b16 %v1244, %v1235
        %v1614 = vpack.c.b16 %v1245, %v1236
        %v1615 = vpack.c.b16 %v1246, %v1237
        %v1616 = vpack.c.b16 %v1247, %v1238
        %v1617 = vpack.c.b16 %v1248, %v1239
        %v1618 = vpack.c.b16 %v1249, %v1240
        %v1619 = vpack.c.b16 %v1250, %v1241
        %v1620 = vpack.c.b16 %v1251, %v1242
        %v1621 = vpack.c.b16 %v1252, %v1243
        %v1622 = vpack.c.b16 %v1262, %v1253
        %v1623 = vpack.c.b16 %v1263, %v1254
        %v1624 = vpack.c.b16 %v1264, %v1255
        %v1625 = vpack.c.b16 %v1265, %v1256
        %v1626 = vpack.c.b16 %v1266, %v1257
        %v1627 = vpack.c.b16 %v1267, %v1258
        %v1628 = vpack.c.b16 %v1268, %v1259
        %v1629 = vpack.c.b16 %v1269, %v1260
        %v1630 = vpack.c.b16 %v1270, %v1261
        %v1631 = vpack.c.b16 %v1280, %v1271
        %v1632 = vpack.c.b16 %v1281, %v1272
        %v1633 = vpack.c.b16 %v1282, %v1273
        %v1634 = vpack.c.b16 %v1283, %v1274
        %v1635 = vpack.c.b16 %v1284, %v1275
        %v1636 = vpack.c.b16 %v1285, %v1276
        %v1637 = vpack.c.b16 %v1286, %v1277
        %v1638 = vpack.c.b16 %v1287, %v1278
        %v1639 = vpack.c.b16 %v1288, %v1279
        %v1640 = vpack.c.b16 %v1298, %v1289
        %v1641 = vpack.c.b16 %v1299, %v1290
        %v1642 = vpack.c.b16 %v1300, %v1291
        %v1643 = vpack.c.b16 %v1301, %v1292
        %v1644 = vpack.c.b16 %v1302, %v1293
        %v1645 = vpack.c.b16 %v1303, %v1294
        %v1646 = vpack.c.b16 %v1304, %v1295
        %v1647 = vpack.c.b16 %v1305, %v1296
        %v1648 = vpack.c.b16 %v1306, %v1297
        %v1649 = vpack.c.b16 %v1316, %v1307
        %v1650 = vpack.c.b16 %v1317, %v1308
        %v1651 = vpack.c.b16 %v1318, %v1309
        %v1652 = vpack.c.b16 %v1319, %v1310
        %v1653 = vpack.c.b16 %v1320, %v1311
        %v1654 = vpack.c.b16 %v1321, %v1312
        %v1655 = vpack.c.b16 %v1322, %v1313
        %v1656 = vpack.c.b16 %v1323, %v1314
        %v1657 = vpack.c.b16 %v1324, %v1315
        %v1658 = vpack.c.b16 %v1334, %v1325
        %v1659 = vpack.c.b16 %v1335, %v1326
        %v1660 = vpack.c.b16 %v1336, %v1327
        %v1661 = vpack.c.b16 %v1337, %v1328
        %v1662 = vpack.c.b16 %v1338, %v1329
        %v1663 = vpack.c.b16 %v1339, %v1330
        %v1664 = vpack.c.b16 %v1340, %v1331
        %v1665 = vpack.c.b16 %v1341, %v1332
        %v1666 = vpack.c.b16 %v1342, %v1333
        %v1667 = vpack.c.b16 %v1352, %v1343
        %v1668 = vpack.c.b16 %v1353, %v1344
        %v1669 = vpack.c.b16 %v1354, %v1345
        %v1670 = vpack.c.b16 %v1355, %v1346
        %v1671 = vpack.c.b16 %v1356, %v1347
        %v1672 = vpack.c.b16 %v1357, %v1348
        %v1673 = vpack.c.b16 %v1358, %v1349
        %v1674 = vpack.c.b16 %v1359, %v1350
        %v1675 = vpack.c.b16 %v1360, %v1351
        %v1676 = vpack.c.b16 %v1370, %v1361
        %v1677 = vpack.c.b16 %v1371, %v1362
        %v1678 = vpack.c.b16 %v1372, %v1363
        %v1679 = vpack.c.b16 %v1373, %v1364
        %v1680 = vpack.c.b16 %v1374, %v1365
        %v1681 = vpack.c.b16 %v1375, %v1366
        %v1682 = vpack.c.b16 %v1376, %v1367
        %v1683 = vpack.c.b16 %v1377, %v1368
        %v1684 = vpack.c.b16 %v1378, %v1369
        %v1685 = vpack.c.b16 %v1388, %v1379
        %v1686 = vpack.c.b16 %v1389, %v1380
        %v1687 = vpack.c.b16 %v1390, %v1381
        %v1688 = vpack.c.b16 %v1391, %v1382
        %v1689 = vpack.c.b16 %v1392, %v1383
        %v1690 = vpack.c.b16 %v1393, %v1384
        %v1691 = vpack.c.b16 %v1394, %v1385
        %v1692 = vpack.c.b16 %v1395, %v1386
        %v1693 = vpack.c.b16 %v1396, %v1387
        %v1694 = vpack.c.b16 %v1406, %v1397
        %v1695 = vpack.c.b16 %v1407, %v1398
        %v1696 = vpack.c.b16 %v1408, %v1399
        %v1697 = vpack.c.b16 %v1409, %v1400
        %v1698 = vpack.c.b16 %v1410, %v1401
        %v1699 = vpack.c.b16 %v1411, %v1402
        %v1700 = vpack.c.b16 %v1412, %v1403
        %v1701 = vpack.c.b16 %v1413, %v1404
        %v1702 = vpack.c.b16 %v1414, %v1405
        %v1703 = vpack.c.b16 %v1424, %v1415
        %v1704 = vpack.c.b16 %v1425, %v1416
        %v1705 = vpack.c.b16 %v1426, %v1417
        %v1706 = vpack.c.b16 %v1427, %v1418
        %v1707 = vpack.c.b16 %v1428, %v1419
        %v1708 = vpack.c.b16 %v1429, %v1420
        %v1709 = vpack.c.b16 %v1430, %v1421
        %v1710 = vpack.c.b16 %v1431, %v1422
        %v1711 = vpack.c.b16 %v1432, %v1423
        %v1712 = vpack.c.b16 %v1442, %v1433
        %v1713 = vpack.c.b16 %v1443, %v1434
        %v1714 = vpack.c.b16 %v1444, %v1435
        %v1715 = vpack.c.b16 %v1445, %v1436
        %v1716 = vpack.c.b16 %v1446, %v1437
        %v1717 = vpack.c.b16 %v1447, %v1438
        %v1718 = vpack.c.b16 %v1448, %v1439
        %v1719 = vpack.c.b16 %v1449, %v1440
        %v1720 = vpack.c.b16 %v1450, %v1441
        %v1721 = vpack.c.b16 %v1460, %v1451
        %v1722 = vpack.c.b16 %v1461, %v1452
        %v1723 = vpack.c.b16 %v1462, %v1453
        %v1724 = vpack.c.b16 %v1463, %v1454
        %v1725 = vpack.c.b16 %v1464, %v1455
        %v1726 = vpack.c.b16 %v1465, %v1456
        %v1727 = vpack.c.b16 %v1466, %v1457
        %v1728 = vpack.c.b16 %v1467, %v1458
        %v1729 = vpack.c.b16 %v1468, %v1459
        %v1730 = vpack.c.b16 %v1478, %v1469
        %v1731 = vpack.c.b16 %v1479, %v1470
        %v1732 = vpack.c.b16 %v1480, %v1471
        %v1733 = vpack.c.b16 %v1481, %v1472
        %v1734 = vpack.c.b16 %v1482, %v1473
        %v1735 = vpack.c.b16 %v1483, %v1474
        %v1736 = vpack.c.b16 %v1484, %v1475
        %v1737 = vpack.c.b16 %v1485, %v1476
        %v1738 = vpack.c.b16 %v1486, %v1477
        %v1739 = vpack.c.b16 %v1496, %v1487
        %v1740 = vpack.c.b16 %v1497, %v1488
        %v1741 = vpack.c.b16 %v1498, %v1489
        %v1742 = vpack.c.b16 %v1499, %v1490
        %v1743 = vpack.c.b16 %v1500, %v1491
        %v1744 = vpack.c.b16 %v1501, %v1492
        %v1745 = vpack.c.b16 %v1502, %v1493
        %v1746 = vpack.c.b16 %v1503, %v1494
        %v1747 = vpack.c.b16 %v1504, %v1495
        %v1748 = vpack.c.b16 %v1514, %v1505
        %v1749 = vpack.c.b16 %v1515, %v1506
        %v1750 = vpack.c.b16 %v1516, %v1507
        %v1751 = vpack.c.b16 %v1517, %v1508
        %v1752 = vpack.c.b16 %v1518, %v1509
        %v1753 = vpack.c.b16 %v1519, %v1510
        %v1754 = vpack.c.b16 %v1520, %v1511
        %v1755 = vpack.c.b16 %v1521, %v1512
        %v1756 = vpack.c.b16 %v1522, %v1513
        %v1757 = vpack.c.b16 %v1532, %v1523
        %v1758 = vpack.c.b16 %v1533, %v1524
        %v1759 = vpack.c.b16 %v1534, %v1525
        %v1760 = vpack.c.b16 %v1535, %v1526
        %v1761 = vpack.c.b16 %v1536, %v1527
        %v1762 = vpack.c.b16 %v1537, %v1528
        %v1763 = vpack.c.b16 %v1538, %v1529
        %v1764 = vpack.c.b16 %v1539, %v1530
        %v1765 = vpack.c.b16 %v1540, %v1531
        %v1766 = vpack.c.b16 %v1550, %v1541
        %v1767 = vpack.c.b16 %v1551, %v1542
        %v1768 = vpack.c.b16 %v1552, %v1543
        %v1769 = vpack.c.b16 %v1553, %v1544
        %v1770 = vpack.c.b16 %v1554, %v1545
        %v1771 = vpack.c.b16 %v1555, %v1546
        %v1772 = vpack.c.b16 %v1556, %v1547
        %v1773 = vpack.c.b16 %v1557, %v1548
        %v1774 = vpack.c.b16 %v1558, %v1549
        %1991 = vmatprep.subr.bf16.mxu0 %v1560
        %1992 = vmatpush1.bf16.msra.mxu0 %v1559
        %1993 = vmatprep.subr.bf16.mxu0 %v1569
        %1994 = vmatpush1.bf16.msra.mxu0 %v1568
        %1995 = vmatprep.subr.bf16.mxu0 %v1578
        %1996 = vmatpush1.bf16.msra.mxu0 %v1577
        %1997 = vmatprep.subr.bf16.mxu0 %v1587
        %1998 = vmatpush1.bf16.msra.mxu0 %v1586
        %1999 = vmatprep.subr.bf16.mxu0 %v1596
        %2000 = vmatpush1.bf16.msra.mxu0 %v1595
        %2001 = vmatprep.subr.bf16.mxu0 %v1605
        %2002 = vmatpush1.bf16.msra.mxu0 %v1604
        %2003 = vmatprep.subr.bf16.mxu0 %v1614
        %2004 = vmatpush1.bf16.msra.mxu0 %v1613
        %2005 = vmatprep.subr.bf16.mxu0 %v1623
        %2006 = vmatpush1.bf16.msra.mxu0 %v1622
        %2007 = vmatprep.subr.bf16.mxu0 %v1632
        %2008 = vmatpush1.bf16.msra.mxu0 %v1631
        %2009 = vmatprep.subr.bf16.mxu0 %v1641
        %2010 = vmatpush1.bf16.msra.mxu0 %v1640
        %2011 = vmatprep.subr.bf16.mxu0 %v1650
        %2012 = vmatpush1.bf16.msra.mxu0 %v1649
        %2013 = vmatprep.subr.bf16.mxu0 %v1659
        %2014 = vmatpush1.bf16.msra.mxu0 %v1658
        %2015 = vmatprep.subr.bf16.mxu0 %v1668
        %2016 = vmatpush1.bf16.msra.mxu0 %v1667
        %2017 = vmatprep.subr.bf16.mxu0 %v1677
        %2018 = vmatpush1.bf16.msra.mxu0 %v1676
        %2019 = vmatprep.subr.bf16.mxu0 %v1686
        %2020 = vmatpush1.bf16.msra.mxu0 %v1685
        %2021 = vmatprep.subr.bf16.mxu0 %v1695
        %2022 = vmatpush1.bf16.msra.mxu0 %v1694
        %2023 = vmatprep.mubr.bf16.mxu0 %v645
        %2024 = vmatmul.mubr.bf16.gmra.mrb[0].mxu0 %v644
        %v2025 = vpop.f32.mrb[0].mxu0
        %v2026 = vadd.f32 0.0, %v2025
        %v2027 = vpop.f32.mrb[0].mxu0
        %v2028 = vadd.f32 0.0, %v2027
        %v2029 = vpop.f32.mrb[0].mxu0
        %v2030 = vpop.f32.mrb[0].mxu0
        %2031 = vdwg.mxu0
        %2032 = vmatprep.subr.bf16.mxu0 %v1704
        %2033 = vmatpush1.bf16.msra.mxu0 %v1703
        %2034 = vmatprep.subr.bf16.mxu0 %v1713
        %2035 = vmatpush1.bf16.msra.mxu0 %v1712
        %2036 = vmatprep.subr.bf16.mxu0 %v1722
        %2037 = vmatpush1.bf16.msra.mxu0 %v1721
        %2038 = vmatprep.subr.bf16.mxu0 %v1731
        %2039 = vmatpush1.bf16.msra.mxu0 %v1730
        %2040 = vmatprep.subr.bf16.mxu0 %v1740
        %2041 = vmatpush1.bf16.msra.mxu0 %v1739
        %2042 = vmatprep.subr.bf16.mxu0 %v1749
        %2043 = vmatpush1.bf16.msra.mxu0 %v1748
        %2044 = vmatprep.subr.bf16.mxu0 %v1758
        %2045 = vmatpush1.bf16.msra.mxu0 %v1757
        %2046 = vmatprep.subr.bf16.mxu0 %v1767
        %2047 = vmatpush1.bf16.msra.mxu0 %v1766
        %2048 = vmatprep.subr.bf16.mxu0 0
        %2049 = vmatpush1.bf16.msra.mxu0 0
        %2050 = vmatprep.subr.bf16.mxu0 0
        %2051 = vmatpush1.bf16.msra.mxu0 0
        %2052 = vmatprep.subr.bf16.mxu0 0
        %2053 = vmatpush1.bf16.msra.mxu0 0
        %2054 = vmatprep.subr.bf16.mxu0 0
        %2055 = vmatpush1.bf16.msra.mxu0 0
        %2056 = vmatprep.subr.bf16.mxu0 0
        %2057 = vmatpush1.bf16.msra.mxu0 0
        %2058 = vmatprep.subr.bf16.mxu0 0
        %2059 = vmatpush1.bf16.msra.mxu0 0
        %2060 = vmatprep.subr.bf16.mxu0 0
        %2061 = vmatpush1.bf16.msra.mxu0 0
        %2062 = vmatprep.subr.bf16.mxu0 0
        %2063 = vmatpush1.bf16.msra.mxu0 0
        %2064 = vmatprep.mubr.bf16.mxu0 0
        %2065 = vmatmul.mubr.bf16.gmra.mrb[0].mxu0 %v646
        %v2066 = vpop.f32.mrb[0].mxu0
        %v2067 = vadd.f32 %v2026, %v2066
        %v2068 = vpop.f32.mrb[0].mxu0
        %v2069 = vadd.f32 %v2028, %v2068
        %v2070 = vpop.f32.mrb[0].mxu0
        %v2071 = vpop.f32.mrb[0].mxu0
        %2072 = vdwg.mxu0
        %2073 = vmatprep.subr.bf16.mxu0 %v1562
        %2074 = vmatpush1.bf16.msra.mxu0 %v1561
        %2075 = vmatprep.subr.bf16.mxu0 %v1571
        %2076 = vmatpush1.bf16.msra.mxu0 %v1570
        %2077 = vmatprep.subr.bf16.mxu0 %v1580
        %2078 = vmatpush1.bf16.msra.mxu0 %v1579
        %2079 = vmatprep.subr.bf16.mxu0 %v1589
        %2080 = vmatpush1.bf16.msra.mxu0 %v1588
        %2081 = vmatprep.subr.bf16.mxu0 %v1598
        %2082 = vmatpush1.bf16.msra.mxu0 %v1597
        %2083 = vmatprep.subr.bf16.mxu0 %v1607
        %2084 = vmatpush1.bf16.msra.mxu0 %v1606
        %2085 = vmatprep.subr.bf16.mxu0 %v1616
        %2086 = vmatpush1.bf16.msra.mxu0 %v1615
        %2087 = vmatprep.subr.bf16.mxu0 %v1625
        %2088 = vmatpush1.bf16.msra.mxu0 %v1624
        %2089 = vmatprep.subr.bf16.mxu0 %v1634
        %2090 = vmatpush1.bf16.msra.mxu0 %v1633
        %2091 = vmatprep.subr.bf16.mxu0 %v1643
        %2092 = vmatpush1.bf16.msra.mxu0 %v1642
        %2093 = vmatprep.subr.bf16.mxu0 %v1652
        %2094 = vmatpush1.bf16.msra.mxu0 %v1651
        %2095 = vmatprep.subr.bf16.mxu0 %v1661
        %2096 = vmatpush1.bf16.msra.mxu0 %v1660
        %2097 = vmatprep.subr.bf16.mxu0 %v1670
        %2098 = vmatpush1.bf16.msra.mxu0 %v1669
        %2099 = vmatprep.subr.bf16.mxu0 %v1679
        %2100 = vmatpush1.bf16.msra.mxu0 %v1678
        %2101 = vmatprep.subr.bf16.mxu0 %v1688
        %2102 = vmatpush1.bf16.msra.mxu0 %v1687
        %2103 = vmatprep.subr.bf16.mxu0 %v1697
        %2104 = vmatpush1.bf16.msra.mxu0 %v1696
        %2105 = vmatprep.mubr.bf16.mxu0 %v645
        %2106 = vmatmul.mubr.bf16.gmra.mrb[0].mxu0 %v644
        %v2107 = vpop.f32.mrb[0].mxu0
        %v2108 = vadd.f32 0.0, %v2107
        %v2109 = vpop.f32.mrb[0].mxu0
        %v2110 = vadd.f32 0.0, %v2109
        %v2111 = vpop.f32.mrb[0].mxu0
        %v2112 = vpop.f32.mrb[0].mxu0
        %2113 = vdwg.mxu0
        %2114 = vmatprep.subr.bf16.mxu0 %v1706
        %2115 = vmatpush1.bf16.msra.mxu0 %v1705
        %2116 = vmatprep.subr.bf16.mxu0 %v1715
        %2117 = vmatpush1.bf16.msra.mxu0 %v1714
        %2118 = vmatprep.subr.bf16.mxu0 %v1724
        %2119 = vmatpush1.bf16.msra.mxu0 %v1723
        %2120 = vmatprep.subr.bf16.mxu0 %v1733
        %2121 = vmatpush1.bf16.msra.mxu0 %v1732
        %2122 = vmatprep.subr.bf16.mxu0 %v1742
        %2123 = vmatpush1.bf16.msra.mxu0 %v1741
        %2124 = vmatprep.subr.bf16.mxu0 %v1751
        %2125 = vmatpush1.bf16.msra.mxu0 %v1750
        %2126 = vmatprep.subr.bf16.mxu0 %v1760
        %2127 = vmatpush1.bf16.msra.mxu0 %v1759
        %2128 = vmatprep.subr.bf16.mxu0 %v1769
        %2129 = vmatpush1.bf16.msra.mxu0 %v1768
        %2130 = vmatprep.subr.bf16.mxu0 0
        %2131 = vmatpush1.bf16.msra.mxu0 0
        %2132 = vmatprep.subr.bf16.mxu0 0
        %2133 = vmatpush1.bf16.msra.mxu0 0
        %2134 = vmatprep.subr.bf16.mxu0 0
        %2135 = vmatpush1.bf16.msra.mxu0 0
        %2136 = vmatprep.subr.bf16.mxu0 0
        %2137 = vmatpush1.bf16.msra.mxu0 0
        %2138 = vmatprep.subr.bf16.mxu0 0
        %2139 = vmatpush1.bf16.msra.mxu0 0
        %2140 = vmatprep.subr.bf16.mxu0 0
        %2141 = vmatpush1.bf16.msra.mxu0 0
        %2142 = vmatprep.subr.bf16.mxu0 0
        %2143 = vmatpush1.bf16.msra.mxu0 0
        %2144 = vmatprep.subr.bf16.mxu0 0
        %2145 = vmatpush1.bf16.msra.mxu0 0
        %2146 = vmatprep.mubr.bf16.mxu0 0
        %2147 = vmatmul.mubr.bf16.gmra.mrb[0].mxu0 %v646
        %v2148 = vpop.f32.mrb[0].mxu0
        %v2149 = vadd.f32 %v2108, %v2148
        %v2150 = vpop.f32.mrb[0].mxu0
        %v2151 = vadd.f32 %v2110, %v2150
        %v2152 = vpop.f32.mrb[0].mxu0
        %v2153 = vpop.f32.mrb[0].mxu0
        %2154 = vdwg.mxu0
        %2155 = vmatprep.subr.bf16.mxu0 %v1564
        %2156 = vmatpush1.bf16.msra.mxu0 %v1563
        %2157 = vmatprep.subr.bf16.mxu0 %v1573
        %2158 = vmatpush1.bf16.msra.mxu0 %v1572
        %2159 = vmatprep.subr.bf16.mxu0 %v1582
        %2160 = vmatpush1.bf16.msra.mxu0 %v1581
        %2161 = vmatprep.subr.bf16.mxu0 %v1591
        %2162 = vmatpush1.bf16.msra.mxu0 %v1590
        %2163 = vmatprep.subr.bf16.mxu0 %v1600
        %2164 = vmatpush1.bf16.msra.mxu0 %v1599
        %2165 = vmatprep.subr.bf16.mxu0 %v1609
        %2166 = vmatpush1.bf16.msra.mxu0 %v1608
        %2167 = vmatprep.subr.bf16.mxu0 %v1618
        %2168 = vmatpush1.bf16.msra.mxu0 %v1617
        %2169 = vmatprep.subr.bf16.mxu0 %v1627
        %2170 = vmatpush1.bf16.msra.mxu0 %v1626
        %2171 = vmatprep.subr.bf16.mxu0 %v1636
        %2172 = vmatpush1.bf16.msra.mxu0 %v1635
        %2173 = vmatprep.subr.bf16.mxu0 %v1645
        %2174 = vmatpush1.bf16.msra.mxu0 %v1644
        %2175 = vmatprep.subr.bf16.mxu0 %v1654
        %2176 = vmatpush1.bf16.msra.mxu0 %v1653
        %2177 = vmatprep.subr.bf16.mxu0 %v1663
        %2178 = vmatpush1.bf16.msra.mxu0 %v1662
        %2179 = vmatprep.subr.bf16.mxu0 %v1672
        %2180 = vmatpush1.bf16.msra.mxu0 %v1671
        %2181 = vmatprep.subr.bf16.mxu0 %v1681
        %2182 = vmatpush1.bf16.msra.mxu0 %v1680
        %2183 = vmatprep.subr.bf16.mxu0 %v1690
        %2184 = vmatpush1.bf16.msra.mxu0 %v1689
        %2185 = vmatprep.subr.bf16.mxu0 %v1699
        %2186 = vmatpush1.bf16.msra.mxu0 %v1698
        %2187 = vmatprep.mubr.bf16.mxu0 %v645
        %2188 = vmatmul.mubr.bf16.gmra.mrb[0].mxu0 %v644
        %v2189 = vpop.f32.mrb[0].mxu0
        %v2190 = vadd.f32 0.0, %v2189
        %v2191 = vpop.f32.mrb[0].mxu0
        %v2192 = vadd.f32 0.0, %v2191
        %v2193 = vpop.f32.mrb[0].mxu0
        %v2194 = vpop.f32.mrb[0].mxu0
        %2195 = vdwg.mxu0
        %2196 = vmatprep.subr.bf16.mxu0 %v1708
        %2197 = vmatpush1.bf16.msra.mxu0 %v1707
        %2198 = vmatprep.subr.bf16.mxu0 %v1717
        %2199 = vmatpush1.bf16.msra.mxu0 %v1716
        %2200 = vmatprep.subr.bf16.mxu0 %v1726
        %2201 = vmatpush1.bf16.msra.mxu0 %v1725
        %2202 = vmatprep.subr.bf16.mxu0 %v1735
        %2203 = vmatpush1.bf16.msra.mxu0 %v1734
        %2204 = vmatprep.subr.bf16.mxu0 %v1744
        %2205 = vmatpush1.bf16.msra.mxu0 %v1743
        %2206 = vmatprep.subr.bf16.mxu0 %v1753
        %2207 = vmatpush1.bf16.msra.mxu0 %v1752
        %2208 = vmatprep.subr.bf16.mxu0 %v1762
        %2209 = vmatpush1.bf16.msra.mxu0 %v1761
        %2210 = vmatprep.subr.bf16.mxu0 %v1771
        %2211 = vmatpush1.bf16.msra.mxu0 %v1770
        %2212 = vmatprep.subr.bf16.mxu0 0
        %2213 = vmatpush1.bf16.msra.mxu0 0
        %2214 = vmatprep.subr.bf16.mxu0 0
        %2215 = vmatpush1.bf16.msra.mxu0 0
        %2216 = vmatprep.subr.bf16.mxu0 0
        %2217 = vmatpush1.bf16.msra.mxu0 0
        %2218 = vmatprep.subr.bf16.mxu0 0
        %2219 = vmatpush1.bf16.msra.mxu0 0
        %2220 = vmatprep.subr.bf16.mxu0 0
        %2221 = vmatpush1.bf16.msra.mxu0 0
        %2222 = vmatprep.subr.bf16.mxu0 0
        %2223 = vmatpush1.bf16.msra.mxu0 0
        %2224 = vmatprep.subr.bf16.mxu0 0
        %2225 = vmatpush1.bf16.msra.mxu0 0
        %2226 = vmatprep.subr.bf16.mxu0 0
        %2227 = vmatpush1.bf16.msra.mxu0 0
        %2228 = vmatprep.mubr.bf16.mxu0 0
        %2229 = vmatmul.mubr.bf16.gmra.mrb[0].mxu0 %v646
        %v2230 = vpop.f32.mrb[0].mxu0
        %v2231 = vadd.f32 %v2190, %v2230
        %v2232 = vpop.f32.mrb[0].mxu0
        %v2233 = vadd.f32 %v2192, %v2232
        %v2234 = vpop.f32.mrb[0].mxu0
        %v2235 = vpop.f32.mrb[0].mxu0
        %2236 = vdwg.mxu0
        %2237 = vmatprep.subr.bf16.mxu0 %v1566
        %2238 = vmatpush1.bf16.msra.mxu0 %v1565
        %2239 = vmatprep.subr.bf16.mxu0 %v1575
        %2240 = vmatpush1.bf16.msra.mxu0 %v1574
        %2241 = vmatprep.subr.bf16.mxu0 %v1584
        %2242 = vmatpush1.bf16.msra.mxu0 %v1583
        %2243 = vmatprep.subr.bf16.mxu0 %v1593
        %2244 = vmatpush1.bf16.msra.mxu0 %v1592
        %2245 = vmatprep.subr.bf16.mxu0 %v1602
        %2246 = vmatpush1.bf16.msra.mxu0 %v1601
        %2247 = vmatprep.subr.bf16.mxu0 %v1611
        %2248 = vmatpush1.bf16.msra.mxu0 %v1610
        %2249 = vmatprep.subr.bf16.mxu0 %v1620
        %2250 = vmatpush1.bf16.msra.mxu0 %v1619
        %2251 = vmatprep.subr.bf16.mxu0 %v1629
        %2252 = vmatpush1.bf16.msra.mxu0 %v1628
        %2253 = vmatprep.subr.bf16.mxu0 %v1638
        %2254 = vmatpush1.bf16.msra.mxu0 %v1637
        %2255 = vmatprep.subr.bf16.mxu0 %v1647
        %2256 = vmatpush1.bf16.msra.mxu0 %v1646
        %2257 = vmatprep.subr.bf16.mxu0 %v1656
        %2258 = vmatpush1.bf16.msra.mxu0 %v1655
        %2259 = vmatprep.subr.bf16.mxu0 %v1665
        %2260 = vmatpush1.bf16.msra.mxu0 %v1664
        %2261 = vmatprep.subr.bf16.mxu0 %v1674
        %2262 = vmatpush1.bf16.msra.mxu0 %v1673
        %2263 = vmatprep.subr.bf16.mxu0 %v1683
        %2264 = vmatpush1.bf16.msra.mxu0 %v1682
        %2265 = vmatprep.subr.bf16.mxu0 %v1692
        %2266 = vmatpush1.bf16.msra.mxu0 %v1691
        %2267 = vmatprep.subr.bf16.mxu0 %v1701
        %2268 = vmatpush1.bf16.msra.mxu0 %v1700
        %2269 = vmatprep.mubr.bf16.mxu0 %v645
        %2270 = vmatmul.mubr.bf16.gmra.mrb[0].mxu0 %v644
        %v2271 = vpop.f32.mrb[0].mxu0
        %v2272 = vadd.f32 0.0, %v2271
        %v2273 = vpop.f32.mrb[0].mxu0
        %v2274 = vadd.f32 0.0, %v2273
        %v2275 = vpop.f32.mrb[0].mxu0
        %v2276 = vpop.f32.mrb[0].mxu0
        %2277 = vdwg.mxu0
        %2278 = vmatprep.subr.bf16.mxu0 %v1710
        %2279 = vmatpush1.bf16.msra.mxu0 %v1709
        %2280 = vmatprep.subr.bf16.mxu0 %v1719
        %2281 = vmatpush1.bf16.msra.mxu0 %v1718
        %2282 = vmatprep.subr.bf16.mxu0 %v1728
        %2283 = vmatpush1.bf16.msra.mxu0 %v1727
        %2284 = vmatprep.subr.bf16.mxu0 %v1737
        %2285 = vmatpush1.bf16.msra.mxu0 %v1736
        %2286 = vmatprep.subr.bf16.mxu0 %v1746
        %2287 = vmatpush1.bf16.msra.mxu0 %v1745
        %2288 = vmatprep.subr.bf16.mxu0 %v1755
        %2289 = vmatpush1.bf16.msra.mxu0 %v1754
        %2290 = vmatprep.subr.bf16.mxu0 %v1764
        %2291 = vmatpush1.bf16.msra.mxu0 %v1763
        %2292 = vmatprep.subr.bf16.mxu0 %v1773
        %2293 = vmatpush1.bf16.msra.mxu0 %v1772
        %2294 = vmatprep.subr.bf16.mxu0 0
        %2295 = vmatpush1.bf16.msra.mxu0 0
        %2296 = vmatprep.subr.bf16.mxu0 0
        %2297 = vmatpush1.bf16.msra.mxu0 0
        %2298 = vmatprep.subr.bf16.mxu0 0
        %2299 = vmatpush1.bf16.msra.mxu0 0
        %2300 = vmatprep.subr.bf16.mxu0 0
        %2301 = vmatpush1.bf16.msra.mxu0 0
        %2302 = vmatprep.subr.bf16.mxu0 0
        %2303 = vmatpush1.bf16.msra.mxu0 0
        %2304 = vmatprep.subr.bf16.mxu0 0
        %2305 = vmatpush1.bf16.msra.mxu0 0
        %2306 = vmatprep.subr.bf16.mxu0 0
        %2307 = vmatpush1.bf16.msra.mxu0 0
        %2308 = vmatprep.subr.bf16.mxu0 0
        %2309 = vmatpush1.bf16.msra.mxu0 0
        %2310 = vmatprep.mubr.bf16.mxu0 0
        %2311 = vmatmul.mubr.bf16.gmra.mrb[0].mxu0 %v646
        %v2312 = vpop.f32.mrb[0].mxu0
        %v2313 = vadd.f32 %v2272, %v2312
        %v2314 = vpop.f32.mrb[0].mxu0
        %v2315 = vadd.f32 %v2274, %v2314
        %v2316 = vpop.f32.mrb[0].mxu0
        %v2317 = vpop.f32.mrb[0].mxu0
        %2318 = vdwg.mxu0
        %2319 = vmatprep.subr.bf16.mxu0 0
        %2320 = vmatpush1.bf16.msra.mxu0 %v1567
        %2321 = vmatprep.subr.bf16.mxu0 0
        %2322 = vmatpush1.bf16.msra.mxu0 %v1576
        %2323 = vmatprep.subr.bf16.mxu0 0
        %2324 = vmatpush1.bf16.msra.mxu0 %v1585
        %2325 = vmatprep.subr.bf16.mxu0 0
        %2326 = vmatpush1.bf16.msra.mxu0 %v1594
        %2327 = vmatprep.subr.bf16.mxu0 0
        %2328 = vmatpush1.bf16.msra.mxu0 %v1603
        %2329 = vmatprep.subr.bf16.mxu0 0
        %2330 = vmatpush1.bf16.msra.mxu0 %v1612
        %2331 = vmatprep.subr.bf16.mxu0 0
        %2332 = vmatpush1.bf16.msra.mxu0 %v1621
        %2333 = vmatprep.subr.bf16.mxu0 0
        %2334 = vmatpush1.bf16.msra.mxu0 %v1630
        %2335 = vmatprep.subr.bf16.mxu0 0
        %2336 = vmatpush1.bf16.msra.mxu0 %v1639
        %2337 = vmatprep.subr.bf16.mxu0 0
        %2338 = vmatpush1.bf16.msra.mxu0 %v1648
        %2339 = vmatprep.subr.bf16.mxu0 0
        %2340 = vmatpush1.bf16.msra.mxu0 %v1657
        %2341 = vmatprep.subr.bf16.mxu0 0
        %2342 = vmatpush1.bf16.msra.mxu0 %v1666
        %2343 = vmatprep.subr.bf16.mxu0 0
        %2344 = vmatpush1.bf16.msra.mxu0 %v1675
        %2345 = vmatprep.subr.bf16.mxu0 0
        %2346 = vmatpush1.bf16.msra.mxu0 %v1684
        %2347 = vmatprep.subr.bf16.mxu0 0
        %2348 = vmatpush1.bf16.msra.mxu0 %v1693
        %2349 = vmatprep.subr.bf16.mxu0 0
        %2350 = vmatpush1.bf16.msra.mxu0 %v1702
        %2351 = vmatprep.mubr.bf16.mxu0 %v645
        %2352 = vmatmul.mubr.bf16.gmra.mrb[0].mxu0 %v644
        %v2353 = vpop.f32.mrb[0].mxu0
        %v2354 = vadd.f32 0.0, %v2353
        %v2355 = vpop.f32.mrb[0].mxu0
        %v2356 = vpop.f32.mrb[0].mxu0
        %v2357 = vpop.f32.mrb[0].mxu0
        %2358 = vdwg.mxu0
        %2359 = vmatprep.subr.bf16.mxu0 0
        %2360 = vmatpush1.bf16.msra.mxu0 %v1711
        %2361 = vmatprep.subr.bf16.mxu0 0
        %2362 = vmatpush1.bf16.msra.mxu0 %v1720
        %2363 = vmatprep.subr.bf16.mxu0 0
        %2364 = vmatpush1.bf16.msra.mxu0 %v1729
        %2365 = vmatprep.subr.bf16.mxu0 0
        %2366 = vmatpush1.bf16.msra.mxu0 %v1738
        %2367 = vmatprep.subr.bf16.mxu0 0
        %2368 = vmatpush1.bf16.msra.mxu0 %v1747
        %2369 = vmatprep.subr.bf16.mxu0 0
        %2370 = vmatpush1.bf16.msra.mxu0 %v1756
        %2371 = vmatprep.subr.bf16.mxu0 0
        %2372 = vmatpush1.bf16.msra.mxu0 %v1765
        %2373 = vmatprep.subr.bf16.mxu0 0
        %2374 = vmatpush1.bf16.msra.mxu0 %v1774
        %2375 = vmatprep.subr.bf16.mxu0 0
        %2376 = vmatpush1.bf16.msra.mxu0 0
        %2377 = vmatprep.subr.bf16.mxu0 0
        %2378 = vmatpush1.bf16.msra.mxu0 0
        %2379 = vmatprep.subr.bf16.mxu0 0
        %2380 = vmatpush1.bf16.msra.mxu0 0
        %2381 = vmatprep.subr.bf16.mxu0 0
        %2382 = vmatpush1.bf16.msra.mxu0 0
        %2383 = vmatprep.subr.bf16.mxu0 0
        %2384 = vmatpush1.bf16.msra.mxu0 0
        %2385 = vmatprep.subr.bf16.mxu0 0
        %2386 = vmatpush1.bf16.msra.mxu0 0
        %2387 = vmatprep.subr.bf16.mxu0 0
        %2388 = vmatpush1.bf16.msra.mxu0 0
        %2389 = vmatprep.subr.bf16.mxu0 0
        %2390 = vmatpush1.bf16.msra.mxu0 0
        %2391 = vmatprep.mubr.bf16.mxu0 0
        %2392 = vmatmul.mubr.bf16.gmra.mrb[0].mxu0 %v646
        %v2393 = vpop.f32.mrb[0].mxu0
        %v2394 = vadd.f32 %v2354, %v2393
        %v2395 = vpop.f32.mrb[0].mxu0
        %v2396 = vpop.f32.mrb[0].mxu0
        %v2397 = vpop.f32.mrb[0].mxu0
        %2398 = vdwg.mxu0
        %v2399 = vpack.c.bf16 %v2067, %v2067
        %v2400 = vpack.c.bf16 %v2069, %v2069
        %v2401 = vpack.c.bf16 %v2149, %v2149
        %v2402 = vpack.c.bf16 %v2151, %v2151
        %v2403 = vpack.c.bf16 %v2231, %v2231
        %v2404 = vpack.c.bf16 %v2233, %v2233
        %v2405 = vpack.c.bf16 %v2313, %v2313
        %v2406 = vpack.c.bf16 %v2315, %v2315
        %v2407 = vpack.c.bf16 %v2394, %v2394
        %v2408 = vlaneseq
        %v2409 = vshrl.u32 %v2408, 7
        %v2410 = vlaneseq
        %v2411 = vand.u32 %v2410, 127
        %vm2412 = vcmp.ge.s32.totalorder %v2409, %v2411
        %vm2413 = vcmask 523264
        %v2415 = vsel %vm2413, %v2399, 0
        %v2418 = vsel %vm2413, %v2402, 0
        %2420 = vmatprep.subr.bf16.mxu0 0
        %2421 = vmatpush1.bf16.xpose.msra.mxu0 %v2418
        %2422 = vmatprep.subr.bf16.mxu0 0
        %2423 = vmatpush1.bf16.xpose.msra.mxu0 0
        %2424 = vmatprep.subr.bf16.mxu0 0
        %2425 = vmatpush1.bf16.xpose.msra.mxu0 0
        %2426 = vmatprep.subr.bf16.mxu0 0
        %2427 = vmatpush1.bf16.xpose.msra.mxu0 0
        %2428 = vmatprep.subr.bf16.mxu0 0
        %2429 = vmatpush1.bf16.xpose.msra.mxu0 0
        %2430 = vmatprep.subr.bf16.mxu0 0
        %2431 = vmatpush1.bf16.xpose.msra.mxu0 0
        %2432 = vmatprep.subr.bf16.mxu0 0
        %2433 = vmatpush1.bf16.xpose.msra.mxu0 0
        %2434 = vmatprep.subr.bf16.mxu0 0
        %2435 = vmatpush1.bf16.xpose.msra.mxu0 0
        %2436 = vmatprep.subr.bf16.mxu0 0
        %2437 = vmatpush1.bf16.xpose.msra.mxu0 0
        %2438 = vmatprep.subr.bf16.mxu0 0
        %2439 = vmatpush1.bf16.xpose.msra.mxu0 0
        %2440 = vmatprep.subr.bf16.mxu0 0
        %2441 = vmatpush1.bf16.xpose.msra.mxu0 0
        %2442 = vmatprep.subr.bf16.mxu0 0
        %2443 = vmatpush1.bf16.xpose.msra.mxu0 0
        %2444 = vmatprep.subr.bf16.mxu0 0
        %2445 = vmatpush1.bf16.xpose.msra.mxu0 0
        %2446 = vmatprep.subr.bf16.mxu0 0
        %2447 = vmatpush1.bf16.xpose.msra.mxu0 0
        %2448 = vmatprep.subr.bf16.mxu0 0
        %2449 = vmatpush1.bf16.xpose.msra.mxu0 0
        %2450 = vmatprep.subr.bf16.mxu0 0
        %2451 = vmatpush1.bf16.xpose.msra.mxu0 0
        %2452 = vmatprep.mubr.bf16.mxu0 0
        %2453 = vmatmul.mubr.bf16.gmra.mrb[0].mxu0 %v2415
        %v2454 = vpop.f32.mrb[0].mxu0
        %v2455 = vadd.f32 0.0, %v2454
        %v2456 = vpop.f32.mrb[0].mxu0
        %v2457 = vpop.f32.mrb[0].mxu0
        %v2458 = vpop.f32.mrb[0].mxu0
        %2459 = vdwg.mxu0
        %v2460 = vsel %vm2412, %v2455, -1e+30
        %vm2461 = vcmask 64512
        %v2462 = vsel %vm2461, %v2460, -inf
        %2463 = vmax.xlane.f32.xlu0 %v2462
        %v2464 = vpop.xlane.xlu0 %2463
        %v2465 = vsub.f32 %v2460, %v2464
        %v2466 = vmul.f32 %v2465, 1.442695
        %v2467 = vpow.pop %v2466
        %v2468 = vsel %vm2461, %v2467, 0.0
        %2469 = vadd.xlane.f32.xlu0 %v2468
        %v2470 = vpop.xlane.xlu0 %2469
        %v2471 = vrcp.pop %v2470
        %v2472 = vmul.f32 %v2467, %v2471
        %v2473 = vpack.c.bf16 %v2472, %v2472
        %v2475 = vsel %vm2461, %v2473, 0
        %vm2477 = vcmask 1043456
        %v2479 = vsel %vm2477, %v2405, 0
        %2481 = vmatprep.subr.bf16.mxu0 0
        %2482 = vmatpush1.bf16.msra.mxu0 %v2479
        %2483 = vmatprep.subr.bf16.mxu0 0
        %2484 = vmatpush1.bf16.msra.mxu0 0
        %2485 = vmatprep.subr.bf16.mxu0 0
        %2486 = vmatpush1.bf16.msra.mxu0 0
        %2487 = vmatprep.subr.bf16.mxu0 0
        %2488 = vmatpush1.bf16.msra.mxu0 0
        %2489 = vmatprep.subr.bf16.mxu0 0
        %2490 = vmatpush1.bf16.msra.mxu0 0
        %2491 = vmatprep.subr.bf16.mxu0 0
        %2492 = vmatpush1.bf16.msra.mxu0 0
        %2493 = vmatprep.subr.bf16.mxu0 0
        %2494 = vmatpush1.bf16.msra.mxu0 0
        %2495 = vmatprep.subr.bf16.mxu0 0
        %2496 = vmatpush1.bf16.msra.mxu0 0
        %2497 = vmatprep.subr.bf16.mxu0 0
        %2498 = vmatpush1.bf16.msra.mxu0 0
        %2499 = vmatprep.subr.bf16.mxu0 0
        %2500 = vmatpush1.bf16.msra.mxu0 0
        %2501 = vmatprep.subr.bf16.mxu0 0
        %2502 = vmatpush1.bf16.msra.mxu0 0
        %2503 = vmatprep.subr.bf16.mxu0 0
        %2504 = vmatpush1.bf16.msra.mxu0 0
        %2505 = vmatprep.subr.bf16.mxu0 0
        %2506 = vmatpush1.bf16.msra.mxu0 0
        %2507 = vmatprep.subr.bf16.mxu0 0
        %2508 = vmatpush1.bf16.msra.mxu0 0
        %2509 = vmatprep.subr.bf16.mxu0 0
        %2510 = vmatpush1.bf16.msra.mxu0 0
        %2511 = vmatprep.subr.bf16.mxu0 0
        %2512 = vmatpush1.bf16.msra.mxu0 0
        %2513 = vmatprep.mubr.bf16.mxu0 0
        %2514 = vmatmul.mubr.bf16.gmra.mrb[0].mxu0 %v2475
        %v2515 = vpop.f32.mrb[0].mxu0
        %v2516 = vadd.f32 0.0, %v2515
        %v2517 = vpop.f32.mrb[0].mxu0
        %v2518 = vpop.f32.mrb[0].mxu0
        %v2519 = vpop.f32.mrb[0].mxu0
        %2520 = vdwg.mxu0
        %v2521 = vpack.c.bf16 %v2516, %v2516
        %vm2522 = vcmask 519168
        %2523 = vst.msk [vmem:[#allocation2] sm:$0xf] %vm2522, %v2521
        %2525 = vrot.lane.b32.xlu0 %v2399, 64
        %v2526 = vpop.permute.xlu0 %2525
        %2528 = vrot.lane.b32.xlu0 %v2402, 64
        %v2529 = vpop.permute.xlu0 %2528
        %v2531 = vsel %vm2413, %v2526, 0
        %v2534 = vsel %vm2413, %v2529, 0
        %2536 = vmatprep.subr.bf16.mxu0 0
        %2537 = vmatpush1.bf16.xpose.msra.mxu0 %v2534
        %2538 = vmatprep.subr.bf16.mxu0 0
        %2539 = vmatpush1.bf16.xpose.msra.mxu0 0
        %2540 = vmatprep.subr.bf16.mxu0 0
        %2541 = vmatpush1.bf16.xpose.msra.mxu0 0
        %2542 = vmatprep.subr.bf16.mxu0 0
        %2543 = vmatpush1.bf16.xpose.msra.mxu0 0
        %2544 = vmatprep.subr.bf16.mxu0 0
        %2545 = vmatpush1.bf16.xpose.msra.mxu0 0
        %2546 = vmatprep.subr.bf16.mxu0 0
        %2547 = vmatpush1.bf16.xpose.msra.mxu0 0
        %2548 = vmatprep.subr.bf16.mxu0 0
        %2549 = vmatpush1.bf16.xpose.msra.mxu0 0
        %2550 = vmatprep.subr.bf16.mxu0 0
        %2551 = vmatpush1.bf16.xpose.msra.mxu0 0
        %2552 = vmatprep.subr.bf16.mxu0 0
        %2553 = vmatpush1.bf16.xpose.msra.mxu0 0
        %2554 = vmatprep.subr.bf16.mxu0 0
        %2555 = vmatpush1.bf16.xpose.msra.mxu0 0
        %2556 = vmatprep.subr.bf16.mxu0 0
        %2557 = vmatpush1.bf16.xpose.msra.mxu0 0
        %2558 = vmatprep.subr.bf16.mxu0 0
        %2559 = vmatpush1.bf16.xpose.msra.mxu0 0
        %2560 = vmatprep.subr.bf16.mxu0 0
        %2561 = vmatpush1.bf16.xpose.msra.mxu0 0
        %2562 = vmatprep.subr.bf16.mxu0 0
        %2563 = vmatpush1.bf16.xpose.msra.mxu0 0
        %2564 = vmatprep.subr.bf16.mxu0 0
        %2565 = vmatpush1.bf16.xpose.msra.mxu0 0
        %2566 = vmatprep.subr.bf16.mxu0 0
        %2567 = vmatpush1.bf16.xpose.msra.mxu0 0
        %2568 = vmatprep.mubr.bf16.mxu0 0
        %2569 = vmatmul.mubr.bf16.gmra.mrb[0].mxu0 %v2531
        %v2570 = vpop.f32.mrb[0].mxu0
        %v2571 = vadd.f32 0.0, %v2570
        %v2572 = vpop.f32.mrb[0].mxu0
        %v2573 = vpop.f32.mrb[0].mxu0
        %v2574 = vpop.f32.mrb[0].mxu0
        %2575 = vdwg.mxu0
        %v2576 = vsel %vm2412, %v2571, -1e+30
        %v2577 = vsel %vm2461, %v2576, -inf
        %2578 = vmax.xlane.f32.xlu0 %v2577
        %v2579 = vpop.xlane.xlu0 %2578
        %v2580 = vsub.f32 %v2576, %v2579
        %v2581 = vmul.f32 %v2580, 1.442695
        %v2582 = vpow.pop %v2581
        %v2583 = vsel %vm2461, %v2582, 0.0
        %2584 = vadd.xlane.f32.xlu0 %v2583
        %v2585 = vpop.xlane.xlu0 %2584
        %v2586 = vrcp.pop %v2585
        %v2587 = vmul.f32 %v2582, %v2586
        %v2588 = vpack.c.bf16 %v2587, %v2587
        %2590 = vrot.lane.b32.xlu0 %v2405, 64
        %v2591 = vpop.permute.xlu0 %2590
        %v2593 = vsel %vm2461, %v2588, 0
        %v2596 = vsel %vm2477, %v2591, 0
        %2598 = vmatprep.subr.bf16.mxu0 0
        %2599 = vmatpush1.bf16.msra.mxu0 %v2596
        %2600 = vmatprep.subr.bf16.mxu0 0
        %2601 = vmatpush1.bf16.msra.mxu0 0
        %2602 = vmatprep.subr.bf16.mxu0 0
        %2603 = vmatpush1.bf16.msra.mxu0 0
        %2604 = vmatprep.subr.bf16.mxu0 0
        %2605 = vmatpush1.bf16.msra.mxu0 0
        %2606 = vmatprep.subr.bf16.mxu0 0
        %2607 = vmatpush1.bf16.msra.mxu0 0
        %2608 = vmatprep.subr.bf16.mxu0 0
        %2609 = vmatpush1.bf16.msra.mxu0 0
        %2610 = vmatprep.subr.bf16.mxu0 0
        %2611 = vmatpush1.bf16.msra.mxu0 0
        %2612 = vmatprep.subr.bf16.mxu0 0
        %2613 = vmatpush1.bf16.msra.mxu0 0
        %2614 = vmatprep.subr.bf16.mxu0 0
        %2615 = vmatpush1.bf16.msra.mxu0 0
        %2616 = vmatprep.subr.bf16.mxu0 0
        %2617 = vmatpush1.bf16.msra.mxu0 0
        %2618 = vmatprep.subr.bf16.mxu0 0
        %2619 = vmatpush1.bf16.msra.mxu0 0
        %2620 = vmatprep.subr.bf16.mxu0 0
        %2621 = vmatpush1.bf16.msra.mxu0 0
        %2622 = vmatprep.subr.bf16.mxu0 0
        %2623 = vmatpush1.bf16.msra.mxu0 0
        %2624 = vmatprep.subr.bf16.mxu0 0
        %2625 = vmatpush1.bf16.msra.mxu0 0
        %2626 = vmatprep.subr.bf16.mxu0 0
        %2627 = vmatpush1.bf16.msra.mxu0 0
        %2628 = vmatprep.subr.bf16.mxu0 0
        %2629 = vmatpush1.bf16.msra.mxu0 0
        %2630 = vmatprep.mubr.bf16.mxu0 0
        %2631 = vmatmul.mubr.bf16.gmra.mrb[0].mxu0 %v2593
        %v2632 = vpop.f32.mrb[0].mxu0
        %v2633 = vadd.f32 0.0, %v2632
        %v2634 = vpop.f32.mrb[0].mxu0
        %v2635 = vpop.f32.mrb[0].mxu0
        %v2636 = vpop.f32.mrb[0].mxu0
        %2637 = vdwg.mxu0
        %v2638 = vpack.c.bf16 %v2633, %v2633
        %v2640 = vunpack.c.l.b16 %v2638
        %v2641 = vpack.c.b16 %v2640, %v2640
        %2642 = vrot.lane.b32.xlu0 %v2641, 64
        %v2643 = vpop.permute.xlu0 %2642
        %vm2645 = vcmask 1043968
        %2646 = vst.msk [vmem:[#allocation2] sm:$0xf] %vm2645, %v2643
        %v2648 = vsel %vm2413, %v2400, 0
        %v2651 = vsel %vm2413, %v2403, 0
        %2653 = vmatprep.subr.bf16.mxu0 0
        %2654 = vmatpush1.bf16.xpose.msra.mxu0 %v2651
        %2655 = vmatprep.subr.bf16.mxu0 0
        %2656 = vmatpush1.bf16.xpose.msra.mxu0 0
        %2657 = vmatprep.subr.bf16.mxu0 0
        %2658 = vmatpush1.bf16.xpose.msra.mxu0 0
        %2659 = vmatprep.subr.bf16.mxu0 0
        %2660 = vmatpush1.bf16.xpose.msra.mxu0 0
        %2661 = vmatprep.subr.bf16.mxu0 0
        %2662 = vmatpush1.bf16.xpose.msra.mxu0 0
        %2663 = vmatprep.subr.bf16.mxu0 0
        %2664 = vmatpush1.bf16.xpose.msra.mxu0 0
        %2665 = vmatprep.subr.bf16.mxu0 0
        %2666 = vmatpush1.bf16.xpose.msra.mxu0 0
        %2667 = vmatprep.subr.bf16.mxu0 0
        %2668 = vmatpush1.bf16.xpose.msra.mxu0 0
        %2669 = vmatprep.subr.bf16.mxu0 0
        %2670 = vmatpush1.bf16.xpose.msra.mxu0 0
        %2671 = vmatprep.subr.bf16.mxu0 0
        %2672 = vmatpush1.bf16.xpose.msra.mxu0 0
        %2673 = vmatprep.subr.bf16.mxu0 0
        %2674 = vmatpush1.bf16.xpose.msra.mxu0 0
        %2675 = vmatprep.subr.bf16.mxu0 0
        %2676 = vmatpush1.bf16.xpose.msra.mxu0 0
        %2677 = vmatprep.subr.bf16.mxu0 0
        %2678 = vmatpush1.bf16.xpose.msra.mxu0 0
        %2679 = vmatprep.subr.bf16.mxu0 0
        %2680 = vmatpush1.bf16.xpose.msra.mxu0 0
        %2681 = vmatprep.subr.bf16.mxu0 0
        %2682 = vmatpush1.bf16.xpose.msra.mxu0 0
        %2683 = vmatprep.subr.bf16.mxu0 0
        %2684 = vmatpush1.bf16.xpose.msra.mxu0 0
        %2685 = vmatprep.mubr.bf16.mxu0 0
        %2686 = vmatmul.mubr.bf16.gmra.mrb[0].mxu0 %v2648
        %v2687 = vpop.f32.mrb[0].mxu0
        %v2688 = vadd.f32 0.0, %v2687
        %v2689 = vpop.f32.mrb[0].mxu0
        %v2690 = vpop.f32.mrb[0].mxu0
        %v2691 = vpop.f32.mrb[0].mxu0
        %2692 = vdwg.mxu0
        %v2693 = vsel %vm2412, %v2688, -1e+30
        %v2694 = vsel %vm2461, %v2693, -inf
        %2695 = vmax.xlane.f32.xlu0 %v2694
        %v2696 = vpop.xlane.xlu0 %2695
        %v2697 = vsub.f32 %v2693, %v2696
        %v2698 = vmul.f32 %v2697, 1.442695
        %v2699 = vpow.pop %v2698
        %v2700 = vsel %vm2461, %v2699, 0.0
        %2701 = vadd.xlane.f32.xlu0 %v2700
        %v2702 = vpop.xlane.xlu0 %2701
        %v2703 = vrcp.pop %v2702
        %v2704 = vmul.f32 %v2699, %v2703
        %v2705 = vpack.c.bf16 %v2704, %v2704
        %v2707 = vsel %vm2461, %v2705, 0
        %v2710 = vsel %vm2477, %v2406, 0
        %2712 = vmatprep.subr.bf16.mxu0 0
        %2713 = vmatpush1.bf16.msra.mxu0 %v2710
        %2714 = vmatprep.subr.bf16.mxu0 0
        %2715 = vmatpush1.bf16.msra.mxu0 0
        %2716 = vmatprep.subr.bf16.mxu0 0
        %2717 = vmatpush1.bf16.msra.mxu0 0
        %2718 = vmatprep.subr.bf16.mxu0 0
        %2719 = vmatpush1.bf16.msra.mxu0 0
        %2720 = vmatprep.subr.bf16.mxu0 0
        %2721 = vmatpush1.bf16.msra.mxu0 0
        %2722 = vmatprep.subr.bf16.mxu0 0
        %2723 = vmatpush1.bf16.msra.mxu0 0
        %2724 = vmatprep.subr.bf16.mxu0 0
        %2725 = vmatpush1.bf16.msra.mxu0 0
        %2726 = vmatprep.subr.bf16.mxu0 0
        %2727 = vmatpush1.bf16.msra.mxu0 0
        %2728 = vmatprep.subr.bf16.mxu0 0
        %2729 = vmatpush1.bf16.msra.mxu0 0
        %2730 = vmatprep.subr.bf16.mxu0 0
        %2731 = vmatpush1.bf16.msra.mxu0 0
        %2732 = vmatprep.subr.bf16.mxu0 0
        %2733 = vmatpush1.bf16.msra.mxu0 0
        %2734 = vmatprep.subr.bf16.mxu0 0
        %2735 = vmatpush1.bf16.msra.mxu0 0
        %2736 = vmatprep.subr.bf16.mxu0 0
        %2737 = vmatpush1.bf16.msra.mxu0 0
        %2738 = vmatprep.subr.bf16.mxu0 0
        %2739 = vmatpush1.bf16.msra.mxu0 0
        %2740 = vmatprep.subr.bf16.mxu0 0
        %2741 = vmatpush1.bf16.msra.mxu0 0
        %2742 = vmatprep.subr.bf16.mxu0 0
        %2743 = vmatpush1.bf16.msra.mxu0 0
        %2744 = vmatprep.mubr.bf16.mxu0 0
        %2745 = vmatmul.mubr.bf16.gmra.mrb[0].mxu0 %v2707
        %v2746 = vpop.f32.mrb[0].mxu0
        %v2747 = vadd.f32 0.0, %v2746
        %v2748 = vpop.f32.mrb[0].mxu0
        %v2749 = vpop.f32.mrb[0].mxu0
        %v2750 = vpop.f32.mrb[0].mxu0
        %2751 = vdwg.mxu0
        %v2752 = vpack.c.bf16 %v2747, %v2747
        %2753 = vst.msk [vmem:[#allocation2 + $0x4] sm:$0xf] %vm2522, %v2752
        %2755 = vrot.lane.b32.xlu0 %v2400, 64
        %v2756 = vpop.permute.xlu0 %2755
        %2758 = vrot.lane.b32.xlu0 %v2403, 64
        %v2759 = vpop.permute.xlu0 %2758
        %v2761 = vsel %vm2413, %v2756, 0
        %v2764 = vsel %vm2413, %v2759, 0
        %2766 = vmatprep.subr.bf16.mxu0 0
        %2767 = vmatpush1.bf16.xpose.msra.mxu0 %v2764
        %2768 = vmatprep.subr.bf16.mxu0 0
        %2769 = vmatpush1.bf16.xpose.msra.mxu0 0
        %2770 = vmatprep.subr.bf16.mxu0 0
        %2771 = vmatpush1.bf16.xpose.msra.mxu0 0
        %2772 = vmatprep.subr.bf16.mxu0 0
        %2773 = vmatpush1.bf16.xpose.msra.mxu0 0
        %2774 = vmatprep.subr.bf16.mxu0 0
        %2775 = vmatpush1.bf16.xpose.msra.mxu0 0
        %2776 = vmatprep.subr.bf16.mxu0 0
        %2777 = vmatpush1.bf16.xpose.msra.mxu0 0
        %2778 = vmatprep.subr.bf16.mxu0 0
        %2779 = vmatpush1.bf16.xpose.msra.mxu0 0
        %2780 = vmatprep.subr.bf16.mxu0 0
        %2781 = vmatpush1.bf16.xpose.msra.mxu0 0
        %2782 = vmatprep.subr.bf16.mxu0 0
        %2783 = vmatpush1.bf16.xpose.msra.mxu0 0
        %2784 = vmatprep.subr.bf16.mxu0 0
        %2785 = vmatpush1.bf16.xpose.msra.mxu0 0
        %2786 = vmatprep.subr.bf16.mxu0 0
        %2787 = vmatpush1.bf16.xpose.msra.mxu0 0
        %2788 = vmatprep.subr.bf16.mxu0 0
        %2789 = vmatpush1.bf16.xpose.msra.mxu0 0
        %2790 = vmatprep.subr.bf16.mxu0 0
        %2791 = vmatpush1.bf16.xpose.msra.mxu0 0
        %2792 = vmatprep.subr.bf16.mxu0 0
        %2793 = vmatpush1.bf16.xpose.msra.mxu0 0
        %2794 = vmatprep.subr.bf16.mxu0 0
        %2795 = vmatpush1.bf16.xpose.msra.mxu0 0
        %2796 = vmatprep.subr.bf16.mxu0 0
        %2797 = vmatpush1.bf16.xpose.msra.mxu0 0
        %2798 = vmatprep.mubr.bf16.mxu0 0
        %2799 = vmatmul.mubr.bf16.gmra.mrb[0].mxu0 %v2761
        %v2800 = vpop.f32.mrb[0].mxu0
        %v2801 = vadd.f32 0.0, %v2800
        %v2802 = vpop.f32.mrb[0].mxu0
        %v2803 = vpop.f32.mrb[0].mxu0
        %v2804 = vpop.f32.mrb[0].mxu0
        %2805 = vdwg.mxu0
        %v2806 = vsel %vm2412, %v2801, -1e+30
        %v2807 = vsel %vm2461, %v2806, -inf
        %2808 = vmax.xlane.f32.xlu0 %v2807
        %v2809 = vpop.xlane.xlu0 %2808
        %v2810 = vsub.f32 %v2806, %v2809
        %v2811 = vmul.f32 %v2810, 1.442695
        %v2812 = vpow.pop %v2811
        %v2813 = vsel %vm2461, %v2812, 0.0
        %2814 = vadd.xlane.f32.xlu0 %v2813
        %v2815 = vpop.xlane.xlu0 %2814
        %v2816 = vrcp.pop %v2815
        %v2817 = vmul.f32 %v2812, %v2816
        %v2818 = vpack.c.bf16 %v2817, %v2817
        %2820 = vrot.lane.b32.xlu0 %v2406, 64
        %v2821 = vpop.permute.xlu0 %2820
        %v2823 = vsel %vm2461, %v2818, 0
        %v2826 = vsel %vm2477, %v2821, 0
        %2828 = vmatprep.subr.bf16.mxu0 0
        %2829 = vmatpush1.bf16.msra.mxu0 %v2826
        %2830 = vmatprep.subr.bf16.mxu0 0
        %2831 = vmatpush1.bf16.msra.mxu0 0
        %2832 = vmatprep.subr.bf16.mxu0 0
        %2833 = vmatpush1.bf16.msra.mxu0 0
        %2834 = vmatprep.subr.bf16.mxu0 0
        %2835 = vmatpush1.bf16.msra.mxu0 0
        %2836 = vmatprep.subr.bf16.mxu0 0
        %2837 = vmatpush1.bf16.msra.mxu0 0
        %2838 = vmatprep.subr.bf16.mxu0 0
        %2839 = vmatpush1.bf16.msra.mxu0 0
        %2840 = vmatprep.subr.bf16.mxu0 0
        %2841 = vmatpush1.bf16.msra.mxu0 0
        %2842 = vmatprep.subr.bf16.mxu0 0
        %2843 = vmatpush1.bf16.msra.mxu0 0
        %2844 = vmatprep.subr.bf16.mxu0 0
        %2845 = vmatpush1.bf16.msra.mxu0 0
        %2846 = vmatprep.subr.bf16.mxu0 0
        %2847 = vmatpush1.bf16.msra.mxu0 0
        %2848 = vmatprep.subr.bf16.mxu0 0
        %2849 = vmatpush1.bf16.msra.mxu0 0
        %2850 = vmatprep.subr.bf16.mxu0 0
        %2851 = vmatpush1.bf16.msra.mxu0 0
        %2852 = vmatprep.subr.bf16.mxu0 0
        %2853 = vmatpush1.bf16.msra.mxu0 0
        %2854 = vmatprep.subr.bf16.mxu0 0
        %2855 = vmatpush1.bf16.msra.mxu0 0
        %2856 = vmatprep.subr.bf16.mxu0 0
        %2857 = vmatpush1.bf16.msra.mxu0 0
        %2858 = vmatprep.subr.bf16.mxu0 0
        %2859 = vmatpush1.bf16.msra.mxu0 0
        %2860 = vmatprep.mubr.bf16.mxu0 0
        %2861 = vmatmul.mubr.bf16.gmra.mrb[0].mxu0 %v2823
        %v2862 = vpop.f32.mrb[0].mxu0
        %v2863 = vadd.f32 0.0, %v2862
        %v2864 = vpop.f32.mrb[0].mxu0
        %v2865 = vpop.f32.mrb[0].mxu0
        %v2866 = vpop.f32.mrb[0].mxu0
        %2867 = vdwg.mxu0
        %v2868 = vpack.c.bf16 %v2863, %v2863
        %v2870 = vunpack.c.l.b16 %v2868
        %v2871 = vpack.c.b16 %v2870, %v2870
        %2872 = vrot.lane.b32.xlu0 %v2871, 64
        %v2873 = vpop.permute.xlu0 %2872
        %2875 = vst.msk [vmem:[#allocation2 + $0x4] sm:$0xf] %vm2645, %v2873
        %v2877 = vsel %vm2413, %v2401, 0
        %v2880 = vsel %vm2413, %v2404, 0
        %2882 = vmatprep.subr.bf16.mxu0 0
        %2883 = vmatpush1.bf16.xpose.msra.mxu0 %v2880
        %2884 = vmatprep.subr.bf16.mxu0 0
        %2885 = vmatpush1.bf16.xpose.msra.mxu0 0
        %2886 = vmatprep.subr.bf16.mxu0 0
        %2887 = vmatpush1.bf16.xpose.msra.mxu0 0
        %2888 = vmatprep.subr.bf16.mxu0 0
        %2889 = vmatpush1.bf16.xpose.msra.mxu0 0
        %2890 = vmatprep.subr.bf16.mxu0 0
        %2891 = vmatpush1.bf16.xpose.msra.mxu0 0
        %2892 = vmatprep.subr.bf16.mxu0 0
        %2893 = vmatpush1.bf16.xpose.msra.mxu0 0
        %2894 = vmatprep.subr.bf16.mxu0 0
        %2895 = vmatpush1.bf16.xpose.msra.mxu0 0
        %2896 = vmatprep.subr.bf16.mxu0 0
        %2897 = vmatpush1.bf16.xpose.msra.mxu0 0
        %2898 = vmatprep.subr.bf16.mxu0 0
        %2899 = vmatpush1.bf16.xpose.msra.mxu0 0
        %2900 = vmatprep.subr.bf16.mxu0 0
        %2901 = vmatpush1.bf16.xpose.msra.mxu0 0
        %2902 = vmatprep.subr.bf16.mxu0 0
        %2903 = vmatpush1.bf16.xpose.msra.mxu0 0
        %2904 = vmatprep.subr.bf16.mxu0 0
        %2905 = vmatpush1.bf16.xpose.msra.mxu0 0
        %2906 = vmatprep.subr.bf16.mxu0 0
        %2907 = vmatpush1.bf16.xpose.msra.mxu0 0
        %2908 = vmatprep.subr.bf16.mxu0 0
        %2909 = vmatpush1.bf16.xpose.msra.mxu0 0
        %2910 = vmatprep.subr.bf16.mxu0 0
        %2911 = vmatpush1.bf16.xpose.msra.mxu0 0
        %2912 = vmatprep.subr.bf16.mxu0 0
        %2913 = vmatpush1.bf16.xpose.msra.mxu0 0
        %2914 = vmatprep.mubr.bf16.mxu0 0
        %2915 = vmatmul.mubr.bf16.gmra.mrb[0].mxu0 %v2877
        %v2916 = vpop.f32.mrb[0].mxu0
        %v2917 = vadd.f32 0.0, %v2916
        %v2918 = vpop.f32.mrb[0].mxu0
        %v2919 = vpop.f32.mrb[0].mxu0
        %v2920 = vpop.f32.mrb[0].mxu0
        %2921 = vdwg.mxu0
        %v2922 = vsel %vm2412, %v2917, -1e+30
        %v2923 = vsel %vm2461, %v2922, -inf
        %2924 = vmax.xlane.f32.xlu0 %v2923
        %v2925 = vpop.xlane.xlu0 %2924
        %v2926 = vsub.f32 %v2922, %v2925
        %v2927 = vmul.f32 %v2926, 1.442695
        %v2928 = vpow.pop %v2927
        %v2929 = vsel %vm2461, %v2928, 0.0
        %2930 = vadd.xlane.f32.xlu0 %v2929
        %v2931 = vpop.xlane.xlu0 %2930
        %v2932 = vrcp.pop %v2931
        %v2933 = vmul.f32 %v2928, %v2932
        %v2934 = vpack.c.bf16 %v2933, %v2933
        %v2936 = vsel %vm2461, %v2934, 0
        %v2939 = vsel %vm2477, %v2407, 0
        %2941 = vmatprep.subr.bf16.mxu0 0
        %2942 = vmatpush1.bf16.msra.mxu0 %v2939
        %2943 = vmatprep.subr.bf16.mxu0 0
        %2944 = vmatpush1.bf16.msra.mxu0 0
        %2945 = vmatprep.subr.bf16.mxu0 0
        %2946 = vmatpush1.bf16.msra.mxu0 0
        %2947 = vmatprep.subr.bf16.mxu0 0
        %2948 = vmatpush1.bf16.msra.mxu0 0
        %2949 = vmatprep.subr.bf16.mxu0 0
        %2950 = vmatpush1.bf16.msra.mxu0 0
        %2951 = vmatprep.subr.bf16.mxu0 0
        %2952 = vmatpush1.bf16.msra.mxu0 0
        %2953 = vmatprep.subr.bf16.mxu0 0
        %2954 = vmatpush1.bf16.msra.mxu0 0
        %2955 = vmatprep.subr.bf16.mxu0 0
        %2956 = vmatpush1.bf16.msra.mxu0 0
        %2957 = vmatprep.subr.bf16.mxu0 0
        %2958 = vmatpush1.bf16.msra.mxu0 0
        %2959 = vmatprep.subr.bf16.mxu0 0
        %2960 = vmatpush1.bf16.msra.mxu0 0
        %2961 = vmatprep.subr.bf16.mxu0 0
        %2962 = vmatpush1.bf16.msra.mxu0 0
        %2963 = vmatprep.subr.bf16.mxu0 0
        %2964 = vmatpush1.bf16.msra.mxu0 0
        %2965 = vmatprep.subr.bf16.mxu0 0
        %2966 = vmatpush1.bf16.msra.mxu0 0
        %2967 = vmatprep.subr.bf16.mxu0 0
        %2968 = vmatpush1.bf16.msra.mxu0 0
        %2969 = vmatprep.subr.bf16.mxu0 0
        %2970 = vmatpush1.bf16.msra.mxu0 0
        %2971 = vmatprep.subr.bf16.mxu0 0
        %2972 = vmatpush1.bf16.msra.mxu0 0
        %2973 = vmatprep.mubr.bf16.mxu0 0
        %2974 = vmatmul.mubr.bf16.gmra.mrb[0].mxu0 %v2936
        %v2975 = vpop.f32.mrb[0].mxu0
        %v2976 = vadd.f32 0.0, %v2975
        %v2977 = vpop.f32.mrb[0].mxu0
        %v2978 = vpop.f32.mrb[0].mxu0
        %v2979 = vpop.f32.mrb[0].mxu0
        %2980 = vdwg.mxu0
        %v2981 = vpack.c.bf16 %v2976, %v2976
        %2982 = vst.msk [vmem:[#allocation2 + $0x8] sm:$0xf] %vm2522, %v2981
        %2984 = vrot.lane.b32.xlu0 %v2401, 64
        %v2985 = vpop.permute.xlu0 %2984
        %2987 = vrot.lane.b32.xlu0 %v2404, 64
        %v2988 = vpop.permute.xlu0 %2987
        %v2990 = vsel %vm2413, %v2985, 0
        %v2993 = vsel %vm2413, %v2988, 0
        %2995 = vmatprep.subr.bf16.mxu0 0
        %2996 = vmatpush1.bf16.xpose.msra.mxu0 %v2993
        %2997 = vmatprep.subr.bf16.mxu0 0
        %2998 = vmatpush1.bf16.xpose.msra.mxu0 0
        %2999 = vmatprep.subr.bf16.mxu0 0
        %3000 = vmatpush1.bf16.xpose.msra.mxu0 0
        %3001 = vmatprep.subr.bf16.mxu0 0
        %3002 = vmatpush1.bf16.xpose.msra.mxu0 0
        %3003 = vmatprep.subr.bf16.mxu0 0
        %3004 = vmatpush1.bf16.xpose.msra.mxu0 0
        %3005 = vmatprep.subr.bf16.mxu0 0
        %3006 = vmatpush1.bf16.xpose.msra.mxu0 0
        %3007 = vmatprep.subr.bf16.mxu0 0
        %3008 = vmatpush1.bf16.xpose.msra.mxu0 0
        %3009 = vmatprep.subr.bf16.mxu0 0
        %3010 = vmatpush1.bf16.xpose.msra.mxu0 0
        %3011 = vmatprep.subr.bf16.mxu0 0
        %3012 = vmatpush1.bf16.xpose.msra.mxu0 0
        %3013 = vmatprep.subr.bf16.mxu0 0
        %3014 = vmatpush1.bf16.xpose.msra.mxu0 0
        %3015 = vmatprep.subr.bf16.mxu0 0
        %3016 = vmatpush1.bf16.xpose.msra.mxu0 0
        %3017 = vmatprep.subr.bf16.mxu0 0
        %3018 = vmatpush1.bf16.xpose.msra.mxu0 0
        %3019 = vmatprep.subr.bf16.mxu0 0
        %3020 = vmatpush1.bf16.xpose.msra.mxu0 0
        %3021 = vmatprep.subr.bf16.mxu0 0
        %3022 = vmatpush1.bf16.xpose.msra.mxu0 0
        %3023 = vmatprep.subr.bf16.mxu0 0
        %3024 = vmatpush1.bf16.xpose.msra.mxu0 0
        %3025 = vmatprep.subr.bf16.mxu0 0
        %3026 = vmatpush1.bf16.xpose.msra.mxu0 0
        %3027 = vmatprep.mubr.bf16.mxu0 0
        %3028 = vmatmul.mubr.bf16.gmra.mrb[0].mxu0 %v2990
        %v3029 = vpop.f32.mrb[0].mxu0
        %v3030 = vadd.f32 0.0, %v3029
        %v3031 = vpop.f32.mrb[0].mxu0
        %v3032 = vpop.f32.mrb[0].mxu0
        %v3033 = vpop.f32.mrb[0].mxu0
        %3034 = vdwg.mxu0
        %v3035 = vsel %vm2412, %v3030, -1e+30
        %v3036 = vsel %vm2461, %v3035, -inf
        %3037 = vmax.xlane.f32.xlu0 %v3036
        %v3038 = vpop.xlane.xlu0 %3037
        %v3039 = vsub.f32 %v3035, %v3038
        %v3040 = vmul.f32 %v3039, 1.442695
        %v3041 = vpow.pop %v3040
        %v3042 = vsel %vm2461, %v3041, 0.0
        %3043 = vadd.xlane.f32.xlu0 %v3042
        %v3044 = vpop.xlane.xlu0 %3043
        %v3045 = vrcp.pop %v3044
        %v3046 = vmul.f32 %v3041, %v3045
        %v3047 = vpack.c.bf16 %v3046, %v3046
        %3049 = vrot.lane.b32.xlu0 %v2407, 64
        %v3050 = vpop.permute.xlu0 %3049
        %v3052 = vsel %vm2461, %v3047, 0
        %v3055 = vsel %vm2477, %v3050, 0
        %3057 = vmatprep.subr.bf16.mxu0 0
        %3058 = vmatpush1.bf16.msra.mxu0 %v3055
        %3059 = vmatprep.subr.bf16.mxu0 0
        %3060 = vmatpush1.bf16.msra.mxu0 0
        %3061 = vmatprep.subr.bf16.mxu0 0
        %3062 = vmatpush1.bf16.msra.mxu0 0
        %3063 = vmatprep.subr.bf16.mxu0 0
        %3064 = vmatpush1.bf16.msra.mxu0 0
        %3065 = vmatprep.subr.bf16.mxu0 0
        %3066 = vmatpush1.bf16.msra.mxu0 0
        %3067 = vmatprep.subr.bf16.mxu0 0
        %3068 = vmatpush1.bf16.msra.mxu0 0
        %3069 = vmatprep.subr.bf16.mxu0 0
        %3070 = vmatpush1.bf16.msra.mxu0 0
        %3071 = vmatprep.subr.bf16.mxu0 0
        %3072 = vmatpush1.bf16.msra.mxu0 0
        %3073 = vmatprep.subr.bf16.mxu0 0
        %3074 = vmatpush1.bf16.msra.mxu0 0
        %3075 = vmatprep.subr.bf16.mxu0 0
        %3076 = vmatpush1.bf16.msra.mxu0 0
        %3077 = vmatprep.subr.bf16.mxu0 0
        %3078 = vmatpush1.bf16.msra.mxu0 0
        %3079 = vmatprep.subr.bf16.mxu0 0
        %3080 = vmatpush1.bf16.msra.mxu0 0
        %3081 = vmatprep.subr.bf16.mxu0 0
        %3082 = vmatpush1.bf16.msra.mxu0 0
        %3083 = vmatprep.subr.bf16.mxu0 0
        %3084 = vmatpush1.bf16.msra.mxu0 0
        %3085 = vmatprep.subr.bf16.mxu0 0
        %3086 = vmatpush1.bf16.msra.mxu0 0
        %3087 = vmatprep.subr.bf16.mxu0 0
        %3088 = vmatpush1.bf16.msra.mxu0 0
        %3089 = vmatprep.mubr.bf16.mxu0 0
        %3090 = vmatmul.mubr.bf16.gmra.mrb[0].mxu0 %v3052
        %v3091 = vpop.f32.mrb[0].mxu0
        %v3092 = vadd.f32 0.0, %v3091
        %v3093 = vpop.f32.mrb[0].mxu0
        %v3094 = vpop.f32.mrb[0].mxu0
        %v3095 = vpop.f32.mrb[0].mxu0
        %3096 = vdwg.mxu0
        %v3097 = vpack.c.bf16 %v3092, %v3092
        %v3099 = vunpack.c.l.b16 %v3097
        %v3100 = vpack.c.b16 %v3099, %v3099
        %3101 = vrot.lane.b32.xlu0 %v3100, 64
        %v3102 = vpop.permute.xlu0 %3101
        %3104 = vst.msk [vmem:[#allocation2 + $0x8] sm:$0xf] %vm2645, %v3102
        %v3105 = vld [vmem:[#allocation2] sm:$0xff]
        %v3106 = vld [vmem:[#allocation2 + $0x8] sm:$0xf]
        %v3107 = vld [vmem:[#allocation11] sm:$0xff]
        %v3108 = vld [vmem:[#allocation11 + $0x8] sm:$0xf]
        %v3109 = vld [vmem:[#allocation11 + $0xc] sm:$0xff]
        %v3110 = vld [vmem:[#allocation11 + $0x14] sm:$0xf]
        %v3111 = vld [vmem:[#allocation11 + $0x18] sm:$0xff]
        %v3112 = vld [vmem:[#allocation11 + $0x20] sm:$0xf]
        %v3113 = vld [vmem:[#allocation11 + $0x24] sm:$0xff]
        %v3114 = vld [vmem:[#allocation11 + $0x2c] sm:$0xf]
        %v3115 = vld [vmem:[#allocation11 + $0x30] sm:$0xff]
        %v3116 = vld [vmem:[#allocation11 + $0x38] sm:$0xf]
        %v3117 = vld [vmem:[#allocation11 + $0x3c] sm:$0xff]
        %v3118 = vld [vmem:[#allocation11 + $0x44] sm:$0xf]
        %v3119 = vld [vmem:[#allocation11 + $0x48] sm:$0xff]
        %v3120 = vld [vmem:[#allocation11 + $0x50] sm:$0xf]
        %v3121 = vld [vmem:[#allocation11 + $0x54] sm:$0xff]
        %v3122 = vld [vmem:[#allocation11 + $0x5c] sm:$0xf]
        %v3123 = vld [vmem:[#allocation11 + $0x60] sm:$0xff]
        %v3124 = vld [vmem:[#allocation11 + $0x68] sm:$0xf]
        %v3125 = vld [vmem:[#allocation11 + $0x6c] sm:$0xff]
        %v3126 = vld [vmem:[#allocation11 + $0x74] sm:$0xf]
        %v3127 = vld [vmem:[#allocation11 + $0x78] sm:$0xff]
        %v3128 = vld [vmem:[#allocation11 + $0x80] sm:$0xf]
        %v3129 = vld [vmem:[#allocation11 + $0x84] sm:$0xff]
        %v3130 = vld [vmem:[#allocation11 + $0x8c] sm:$0xf]
        %v3131 = vld [vmem:[#allocation11 + $0x90] sm:$0xff]
        %v3132 = vld [vmem:[#allocation11 + $0x98] sm:$0xf]
        %v3133 = vld [vmem:[#allocation11 + $0x9c] sm:$0xff]
        %v3134 = vld [vmem:[#allocation11 + $0xa4] sm:$0xf]
        %v3135 = vld [vmem:[#allocation11 + $0xa8] sm:$0xff]
        %v3136 = vld [vmem:[#allocation11 + $0xb0] sm:$0xf]
        %v3137 = vld [vmem:[#allocation11 + $0xb4] sm:$0xff]
        %v3138 = vld [vmem:[#allocation11 + $0xbc] sm:$0xf]
        %v3139 = vld [vmem:[#allocation11 + $0xc0] sm:$0xff]
        %v3140 = vld [vmem:[#allocation11 + $0xc8] sm:$0xf]
        %v3141 = vld [vmem:[#allocation11 + $0xcc] sm:$0xff]
        %v3142 = vld [vmem:[#allocation11 + $0xd4] sm:$0xf]
        %v3143 = vld [vmem:[#allocation11 + $0xd8] sm:$0xff]
        %v3144 = vld [vmem:[#allocation11 + $0xe0] sm:$0xf]
        %v3145 = vld [vmem:[#allocation11 + $0xe4] sm:$0xff]
        %v3146 = vld [vmem:[#allocation11 + $0xec] sm:$0xf]
        %v3147 = vld [vmem:[#allocation11 + $0xf0] sm:$0xff]
        %v3148 = vld [vmem:[#allocation11 + $0xf8] sm:$0xf]
        %v3149 = vld [vmem:[#allocation11 + $0xfc] sm:$0xff]
        %v3150 = vld [vmem:[#allocation11 + $0x104] sm:$0xf]
        %v3151 = vld [vmem:[#allocation11 + $0x108] sm:$0xff]
        %v3152 = vld [vmem:[#allocation11 + $0x110] sm:$0xf]
        %v3153 = vld [vmem:[#allocation11 + $0x114] sm:$0xff]
        %v3154 = vld [vmem:[#allocation11 + $0x11c] sm:$0xf]
        %v3155 = vld [vmem:[#allocation11 + $0x120] sm:$0xff]
        %v3156 = vld [vmem:[#allocation11 + $0x128] sm:$0xf]
        %v3157 = vld [vmem:[#allocation11 + $0x12c] sm:$0xff]
        %v3158 = vld [vmem:[#allocation11 + $0x134] sm:$0xf]
        %v3159 = vld [vmem:[#allocation11 + $0x138] sm:$0xff]
        %v3160 = vld [vmem:[#allocation11 + $0x140] sm:$0xf]
        %v3161 = vld [vmem:[#allocation11 + $0x144] sm:$0xff]
        %v3162 = vld [vmem:[#allocation11 + $0x14c] sm:$0xf]
        %v3163 = vld [vmem:[#allocation11 + $0x150] sm:$0xff]
        %v3164 = vld [vmem:[#allocation11 + $0x158] sm:$0xf]
        %v3165 = vld [vmem:[#allocation11 + $0x15c] sm:$0xff]
        %v3166 = vld [vmem:[#allocation11 + $0x164] sm:$0xf]
        %v3167 = vld [vmem:[#allocation11 + $0x168] sm:$0xff]
        %v3168 = vld [vmem:[#allocation11 + $0x170] sm:$0xf]
        %v3169 = vld [vmem:[#allocation11 + $0x174] sm:$0xff]
        %v3170 = vld [vmem:[#allocation11 + $0x17c] sm:$0xf]
        %v3171 = vld [vmem:[#allocation11 + $0x180] sm:$0xff]
        %v3172 = vld [vmem:[#allocation11 + $0x188] sm:$0xf]
        %v3173 = vld [vmem:[#allocation11 + $0x18c] sm:$0xff]
        %v3174 = vld [vmem:[#allocation11 + $0x194] sm:$0xf]
        %v3175 = vld [vmem:[#allocation11 + $0x198] sm:$0xff]
        %v3176 = vld [vmem:[#allocation11 + $0x1a0] sm:$0xf]
        %v3177 = vld [vmem:[#allocation11 + $0x1a4] sm:$0xff]
        %v3178 = vld [vmem:[#allocation11 + $0x1ac] sm:$0xf]
        %v3179 = vld [vmem:[#allocation11 + $0x1b0] sm:$0xff]
        %v3180 = vld [vmem:[#allocation11 + $0x1b8] sm:$0xf]
        %v3181 = vld [vmem:[#allocation11 + $0x1bc] sm:$0xff]
        %v3182 = vld [vmem:[#allocation11 + $0x1c4] sm:$0xf]
        %v3183 = vld [vmem:[#allocation11 + $0x1c8] sm:$0xff]
        %v3184 = vld [vmem:[#allocation11 + $0x1d0] sm:$0xf]
        %v3185 = vld [vmem:[#allocation11 + $0x1d4] sm:$0xff]
        %v3186 = vld [vmem:[#allocation11 + $0x1dc] sm:$0xf]
        %v3187 = vld [vmem:[#allocation11 + $0x1e0] sm:$0xff]
        %v3188 = vld [vmem:[#allocation11 + $0x1e8] sm:$0xf]
        %v3189 = vld [vmem:[#allocation11 + $0x1ec] sm:$0xff]
        %v3190 = vld [vmem:[#allocation11 + $0x1f4] sm:$0xf]
        %v3191 = vld [vmem:[#allocation11 + $0x1f8] sm:$0xff]
        %v3192 = vld [vmem:[#allocation11 + $0x200] sm:$0xf]
        %v3193 = vld [vmem:[#allocation11 + $0x204] sm:$0xff]
        %v3194 = vld [vmem:[#allocation11 + $0x20c] sm:$0xf]
        %v3195 = vld [vmem:[#allocation11 + $0x210] sm:$0xff]
        %v3196 = vld [vmem:[#allocation11 + $0x218] sm:$0xf]
        %v3197 = vld [vmem:[#allocation11 + $0x21c] sm:$0xff]
        %v3198 = vld [vmem:[#allocation11 + $0x224] sm:$0xf]
        %v3199 = vld [vmem:[#allocation11 + $0x228] sm:$0xff]
        %v3200 = vld [vmem:[#allocation11 + $0x230] sm:$0xf]
        %v3201 = vld [vmem:[#allocation11 + $0x234] sm:$0xff]
        %v3202 = vld [vmem:[#allocation11 + $0x23c] sm:$0xf]
        %v3203 = vld [vmem:[#allocation12] sm:$0x7]
        %v3205 = vlaneseq
        %v3206 = vshrl.u32 %v3205, 7
        %v3207 = vsub.s32 0, %v3206
        %v3208 = vrot.slane %v3203, %v3207
        %v3209 = vlaneseq
        %v3210 = vshrl.u32 %v3209, 7
        %v3211 = vsub.s32 1, %v3210
        %v3212 = vrot.slane %v3203, %v3211
        %v3213 = vlaneseq
        %v3214 = vshrl.u32 %v3213, 7
        %v3215 = vsub.s32 2, %v3214
        %v3216 = vrot.slane %v3203, %v3215
        %v3222 = vunpack.c.l.b16 %v3105
        %v3223 = vunpack.c.h.b16 %v3105
        %v3224 = vunpack.c.l.b16 %v3106
        %v3225 = vpack.c.b16 %v3222, %v3222
        %v3226 = vpack.c.b16 %v3223, %v3223
        %v3227 = vpack.c.b16 %v3224, %v3224
        %v3327 = vunpack.c.l.b16 %v3107
        %v3328 = vunpack.c.h.b16 %v3107
        %v3329 = vunpack.c.l.b16 %v3108
        %v3330 = vunpack.c.l.b16 %v3109
        %v3331 = vunpack.c.h.b16 %v3109
        %v3332 = vunpack.c.l.b16 %v3110
        %v3333 = vunpack.c.l.b16 %v3111
        %v3334 = vunpack.c.h.b16 %v3111
        %v3335 = vunpack.c.l.b16 %v3112
        %v3336 = vunpack.c.l.b16 %v3113
        %v3337 = vunpack.c.h.b16 %v3113
        %v3338 = vunpack.c.l.b16 %v3114
        %v3339 = vunpack.c.l.b16 %v3115
        %v3340 = vunpack.c.h.b16 %v3115
        %v3341 = vunpack.c.l.b16 %v3116
        %v3342 = vunpack.c.l.b16 %v3117
        %v3343 = vunpack.c.h.b16 %v3117
        %v3344 = vunpack.c.l.b16 %v3118
        %v3345 = vunpack.c.l.b16 %v3119
        %v3346 = vunpack.c.h.b16 %v3119
        %v3347 = vunpack.c.l.b16 %v3120
        %v3348 = vunpack.c.l.b16 %v3121
        %v3349 = vunpack.c.h.b16 %v3121
        %v3350 = vunpack.c.l.b16 %v3122
        %v3351 = vunpack.c.l.b16 %v3123
        %v3352 = vunpack.c.h.b16 %v3123
        %v3353 = vunpack.c.l.b16 %v3124
        %v3354 = vunpack.c.l.b16 %v3125
        %v3355 = vunpack.c.h.b16 %v3125
        %v3356 = vunpack.c.l.b16 %v3126
        %v3357 = vunpack.c.l.b16 %v3127
        %v3358 = vunpack.c.h.b16 %v3127
        %v3359 = vunpack.c.l.b16 %v3128
        %v3360 = vunpack.c.l.b16 %v3129
        %v3361 = vunpack.c.h.b16 %v3129
        %v3362 = vunpack.c.l.b16 %v3130
        %v3363 = vunpack.c.l.b16 %v3131
        %v3364 = vunpack.c.h.b16 %v3131
        %v3365 = vunpack.c.l.b16 %v3132
        %v3366 = vunpack.c.l.b16 %v3133
        %v3367 = vunpack.c.h.b16 %v3133
        %v3368 = vunpack.c.l.b16 %v3134
        %v3369 = vunpack.c.l.b16 %v3135
        %v3370 = vunpack.c.h.b16 %v3135
        %v3371 = vunpack.c.l.b16 %v3136
        %v3372 = vunpack.c.l.b16 %v3137
        %v3373 = vunpack.c.h.b16 %v3137
        %v3374 = vunpack.c.l.b16 %v3138
        %v3375 = vunpack.c.l.b16 %v3139
        %v3376 = vunpack.c.h.b16 %v3139
        %v3377 = vunpack.c.l.b16 %v3140
        %v3378 = vunpack.c.l.b16 %v3141
        %v3379 = vunpack.c.h.b16 %v3141
        %v3380 = vunpack.c.l.b16 %v3142
        %v3381 = vunpack.c.l.b16 %v3143
        %v3382 = vunpack.c.h.b16 %v3143
        %v3383 = vunpack.c.l.b16 %v3144
        %v3384 = vunpack.c.l.b16 %v3145
        %v3385 = vunpack.c.h.b16 %v3145
        %v3386 = vunpack.c.l.b16 %v3146
        %v3387 = vunpack.c.l.b16 %v3147
        %v3388 = vunpack.c.h.b16 %v3147
        %v3389 = vunpack.c.l.b16 %v3148
        %v3390 = vunpack.c.l.b16 %v3149
        %v3391 = vunpack.c.h.b16 %v3149
        %v3392 = vunpack.c.l.b16 %v3150
        %v3393 = vunpack.c.l.b16 %v3151
        %v3394 = vunpack.c.h.b16 %v3151
        %v3395 = vunpack.c.l.b16 %v3152
        %v3396 = vunpack.c.l.b16 %v3153
        %v3397 = vunpack.c.h.b16 %v3153
        %v3398 = vunpack.c.l.b16 %v3154
        %v3399 = vunpack.c.l.b16 %v3155
        %v3400 = vunpack.c.h.b16 %v3155
        %v3401 = vunpack.c.l.b16 %v3156
        %v3402 = vunpack.c.l.b16 %v3157
        %v3403 = vunpack.c.h.b16 %v3157
        %v3404 = vunpack.c.l.b16 %v3158
        %v3405 = vunpack.c.l.b16 %v3159
        %v3406 = vunpack.c.h.b16 %v3159
        %v3407 = vunpack.c.l.b16 %v3160
        %v3408 = vunpack.c.l.b16 %v3161
        %v3409 = vunpack.c.h.b16 %v3161
        %v3410 = vunpack.c.l.b16 %v3162
        %v3411 = vunpack.c.l.b16 %v3163
        %v3412 = vunpack.c.h.b16 %v3163
        %v3413 = vunpack.c.l.b16 %v3164
        %v3414 = vunpack.c.l.b16 %v3165
        %v3415 = vunpack.c.h.b16 %v3165
        %v3416 = vunpack.c.l.b16 %v3166
        %v3417 = vunpack.c.l.b16 %v3167
        %v3418 = vunpack.c.h.b16 %v3167
        %v3419 = vunpack.c.l.b16 %v3168
        %v3420 = vunpack.c.l.b16 %v3169
        %v3421 = vunpack.c.h.b16 %v3169
        %v3422 = vunpack.c.l.b16 %v3170
        %v3423 = vunpack.c.l.b16 %v3171
        %v3424 = vunpack.c.h.b16 %v3171
        %v3425 = vunpack.c.l.b16 %v3172
        %v3426 = vunpack.c.l.b16 %v3173
        %v3427 = vunpack.c.h.b16 %v3173
        %v3428 = vunpack.c.l.b16 %v3174
        %v3429 = vunpack.c.l.b16 %v3175
        %v3430 = vunpack.c.h.b16 %v3175
        %v3431 = vunpack.c.l.b16 %v3176
        %v3432 = vunpack.c.l.b16 %v3177
        %v3433 = vunpack.c.h.b16 %v3177
        %v3434 = vunpack.c.l.b16 %v3178
        %v3435 = vunpack.c.l.b16 %v3179
        %v3436 = vunpack.c.h.b16 %v3179
        %v3437 = vunpack.c.l.b16 %v3180
        %v3438 = vunpack.c.l.b16 %v3181
        %v3439 = vunpack.c.h.b16 %v3181
        %v3440 = vunpack.c.l.b16 %v3182
        %v3441 = vunpack.c.l.b16 %v3183
        %v3442 = vunpack.c.h.b16 %v3183
        %v3443 = vunpack.c.l.b16 %v3184
        %v3444 = vunpack.c.l.b16 %v3185
        %v3445 = vunpack.c.h.b16 %v3185
        %v3446 = vunpack.c.l.b16 %v3186
        %v3447 = vunpack.c.l.b16 %v3187
        %v3448 = vunpack.c.h.b16 %v3187
        %v3449 = vunpack.c.l.b16 %v3188
        %v3450 = vunpack.c.l.b16 %v3189
        %v3451 = vunpack.c.h.b16 %v3189
        %v3452 = vunpack.c.l.b16 %v3190
        %v3453 = vunpack.c.l.b16 %v3191
        %v3454 = vunpack.c.h.b16 %v3191
        %v3455 = vunpack.c.l.b16 %v3192
        %v3456 = vunpack.c.l.b16 %v3193
        %v3457 = vunpack.c.h.b16 %v3193
        %v3458 = vunpack.c.l.b16 %v3194
        %v3459 = vunpack.c.l.b16 %v3195
        %v3460 = vunpack.c.h.b16 %v3195
        %v3461 = vunpack.c.l.b16 %v3196
        %v3462 = vunpack.c.l.b16 %v3197
        %v3463 = vunpack.c.h.b16 %v3197
        %v3464 = vunpack.c.l.b16 %v3198
        %v3465 = vunpack.c.l.b16 %v3199
        %v3466 = vunpack.c.h.b16 %v3199
        %v3467 = vunpack.c.l.b16 %v3200
        %v3468 = vunpack.c.l.b16 %v3201
        %v3469 = vunpack.c.h.b16 %v3201
        %v3470 = vunpack.c.l.b16 %v3202
        %v3471 = vpack.c.b16 %v3330, %v3327
        %v3472 = vpack.c.b16 %v3331, %v3328
        %v3473 = vpack.c.b16 %v3332, %v3329
        %v3474 = vpack.c.b16 %v3336, %v3333
        %v3475 = vpack.c.b16 %v3337, %v3334
        %v3476 = vpack.c.b16 %v3338, %v3335
        %v3477 = vpack.c.b16 %v3342, %v3339
        %v3478 = vpack.c.b16 %v3343, %v3340
        %v3479 = vpack.c.b16 %v3344, %v3341
        %v3480 = vpack.c.b16 %v3348, %v3345
        %v3481 = vpack.c.b16 %v3349, %v3346
        %v3482 = vpack.c.b16 %v3350, %v3347
        %v3483 = vpack.c.b16 %v3354, %v3351
        %v3484 = vpack.c.b16 %v3355, %v3352
        %v3485 = vpack.c.b16 %v3356, %v3353
        %v3486 = vpack.c.b16 %v3360, %v3357
        %v3487 = vpack.c.b16 %v3361, %v3358
        %v3488 = vpack.c.b16 %v3362, %v3359
        %v3489 = vpack.c.b16 %v3366, %v3363
        %v3490 = vpack.c.b16 %v3367, %v3364
        %v3491 = vpack.c.b16 %v3368, %v3365
        %v3492 = vpack.c.b16 %v3372, %v3369
        %v3493 = vpack.c.b16 %v3373, %v3370
        %v3494 = vpack.c.b16 %v3374, %v3371
        %v3495 = vpack.c.b16 %v3378, %v3375
        %v3496 = vpack.c.b16 %v3379, %v3376
        %v3497 = vpack.c.b16 %v3380, %v3377
        %v3498 = vpack.c.b16 %v3384, %v3381
        %v3499 = vpack.c.b16 %v3385, %v3382
        %v3500 = vpack.c.b16 %v3386, %v3383
        %v3501 = vpack.c.b16 %v3390, %v3387
        %v3502 = vpack.c.b16 %v3391, %v3388
        %v3503 = vpack.c.b16 %v3392, %v3389
        %v3504 = vpack.c.b16 %v3396, %v3393
        %v3505 = vpack.c.b16 %v3397, %v3394
        %v3506 = vpack.c.b16 %v3398, %v3395
        %v3507 = vpack.c.b16 %v3402, %v3399
        %v3508 = vpack.c.b16 %v3403, %v3400
        %v3509 = vpack.c.b16 %v3404, %v3401
        %v3510 = vpack.c.b16 %v3408, %v3405
        %v3511 = vpack.c.b16 %v3409, %v3406
        %v3512 = vpack.c.b16 %v3410, %v3407
        %v3513 = vpack.c.b16 %v3414, %v3411
        %v3514 = vpack.c.b16 %v3415, %v3412
        %v3515 = vpack.c.b16 %v3416, %v3413
        %v3516 = vpack.c.b16 %v3420, %v3417
        %v3517 = vpack.c.b16 %v3421, %v3418
        %v3518 = vpack.c.b16 %v3422, %v3419
        %v3519 = vpack.c.b16 %v3426, %v3423
        %v3520 = vpack.c.b16 %v3427, %v3424
        %v3521 = vpack.c.b16 %v3428, %v3425
        %v3522 = vpack.c.b16 %v3432, %v3429
        %v3523 = vpack.c.b16 %v3433, %v3430
        %v3524 = vpack.c.b16 %v3434, %v3431
        %v3525 = vpack.c.b16 %v3438, %v3435
        %v3526 = vpack.c.b16 %v3439, %v3436
        %v3527 = vpack.c.b16 %v3440, %v3437
        %v3528 = vpack.c.b16 %v3444, %v3441
        %v3529 = vpack.c.b16 %v3445, %v3442
        %v3530 = vpack.c.b16 %v3446, %v3443
        %v3531 = vpack.c.b16 %v3450, %v3447
        %v3532 = vpack.c.b16 %v3451, %v3448
        %v3533 = vpack.c.b16 %v3452, %v3449
        %v3534 = vpack.c.b16 %v3456, %v3453
        %v3535 = vpack.c.b16 %v3457, %v3454
        %v3536 = vpack.c.b16 %v3458, %v3455
        %v3537 = vpack.c.b16 %v3462, %v3459
        %v3538 = vpack.c.b16 %v3463, %v3460
        %v3539 = vpack.c.b16 %v3464, %v3461
        %v3540 = vpack.c.b16 %v3468, %v3465
        %v3541 = vpack.c.b16 %v3469, %v3466
        %v3542 = vpack.c.b16 %v3470, %v3467
        %3615 = vmatprep.subr.bf16.mxu0 %v3472
        %3616 = vmatpush1.bf16.msra.mxu0 %v3471
        %3617 = vmatprep.subr.bf16.mxu0 %v3475
        %3618 = vmatpush1.bf16.msra.mxu0 %v3474
        %3619 = vmatprep.subr.bf16.mxu0 %v3478
        %3620 = vmatpush1.bf16.msra.mxu0 %v3477
        %3621 = vmatprep.subr.bf16.mxu0 %v3481
        %3622 = vmatpush1.bf16.msra.mxu0 %v3480
        %3623 = vmatprep.subr.bf16.mxu0 %v3484
        %3624 = vmatpush1.bf16.msra.mxu0 %v3483
        %3625 = vmatprep.subr.bf16.mxu0 %v3487
        %3626 = vmatpush1.bf16.msra.mxu0 %v3486
        %3627 = vmatprep.subr.bf16.mxu0 %v3490
        %3628 = vmatpush1.bf16.msra.mxu0 %v3489
        %3629 = vmatprep.subr.bf16.mxu0 %v3493
        %3630 = vmatpush1.bf16.msra.mxu0 %v3492
        %3631 = vmatprep.subr.bf16.mxu0 %v3496
        %3632 = vmatpush1.bf16.msra.mxu0 %v3495
        %3633 = vmatprep.subr.bf16.mxu0 %v3499
        %3634 = vmatpush1.bf16.msra.mxu0 %v3498
        %3635 = vmatprep.subr.bf16.mxu0 %v3502
        %3636 = vmatpush1.bf16.msra.mxu0 %v3501
        %3637 = vmatprep.subr.bf16.mxu0 %v3505
        %3638 = vmatpush1.bf16.msra.mxu0 %v3504
        %3639 = vmatprep.subr.bf16.mxu0 %v3508
        %3640 = vmatpush1.bf16.msra.mxu0 %v3507
        %3641 = vmatprep.subr.bf16.mxu0 %v3511
        %3642 = vmatpush1.bf16.msra.mxu0 %v3510
        %3643 = vmatprep.subr.bf16.mxu0 %v3514
        %3644 = vmatpush1.bf16.msra.mxu0 %v3513
        %3645 = vmatprep.subr.bf16.mxu0 %v3517
        %3646 = vmatpush1.bf16.msra.mxu0 %v3516
        %3647 = vmatprep.mubr.bf16.mxu0 %v3226
        %3648 = vmatmul.mubr.bf16.gmra.mrb[0].mxu0 %v3225
        %v3649 = vpop.f32.mrb[0].mxu0
        %v3650 = vadd.f32 %v3208, %v3649
        %v3651 = vpop.f32.mrb[0].mxu0
        %v3652 = vadd.f32 %v3212, %v3651
        %v3653 = vpop.f32.mrb[0].mxu0
        %v3654 = vpop.f32.mrb[0].mxu0
        %3655 = vdwg.mxu0
        %3656 = vmatprep.subr.bf16.mxu0 %v3520
        %3657 = vmatpush1.bf16.msra.mxu0 %v3519
        %3658 = vmatprep.subr.bf16.mxu0 %v3523
        %3659 = vmatpush1.bf16.msra.mxu0 %v3522
        %3660 = vmatprep.subr.bf16.mxu0 %v3526
        %3661 = vmatpush1.bf16.msra.mxu0 %v3525
        %3662 = vmatprep.subr.bf16.mxu0 %v3529
        %3663 = vmatpush1.bf16.msra.mxu0 %v3528
        %3664 = vmatprep.subr.bf16.mxu0 %v3532
        %3665 = vmatpush1.bf16.msra.mxu0 %v3531
        %3666 = vmatprep.subr.bf16.mxu0 %v3535
        %3667 = vmatpush1.bf16.msra.mxu0 %v3534
        %3668 = vmatprep.subr.bf16.mxu0 %v3538
        %3669 = vmatpush1.bf16.msra.mxu0 %v3537
        %3670 = vmatprep.subr.bf16.mxu0 %v3541
        %3671 = vmatpush1.bf16.msra.mxu0 %v3540
        %3672 = vmatprep.subr.bf16.mxu0 0
        %3673 = vmatpush1.bf16.msra.mxu0 0
        %3674 = vmatprep.subr.bf16.mxu0 0
        %3675 = vmatpush1.bf16.msra.mxu0 0
        %3676 = vmatprep.subr.bf16.mxu0 0
        %3677 = vmatpush1.bf16.msra.mxu0 0
        %3678 = vmatprep.subr.bf16.mxu0 0
        %3679 = vmatpush1.bf16.msra.mxu0 0
        %3680 = vmatprep.subr.bf16.mxu0 0
        %3681 = vmatpush1.bf16.msra.mxu0 0
        %3682 = vmatprep.subr.bf16.mxu0 0
        %3683 = vmatpush1.bf16.msra.mxu0 0
        %3684 = vmatprep.subr.bf16.mxu0 0
        %3685 = vmatpush1.bf16.msra.mxu0 0
        %3686 = vmatprep.subr.bf16.mxu0 0
        %3687 = vmatpush1.bf16.msra.mxu0 0
        %3688 = vmatprep.mubr.bf16.mxu0 0
        %3689 = vmatmul.mubr.bf16.gmra.mrb[0].mxu0 %v3227
        %v3690 = vpop.f32.mrb[0].mxu0
        %v3691 = vadd.f32 %v3650, %v3690
        %v3692 = vpop.f32.mrb[0].mxu0
        %v3693 = vadd.f32 %v3652, %v3692
        %v3694 = vpop.f32.mrb[0].mxu0
        %v3695 = vpop.f32.mrb[0].mxu0
        %3696 = vdwg.mxu0
        %3697 = vmatprep.subr.bf16.mxu0 0
        %3698 = vmatpush1.bf16.msra.mxu0 %v3473
        %3699 = vmatprep.subr.bf16.mxu0 0
        %3700 = vmatpush1.bf16.msra.mxu0 %v3476
        %3701 = vmatprep.subr.bf16.mxu0 0
        %3702 = vmatpush1.bf16.msra.mxu0 %v3479
        %3703 = vmatprep.subr.bf16.mxu0 0
        %3704 = vmatpush1.bf16.msra.mxu0 %v3482
        %3705 = vmatprep.subr.bf16.mxu0 0
        %3706 = vmatpush1.bf16.msra.mxu0 %v3485
        %3707 = vmatprep.subr.bf16.mxu0 0
        %3708 = vmatpush1.bf16.msra.mxu0 %v3488
        %3709 = vmatprep.subr.bf16.mxu0 0
        %3710 = vmatpush1.bf16.msra.mxu0 %v3491
        %3711 = vmatprep.subr.bf16.mxu0 0
        %3712 = vmatpush1.bf16.msra.mxu0 %v3494
        %3713 = vmatprep.subr.bf16.mxu0 0
        %3714 = vmatpush1.bf16.msra.mxu0 %v3497
        %3715 = vmatprep.subr.bf16.mxu0 0
        %3716 = vmatpush1.bf16.msra.mxu0 %v3500
        %3717 = vmatprep.subr.bf16.mxu0 0
        %3718 = vmatpush1.bf16.msra.mxu0 %v3503
        %3719 = vmatprep.subr.bf16.mxu0 0
        %3720 = vmatpush1.bf16.msra.mxu0 %v3506
        %3721 = vmatprep.subr.bf16.mxu0 0
        %3722 = vmatpush1.bf16.msra.mxu0 %v3509
        %3723 = vmatprep.subr.bf16.mxu0 0
        %3724 = vmatpush1.bf16.msra.mxu0 %v3512
        %3725 = vmatprep.subr.bf16.mxu0 0
        %3726 = vmatpush1.bf16.msra.mxu0 %v3515
        %3727 = vmatprep.subr.bf16.mxu0 0
        %3728 = vmatpush1.bf16.msra.mxu0 %v3518
        %3729 = vmatprep.mubr.bf16.mxu0 %v3226
        %3730 = vmatmul.mubr.bf16.gmra.mrb[0].mxu0 %v3225
        %v3731 = vpop.f32.mrb[0].mxu0
        %v3732 = vadd.f32 %v3216, %v3731
        %v3733 = vpop.f32.mrb[0].mxu0
        %v3734 = vpop.f32.mrb[0].mxu0
        %v3735 = vpop.f32.mrb[0].mxu0
        %3736 = vdwg.mxu0
        %3737 = vmatprep.subr.bf16.mxu0 0
        %3738 = vmatpush1.bf16.msra.mxu0 %v3521
        %3739 = vmatprep.subr.bf16.mxu0 0
        %3740 = vmatpush1.bf16.msra.mxu0 %v3524
        %3741 = vmatprep.subr.bf16.mxu0 0
        %3742 = vmatpush1.bf16.msra.mxu0 %v3527
        %3743 = vmatprep.subr.bf16.mxu0 0
        %3744 = vmatpush1.bf16.msra.mxu0 %v3530
        %3745 = vmatprep.subr.bf16.mxu0 0
        %3746 = vmatpush1.bf16.msra.mxu0 %v3533
        %3747 = vmatprep.subr.bf16.mxu0 0
        %3748 = vmatpush1.bf16.msra.mxu0 %v3536
        %3749 = vmatprep.subr.bf16.mxu0 0
        %3750 = vmatpush1.bf16.msra.mxu0 %v3539
        %3751 = vmatprep.subr.bf16.mxu0 0
        %3752 = vmatpush1.bf16.msra.mxu0 %v3542
        %3753 = vmatprep.subr.bf16.mxu0 0
        %3754 = vmatpush1.bf16.msra.mxu0 0
        %3755 = vmatprep.subr.bf16.mxu0 0
        %3756 = vmatpush1.bf16.msra.mxu0 0
        %3757 = vmatprep.subr.bf16.mxu0 0
        %3758 = vmatpush1.bf16.msra.mxu0 0
        %3759 = vmatprep.subr.bf16.mxu0 0
        %3760 = vmatpush1.bf16.msra.mxu0 0
        %3761 = vmatprep.subr.bf16.mxu0 0
        %3762 = vmatpush1.bf16.msra.mxu0 0
        %3763 = vmatprep.subr.bf16.mxu0 0
        %3764 = vmatpush1.bf16.msra.mxu0 0
        %3765 = vmatprep.subr.bf16.mxu0 0
        %3766 = vmatpush1.bf16.msra.mxu0 0
        %3767 = vmatprep.subr.bf16.mxu0 0
        %3768 = vmatpush1.bf16.msra.mxu0 0
        %3769 = vmatprep.mubr.bf16.mxu0 0
        %3770 = vmatmul.mubr.bf16.gmra.mrb[0].mxu0 %v3227
        %v3771 = vpop.f32.mrb[0].mxu0
        %v3772 = vadd.f32 %v3732, %v3771
        %v3773 = vpop.f32.mrb[0].mxu0
        %v3774 = vpop.f32.mrb[0].mxu0
        %v3775 = vpop.f32.mrb[0].mxu0
        %3776 = vdwg.mxu0
        %v3777 = vadd.f32 %v641, %v3691
        %v3778 = vadd.f32 %v642, %v3693
        %v3779 = vadd.f32 %v643, %v3772
        %v3780 = vld [vmem:[#allocation14] sm:$0x7]
        %v3781 = vld [vmem:[#allocation15] sm:$0x7]
        %v3782 = vadd.f32 %v3777, %v3778
        %v3783 = vadd.f32 %v3782, %v3779
        %3784 = vadd.xlane.f32.xlu0 %v3783
        %v3785 = vpop.xlane.xlu0 %3784
        %v3786 = vmul.f32 %v3785, %v586
        %v3787 = vmul.f32 %v3777, %v3777
        %v3788 = vmul.f32 %v3778, %v3778
        %v3789 = vmul.f32 %v3779, %v3779
        %v3790 = vadd.f32 %v3787, %v3788
        %v3791 = vadd.f32 %v3790, %v3789
        %3792 = vadd.xlane.f32.xlu0 %v3791
        %v3793 = vpop.xlane.xlu0 %3792
        %v3794 = vmul.f32 %v3793, %v586
        %v3795 = vmul.f32 %v3786, %v3786
        %v3796 = vsub.f32 %v3794, %v3795
        %v3797 = vsub.f32 %v3777, %v3786
        %v3798 = vsub.f32 %v3778, %v3786
        %v3799 = vsub.f32 %v3779, %v3786
        %v3800 = vadd.f32 %v3796, 1e-05
        %v3801 = vrsqrt.pop %v3800
        %v3802 = vmul.f32 %v3797, %v3801
        %v3803 = vmul.f32 %v3798, %v3801
        %v3804 = vmul.f32 %v3799, %v3801
        %v3806 = vlaneseq
        %v3807 = vshrl.u32 %v3806, 7
        %v3808 = vsub.s32 0, %v3807
        %v3809 = vrot.slane %v3780, %v3808
        %v3810 = vlaneseq
        %v3811 = vshrl.u32 %v3810, 7
        %v3812 = vsub.s32 1, %v3811
        %v3813 = vrot.slane %v3780, %v3812
        %v3814 = vlaneseq
        %v3815 = vshrl.u32 %v3814, 7
        %v3816 = vsub.s32 2, %v3815
        %v3817 = vrot.slane %v3780, %v3816
        %v3821 = vmul.f32 %v3802, %v3809
        %v3822 = vmul.f32 %v3803, %v3813
        %v3823 = vmul.f32 %v3804, %v3817
        %v3825 = vlaneseq
        %v3826 = vshrl.u32 %v3825, 7
        %v3827 = vsub.s32 0, %v3826
        %v3828 = vrot.slane %v3781, %v3827
        %v3829 = vlaneseq
        %v3830 = vshrl.u32 %v3829, 7
        %v3831 = vsub.s32 1, %v3830
        %v3832 = vrot.slane %v3781, %v3831
        %v3833 = vlaneseq
        %v3834 = vshrl.u32 %v3833, 7
        %v3835 = vsub.s32 2, %v3834
        %v3836 = vrot.slane %v3781, %v3835
        %v3840 = vadd.f32 %v3821, %v3828
        %v3841 = vadd.f32 %v3822, %v3832
        %v3842 = vadd.f32 %v3823, %v3836
        %v3843 = vpack.c.bf16 %v3840, %v3840
        %v3844 = vpack.c.bf16 %v3841, %v3841
        %v3845 = vpack.c.bf16 %v3842, %v3842
        %v3846 = vld [vmem:[#allocation17] sm:$0xff]
        %v3847 = vld [vmem:[#allocation17 + $0x8] sm:$0xff]
        %v3848 = vld [vmem:[#allocation17 + $0x10] sm:$0xff]
        %v3849 = vld [vmem:[#allocation17 + $0x18] sm:$0xff]
        %v3850 = vld [vmem:[#allocation17 + $0x20] sm:$0xff]
        %v3851 = vld [vmem:[#allocation17 + $0x28] sm:$0xff]
        %v3852 = vld [vmem:[#allocation17 + $0x30] sm:$0xff]
        %v3853 = vld [vmem:[#allocation17 + $0x38] sm:$0xff]
        %v3854 = vld [vmem:[#allocation17 + $0x40] sm:$0xff]
        %v3855 = vld [vmem:[#allocation17 + $0x48] sm:$0xff]
        %v3856 = vld [vmem:[#allocation17 + $0x50] sm:$0xff]
        %v3857 = vld [vmem:[#allocation17 + $0x58] sm:$0xff]
        %v3858 = vld [vmem:[#allocation17 + $0x60] sm:$0xff]
        %v3859 = vld [vmem:[#allocation17 + $0x68] sm:$0xff]
        %v3860 = vld [vmem:[#allocation17 + $0x70] sm:$0xff]
        %v3861 = vld [vmem:[#allocation17 + $0x78] sm:$0xff]
        %v3862 = vld [vmem:[#allocation17 + $0x80] sm:$0xff]
        %v3863 = vld [vmem:[#allocation17 + $0x88] sm:$0xff]
        %v3864 = vld [vmem:[#allocation17 + $0x90] sm:$0xff]
        %v3865 = vld [vmem:[#allocation17 + $0x98] sm:$0xff]
        %v3866 = vld [vmem:[#allocation17 + $0xa0] sm:$0xff]
        %v3867 = vld [vmem:[#allocation17 + $0xa8] sm:$0xff]
        %v3868 = vld [vmem:[#allocation17 + $0xb0] sm:$0xff]
        %v3869 = vld [vmem:[#allocation17 + $0xb8] sm:$0xff]
        %v3870 = vld [vmem:[#allocation17 + $0xc0] sm:$0xff]
        %v3871 = vld [vmem:[#allocation17 + $0xc8] sm:$0xff]
        %v3872 = vld [vmem:[#allocation17 + $0xd0] sm:$0xff]
        %v3873 = vld [vmem:[#allocation17 + $0xd8] sm:$0xff]
        %v3874 = vld [vmem:[#allocation17 + $0xe0] sm:$0xff]
        %v3875 = vld [vmem:[#allocation17 + $0xe8] sm:$0xff]
        %v3876 = vld [vmem:[#allocation17 + $0xf0] sm:$0xff]
        %v3877 = vld [vmem:[#allocation17 + $0xf8] sm:$0xff]
        %v3878 = vld [vmem:[#allocation17 + $0x100] sm:$0xff]
        %v3879 = vld [vmem:[#allocation17 + $0x108] sm:$0xff]
        %v3880 = vld [vmem:[#allocation17 + $0x110] sm:$0xff]
        %v3881 = vld [vmem:[#allocation17 + $0x118] sm:$0xff]
        %v3882 = vld [vmem:[#allocation17 + $0x120] sm:$0xff]
        %v3883 = vld [vmem:[#allocation17 + $0x128] sm:$0xff]
        %v3884 = vld [vmem:[#allocation17 + $0x130] sm:$0xff]
        %v3885 = vld [vmem:[#allocation17 + $0x138] sm:$0xff]
        %v3886 = vld [vmem:[#allocation17 + $0x140] sm:$0xff]
        %v3887 = vld [vmem:[#allocation17 + $0x148] sm:$0xff]
        %v3888 = vld [vmem:[#allocation17 + $0x150] sm:$0xff]
        %v3889 = vld [vmem:[#allocation17 + $0x158] sm:$0xff]
        %v3890 = vld [vmem:[#allocation17 + $0x160] sm:$0xff]
        %v3891 = vld [vmem:[#allocation17 + $0x168] sm:$0xff]
        %v3892 = vld [vmem:[#allocation17 + $0x170] sm:$0xff]
        %v3893 = vld [vmem:[#allocation17 + $0x178] sm:$0xff]
        %v3894 = vld [vmem:[#allocation17 + $0x180] sm:$0xff]
        %v3895 = vld [vmem:[#allocation17 + $0x188] sm:$0xff]
        %v3896 = vld [vmem:[#allocation17 + $0x190] sm:$0xff]
        %v3897 = vld [vmem:[#allocation17 + $0x198] sm:$0xff]
        %v3898 = vld [vmem:[#allocation17 + $0x1a0] sm:$0xff]
        %v3899 = vld [vmem:[#allocation17 + $0x1a8] sm:$0xff]
        %v3900 = vld [vmem:[#allocation17 + $0x1b0] sm:$0xff]
        %v3901 = vld [vmem:[#allocation17 + $0x1b8] sm:$0xff]
        %v3902 = vld [vmem:[#allocation17 + $0x1c0] sm:$0xff]
        %v3903 = vld [vmem:[#allocation17 + $0x1c8] sm:$0xff]
        %v3904 = vld [vmem:[#allocation17 + $0x1d0] sm:$0xff]
        %v3905 = vld [vmem:[#allocation17 + $0x1d8] sm:$0xff]
        %v3906 = vld [vmem:[#allocation17 + $0x1e0] sm:$0xff]
        %v3907 = vld [vmem:[#allocation17 + $0x1e8] sm:$0xff]
        %v3908 = vld [vmem:[#allocation17 + $0x1f0] sm:$0xff]
        %v3909 = vld [vmem:[#allocation17 + $0x1f8] sm:$0xff]
        %v3910 = vld [vmem:[#allocation17 + $0x200] sm:$0xff]
        %v3911 = vld [vmem:[#allocation17 + $0x208] sm:$0xff]
        %v3912 = vld [vmem:[#allocation17 + $0x210] sm:$0xff]
        %v3913 = vld [vmem:[#allocation17 + $0x218] sm:$0xff]
        %v3914 = vld [vmem:[#allocation17 + $0x220] sm:$0xff]
        %v3915 = vld [vmem:[#allocation17 + $0x228] sm:$0xff]
        %v3916 = vld [vmem:[#allocation17 + $0x230] sm:$0xff]
        %v3917 = vld [vmem:[#allocation17 + $0x238] sm:$0xff]
        %v3918 = vld [vmem:[#allocation17 + $0x240] sm:$0xff]
        %v3919 = vld [vmem:[#allocation17 + $0x248] sm:$0xff]
        %v3920 = vld [vmem:[#allocation17 + $0x250] sm:$0xff]
        %v3921 = vld [vmem:[#allocation17 + $0x258] sm:$0xff]
        %v3922 = vld [vmem:[#allocation17 + $0x260] sm:$0xff]
        %v3923 = vld [vmem:[#allocation17 + $0x268] sm:$0xff]
        %v3924 = vld [vmem:[#allocation17 + $0x270] sm:$0xff]
        %v3925 = vld [vmem:[#allocation17 + $0x278] sm:$0xff]
        %v3926 = vld [vmem:[#allocation17 + $0x280] sm:$0xff]
        %v3927 = vld [vmem:[#allocation17 + $0x288] sm:$0xff]
        %v3928 = vld [vmem:[#allocation17 + $0x290] sm:$0xff]
        %v3929 = vld [vmem:[#allocation17 + $0x298] sm:$0xff]
        %v3930 = vld [vmem:[#allocation17 + $0x2a0] sm:$0xff]
        %v3931 = vld [vmem:[#allocation17 + $0x2a8] sm:$0xff]
        %v3932 = vld [vmem:[#allocation17 + $0x2b0] sm:$0xff]
        %v3933 = vld [vmem:[#allocation17 + $0x2b8] sm:$0xff]
        %v3934 = vld [vmem:[#allocation17 + $0x2c0] sm:$0xff]
        %v3935 = vld [vmem:[#allocation17 + $0x2c8] sm:$0xff]
        %v3936 = vld [vmem:[#allocation17 + $0x2d0] sm:$0xff]
        %v3937 = vld [vmem:[#allocation17 + $0x2d8] sm:$0xff]
        %v3938 = vld [vmem:[#allocation17 + $0x2e0] sm:$0xff]
        %v3939 = vld [vmem:[#allocation17 + $0x2e8] sm:$0xff]
        %v3940 = vld [vmem:[#allocation17 + $0x2f0] sm:$0xff]
        %v3941 = vld [vmem:[#allocation17 + $0x2f8] sm:$0xff]
        %v3942 = vld [vmem:[#allocation17 + $0x300] sm:$0xff]
        %v3943 = vld [vmem:[#allocation17 + $0x308] sm:$0xff]
        %v3944 = vld [vmem:[#allocation17 + $0x310] sm:$0xff]
        %v3945 = vld [vmem:[#allocation17 + $0x318] sm:$0xff]
        %v3946 = vld [vmem:[#allocation17 + $0x320] sm:$0xff]
        %v3947 = vld [vmem:[#allocation17 + $0x328] sm:$0xff]
        %v3948 = vld [vmem:[#allocation17 + $0x330] sm:$0xff]
        %v3949 = vld [vmem:[#allocation17 + $0x338] sm:$0xff]
        %v3950 = vld [vmem:[#allocation17 + $0x340] sm:$0xff]
        %v3951 = vld [vmem:[#allocation17 + $0x348] sm:$0xff]
        %v3952 = vld [vmem:[#allocation17 + $0x350] sm:$0xff]
        %v3953 = vld [vmem:[#allocation17 + $0x358] sm:$0xff]
        %v3954 = vld [vmem:[#allocation17 + $0x360] sm:$0xff]
        %v3955 = vld [vmem:[#allocation17 + $0x368] sm:$0xff]
        %v3956 = vld [vmem:[#allocation17 + $0x370] sm:$0xff]
        %v3957 = vld [vmem:[#allocation17 + $0x378] sm:$0xff]
        %v3958 = vld [vmem:[#allocation17 + $0x380] sm:$0xff]
        %v3959 = vld [vmem:[#allocation17 + $0x388] sm:$0xff]
        %v3960 = vld [vmem:[#allocation17 + $0x390] sm:$0xff]
        %v3961 = vld [vmem:[#allocation17 + $0x398] sm:$0xff]
        %v3962 = vld [vmem:[#allocation17 + $0x3a0] sm:$0xff]
        %v3963 = vld [vmem:[#allocation17 + $0x3a8] sm:$0xff]
        %v3964 = vld [vmem:[#allocation17 + $0x3b0] sm:$0xff]
        %v3965 = vld [vmem:[#allocation17 + $0x3b8] sm:$0xff]
        %v3966 = vld [vmem:[#allocation17 + $0x3c0] sm:$0xff]
        %v3967 = vld [vmem:[#allocation17 + $0x3c8] sm:$0xff]
        %v3968 = vld [vmem:[#allocation17 + $0x3d0] sm:$0xff]
        %v3969 = vld [vmem:[#allocation17 + $0x3d8] sm:$0xff]
        %v3970 = vld [vmem:[#allocation17 + $0x3e0] sm:$0xff]
        %v3971 = vld [vmem:[#allocation17 + $0x3e8] sm:$0xff]
        %v3972 = vld [vmem:[#allocation17 + $0x3f0] sm:$0xff]
        %v3973 = vld [vmem:[#allocation17 + $0x3f8] sm:$0xff]
        %v3974 = vld [vmem:[#allocation17 + $0x400] sm:$0xff]
        %v3975 = vld [vmem:[#allocation17 + $0x408] sm:$0xff]
        %v3976 = vld [vmem:[#allocation17 + $0x410] sm:$0xff]
        %v3977 = vld [vmem:[#allocation17 + $0x418] sm:$0xff]
        %v3978 = vld [vmem:[#allocation17 + $0x420] sm:$0xff]
        %v3979 = vld [vmem:[#allocation17 + $0x428] sm:$0xff]
        %v3980 = vld [vmem:[#allocation17 + $0x430] sm:$0xff]
        %v3981 = vld [vmem:[#allocation17 + $0x438] sm:$0xff]
        %v3982 = vld [vmem:[#allocation17 + $0x440] sm:$0xff]
        %v3983 = vld [vmem:[#allocation17 + $0x448] sm:$0xff]
        %v3984 = vld [vmem:[#allocation17 + $0x450] sm:$0xff]
        %v3985 = vld [vmem:[#allocation17 + $0x458] sm:$0xff]
        %v3986 = vld [vmem:[#allocation17 + $0x460] sm:$0xff]
        %v3987 = vld [vmem:[#allocation17 + $0x468] sm:$0xff]
        %v3988 = vld [vmem:[#allocation17 + $0x470] sm:$0xff]
        %v3989 = vld [vmem:[#allocation17 + $0x478] sm:$0xff]
        %v3990 = vld [vmem:[#allocation17 + $0x480] sm:$0xff]
        %v3991 = vld [vmem:[#allocation17 + $0x488] sm:$0xff]
        %v3992 = vld [vmem:[#allocation17 + $0x490] sm:$0xff]
        %v3993 = vld [vmem:[#allocation17 + $0x498] sm:$0xff]
        %v3994 = vld [vmem:[#allocation17 + $0x4a0] sm:$0xff]
        %v3995 = vld [vmem:[#allocation17 + $0x4a8] sm:$0xff]
        %v3996 = vld [vmem:[#allocation17 + $0x4b0] sm:$0xff]
        %v3997 = vld [vmem:[#allocation17 + $0x4b8] sm:$0xff]
        %v3998 = vld [vmem:[#allocation17 + $0x4c0] sm:$0xff]
        %v3999 = vld [vmem:[#allocation17 + $0x4c8] sm:$0xff]
        %v4000 = vld [vmem:[#allocation17 + $0x4d0] sm:$0xff]
        %v4001 = vld [vmem:[#allocation17 + $0x4d8] sm:$0xff]
        %v4002 = vld [vmem:[#allocation17 + $0x4e0] sm:$0xff]
        %v4003 = vld [vmem:[#allocation17 + $0x4e8] sm:$0xff]
        %v4004 = vld [vmem:[#allocation17 + $0x4f0] sm:$0xff]
        %v4005 = vld [vmem:[#allocation17 + $0x4f8] sm:$0xff]
        %v4006 = vld [vmem:[#allocation17 + $0x500] sm:$0xff]
        %v4007 = vld [vmem:[#allocation17 + $0x508] sm:$0xff]
        %v4008 = vld [vmem:[#allocation17 + $0x510] sm:$0xff]
        %v4009 = vld [vmem:[#allocation17 + $0x518] sm:$0xff]
        %v4010 = vld [vmem:[#allocation17 + $0x520] sm:$0xff]
        %v4011 = vld [vmem:[#allocation17 + $0x528] sm:$0xff]
        %v4012 = vld [vmem:[#allocation17 + $0x530] sm:$0xff]
        %v4013 = vld [vmem:[#allocation17 + $0x538] sm:$0xff]
        %v4014 = vld [vmem:[#allocation17 + $0x540] sm:$0xff]
        %v4015 = vld [vmem:[#allocation17 + $0x548] sm:$0xff]
        %v4016 = vld [vmem:[#allocation17 + $0x550] sm:$0xff]
        %v4017 = vld [vmem:[#allocation17 + $0x558] sm:$0xff]
        %v4018 = vld [vmem:[#allocation17 + $0x560] sm:$0xff]
        %v4019 = vld [vmem:[#allocation17 + $0x568] sm:$0xff]
        %v4020 = vld [vmem:[#allocation17 + $0x570] sm:$0xff]
        %v4021 = vld [vmem:[#allocation17 + $0x578] sm:$0xff]
        %v4022 = vld [vmem:[#allocation17 + $0x580] sm:$0xff]
        %v4023 = vld [vmem:[#allocation17 + $0x588] sm:$0xff]
        %v4024 = vld [vmem:[#allocation17 + $0x590] sm:$0xff]
        %v4025 = vld [vmem:[#allocation17 + $0x598] sm:$0xff]
        %v4026 = vld [vmem:[#allocation17 + $0x5a0] sm:$0xff]
        %v4027 = vld [vmem:[#allocation17 + $0x5a8] sm:$0xff]
        %v4028 = vld [vmem:[#allocation17 + $0x5b0] sm:$0xff]
        %v4029 = vld [vmem:[#allocation17 + $0x5b8] sm:$0xff]
        %v4030 = vld [vmem:[#allocation17 + $0x5c0] sm:$0xff]
        %v4031 = vld [vmem:[#allocation17 + $0x5c8] sm:$0xff]
        %v4032 = vld [vmem:[#allocation17 + $0x5d0] sm:$0xff]
        %v4033 = vld [vmem:[#allocation17 + $0x5d8] sm:$0xff]
        %v4034 = vld [vmem:[#allocation17 + $0x5e0] sm:$0xff]
        %v4035 = vld [vmem:[#allocation17 + $0x5e8] sm:$0xff]
        %v4036 = vld [vmem:[#allocation17 + $0x5f0] sm:$0xff]
        %v4037 = vld [vmem:[#allocation17 + $0x5f8] sm:$0xff]
        %v4038 = vld [vmem:[#allocation17 + $0x600] sm:$0xff]
        %v4039 = vld [vmem:[#allocation17 + $0x608] sm:$0xff]
        %v4040 = vld [vmem:[#allocation17 + $0x610] sm:$0xff]
        %v4041 = vld [vmem:[#allocation17 + $0x618] sm:$0xff]
        %v4042 = vld [vmem:[#allocation17 + $0x620] sm:$0xff]
        %v4043 = vld [vmem:[#allocation17 + $0x628] sm:$0xff]
        %v4044 = vld [vmem:[#allocation17 + $0x630] sm:$0xff]
        %v4045 = vld [vmem:[#allocation17 + $0x638] sm:$0xff]
        %v4046 = vld [vmem:[#allocation17 + $0x640] sm:$0xff]
        %v4047 = vld [vmem:[#allocation17 + $0x648] sm:$0xff]
        %v4048 = vld [vmem:[#allocation17 + $0x650] sm:$0xff]
        %v4049 = vld [vmem:[#allocation17 + $0x658] sm:$0xff]
        %v4050 = vld [vmem:[#allocation17 + $0x660] sm:$0xff]
        %v4051 = vld [vmem:[#allocation17 + $0x668] sm:$0xff]
        %v4052 = vld [vmem:[#allocation17 + $0x670] sm:$0xff]
        %v4053 = vld [vmem:[#allocation17 + $0x678] sm:$0xff]
        %v4054 = vld [vmem:[#allocation17 + $0x680] sm:$0xff]
        %v4055 = vld [vmem:[#allocation17 + $0x688] sm:$0xff]
        %v4056 = vld [vmem:[#allocation17 + $0x690] sm:$0xff]
        %v4057 = vld [vmem:[#allocation17 + $0x698] sm:$0xff]
        %v4058 = vld [vmem:[#allocation17 + $0x6a0] sm:$0xff]
        %v4059 = vld [vmem:[#allocation17 + $0x6a8] sm:$0xff]
        %v4060 = vld [vmem:[#allocation17 + $0x6b0] sm:$0xff]
        %v4061 = vld [vmem:[#allocation17 + $0x6b8] sm:$0xff]
        %v4062 = vld [vmem:[#allocation17 + $0x6c0] sm:$0xff]
        %v4063 = vld [vmem:[#allocation17 + $0x6c8] sm:$0xff]
        %v4064 = vld [vmem:[#allocation17 + $0x6d0] sm:$0xff]
        %v4065 = vld [vmem:[#allocation17 + $0x6d8] sm:$0xff]
        %v4066 = vld [vmem:[#allocation17 + $0x6e0] sm:$0xff]
        %v4067 = vld [vmem:[#allocation17 + $0x6e8] sm:$0xff]
        %v4068 = vld [vmem:[#allocation17 + $0x6f0] sm:$0xff]
        %v4069 = vld [vmem:[#allocation17 + $0x6f8] sm:$0xff]
        %v4070 = vld [vmem:[#allocation17 + $0x700] sm:$0xff]
        %v4071 = vld [vmem:[#allocation17 + $0x708] sm:$0xff]
        %v4072 = vld [vmem:[#allocation17 + $0x710] sm:$0xff]
        %v4073 = vld [vmem:[#allocation17 + $0x718] sm:$0xff]
        %v4074 = vld [vmem:[#allocation17 + $0x720] sm:$0xff]
        %v4075 = vld [vmem:[#allocation17 + $0x728] sm:$0xff]
        %v4076 = vld [vmem:[#allocation17 + $0x730] sm:$0xff]
        %v4077 = vld [vmem:[#allocation17 + $0x738] sm:$0xff]
        %v4078 = vld [vmem:[#allocation17 + $0x740] sm:$0xff]
        %v4079 = vld [vmem:[#allocation17 + $0x748] sm:$0xff]
        %v4080 = vld [vmem:[#allocation17 + $0x750] sm:$0xff]
        %v4081 = vld [vmem:[#allocation17 + $0x758] sm:$0xff]
        %v4082 = vld [vmem:[#allocation17 + $0x760] sm:$0xff]
        %v4083 = vld [vmem:[#allocation17 + $0x768] sm:$0xff]
        %v4084 = vld [vmem:[#allocation17 + $0x770] sm:$0xff]
        %v4085 = vld [vmem:[#allocation17 + $0x778] sm:$0xff]
        %v4086 = vld [vmem:[#allocation17 + $0x780] sm:$0xff]
        %v4087 = vld [vmem:[#allocation17 + $0x788] sm:$0xff]
        %v4088 = vld [vmem:[#allocation17 + $0x790] sm:$0xff]
        %v4089 = vld [vmem:[#allocation17 + $0x798] sm:$0xff]
        %v4090 = vld [vmem:[#allocation17 + $0x7a0] sm:$0xff]
        %v4091 = vld [vmem:[#allocation17 + $0x7a8] sm:$0xff]
        %v4092 = vld [vmem:[#allocation17 + $0x7b0] sm:$0xff]
        %v4093 = vld [vmem:[#allocation17 + $0x7b8] sm:$0xff]
        %v4094 = vld [vmem:[#allocation17 + $0x7c0] sm:$0xff]
        %v4095 = vld [vmem:[#allocation17 + $0x7c8] sm:$0xff]
        %v4096 = vld [vmem:[#allocation17 + $0x7d0] sm:$0xff]
        %v4097 = vld [vmem:[#allocation17 + $0x7d8] sm:$0xff]
        %v4098 = vld [vmem:[#allocation17 + $0x7e0] sm:$0xff]
        %v4099 = vld [vmem:[#allocation17 + $0x7e8] sm:$0xff]
        %v4100 = vld [vmem:[#allocation17 + $0x7f0] sm:$0xff]
        %v4101 = vld [vmem:[#allocation17 + $0x7f8] sm:$0xff]
        %v4102 = vld [vmem:[#allocation17 + $0x800] sm:$0xff]
        %v4103 = vld [vmem:[#allocation17 + $0x808] sm:$0xff]
        %v4104 = vld [vmem:[#allocation17 + $0x810] sm:$0xff]
        %v4105 = vld [vmem:[#allocation17 + $0x818] sm:$0xff]
        %v4106 = vld [vmem:[#allocation17 + $0x820] sm:$0xff]
        %v4107 = vld [vmem:[#allocation17 + $0x828] sm:$0xff]
        %v4108 = vld [vmem:[#allocation17 + $0x830] sm:$0xff]
        %v4109 = vld [vmem:[#allocation17 + $0x838] sm:$0xff]
        %v4110 = vld [vmem:[#allocation17 + $0x840] sm:$0xff]
        %v4111 = vld [vmem:[#allocation17 + $0x848] sm:$0xff]
        %v4112 = vld [vmem:[#allocation17 + $0x850] sm:$0xff]
        %v4113 = vld [vmem:[#allocation17 + $0x858] sm:$0xff]
        %v4114 = vld [vmem:[#allocation17 + $0x860] sm:$0xff]
        %v4115 = vld [vmem:[#allocation17 + $0x868] sm:$0xff]
        %v4116 = vld [vmem:[#allocation17 + $0x870] sm:$0xff]
        %v4117 = vld [vmem:[#allocation17 + $0x878] sm:$0xff]
        %v4118 = vld [vmem:[#allocation17 + $0x880] sm:$0xff]
        %v4119 = vld [vmem:[#allocation17 + $0x888] sm:$0xff]
        %v4120 = vld [vmem:[#allocation17 + $0x890] sm:$0xff]
        %v4121 = vld [vmem:[#allocation17 + $0x898] sm:$0xff]
        %v4122 = vld [vmem:[#allocation17 + $0x8a0] sm:$0xff]
        %v4123 = vld [vmem:[#allocation17 + $0x8a8] sm:$0xff]
        %v4124 = vld [vmem:[#allocation17 + $0x8b0] sm:$0xff]
        %v4125 = vld [vmem:[#allocation17 + $0x8b8] sm:$0xff]
        %v4126 = vld [vmem:[#allocation17 + $0x8c0] sm:$0xff]
        %v4127 = vld [vmem:[#allocation17 + $0x8c8] sm:$0xff]
        %v4128 = vld [vmem:[#allocation17 + $0x8d0] sm:$0xff]
        %v4129 = vld [vmem:[#allocation17 + $0x8d8] sm:$0xff]
        %v4130 = vld [vmem:[#allocation17 + $0x8e0] sm:$0xff]
        %v4131 = vld [vmem:[#allocation17 + $0x8e8] sm:$0xff]
        %v4132 = vld [vmem:[#allocation17 + $0x8f0] sm:$0xff]
        %v4133 = vld [vmem:[#allocation17 + $0x8f8] sm:$0xff]
        %v4134 = vld [vmem:[#allocation18] sm:$0xff]
        %v4135 = vld [vmem:[#allocation18 + $0x8] sm:$0xf]
        %v4138 = vlaneseq
        %v4139 = vshrl.u32 %v4138, 7
        %v4140 = vsub.s32 0, %v4139
        %v4141 = vrot.slane %v4134, %v4140
        %v4142 = vlaneseq
        %v4143 = vshrl.u32 %v4142, 7
        %v4144 = vsub.s32 1, %v4143
        %v4145 = vrot.slane %v4134, %v4144
        %v4146 = vlaneseq
        %v4147 = vshrl.u32 %v4146, 7
        %v4148 = vsub.s32 2, %v4147
        %v4149 = vrot.slane %v4134, %v4148
        %v4150 = vlaneseq
        %v4151 = vshrl.u32 %v4150, 7
        %v4152 = vsub.s32 3, %v4151
        %v4153 = vrot.slane %v4134, %v4152
        %v4154 = vlaneseq
        %v4155 = vshrl.u32 %v4154, 7
        %v4156 = vsub.s32 4, %v4155
        %v4157 = vrot.slane %v4134, %v4156
        %v4158 = vlaneseq
        %v4159 = vshrl.u32 %v4158, 7
        %v4160 = vsub.s32 5, %v4159
        %v4161 = vrot.slane %v4134, %v4160
        %v4162 = vlaneseq
        %v4163 = vshrl.u32 %v4162, 7
        %v4164 = vsub.s32 6, %v4163
        %v4165 = vrot.slane %v4134, %v4164
        %v4166 = vlaneseq
        %v4167 = vshrl.u32 %v4166, 7
        %v4168 = vsub.s32 7, %v4167
        %v4169 = vrot.slane %v4134, %v4168
        %v4170 = vlaneseq
        %v4171 = vshrl.u32 %v4170, 7
        %v4172 = vsub.s32 0, %v4171
        %v4173 = vrot.slane %v4135, %v4172
        %v4174 = vlaneseq
        %v4175 = vshrl.u32 %v4174, 7
        %v4176 = vsub.s32 1, %v4175
        %v4177 = vrot.slane %v4135, %v4176
        %v4178 = vlaneseq
        %v4179 = vshrl.u32 %v4178, 7
        %v4180 = vsub.s32 2, %v4179
        %v4181 = vrot.slane %v4135, %v4180
        %v4182 = vlaneseq
        %v4183 = vshrl.u32 %v4182, 7
        %v4184 = vsub.s32 3, %v4183
        %v4185 = vrot.slane %v4135, %v4184
        %v4486 = vunpack.c.l.b16 %v3846
        %v4487 = vunpack.c.h.b16 %v3846
        %v4488 = vunpack.c.l.b16 %v3847
        %v4489 = vunpack.c.h.b16 %v3847
        %v4490 = vunpack.c.l.b16 %v3848
        %v4491 = vunpack.c.h.b16 %v3848
        %v4492 = vunpack.c.l.b16 %v3849
        %v4493 = vunpack.c.h.b16 %v3849
        %v4494 = vunpack.c.l.b16 %v3850
        %v4495 = vunpack.c.h.b16 %v3850
        %v4496 = vunpack.c.l.b16 %v3851
        %v4497 = vunpack.c.h.b16 %v3851
        %v4498 = vunpack.c.l.b16 %v3852
        %v4499 = vunpack.c.h.b16 %v3852
        %v4500 = vunpack.c.l.b16 %v3853
        %v4501 = vunpack.c.h.b16 %v3853
        %v4502 = vunpack.c.l.b16 %v3854
        %v4503 = vunpack.c.h.b16 %v3854
        %v4504 = vunpack.c.l.b16 %v3855
        %v4505 = vunpack.c.h.b16 %v3855
        %v4506 = vunpack.c.l.b16 %v3856
        %v4507 = vunpack.c.h.b16 %v3856
        %v4508 = vunpack.c.l.b16 %v3857
        %v4509 = vunpack.c.h.b16 %v3857
        %v4510 = vunpack.c.l.b16 %v3858
        %v4511 = vunpack.c.h.b16 %v3858
        %v4512 = vunpack.c.l.b16 %v3859
        %v4513 = vunpack.c.h.b16 %v3859
        %v4514 = vunpack.c.l.b16 %v3860
        %v4515 = vunpack.c.h.b16 %v3860
        %v4516 = vunpack.c.l.b16 %v3861
        %v4517 = vunpack.c.h.b16 %v3861
        %v4518 = vunpack.c.l.b16 %v3862
        %v4519 = vunpack.c.h.b16 %v3862
        %v4520 = vunpack.c.l.b16 %v3863
        %v4521 = vunpack.c.h.b16 %v3863
        %v4522 = vunpack.c.l.b16 %v3864
        %v4523 = vunpack.c.h.b16 %v3864
        %v4524 = vunpack.c.l.b16 %v3865
        %v4525 = vunpack.c.h.b16 %v3865
        %v4526 = vunpack.c.l.b16 %v3866
        %v4527 = vunpack.c.h.b16 %v3866
        %v4528 = vunpack.c.l.b16 %v3867
        %v4529 = vunpack.c.h.b16 %v3867
        %v4530 = vunpack.c.l.b16 %v3868
        %v4531 = vunpack.c.h.b16 %v3868
        %v4532 = vunpack.c.l.b16 %v3869
        %v4533 = vunpack.c.h.b16 %v3869
        %v4534 = vunpack.c.l.b16 %v3870
        %v4535 = vunpack.c.h.b16 %v3870
        %v4536 = vunpack.c.l.b16 %v3871
        %v4537 = vunpack.c.h.b16 %v3871
        %v4538 = vunpack.c.l.b16 %v3872
        %v4539 = vunpack.c.h.b16 %v3872
        %v4540 = vunpack.c.l.b16 %v3873
        %v4541 = vunpack.c.h.b16 %v3873
        %v4542 = vunpack.c.l.b16 %v3874
        %v4543 = vunpack.c.h.b16 %v3874
        %v4544 = vunpack.c.l.b16 %v3875
        %v4545 = vunpack.c.h.b16 %v3875
        %v4546 = vunpack.c.l.b16 %v3876
        %v4547 = vunpack.c.h.b16 %v3876
        %v4548 = vunpack.c.l.b16 %v3877
        %v4549 = vunpack.c.h.b16 %v3877
        %v4550 = vunpack.c.l.b16 %v3878
        %v4551 = vunpack.c.h.b16 %v3878
        %v4552 = vunpack.c.l.b16 %v3879
        %v4553 = vunpack.c.h.b16 %v3879
        %v4554 = vunpack.c.l.b16 %v3880
        %v4555 = vunpack.c.h.b16 %v3880
        %v4556 = vunpack.c.l.b16 %v3881
        %v4557 = vunpack.c.h.b16 %v3881
        %v4558 = vunpack.c.l.b16 %v3882
        %v4559 = vunpack.c.h.b16 %v3882
        %v4560 = vunpack.c.l.b16 %v3883
        %v4561 = vunpack.c.h.b16 %v3883
        %v4562 = vunpack.c.l.b16 %v3884
        %v4563 = vunpack.c.h.b16 %v3884
        %v4564 = vunpack.c.l.b16 %v3885
        %v4565 = vunpack.c.h.b16 %v3885
        %v4566 = vunpack.c.l.b16 %v3886
        %v4567 = vunpack.c.h.b16 %v3886
        %v4568 = vunpack.c.l.b16 %v3887
        %v4569 = vunpack.c.h.b16 %v3887
        %v4570 = vunpack.c.l.b16 %v3888
        %v4571 = vunpack.c.h.b16 %v3888
        %v4572 = vunpack.c.l.b16 %v3889
        %v4573 = vunpack.c.h.b16 %v3889
        %v4574 = vunpack.c.l.b16 %v3890
        %v4575 = vunpack.c.h.b16 %v3890
        %v4576 = vunpack.c.l.b16 %v3891
        %v4577 = vunpack.c.h.b16 %v3891
        %v4578 = vunpack.c.l.b16 %v3892
        %v4579 = vunpack.c.h.b16 %v3892
        %v4580 = vunpack.c.l.b16 %v3893
        %v4581 = vunpack.c.h.b16 %v3893
        %v4582 = vunpack.c.l.b16 %v3894
        %v4583 = vunpack.c.h.b16 %v3894
        %v4584 = vunpack.c.l.b16 %v3895
        %v4585 = vunpack.c.h.b16 %v3895
        %v4586 = vunpack.c.l.b16 %v3896
        %v4587 = vunpack.c.h.b16 %v3896
        %v4588 = vunpack.c.l.b16 %v3897
        %v4589 = vunpack.c.h.b16 %v3897
        %v4590 = vunpack.c.l.b16 %v3898
        %v4591 = vunpack.c.h.b16 %v3898
        %v4592 = vunpack.c.l.b16 %v3899
        %v4593 = vunpack.c.h.b16 %v3899
        %v4594 = vunpack.c.l.b16 %v3900
        %v4595 = vunpack.c.h.b16 %v3900
        %v4596 = vunpack.c.l.b16 %v3901
        %v4597 = vunpack.c.h.b16 %v3901
        %v4598 = vunpack.c.l.b16 %v3902
        %v4599 = vunpack.c.h.b16 %v3902
        %v4600 = vunpack.c.l.b16 %v3903
        %v4601 = vunpack.c.h.b16 %v3903
        %v4602 = vunpack.c.l.b16 %v3904
        %v4603 = vunpack.c.h.b16 %v3904
        %v4604 = vunpack.c.l.b16 %v3905
        %v4605 = vunpack.c.h.b16 %v3905
        %v4606 = vunpack.c.l.b16 %v3906
        %v4607 = vunpack.c.h.b16 %v3906
        %v4608 = vunpack.c.l.b16 %v3907
        %v4609 = vunpack.c.h.b16 %v3907
        %v4610 = vunpack.c.l.b16 %v3908
        %v4611 = vunpack.c.h.b16 %v3908
        %v4612 = vunpack.c.l.b16 %v3909
        %v4613 = vunpack.c.h.b16 %v3909
        %v4614 = vunpack.c.l.b16 %v3910
        %v4615 = vunpack.c.h.b16 %v3910
        %v4616 = vunpack.c.l.b16 %v3911
        %v4617 = vunpack.c.h.b16 %v3911
        %v4618 = vunpack.c.l.b16 %v3912
        %v4619 = vunpack.c.h.b16 %v3912
        %v4620 = vunpack.c.l.b16 %v3913
        %v4621 = vunpack.c.h.b16 %v3913
        %v4622 = vunpack.c.l.b16 %v3914
        %v4623 = vunpack.c.h.b16 %v3914
        %v4624 = vunpack.c.l.b16 %v3915
        %v4625 = vunpack.c.h.b16 %v3915
        %v4626 = vunpack.c.l.b16 %v3916
        %v4627 = vunpack.c.h.b16 %v3916
        %v4628 = vunpack.c.l.b16 %v3917
        %v4629 = vunpack.c.h.b16 %v3917
        %v4630 = vunpack.c.l.b16 %v3918
        %v4631 = vunpack.c.h.b16 %v3918
        %v4632 = vunpack.c.l.b16 %v3919
        %v4633 = vunpack.c.h.b16 %v3919
        %v4634 = vunpack.c.l.b16 %v3920
        %v4635 = vunpack.c.h.b16 %v3920
        %v4636 = vunpack.c.l.b16 %v3921
        %v4637 = vunpack.c.h.b16 %v3921
        %v4638 = vunpack.c.l.b16 %v3922
        %v4639 = vunpack.c.h.b16 %v3922
        %v4640 = vunpack.c.l.b16 %v3923
        %v4641 = vunpack.c.h.b16 %v3923
        %v4642 = vunpack.c.l.b16 %v3924
        %v4643 = vunpack.c.h.b16 %v3924
        %v4644 = vunpack.c.l.b16 %v3925
        %v4645 = vunpack.c.h.b16 %v3925
        %v4646 = vunpack.c.l.b16 %v3926
        %v4647 = vunpack.c.h.b16 %v3926
        %v4648 = vunpack.c.l.b16 %v3927
        %v4649 = vunpack.c.h.b16 %v3927
        %v4650 = vunpack.c.l.b16 %v3928
        %v4651 = vunpack.c.h.b16 %v3928
        %v4652 = vunpack.c.l.b16 %v3929
        %v4653 = vunpack.c.h.b16 %v3929
        %v4654 = vunpack.c.l.b16 %v3930
        %v4655 = vunpack.c.h.b16 %v3930
        %v4656 = vunpack.c.l.b16 %v3931
        %v4657 = vunpack.c.h.b16 %v3931
        %v4658 = vunpack.c.l.b16 %v3932
        %v4659 = vunpack.c.h.b16 %v3932
        %v4660 = vunpack.c.l.b16 %v3933
        %v4661 = vunpack.c.h.b16 %v3933
        %v4662 = vunpack.c.l.b16 %v3934
        %v4663 = vunpack.c.h.b16 %v3934
        %v4664 = vunpack.c.l.b16 %v3935
        %v4665 = vunpack.c.h.b16 %v3935
        %v4666 = vunpack.c.l.b16 %v3936
        %v4667 = vunpack.c.h.b16 %v3936
        %v4668 = vunpack.c.l.b16 %v3937
        %v4669 = vunpack.c.h.b16 %v3937
        %v4670 = vunpack.c.l.b16 %v3938
        %v4671 = vunpack.c.h.b16 %v3938
        %v4672 = vunpack.c.l.b16 %v3939
        %v4673 = vunpack.c.h.b16 %v3939
        %v4674 = vunpack.c.l.b16 %v3940
        %v4675 = vunpack.c.h.b16 %v3940
        %v4676 = vunpack.c.l.b16 %v3941
        %v4677 = vunpack.c.h.b16 %v3941
        %v4678 = vunpack.c.l.b16 %v3942
        %v4679 = vunpack.c.h.b16 %v3942
        %v4680 = vunpack.c.l.b16 %v3943
        %v4681 = vunpack.c.h.b16 %v3943
        %v4682 = vunpack.c.l.b16 %v3944
        %v4683 = vunpack.c.h.b16 %v3944
        %v4684 = vunpack.c.l.b16 %v3945
        %v4685 = vunpack.c.h.b16 %v3945
        %v4686 = vunpack.c.l.b16 %v3946
        %v4687 = vunpack.c.h.b16 %v3946
        %v4688 = vunpack.c.l.b16 %v3947
        %v4689 = vunpack.c.h.b16 %v3947
        %v4690 = vunpack.c.l.b16 %v3948
        %v4691 = vunpack.c.h.b16 %v3948
        %v4692 = vunpack.c.l.b16 %v3949
        %v4693 = vunpack.c.h.b16 %v3949
        %v4694 = vunpack.c.l.b16 %v3950
        %v4695 = vunpack.c.h.b16 %v3950
        %v4696 = vunpack.c.l.b16 %v3951
        %v4697 = vunpack.c.h.b16 %v3951
        %v4698 = vunpack.c.l.b16 %v3952
        %v4699 = vunpack.c.h.b16 %v3952
        %v4700 = vunpack.c.l.b16 %v3953
        %v4701 = vunpack.c.h.b16 %v3953
        %v4702 = vunpack.c.l.b16 %v3954
        %v4703 = vunpack.c.h.b16 %v3954
        %v4704 = vunpack.c.l.b16 %v3955
        %v4705 = vunpack.c.h.b16 %v3955
        %v4706 = vunpack.c.l.b16 %v3956
        %v4707 = vunpack.c.h.b16 %v3956
        %v4708 = vunpack.c.l.b16 %v3957
        %v4709 = vunpack.c.h.b16 %v3957
        %v4710 = vunpack.c.l.b16 %v3958
        %v4711 = vunpack.c.h.b16 %v3958
        %v4712 = vunpack.c.l.b16 %v3959
        %v4713 = vunpack.c.h.b16 %v3959
        %v4714 = vunpack.c.l.b16 %v3960
        %v4715 = vunpack.c.h.b16 %v3960
        %v4716 = vunpack.c.l.b16 %v3961
        %v4717 = vunpack.c.h.b16 %v3961
        %v4718 = vunpack.c.l.b16 %v3962
        %v4719 = vunpack.c.h.b16 %v3962
        %v4720 = vunpack.c.l.b16 %v3963
        %v4721 = vunpack.c.h.b16 %v3963
        %v4722 = vunpack.c.l.b16 %v3964
        %v4723 = vunpack.c.h.b16 %v3964
        %v4724 = vunpack.c.l.b16 %v3965
        %v4725 = vunpack.c.h.b16 %v3965
        %v4726 = vunpack.c.l.b16 %v3966
        %v4727 = vunpack.c.h.b16 %v3966
        %v4728 = vunpack.c.l.b16 %v3967
        %v4729 = vunpack.c.h.b16 %v3967
        %v4730 = vunpack.c.l.b16 %v3968
        %v4731 = vunpack.c.h.b16 %v3968
        %v4732 = vunpack.c.l.b16 %v3969
        %v4733 = vunpack.c.h.b16 %v3969
        %v4734 = vunpack.c.l.b16 %v3970
        %v4735 = vunpack.c.h.b16 %v3970
        %v4736 = vunpack.c.l.b16 %v3971
        %v4737 = vunpack.c.h.b16 %v3971
        %v4738 = vunpack.c.l.b16 %v3972
        %v4739 = vunpack.c.h.b16 %v3972
        %v4740 = vunpack.c.l.b16 %v3973
        %v4741 = vunpack.c.h.b16 %v3973
        %v4742 = vunpack.c.l.b16 %v3974
        %v4743 = vunpack.c.h.b16 %v3974
        %v4744 = vunpack.c.l.b16 %v3975
        %v4745 = vunpack.c.h.b16 %v3975
        %v4746 = vunpack.c.l.b16 %v3976
        %v4747 = vunpack.c.h.b16 %v3976
        %v4748 = vunpack.c.l.b16 %v3977
        %v4749 = vunpack.c.h.b16 %v3977
        %v4750 = vunpack.c.l.b16 %v3978
        %v4751 = vunpack.c.h.b16 %v3978
        %v4752 = vunpack.c.l.b16 %v3979
        %v4753 = vunpack.c.h.b16 %v3979
        %v4754 = vunpack.c.l.b16 %v3980
        %v4755 = vunpack.c.h.b16 %v3980
        %v4756 = vunpack.c.l.b16 %v3981
        %v4757 = vunpack.c.h.b16 %v3981
        %v4758 = vunpack.c.l.b16 %v3982
        %v4759 = vunpack.c.h.b16 %v3982
        %v4760 = vunpack.c.l.b16 %v3983
        %v4761 = vunpack.c.h.b16 %v3983
        %v4762 = vunpack.c.l.b16 %v3984
        %v4763 = vunpack.c.h.b16 %v3984
        %v4764 = vunpack.c.l.b16 %v3985
        %v4765 = vunpack.c.h.b16 %v3985
        %v4766 = vunpack.c.l.b16 %v3986
        %v4767 = vunpack.c.h.b16 %v3986
        %v4768 = vunpack.c.l.b16 %v3987
        %v4769 = vunpack.c.h.b16 %v3987
        %v4770 = vunpack.c.l.b16 %v3988
        %v4771 = vunpack.c.h.b16 %v3988
        %v4772 = vunpack.c.l.b16 %v3989
        %v4773 = vunpack.c.h.b16 %v3989
        %v4774 = vunpack.c.l.b16 %v3990
        %v4775 = vunpack.c.h.b16 %v3990
        %v4776 = vunpack.c.l.b16 %v3991
        %v4777 = vunpack.c.h.b16 %v3991
        %v4778 = vunpack.c.l.b16 %v3992
        %v4779 = vunpack.c.h.b16 %v3992
        %v4780 = vunpack.c.l.b16 %v3993
        %v4781 = vunpack.c.h.b16 %v3993
        %v4782 = vunpack.c.l.b16 %v3994
        %v4783 = vunpack.c.h.b16 %v3994
        %v4784 = vunpack.c.l.b16 %v3995
        %v4785 = vunpack.c.h.b16 %v3995
        %v4786 = vunpack.c.l.b16 %v3996
        %v4787 = vunpack.c.h.b16 %v3996
        %v4788 = vunpack.c.l.b16 %v3997
        %v4789 = vunpack.c.h.b16 %v3997
        %v4790 = vunpack.c.l.b16 %v3998
        %v4791 = vunpack.c.h.b16 %v3998
        %v4792 = vunpack.c.l.b16 %v3999
        %v4793 = vunpack.c.h.b16 %v3999
        %v4794 = vunpack.c.l.b16 %v4000
        %v4795 = vunpack.c.h.b16 %v4000
        %v4796 = vunpack.c.l.b16 %v4001
        %v4797 = vunpack.c.h.b16 %v4001
        %v4798 = vunpack.c.l.b16 %v4002
        %v4799 = vunpack.c.h.b16 %v4002
        %v4800 = vunpack.c.l.b16 %v4003
        %v4801 = vunpack.c.h.b16 %v4003
        %v4802 = vunpack.c.l.b16 %v4004
        %v4803 = vunpack.c.h.b16 %v4004
        %v4804 = vunpack.c.l.b16 %v4005
        %v4805 = vunpack.c.h.b16 %v4005
        %v4806 = vunpack.c.l.b16 %v4006
        %v4807 = vunpack.c.h.b16 %v4006
        %v4808 = vunpack.c.l.b16 %v4007
        %v4809 = vunpack.c.h.b16 %v4007
        %v4810 = vunpack.c.l.b16 %v4008
        %v4811 = vunpack.c.h.b16 %v4008
        %v4812 = vunpack.c.l.b16 %v4009
        %v4813 = vunpack.c.h.b16 %v4009
        %v4814 = vunpack.c.l.b16 %v4010
        %v4815 = vunpack.c.h.b16 %v4010
        %v4816 = vunpack.c.l.b16 %v4011
        %v4817 = vunpack.c.h.b16 %v4011
        %v4818 = vunpack.c.l.b16 %v4012
        %v4819 = vunpack.c.h.b16 %v4012
        %v4820 = vunpack.c.l.b16 %v4013
        %v4821 = vunpack.c.h.b16 %v4013
        %v4822 = vunpack.c.l.b16 %v4014
        %v4823 = vunpack.c.h.b16 %v4014
        %v4824 = vunpack.c.l.b16 %v4015
        %v4825 = vunpack.c.h.b16 %v4015
        %v4826 = vunpack.c.l.b16 %v4016
        %v4827 = vunpack.c.h.b16 %v4016
        %v4828 = vunpack.c.l.b16 %v4017
        %v4829 = vunpack.c.h.b16 %v4017
        %v4830 = vunpack.c.l.b16 %v4018
        %v4831 = vunpack.c.h.b16 %v4018
        %v4832 = vunpack.c.l.b16 %v4019
        %v4833 = vunpack.c.h.b16 %v4019
        %v4834 = vunpack.c.l.b16 %v4020
        %v4835 = vunpack.c.h.b16 %v4020
        %v4836 = vunpack.c.l.b16 %v4021
        %v4837 = vunpack.c.h.b16 %v4021
        %v4838 = vunpack.c.l.b16 %v4022
        %v4839 = vunpack.c.h.b16 %v4022
        %v4840 = vunpack.c.l.b16 %v4023
        %v4841 = vunpack.c.h.b16 %v4023
        %v4842 = vunpack.c.l.b16 %v4024
        %v4843 = vunpack.c.h.b16 %v4024
        %v4844 = vunpack.c.l.b16 %v4025
        %v4845 = vunpack.c.h.b16 %v4025
        %v4846 = vunpack.c.l.b16 %v4026
        %v4847 = vunpack.c.h.b16 %v4026
        %v4848 = vunpack.c.l.b16 %v4027
        %v4849 = vunpack.c.h.b16 %v4027
        %v4850 = vunpack.c.l.b16 %v4028
        %v4851 = vunpack.c.h.b16 %v4028
        %v4852 = vunpack.c.l.b16 %v4029
        %v4853 = vunpack.c.h.b16 %v4029
        %v4854 = vunpack.c.l.b16 %v4030
        %v4855 = vunpack.c.h.b16 %v4030
        %v4856 = vunpack.c.l.b16 %v4031
        %v4857 = vunpack.c.h.b16 %v4031
        %v4858 = vunpack.c.l.b16 %v4032
        %v4859 = vunpack.c.h.b16 %v4032
        %v4860 = vunpack.c.l.b16 %v4033
        %v4861 = vunpack.c.h.b16 %v4033
        %v4862 = vunpack.c.l.b16 %v4034
        %v4863 = vunpack.c.h.b16 %v4034
        %v4864 = vunpack.c.l.b16 %v4035
        %v4865 = vunpack.c.h.b16 %v4035
        %v4866 = vunpack.c.l.b16 %v4036
        %v4867 = vunpack.c.h.b16 %v4036
        %v4868 = vunpack.c.l.b16 %v4037
        %v4869 = vunpack.c.h.b16 %v4037
        %v4870 = vunpack.c.l.b16 %v4038
        %v4871 = vunpack.c.h.b16 %v4038
        %v4872 = vunpack.c.l.b16 %v4039
        %v4873 = vunpack.c.h.b16 %v4039
        %v4874 = vunpack.c.l.b16 %v4040
        %v4875 = vunpack.c.h.b16 %v4040
        %v4876 = vunpack.c.l.b16 %v4041
        %v4877 = vunpack.c.h.b16 %v4041
        %v4878 = vunpack.c.l.b16 %v4042
        %v4879 = vunpack.c.h.b16 %v4042
        %v4880 = vunpack.c.l.b16 %v4043
        %v4881 = vunpack.c.h.b16 %v4043
        %v4882 = vunpack.c.l.b16 %v4044
        %v4883 = vunpack.c.h.b16 %v4044
        %v4884 = vunpack.c.l.b16 %v4045
        %v4885 = vunpack.c.h.b16 %v4045
        %v4886 = vunpack.c.l.b16 %v4046
        %v4887 = vunpack.c.h.b16 %v4046
        %v4888 = vunpack.c.l.b16 %v4047
        %v4889 = vunpack.c.h.b16 %v4047
        %v4890 = vunpack.c.l.b16 %v4048
        %v4891 = vunpack.c.h.b16 %v4048
        %v4892 = vunpack.c.l.b16 %v4049
        %v4893 = vunpack.c.h.b16 %v4049
        %v4894 = vunpack.c.l.b16 %v4050
        %v4895 = vunpack.c.h.b16 %v4050
        %v4896 = vunpack.c.l.b16 %v4051
        %v4897 = vunpack.c.h.b16 %v4051
        %v4898 = vunpack.c.l.b16 %v4052
        %v4899 = vunpack.c.h.b16 %v4052
        %v4900 = vunpack.c.l.b16 %v4053
        %v4901 = vunpack.c.h.b16 %v4053
        %v4902 = vunpack.c.l.b16 %v4054
        %v4903 = vunpack.c.h.b16 %v4054
        %v4904 = vunpack.c.l.b16 %v4055
        %v4905 = vunpack.c.h.b16 %v4055
        %v4906 = vunpack.c.l.b16 %v4056
        %v4907 = vunpack.c.h.b16 %v4056
        %v4908 = vunpack.c.l.b16 %v4057
        %v4909 = vunpack.c.h.b16 %v4057
        %v4910 = vunpack.c.l.b16 %v4058
        %v4911 = vunpack.c.h.b16 %v4058
        %v4912 = vunpack.c.l.b16 %v4059
        %v4913 = vunpack.c.h.b16 %v4059
        %v4914 = vunpack.c.l.b16 %v4060
        %v4915 = vunpack.c.h.b16 %v4060
        %v4916 = vunpack.c.l.b16 %v4061
        %v4917 = vunpack.c.h.b16 %v4061
        %v4918 = vunpack.c.l.b16 %v4062
        %v4919 = vunpack.c.h.b16 %v4062
        %v4920 = vunpack.c.l.b16 %v4063
        %v4921 = vunpack.c.h.b16 %v4063
        %v4922 = vunpack.c.l.b16 %v4064
        %v4923 = vunpack.c.h.b16 %v4064
        %v4924 = vunpack.c.l.b16 %v4065
        %v4925 = vunpack.c.h.b16 %v4065
        %v4926 = vunpack.c.l.b16 %v4066
        %v4927 = vunpack.c.h.b16 %v4066
        %v4928 = vunpack.c.l.b16 %v4067
        %v4929 = vunpack.c.h.b16 %v4067
        %v4930 = vunpack.c.l.b16 %v4068
        %v4931 = vunpack.c.h.b16 %v4068
        %v4932 = vunpack.c.l.b16 %v4069
        %v4933 = vunpack.c.h.b16 %v4069
        %v4934 = vunpack.c.l.b16 %v4070
        %v4935 = vunpack.c.h.b16 %v4070
        %v4936 = vunpack.c.l.b16 %v4071
        %v4937 = vunpack.c.h.b16 %v4071
        %v4938 = vunpack.c.l.b16 %v4072
        %v4939 = vunpack.c.h.b16 %v4072
        %v4940 = vunpack.c.l.b16 %v4073
        %v4941 = vunpack.c.h.b16 %v4073
        %v4942 = vunpack.c.l.b16 %v4074
        %v4943 = vunpack.c.h.b16 %v4074
        %v4944 = vunpack.c.l.b16 %v4075
        %v4945 = vunpack.c.h.b16 %v4075
        %v4946 = vunpack.c.l.b16 %v4076
        %v4947 = vunpack.c.h.b16 %v4076
        %v4948 = vunpack.c.l.b16 %v4077
        %v4949 = vunpack.c.h.b16 %v4077
        %v4950 = vunpack.c.l.b16 %v4078
        %v4951 = vunpack.c.h.b16 %v4078
        %v4952 = vunpack.c.l.b16 %v4079
        %v4953 = vunpack.c.h.b16 %v4079
        %v4954 = vunpack.c.l.b16 %v4080
        %v4955 = vunpack.c.h.b16 %v4080
        %v4956 = vunpack.c.l.b16 %v4081
        %v4957 = vunpack.c.h.b16 %v4081
        %v4958 = vunpack.c.l.b16 %v4082
        %v4959 = vunpack.c.h.b16 %v4082
        %v4960 = vunpack.c.l.b16 %v4083
        %v4961 = vunpack.c.h.b16 %v4083
        %v4962 = vunpack.c.l.b16 %v4084
        %v4963 = vunpack.c.h.b16 %v4084
        %v4964 = vunpack.c.l.b16 %v4085
        %v4965 = vunpack.c.h.b16 %v4085
        %v4966 = vunpack.c.l.b16 %v4086
        %v4967 = vunpack.c.h.b16 %v4086
        %v4968 = vunpack.c.l.b16 %v4087
        %v4969 = vunpack.c.h.b16 %v4087
        %v4970 = vunpack.c.l.b16 %v4088
        %v4971 = vunpack.c.h.b16 %v4088
        %v4972 = vunpack.c.l.b16 %v4089
        %v4973 = vunpack.c.h.b16 %v4089
        %v4974 = vunpack.c.l.b16 %v4090
        %v4975 = vunpack.c.h.b16 %v4090
        %v4976 = vunpack.c.l.b16 %v4091
        %v4977 = vunpack.c.h.b16 %v4091
        %v4978 = vunpack.c.l.b16 %v4092
        %v4979 = vunpack.c.h.b16 %v4092
        %v4980 = vunpack.c.l.b16 %v4093
        %v4981 = vunpack.c.h.b16 %v4093
        %v4982 = vunpack.c.l.b16 %v4094
        %v4983 = vunpack.c.h.b16 %v4094
        %v4984 = vunpack.c.l.b16 %v4095
        %v4985 = vunpack.c.h.b16 %v4095
        %v4986 = vunpack.c.l.b16 %v4096
        %v4987 = vunpack.c.h.b16 %v4096
        %v4988 = vunpack.c.l.b16 %v4097
        %v4989 = vunpack.c.h.b16 %v4097
        %v4990 = vunpack.c.l.b16 %v4098
        %v4991 = vunpack.c.h.b16 %v4098
        %v4992 = vunpack.c.l.b16 %v4099
        %v4993 = vunpack.c.h.b16 %v4099
        %v4994 = vunpack.c.l.b16 %v4100
        %v4995 = vunpack.c.h.b16 %v4100
        %v4996 = vunpack.c.l.b16 %v4101
        %v4997 = vunpack.c.h.b16 %v4101
        %v4998 = vunpack.c.l.b16 %v4102
        %v4999 = vunpack.c.h.b16 %v4102
        %v5000 = vunpack.c.l.b16 %v4103
        %v5001 = vunpack.c.h.b16 %v4103
        %v5002 = vunpack.c.l.b16 %v4104
        %v5003 = vunpack.c.h.b16 %v4104
        %v5004 = vunpack.c.l.b16 %v4105
        %v5005 = vunpack.c.h.b16 %v4105
        %v5006 = vunpack.c.l.b16 %v4106
        %v5007 = vunpack.c.h.b16 %v4106
        %v5008 = vunpack.c.l.b16 %v4107
        %v5009 = vunpack.c.h.b16 %v4107
        %v5010 = vunpack.c.l.b16 %v4108
        %v5011 = vunpack.c.h.b16 %v4108
        %v5012 = vunpack.c.l.b16 %v4109
        %v5013 = vunpack.c.h.b16 %v4109
        %v5014 = vunpack.c.l.b16 %v4110
        %v5015 = vunpack.c.h.b16 %v4110
        %v5016 = vunpack.c.l.b16 %v4111
        %v5017 = vunpack.c.h.b16 %v4111
        %v5018 = vunpack.c.l.b16 %v4112
        %v5019 = vunpack.c.h.b16 %v4112
        %v5020 = vunpack.c.l.b16 %v4113
        %v5021 = vunpack.c.h.b16 %v4113
        %v5022 = vunpack.c.l.b16 %v4114
        %v5023 = vunpack.c.h.b16 %v4114
        %v5024 = vunpack.c.l.b16 %v4115
        %v5025 = vunpack.c.h.b16 %v4115
        %v5026 = vunpack.c.l.b16 %v4116
        %v5027 = vunpack.c.h.b16 %v4116
        %v5028 = vunpack.c.l.b16 %v4117
        %v5029 = vunpack.c.h.b16 %v4117
        %v5030 = vunpack.c.l.b16 %v4118
        %v5031 = vunpack.c.h.b16 %v4118
        %v5032 = vunpack.c.l.b16 %v4119
        %v5033 = vunpack.c.h.b16 %v4119
        %v5034 = vunpack.c.l.b16 %v4120
        %v5035 = vunpack.c.h.b16 %v4120
        %v5036 = vunpack.c.l.b16 %v4121
        %v5037 = vunpack.c.h.b16 %v4121
        %v5038 = vunpack.c.l.b16 %v4122
        %v5039 = vunpack.c.h.b16 %v4122
        %v5040 = vunpack.c.l.b16 %v4123
        %v5041 = vunpack.c.h.b16 %v4123
        %v5042 = vunpack.c.l.b16 %v4124
        %v5043 = vunpack.c.h.b16 %v4124
        %v5044 = vunpack.c.l.b16 %v4125
        %v5045 = vunpack.c.h.b16 %v4125
        %v5046 = vunpack.c.l.b16 %v4126
        %v5047 = vunpack.c.h.b16 %v4126
        %v5048 = vunpack.c.l.b16 %v4127
        %v5049 = vunpack.c.h.b16 %v4127
        %v5050 = vunpack.c.l.b16 %v4128
        %v5051 = vunpack.c.h.b16 %v4128
        %v5052 = vunpack.c.l.b16 %v4129
        %v5053 = vunpack.c.h.b16 %v4129
        %v5054 = vunpack.c.l.b16 %v4130
        %v5055 = vunpack.c.h.b16 %v4130
        %v5056 = vunpack.c.l.b16 %v4131
        %v5057 = vunpack.c.h.b16 %v4131
        %v5058 = vunpack.c.l.b16 %v4132
        %v5059 = vunpack.c.h.b16 %v4132
        %v5060 = vunpack.c.l.b16 %v4133
        %v5061 = vunpack.c.h.b16 %v4133
        %v5062 = vpack.c.b16 %v4498, %v4486
        %v5063 = vpack.c.b16 %v4499, %v4487
        %v5064 = vpack.c.b16 %v4500, %v4488
        %v5065 = vpack.c.b16 %v4501, %v4489
        %v5066 = vpack.c.b16 %v4502, %v4490
        %v5067 = vpack.c.b16 %v4503, %v4491
        %v5068 = vpack.c.b16 %v4504, %v4492
        %v5069 = vpack.c.b16 %v4505, %v4493
        %v5070 = vpack.c.b16 %v4506, %v4494
        %v5071 = vpack.c.b16 %v4507, %v4495
        %v5072 = vpack.c.b16 %v4508, %v4496
        %v5073 = vpack.c.b16 %v4509, %v4497
        %v5074 = vpack.c.b16 %v4522, %v4510
        %v5075 = vpack.c.b16 %v4523, %v4511
        %v5076 = vpack.c.b16 %v4524, %v4512
        %v5077 = vpack.c.b16 %v4525, %v4513
        %v5078 = vpack.c.b16 %v4526, %v4514
        %v5079 = vpack.c.b16 %v4527, %v4515
        %v5080 = vpack.c.b16 %v4528, %v4516
        %v5081 = vpack.c.b16 %v4529, %v4517
        %v5082 = vpack.c.b16 %v4530, %v4518
        %v5083 = vpack.c.b16 %v4531, %v4519
        %v5084 = vpack.c.b16 %v4532, %v4520
        %v5085 = vpack.c.b16 %v4533, %v4521
        %v5086 = vpack.c.b16 %v4546, %v4534
        %v5087 = vpack.c.b16 %v4547, %v4535
        %v5088 = vpack.c.b16 %v4548, %v4536
        %v5089 = vpack.c.b16 %v4549, %v4537
        %v5090 = vpack.c.b16 %v4550, %v4538
        %v5091 = vpack.c.b16 %v4551, %v4539
        %v5092 = vpack.c.b16 %v4552, %v4540
        %v5093 = vpack.c.b16 %v4553, %v4541
        %v5094 = vpack.c.b16 %v4554, %v4542
        %v5095 = vpack.c.b16 %v4555, %v4543
        %v5096 = vpack.c.b16 %v4556, %v4544
        %v5097 = vpack.c.b16 %v4557, %v4545
        %v5098 = vpack.c.b16 %v4570, %v4558
        %v5099 = vpack.c.b16 %v4571, %v4559
        %v5100 = vpack.c.b16 %v4572, %v4560
        %v5101 = vpack.c.b16 %v4573, %v4561
        %v5102 = vpack.c.b16 %v4574, %v4562
        %v5103 = vpack.c.b16 %v4575, %v4563
        %v5104 = vpack.c.b16 %v4576, %v4564
        %v5105 = vpack.c.b16 %v4577, %v4565
        %v5106 = vpack.c.b16 %v4578, %v4566
        %v5107 = vpack.c.b16 %v4579, %v4567
        %v5108 = vpack.c.b16 %v4580, %v4568
        %v5109 = vpack.c.b16 %v4581, %v4569
        %v5110 = vpack.c.b16 %v4594, %v4582
        %v5111 = vpack.c.b16 %v4595, %v4583
        %v5112 = vpack.c.b16 %v4596, %v4584
        %v5113 = vpack.c.b16 %v4597, %v4585
        %v5114 = vpack.c.b16 %v4598, %v4586
        %v5115 = vpack.c.b16 %v4599, %v4587
        %v5116 = vpack.c.b16 %v4600, %v4588
        %v5117 = vpack.c.b16 %v4601, %v4589
        %v5118 = vpack.c.b16 %v4602, %v4590
        %v5119 = vpack.c.b16 %v4603, %v4591
        %v5120 = vpack.c.b16 %v4604, %v4592
        %v5121 = vpack.c.b16 %v4605, %v4593
        %v5122 = vpack.c.b16 %v4618, %v4606
        %v5123 = vpack.c.b16 %v4619, %v4607
        %v5124 = vpack.c.b16 %v4620, %v4608
        %v5125 = vpack.c.b16 %v4621, %v4609
        %v5126 = vpack.c.b16 %v4622, %v4610
        %v5127 = vpack.c.b16 %v4623, %v4611
        %v5128 = vpack.c.b16 %v4624, %v4612
        %v5129 = vpack.c.b16 %v4625, %v4613
        %v5130 = vpack.c.b16 %v4626, %v4614
        %v5131 = vpack.c.b16 %v4627, %v4615
        %v5132 = vpack.c.b16 %v4628, %v4616
        %v5133 = vpack.c.b16 %v4629, %v4617
        %v5134 = vpack.c.b16 %v4642, %v4630
        %v5135 = vpack.c.b16 %v4643, %v4631
        %v5136 = vpack.c.b16 %v4644, %v4632
        %v5137 = vpack.c.b16 %v4645, %v4633
        %v5138 = vpack.c.b16 %v4646, %v4634
        %v5139 = vpack.c.b16 %v4647, %v4635
        %v5140 = vpack.c.b16 %v4648, %v4636
        %v5141 = vpack.c.b16 %v4649, %v4637
        %v5142 = vpack.c.b16 %v4650, %v4638
        %v5143 = vpack.c.b16 %v4651, %v4639
        %v5144 = vpack.c.b16 %v4652, %v4640
        %v5145 = vpack.c.b16 %v4653, %v4641
        %v5146 = vpack.c.b16 %v4666, %v4654
        %v5147 = vpack.c.b16 %v4667, %v4655
        %v5148 = vpack.c.b16 %v4668, %v4656
        %v5149 = vpack.c.b16 %v4669, %v4657
        %v5150 = vpack.c.b16 %v4670, %v4658
        %v5151 = vpack.c.b16 %v4671, %v4659
        %v5152 = vpack.c.b16 %v4672, %v4660
        %v5153 = vpack.c.b16 %v4673, %v4661
        %v5154 = vpack.c.b16 %v4674, %v4662
        %v5155 = vpack.c.b16 %v4675, %v4663
        %v5156 = vpack.c.b16 %v4676, %v4664
        %v5157 = vpack.c.b16 %v4677, %v4665
        %v5158 = vpack.c.b16 %v4690, %v4678
        %v5159 = vpack.c.b16 %v4691, %v4679
        %v5160 = vpack.c.b16 %v4692, %v4680
        %v5161 = vpack.c.b16 %v4693, %v4681
        %v5162 = vpack.c.b16 %v4694, %v4682
        %v5163 = vpack.c.b16 %v4695, %v4683
        %v5164 = vpack.c.b16 %v4696, %v4684
        %v5165 = vpack.c.b16 %v4697, %v4685
        %v5166 = vpack.c.b16 %v4698, %v4686
        %v5167 = vpack.c.b16 %v4699, %v4687
        %v5168 = vpack.c.b16 %v4700, %v4688
        %v5169 = vpack.c.b16 %v4701, %v4689
        %v5170 = vpack.c.b16 %v4714, %v4702
        %v5171 = vpack.c.b16 %v4715, %v4703
        %v5172 = vpack.c.b16 %v4716, %v4704
        %v5173 = vpack.c.b16 %v4717, %v4705
        %v5174 = vpack.c.b16 %v4718, %v4706
        %v5175 = vpack.c.b16 %v4719, %v4707
        %v5176 = vpack.c.b16 %v4720, %v4708
        %v5177 = vpack.c.b16 %v4721, %v4709
        %v5178 = vpack.c.b16 %v4722, %v4710
        %v5179 = vpack.c.b16 %v4723, %v4711
        %v5180 = vpack.c.b16 %v4724, %v4712
        %v5181 = vpack.c.b16 %v4725, %v4713
        %v5182 = vpack.c.b16 %v4738, %v4726
        %v5183 = vpack.c.b16 %v4739, %v4727
        %v5184 = vpack.c.b16 %v4740, %v4728
        %v5185 = vpack.c.b16 %v4741, %v4729
        %v5186 = vpack.c.b16 %v4742, %v4730
        %v5187 = vpack.c.b16 %v4743, %v4731
        %v5188 = vpack.c.b16 %v4744, %v4732
        %v5189 = vpack.c.b16 %v4745, %v4733
        %v5190 = vpack.c.b16 %v4746, %v4734
        %v5191 = vpack.c.b16 %v4747, %v4735
        %v5192 = vpack.c.b16 %v4748, %v4736
        %v5193 = vpack.c.b16 %v4749, %v4737
        %v5194 = vpack.c.b16 %v4762, %v4750
        %v5195 = vpack.c.b16 %v4763, %v4751
        %v5196 = vpack.c.b16 %v4764, %v4752
        %v5197 = vpack.c.b16 %v4765, %v4753
        %v5198 = vpack.c.b16 %v4766, %v4754
        %v5199 = vpack.c.b16 %v4767, %v4755
        %v5200 = vpack.c.b16 %v4768, %v4756
        %v5201 = vpack.c.b16 %v4769, %v4757
        %v5202 = vpack.c.b16 %v4770, %v4758
        %v5203 = vpack.c.b16 %v4771, %v4759
        %v5204 = vpack.c.b16 %v4772, %v4760
        %v5205 = vpack.c.b16 %v4773, %v4761
        %v5206 = vpack.c.b16 %v4786, %v4774
        %v5207 = vpack.c.b16 %v4787, %v4775
        %v5208 = vpack.c.b16 %v4788, %v4776
        %v5209 = vpack.c.b16 %v4789, %v4777
        %v5210 = vpack.c.b16 %v4790, %v4778
        %v5211 = vpack.c.b16 %v4791, %v4779
        %v5212 = vpack.c.b16 %v4792, %v4780
        %v5213 = vpack.c.b16 %v4793, %v4781
        %v5214 = vpack.c.b16 %v4794, %v4782
        %v5215 = vpack.c.b16 %v4795, %v4783
        %v5216 = vpack.c.b16 %v4796, %v4784
        %v5217 = vpack.c.b16 %v4797, %v4785
        %v5218 = vpack.c.b16 %v4810, %v4798
        %v5219 = vpack.c.b16 %v4811, %v4799
        %v5220 = vpack.c.b16 %v4812, %v4800
        %v5221 = vpack.c.b16 %v4813, %v4801
        %v5222 = vpack.c.b16 %v4814, %v4802
        %v5223 = vpack.c.b16 %v4815, %v4803
        %v5224 = vpack.c.b16 %v4816, %v4804
        %v5225 = vpack.c.b16 %v4817, %v4805
        %v5226 = vpack.c.b16 %v4818, %v4806
        %v5227 = vpack.c.b16 %v4819, %v4807
        %v5228 = vpack.c.b16 %v4820, %v4808
        %v5229 = vpack.c.b16 %v4821, %v4809
        %v5230 = vpack.c.b16 %v4834, %v4822
        %v5231 = vpack.c.b16 %v4835, %v4823
        %v5232 = vpack.c.b16 %v4836, %v4824
        %v5233 = vpack.c.b16 %v4837, %v4825
        %v5234 = vpack.c.b16 %v4838, %v4826
        %v5235 = vpack.c.b16 %v4839, %v4827
        %v5236 = vpack.c.b16 %v4840, %v4828
        %v5237 = vpack.c.b16 %v4841, %v4829
        %v5238 = vpack.c.b16 %v4842, %v4830
        %v5239 = vpack.c.b16 %v4843, %v4831
        %v5240 = vpack.c.b16 %v4844, %v4832
        %v5241 = vpack.c.b16 %v4845, %v4833
        %v5242 = vpack.c.b16 %v4858, %v4846
        %v5243 = vpack.c.b16 %v4859, %v4847
        %v5244 = vpack.c.b16 %v4860, %v4848
        %v5245 = vpack.c.b16 %v4861, %v4849
        %v5246 = vpack.c.b16 %v4862, %v4850
        %v5247 = vpack.c.b16 %v4863, %v4851
        %v5248 = vpack.c.b16 %v4864, %v4852
        %v5249 = vpack.c.b16 %v4865, %v4853
        %v5250 = vpack.c.b16 %v4866, %v4854
        %v5251 = vpack.c.b16 %v4867, %v4855
        %v5252 = vpack.c.b16 %v4868, %v4856
        %v5253 = vpack.c.b16 %v4869, %v4857
        %v5254 = vpack.c.b16 %v4882, %v4870
        %v5255 = vpack.c.b16 %v4883, %v4871
        %v5256 = vpack.c.b16 %v4884, %v4872
        %v5257 = vpack.c.b16 %v4885, %v4873
        %v5258 = vpack.c.b16 %v4886, %v4874
        %v5259 = vpack.c.b16 %v4887, %v4875
        %v5260 = vpack.c.b16 %v4888, %v4876
        %v5261 = vpack.c.b16 %v4889, %v4877
        %v5262 = vpack.c.b16 %v4890, %v4878
        %v5263 = vpack.c.b16 %v4891, %v4879
        %v5264 = vpack.c.b16 %v4892, %v4880
        %v5265 = vpack.c.b16 %v4893, %v4881
        %v5266 = vpack.c.b16 %v4906, %v4894
        %v5267 = vpack.c.b16 %v4907, %v4895
        %v5268 = vpack.c.b16 %v4908, %v4896
        %v5269 = vpack.c.b16 %v4909, %v4897
        %v5270 = vpack.c.b16 %v4910, %v4898
        %v5271 = vpack.c.b16 %v4911, %v4899
        %v5272 = vpack.c.b16 %v4912, %v4900
        %v5273 = vpack.c.b16 %v4913, %v4901
        %v5274 = vpack.c.b16 %v4914, %v4902
        %v5275 = vpack.c.b16 %v4915, %v4903
        %v5276 = vpack.c.b16 %v4916, %v4904
        %v5277 = vpack.c.b16 %v4917, %v4905
        %v5278 = vpack.c.b16 %v4930, %v4918
        %v5279 = vpack.c.b16 %v4931, %v4919
        %v5280 = vpack.c.b16 %v4932, %v4920
        %v5281 = vpack.c.b16 %v4933, %v4921
        %v5282 = vpack.c.b16 %v4934, %v4922
        %v5283 = vpack.c.b16 %v4935, %v4923
        %v5284 = vpack.c.b16 %v4936, %v4924
        %v5285 = vpack.c.b16 %v4937, %v4925
        %v5286 = vpack.c.b16 %v4938, %v4926
        %v5287 = vpack.c.b16 %v4939, %v4927
        %v5288 = vpack.c.b16 %v4940, %v4928
        %v5289 = vpack.c.b16 %v4941, %v4929
        %v5290 = vpack.c.b16 %v4954, %v4942
        %v5291 = vpack.c.b16 %v4955, %v4943
        %v5292 = vpack.c.b16 %v4956, %v4944
        %v5293 = vpack.c.b16 %v4957, %v4945
        %v5294 = vpack.c.b16 %v4958, %v4946
        %v5295 = vpack.c.b16 %v4959, %v4947
        %v5296 = vpack.c.b16 %v4960, %v4948
        %v5297 = vpack.c.b16 %v4961, %v4949
        %v5298 = vpack.c.b16 %v4962, %v4950
        %v5299 = vpack.c.b16 %v4963, %v4951
        %v5300 = vpack.c.b16 %v4964, %v4952
        %v5301 = vpack.c.b16 %v4965, %v4953
        %v5302 = vpack.c.b16 %v4978, %v4966
        %v5303 = vpack.c.b16 %v4979, %v4967
        %v5304 = vpack.c.b16 %v4980, %v4968
        %v5305 = vpack.c.b16 %v4981, %v4969
        %v5306 = vpack.c.b16 %v4982, %v4970
        %v5307 = vpack.c.b16 %v4983, %v4971
        %v5308 = vpack.c.b16 %v4984, %v4972
        %v5309 = vpack.c.b16 %v4985, %v4973
        %v5310 = vpack.c.b16 %v4986, %v4974
        %v5311 = vpack.c.b16 %v4987, %v4975
        %v5312 = vpack.c.b16 %v4988, %v4976
        %v5313 = vpack.c.b16 %v4989, %v4977
        %v5314 = vpack.c.b16 %v5002, %v4990
        %v5315 = vpack.c.b16 %v5003, %v4991
        %v5316 = vpack.c.b16 %v5004, %v4992
        %v5317 = vpack.c.b16 %v5005, %v4993
        %v5318 = vpack.c.b16 %v5006, %v4994
        %v5319 = vpack.c.b16 %v5007, %v4995
        %v5320 = vpack.c.b16 %v5008, %v4996
        %v5321 = vpack.c.b16 %v5009, %v4997
        %v5322 = vpack.c.b16 %v5010, %v4998
        %v5323 = vpack.c.b16 %v5011, %v4999
        %v5324 = vpack.c.b16 %v5012, %v5000
        %v5325 = vpack.c.b16 %v5013, %v5001
        %v5326 = vpack.c.b16 %v5026, %v5014
        %v5327 = vpack.c.b16 %v5027, %v5015
        %v5328 = vpack.c.b16 %v5028, %v5016
        %v5329 = vpack.c.b16 %v5029, %v5017
        %v5330 = vpack.c.b16 %v5030, %v5018
        %v5331 = vpack.c.b16 %v5031, %v5019
        %v5332 = vpack.c.b16 %v5032, %v5020
        %v5333 = vpack.c.b16 %v5033, %v5021
        %v5334 = vpack.c.b16 %v5034, %v5022
        %v5335 = vpack.c.b16 %v5035, %v5023
        %v5336 = vpack.c.b16 %v5036, %v5024
        %v5337 = vpack.c.b16 %v5037, %v5025
        %v5338 = vpack.c.b16 %v5050, %v5038
        %v5339 = vpack.c.b16 %v5051, %v5039
        %v5340 = vpack.c.b16 %v5052, %v5040
        %v5341 = vpack.c.b16 %v5053, %v5041
        %v5342 = vpack.c.b16 %v5054, %v5042
        %v5343 = vpack.c.b16 %v5055, %v5043
        %v5344 = vpack.c.b16 %v5056, %v5044
        %v5345 = vpack.c.b16 %v5057, %v5045
        %v5346 = vpack.c.b16 %v5058, %v5046
        %v5347 = vpack.c.b16 %v5059, %v5047
        %v5348 = vpack.c.b16 %v5060, %v5048
        %v5349 = vpack.c.b16 %v5061, %v5049
        %5638 = vmatprep.subr.bf16.mxu0 %v5063
        %5639 = vmatpush1.bf16.msra.mxu0 %v5062
        %5640 = vmatprep.subr.bf16.mxu0 %v5075
        %5641 = vmatpush1.bf16.msra.mxu0 %v5074
        %5642 = vmatprep.subr.bf16.mxu0 %v5087
        %5643 = vmatpush1.bf16.msra.mxu0 %v5086
        %5644 = vmatprep.subr.bf16.mxu0 %v5099
        %5645 = vmatpush1.bf16.msra.mxu0 %v5098
        %5646 = vmatprep.subr.bf16.mxu0 %v5111
        %5647 = vmatpush1.bf16.msra.mxu0 %v5110
        %5648 = vmatprep.subr.bf16.mxu0 %v5123
        %5649 = vmatpush1.bf16.msra.mxu0 %v5122
        %5650 = vmatprep.subr.bf16.mxu0 %v5135
        %5651 = vmatpush1.bf16.msra.mxu0 %v5134
        %5652 = vmatprep.subr.bf16.mxu0 %v5147
        %5653 = vmatpush1.bf16.msra.mxu0 %v5146
        %5654 = vmatprep.subr.bf16.mxu0 %v5159
        %5655 = vmatpush1.bf16.msra.mxu0 %v5158
        %5656 = vmatprep.subr.bf16.mxu0 %v5171
        %5657 = vmatpush1.bf16.msra.mxu0 %v5170
        %5658 = vmatprep.subr.bf16.mxu0 %v5183
        %5659 = vmatpush1.bf16.msra.mxu0 %v5182
        %5660 = vmatprep.subr.bf16.mxu0 %v5195
        %5661 = vmatpush1.bf16.msra.mxu0 %v5194
        %5662 = vmatprep.subr.bf16.mxu0 %v5207
        %5663 = vmatpush1.bf16.msra.mxu0 %v5206
        %5664 = vmatprep.subr.bf16.mxu0 %v5219
        %5665 = vmatpush1.bf16.msra.mxu0 %v5218
        %5666 = vmatprep.subr.bf16.mxu0 %v5231
        %5667 = vmatpush1.bf16.msra.mxu0 %v5230
        %5668 = vmatprep.subr.bf16.mxu0 %v5243
        %5669 = vmatpush1.bf16.msra.mxu0 %v5242
        %5670 = vmatprep.mubr.bf16.mxu0 %v3844
        %5671 = vmatmul.mubr.bf16.gmra.mrb[0].mxu0 %v3843
        %v5672 = vpop.f32.mrb[0].mxu0
        %v5673 = vadd.f32 %v4141, %v5672
        %v5674 = vpop.f32.mrb[0].mxu0
        %v5675 = vadd.f32 %v4145, %v5674
        %v5676 = vpop.f32.mrb[0].mxu0
        %v5677 = vpop.f32.mrb[0].mxu0
        %5678 = vdwg.mxu0
        %5679 = vmatprep.subr.bf16.mxu0 %v5255
        %5680 = vmatpush1.bf16.msra.mxu0 %v5254
        %5681 = vmatprep.subr.bf16.mxu0 %v5267
        %5682 = vmatpush1.bf16.msra.mxu0 %v5266
        %5683 = vmatprep.subr.bf16.mxu0 %v5279
        %5684 = vmatpush1.bf16.msra.mxu0 %v5278
        %5685 = vmatprep.subr.bf16.mxu0 %v5291
        %5686 = vmatpush1.bf16.msra.mxu0 %v5290
        %5687 = vmatprep.subr.bf16.mxu0 %v5303
        %5688 = vmatpush1.bf16.msra.mxu0 %v5302
        %5689 = vmatprep.subr.bf16.mxu0 %v5315
        %5690 = vmatpush1.bf16.msra.mxu0 %v5314
        %5691 = vmatprep.subr.bf16.mxu0 %v5327
        %5692 = vmatpush1.bf16.msra.mxu0 %v5326
        %5693 = vmatprep.subr.bf16.mxu0 %v5339
        %5694 = vmatpush1.bf16.msra.mxu0 %v5338
        %5695 = vmatprep.subr.bf16.mxu0 0
        %5696 = vmatpush1.bf16.msra.mxu0 0
        %5697 = vmatprep.subr.bf16.mxu0 0
        %5698 = vmatpush1.bf16.msra.mxu0 0
        %5699 = vmatprep.subr.bf16.mxu0 0
        %5700 = vmatpush1.bf16.msra.mxu0 0
        %5701 = vmatprep.subr.bf16.mxu0 0
        %5702 = vmatpush1.bf16.msra.mxu0 0
        %5703 = vmatprep.subr.bf16.mxu0 0
        %5704 = vmatpush1.bf16.msra.mxu0 0
        %5705 = vmatprep.subr.bf16.mxu0 0
        %5706 = vmatpush1.bf16.msra.mxu0 0
        %5707 = vmatprep.subr.bf16.mxu0 0
        %5708 = vmatpush1.bf16.msra.mxu0 0
        %5709 = vmatprep.subr.bf16.mxu0 0
        %5710 = vmatpush1.bf16.msra.mxu0 0
        %5711 = vmatprep.mubr.bf16.mxu0 0
        %5712 = vmatmul.mubr.bf16.gmra.mrb[0].mxu0 %v3845
        %v5713 = vpop.f32.mrb[0].mxu0
        %v5714 = vadd.f32 %v5673, %v5713
        %v5715 = vpop.f32.mrb[0].mxu0
        %v5716 = vadd.f32 %v5675, %v5715
        %v5717 = vpop.f32.mrb[0].mxu0
        %v5718 = vpop.f32.mrb[0].mxu0
        %5719 = vdwg.mxu0
        %5720 = vmatprep.subr.bf16.mxu0 %v5065
        %5721 = vmatpush1.bf16.msra.mxu0 %v5064
        %5722 = vmatprep.subr.bf16.mxu0 %v5077
        %5723 = vmatpush1.bf16.msra.mxu0 %v5076
        %5724 = vmatprep.subr.bf16.mxu0 %v5089
        %5725 = vmatpush1.bf16.msra.mxu0 %v5088
        %5726 = vmatprep.subr.bf16.mxu0 %v5101
        %5727 = vmatpush1.bf16.msra.mxu0 %v5100
        %5728 = vmatprep.subr.bf16.mxu0 %v5113
        %5729 = vmatpush1.bf16.msra.mxu0 %v5112
        %5730 = vmatprep.subr.bf16.mxu0 %v5125
        %5731 = vmatpush1.bf16.msra.mxu0 %v5124
        %5732 = vmatprep.subr.bf16.mxu0 %v5137
        %5733 = vmatpush1.bf16.msra.mxu0 %v5136
        %5734 = vmatprep.subr.bf16.mxu0 %v5149
        %5735 = vmatpush1.bf16.msra.mxu0 %v5148
        %5736 = vmatprep.subr.bf16.mxu0 %v5161
        %5737 = vmatpush1.bf16.msra.mxu0 %v5160
        %5738 = vmatprep.subr.bf16.mxu0 %v5173
        %5739 = vmatpush1.bf16.msra.mxu0 %v5172
        %5740 = vmatprep.subr.bf16.mxu0 %v5185
        %5741 = vmatpush1.bf16.msra.mxu0 %v5184
        %5742 = vmatprep.subr.bf16.mxu0 %v5197
        %5743 = vmatpush1.bf16.msra.mxu0 %v5196
        %5744 = vmatprep.subr.bf16.mxu0 %v5209
        %5745 = vmatpush1.bf16.msra.mxu0 %v5208
        %5746 = vmatprep.subr.bf16.mxu0 %v5221
        %5747 = vmatpush1.bf16.msra.mxu0 %v5220
        %5748 = vmatprep.subr.bf16.mxu0 %v5233
        %5749 = vmatpush1.bf16.msra.mxu0 %v5232
        %5750 = vmatprep.subr.bf16.mxu0 %v5245
        %5751 = vmatpush1.bf16.msra.mxu0 %v5244
        %5752 = vmatprep.mubr.bf16.mxu0 %v3844
        %5753 = vmatmul.mubr.bf16.gmra.mrb[0].mxu0 %v3843
        %v5754 = vpop.f32.mrb[0].mxu0
        %v5755 = vadd.f32 %v4149, %v5754
        %v5756 = vpop.f32.mrb[0].mxu0
        %v5757 = vadd.f32 %v4153, %v5756
        %v5758 = vpop.f32.mrb[0].mxu0
        %v5759 = vpop.f32.mrb[0].mxu0
        %5760 = vdwg.mxu0
        %5761 = vmatprep.subr.bf16.mxu0 %v5257
        %5762 = vmatpush1.bf16.msra.mxu0 %v5256
        %5763 = vmatprep.subr.bf16.mxu0 %v5269
        %5764 = vmatpush1.bf16.msra.mxu0 %v5268
        %5765 = vmatprep.subr.bf16.mxu0 %v5281
        %5766 = vmatpush1.bf16.msra.mxu0 %v5280
        %5767 = vmatprep.subr.bf16.mxu0 %v5293
        %5768 = vmatpush1.bf16.msra.mxu0 %v5292
        %5769 = vmatprep.subr.bf16.mxu0 %v5305
        %5770 = vmatpush1.bf16.msra.mxu0 %v5304
        %5771 = vmatprep.subr.bf16.mxu0 %v5317
        %5772 = vmatpush1.bf16.msra.mxu0 %v5316
        %5773 = vmatprep.subr.bf16.mxu0 %v5329
        %5774 = vmatpush1.bf16.msra.mxu0 %v5328
        %5775 = vmatprep.subr.bf16.mxu0 %v5341
        %5776 = vmatpush1.bf16.msra.mxu0 %v5340
        %5777 = vmatprep.subr.bf16.mxu0 0
        %5778 = vmatpush1.bf16.msra.mxu0 0
        %5779 = vmatprep.subr.bf16.mxu0 0
        %5780 = vmatpush1.bf16.msra.mxu0 0
        %5781 = vmatprep.subr.bf16.mxu0 0
        %5782 = vmatpush1.bf16.msra.mxu0 0
        %5783 = vmatprep.subr.bf16.mxu0 0
        %5784 = vmatpush1.bf16.msra.mxu0 0
        %5785 = vmatprep.subr.bf16.mxu0 0
        %5786 = vmatpush1.bf16.msra.mxu0 0
        %5787 = vmatprep.subr.bf16.mxu0 0
        %5788 = vmatpush1.bf16.msra.mxu0 0
        %5789 = vmatprep.subr.bf16.mxu0 0
        %5790 = vmatpush1.bf16.msra.mxu0 0
        %5791 = vmatprep.subr.bf16.mxu0 0
        %5792 = vmatpush1.bf16.msra.mxu0 0
        %5793 = vmatprep.mubr.bf16.mxu0 0
        %5794 = vmatmul.mubr.bf16.gmra.mrb[0].mxu0 %v3845
        %v5795 = vpop.f32.mrb[0].mxu0
        %v5796 = vadd.f32 %v5755, %v5795
        %v5797 = vpop.f32.mrb[0].mxu0
        %v5798 = vadd.f32 %v5757, %v5797
        %v5799 = vpop.f32.mrb[0].mxu0
        %v5800 = vpop.f32.mrb[0].mxu0
        %5801 = vdwg.mxu0
        %5802 = vmatprep.subr.bf16.mxu0 %v5067
        %5803 = vmatpush1.bf16.msra.mxu0 %v5066
        %5804 = vmatprep.subr.bf16.mxu0 %v5079
        %5805 = vmatpush1.bf16.msra.mxu0 %v5078
        %5806 = vmatprep.subr.bf16.mxu0 %v5091
        %5807 = vmatpush1.bf16.msra.mxu0 %v5090
        %5808 = vmatprep.subr.bf16.mxu0 %v5103
        %5809 = vmatpush1.bf16.msra.mxu0 %v5102
        %5810 = vmatprep.subr.bf16.mxu0 %v5115
        %5811 = vmatpush1.bf16.msra.mxu0 %v5114
        %5812 = vmatprep.subr.bf16.mxu0 %v5127
        %5813 = vmatpush1.bf16.msra.mxu0 %v5126
        %5814 = vmatprep.subr.bf16.mxu0 %v5139
        %5815 = vmatpush1.bf16.msra.mxu0 %v5138
        %5816 = vmatprep.subr.bf16.mxu0 %v5151
        %5817 = vmatpush1.bf16.msra.mxu0 %v5150
        %5818 = vmatprep.subr.bf16.mxu0 %v5163
        %5819 = vmatpush1.bf16.msra.mxu0 %v5162
        %5820 = vmatprep.subr.bf16.mxu0 %v5175
        %5821 = vmatpush1.bf16.msra.mxu0 %v5174
        %5822 = vmatprep.subr.bf16.mxu0 %v5187
        %5823 = vmatpush1.bf16.msra.mxu0 %v5186
        %5824 = vmatprep.subr.bf16.mxu0 %v5199
        %5825 = vmatpush1.bf16.msra.mxu0 %v5198
        %5826 = vmatprep.subr.bf16.mxu0 %v5211
        %5827 = vmatpush1.bf16.msra.mxu0 %v5210
        %5828 = vmatprep.subr.bf16.mxu0 %v5223
        %5829 = vmatpush1.bf16.msra.mxu0 %v5222
        %5830 = vmatprep.subr.bf16.mxu0 %v5235
        %5831 = vmatpush1.bf16.msra.mxu0 %v5234
        %5832 = vmatprep.subr.bf16.mxu0 %v5247
        %5833 = vmatpush1.bf16.msra.mxu0 %v5246
        %5834 = vmatprep.mubr.bf16.mxu0 %v3844
        %5835 = vmatmul.mubr.bf16.gmra.mrb[0].mxu0 %v3843
        %v5836 = vpop.f32.mrb[0].mxu0
        %v5837 = vadd.f32 %v4157, %v5836
        %v5838 = vpop.f32.mrb[0].mxu0
        %v5839 = vadd.f32 %v4161, %v5838
        %v5840 = vpop.f32.mrb[0].mxu0
        %v5841 = vpop.f32.mrb[0].mxu0
        %5842 = vdwg.mxu0
        %5843 = vmatprep.subr.bf16.mxu0 %v5259
        %5844 = vmatpush1.bf16.msra.mxu0 %v5258
        %5845 = vmatprep.subr.bf16.mxu0 %v5271
        %5846 = vmatpush1.bf16.msra.mxu0 %v5270
        %5847 = vmatprep.subr.bf16.mxu0 %v5283
        %5848 = vmatpush1.bf16.msra.mxu0 %v5282
        %5849 = vmatprep.subr.bf16.mxu0 %v5295
        %5850 = vmatpush1.bf16.msra.mxu0 %v5294
        %5851 = vmatprep.subr.bf16.mxu0 %v5307
        %5852 = vmatpush1.bf16.msra.mxu0 %v5306
        %5853 = vmatprep.subr.bf16.mxu0 %v5319
        %5854 = vmatpush1.bf16.msra.mxu0 %v5318
        %5855 = vmatprep.subr.bf16.mxu0 %v5331
        %5856 = vmatpush1.bf16.msra.mxu0 %v5330
        %5857 = vmatprep.subr.bf16.mxu0 %v5343
        %5858 = vmatpush1.bf16.msra.mxu0 %v5342
        %5859 = vmatprep.subr.bf16.mxu0 0
        %5860 = vmatpush1.bf16.msra.mxu0 0
        %5861 = vmatprep.subr.bf16.mxu0 0
        %5862 = vmatpush1.bf16.msra.mxu0 0
        %5863 = vmatprep.subr.bf16.mxu0 0
        %5864 = vmatpush1.bf16.msra.mxu0 0
        %5865 = vmatprep.subr.bf16.mxu0 0
        %5866 = vmatpush1.bf16.msra.mxu0 0
        %5867 = vmatprep.subr.bf16.mxu0 0
        %5868 = vmatpush1.bf16.msra.mxu0 0
        %5869 = vmatprep.subr.bf16.mxu0 0
        %5870 = vmatpush1.bf16.msra.mxu0 0
        %5871 = vmatprep.subr.bf16.mxu0 0
        %5872 = vmatpush1.bf16.msra.mxu0 0
        %5873 = vmatprep.subr.bf16.mxu0 0
        %5874 = vmatpush1.bf16.msra.mxu0 0
        %5875 = vmatprep.mubr.bf16.mxu0 0
        %5876 = vmatmul.mubr.bf16.gmra.mrb[0].mxu0 %v3845
        %v5877 = vpop.f32.mrb[0].mxu0
        %v5878 = vadd.f32 %v5837, %v5877
        %v5879 = vpop.f32.mrb[0].mxu0
        %v5880 = vadd.f32 %v5839, %v5879
        %v5881 = vpop.f32.mrb[0].mxu0
        %v5882 = vpop.f32.mrb[0].mxu0
        %5883 = vdwg.mxu0
        %5884 = vmatprep.subr.bf16.mxu0 %v5069
        %5885 = vmatpush1.bf16.msra.mxu0 %v5068
        %5886 = vmatprep.subr.bf16.mxu0 %v5081
        %5887 = vmatpush1.bf16.msra.mxu0 %v5080
        %5888 = vmatprep.subr.bf16.mxu0 %v5093
        %5889 = vmatpush1.bf16.msra.mxu0 %v5092
        %5890 = vmatprep.subr.bf16.mxu0 %v5105
        %5891 = vmatpush1.bf16.msra.mxu0 %v5104
        %5892 = vmatprep.subr.bf16.mxu0 %v5117
        %5893 = vmatpush1.bf16.msra.mxu0 %v5116
        %5894 = vmatprep.subr.bf16.mxu0 %v5129
        %5895 = vmatpush1.bf16.msra.mxu0 %v5128
        %5896 = vmatprep.subr.bf16.mxu0 %v5141
        %5897 = vmatpush1.bf16.msra.mxu0 %v5140
        %5898 = vmatprep.subr.bf16.mxu0 %v5153
        %5899 = vmatpush1.bf16.msra.mxu0 %v5152
        %5900 = vmatprep.subr.bf16.mxu0 %v5165
        %5901 = vmatpush1.bf16.msra.mxu0 %v5164
        %5902 = vmatprep.subr.bf16.mxu0 %v5177
        %5903 = vmatpush1.bf16.msra.mxu0 %v5176
        %5904 = vmatprep.subr.bf16.mxu0 %v5189
        %5905 = vmatpush1.bf16.msra.mxu0 %v5188
        %5906 = vmatprep.subr.bf16.mxu0 %v5201
        %5907 = vmatpush1.bf16.msra.mxu0 %v5200
        %5908 = vmatprep.subr.bf16.mxu0 %v5213
        %5909 = vmatpush1.bf16.msra.mxu0 %v5212
        %5910 = vmatprep.subr.bf16.mxu0 %v5225
        %5911 = vmatpush1.bf16.msra.mxu0 %v5224
        %5912 = vmatprep.subr.bf16.mxu0 %v5237
        %5913 = vmatpush1.bf16.msra.mxu0 %v5236
        %5914 = vmatprep.subr.bf16.mxu0 %v5249
        %5915 = vmatpush1.bf16.msra.mxu0 %v5248
        %5916 = vmatprep.mubr.bf16.mxu0 %v3844
        %5917 = vmatmul.mubr.bf16.gmra.mrb[0].mxu0 %v3843
        %v5918 = vpop.f32.mrb[0].mxu0
        %v5919 = vadd.f32 %v4165, %v5918
        %v5920 = vpop.f32.mrb[0].mxu0
        %v5921 = vadd.f32 %v4169, %v5920
        %v5922 = vpop.f32.mrb[0].mxu0
        %v5923 = vpop.f32.mrb[0].mxu0
        %5924 = vdwg.mxu0
        %5925 = vmatprep.subr.bf16.mxu0 %v5261
        %5926 = vmatpush1.bf16.msra.mxu0 %v5260
        %5927 = vmatprep.subr.bf16.mxu0 %v5273
        %5928 = vmatpush1.bf16.msra.mxu0 %v5272
        %5929 = vmatprep.subr.bf16.mxu0 %v5285
        %5930 = vmatpush1.bf16.msra.mxu0 %v5284
        %5931 = vmatprep.subr.bf16.mxu0 %v5297
        %5932 = vmatpush1.bf16.msra.mxu0 %v5296
        %5933 = vmatprep.subr.bf16.mxu0 %v5309
        %5934 = vmatpush1.bf16.msra.mxu0 %v5308
        %5935 = vmatprep.subr.bf16.mxu0 %v5321
        %5936 = vmatpush1.bf16.msra.mxu0 %v5320
        %5937 = vmatprep.subr.bf16.mxu0 %v5333
        %5938 = vmatpush1.bf16.msra.mxu0 %v5332
        %5939 = vmatprep.subr.bf16.mxu0 %v5345
        %5940 = vmatpush1.bf16.msra.mxu0 %v5344
        %5941 = vmatprep.subr.bf16.mxu0 0
        %5942 = vmatpush1.bf16.msra.mxu0 0
        %5943 = vmatprep.subr.bf16.mxu0 0
        %5944 = vmatpush1.bf16.msra.mxu0 0
        %5945 = vmatprep.subr.bf16.mxu0 0
        %5946 = vmatpush1.bf16.msra.mxu0 0
        %5947 = vmatprep.subr.bf16.mxu0 0
        %5948 = vmatpush1.bf16.msra.mxu0 0
        %5949 = vmatprep.subr.bf16.mxu0 0
        %5950 = vmatpush1.bf16.msra.mxu0 0
        %5951 = vmatprep.subr.bf16.mxu0 0
        %5952 = vmatpush1.bf16.msra.mxu0 0
        %5953 = vmatprep.subr.bf16.mxu0 0
        %5954 = vmatpush1.bf16.msra.mxu0 0
        %5955 = vmatprep.subr.bf16.mxu0 0
        %5956 = vmatpush1.bf16.msra.mxu0 0
        %5957 = vmatprep.mubr.bf16.mxu0 0
        %5958 = vmatmul.mubr.bf16.gmra.mrb[0].mxu0 %v3845
        %v5959 = vpop.f32.mrb[0].mxu0
        %v5960 = vadd.f32 %v5919, %v5959
        %v5961 = vpop.f32.mrb[0].mxu0
        %v5962 = vadd.f32 %v5921, %v5961
        %v5963 = vpop.f32.mrb[0].mxu0
        %v5964 = vpop.f32.mrb[0].mxu0
        %5965 = vdwg.mxu0
        %5966 = vmatprep.subr.bf16.mxu0 %v5071
        %5967 = vmatpush1.bf16.msra.mxu0 %v5070
        %5968 = vmatprep.subr.bf16.mxu0 %v5083
        %5969 = vmatpush1.bf16.msra.mxu0 %v5082
        %5970 = vmatprep.subr.bf16.mxu0 %v5095
        %5971 = vmatpush1.bf16.msra.mxu0 %v5094
        %5972 = vmatprep.subr.bf16.mxu0 %v5107
        %5973 = vmatpush1.bf16.msra.mxu0 %v5106
        %5974 = vmatprep.subr.bf16.mxu0 %v5119
        %5975 = vmatpush1.bf16.msra.mxu0 %v5118
        %5976 = vmatprep.subr.bf16.mxu0 %v5131
        %5977 = vmatpush1.bf16.msra.mxu0 %v5130
        %5978 = vmatprep.subr.bf16.mxu0 %v5143
        %5979 = vmatpush1.bf16.msra.mxu0 %v5142
        %5980 = vmatprep.subr.bf16.mxu0 %v5155
        %5981 = vmatpush1.bf16.msra.mxu0 %v5154
        %5982 = vmatprep.subr.bf16.mxu0 %v5167
        %5983 = vmatpush1.bf16.msra.mxu0 %v5166
        %5984 = vmatprep.subr.bf16.mxu0 %v5179
        %5985 = vmatpush1.bf16.msra.mxu0 %v5178
        %5986 = vmatprep.subr.bf16.mxu0 %v5191
        %5987 = vmatpush1.bf16.msra.mxu0 %v5190
        %5988 = vmatprep.subr.bf16.mxu0 %v5203
        %5989 = vmatpush1.bf16.msra.mxu0 %v5202
        %5990 = vmatprep.subr.bf16.mxu0 %v5215
        %5991 = vmatpush1.bf16.msra.mxu0 %v5214
        %5992 = vmatprep.subr.bf16.mxu0 %v5227
        %5993 = vmatpush1.bf16.msra.mxu0 %v5226
        %5994 = vmatprep.subr.bf16.mxu0 %v5239
        %5995 = vmatpush1.bf16.msra.mxu0 %v5238
        %5996 = vmatprep.subr.bf16.mxu0 %v5251
        %5997 = vmatpush1.bf16.msra.mxu0 %v5250
        %5998 = vmatprep.mubr.bf16.mxu0 %v3844
        %5999 = vmatmul.mubr.bf16.gmra.mrb[0].mxu0 %v3843
        %v6000 = vpop.f32.mrb[0].mxu0
        %v6001 = vadd.f32 %v4173, %v6000
        %v6002 = vpop.f32.mrb[0].mxu0
        %v6003 = vadd.f32 %v4177, %v6002
        %v6004 = vpop.f32.mrb[0].mxu0
        %v6005 = vpop.f32.mrb[0].mxu0
        %6006 = vdwg.mxu0
        %6007 = vmatprep.subr.bf16.mxu0 %v5263
        %6008 = vmatpush1.bf16.msra.mxu0 %v5262
        %6009 = vmatprep.subr.bf16.mxu0 %v5275
        %6010 = vmatpush1.bf16.msra.mxu0 %v5274
        %6011 = vmatprep.subr.bf16.mxu0 %v5287
        %6012 = vmatpush1.bf16.msra.mxu0 %v5286
        %6013 = vmatprep.subr.bf16.mxu0 %v5299
        %6014 = vmatpush1.bf16.msra.mxu0 %v5298
        %6015 = vmatprep.subr.bf16.mxu0 %v5311
        %6016 = vmatpush1.bf16.msra.mxu0 %v5310
        %6017 = vmatprep.subr.bf16.mxu0 %v5323
        %6018 = vmatpush1.bf16.msra.mxu0 %v5322
        %6019 = vmatprep.subr.bf16.mxu0 %v5335
        %6020 = vmatpush1.bf16.msra.mxu0 %v5334
        %6021 = vmatprep.subr.bf16.mxu0 %v5347
        %6022 = vmatpush1.bf16.msra.mxu0 %v5346
        %6023 = vmatprep.subr.bf16.mxu0 0
        %6024 = vmatpush1.bf16.msra.mxu0 0
        %6025 = vmatprep.subr.bf16.mxu0 0
        %6026 = vmatpush1.bf16.msra.mxu0 0
        %6027 = vmatprep.subr.bf16.mxu0 0
        %6028 = vmatpush1.bf16.msra.mxu0 0
        %6029 = vmatprep.subr.bf16.mxu0 0
        %6030 = vmatpush1.bf16.msra.mxu0 0
        %6031 = vmatprep.subr.bf16.mxu0 0
        %6032 = vmatpush1.bf16.msra.mxu0 0
        %6033 = vmatprep.subr.bf16.mxu0 0
        %6034 = vmatpush1.bf16.msra.mxu0 0
        %6035 = vmatprep.subr.bf16.mxu0 0
        %6036 = vmatpush1.bf16.msra.mxu0 0
        %6037 = vmatprep.subr.bf16.mxu0 0
        %6038 = vmatpush1.bf16.msra.mxu0 0
        %6039 = vmatprep.mubr.bf16.mxu0 0
        %6040 = vmatmul.mubr.bf16.gmra.mrb[0].mxu0 %v3845
        %v6041 = vpop.f32.mrb[0].mxu0
        %v6042 = vadd.f32 %v6001, %v6041
        %v6043 = vpop.f32.mrb[0].mxu0
        %v6044 = vadd.f32 %v6003, %v6043
        %v6045 = vpop.f32.mrb[0].mxu0
        %v6046 = vpop.f32.mrb[0].mxu0
        %6047 = vdwg.mxu0
        %6048 = vmatprep.subr.bf16.mxu0 %v5073
        %6049 = vmatpush1.bf16.msra.mxu0 %v5072
        %6050 = vmatprep.subr.bf16.mxu0 %v5085
        %6051 = vmatpush1.bf16.msra.mxu0 %v5084
        %6052 = vmatprep.subr.bf16.mxu0 %v5097
        %6053 = vmatpush1.bf16.msra.mxu0 %v5096
        %6054 = vmatprep.subr.bf16.mxu0 %v5109
        %6055 = vmatpush1.bf16.msra.mxu0 %v5108
        %6056 = vmatprep.subr.bf16.mxu0 %v5121
        %6057 = vmatpush1.bf16.msra.mxu0 %v5120
        %6058 = vmatprep.subr.bf16.mxu0 %v5133
        %6059 = vmatpush1.bf16.msra.mxu0 %v5132
        %6060 = vmatprep.subr.bf16.mxu0 %v5145
        %6061 = vmatpush1.bf16.msra.mxu0 %v5144
        %6062 = vmatprep.subr.bf16.mxu0 %v5157
        %6063 = vmatpush1.bf16.msra.mxu0 %v5156
        %6064 = vmatprep.subr.bf16.mxu0 %v5169
        %6065 = vmatpush1.bf16.msra.mxu0 %v5168
        %6066 = vmatprep.subr.bf16.mxu0 %v5181
        %6067 = vmatpush1.bf16.msra.mxu0 %v5180
        %6068 = vmatprep.subr.bf16.mxu0 %v5193
        %6069 = vmatpush1.bf16.msra.mxu0 %v5192
        %6070 = vmatprep.subr.bf16.mxu0 %v5205
        %6071 = vmatpush1.bf16.msra.mxu0 %v5204
        %6072 = vmatprep.subr.bf16.mxu0 %v5217
        %6073 = vmatpush1.bf16.msra.mxu0 %v5216
        %6074 = vmatprep.subr.bf16.mxu0 %v5229
        %6075 = vmatpush1.bf16.msra.mxu0 %v5228
        %6076 = vmatprep.subr.bf16.mxu0 %v5241
        %6077 = vmatpush1.bf16.msra.mxu0 %v5240
        %6078 = vmatprep.subr.bf16.mxu0 %v5253
        %6079 = vmatpush1.bf16.msra.mxu0 %v5252
        %6080 = vmatprep.mubr.bf16.mxu0 %v3844
        %6081 = vmatmul.mubr.bf16.gmra.mrb[0].mxu0 %v3843
        %v6082 = vpop.f32.mrb[0].mxu0
        %v6083 = vadd.f32 %v4181, %v6082
        %v6084 = vpop.f32.mrb[0].mxu0
        %v6085 = vadd.f32 %v4185, %v6084
        %v6086 = vpop.f32.mrb[0].mxu0
        %v6087 = vpop.f32.mrb[0].mxu0
        %6088 = vdwg.mxu0
        %6089 = vmatprep.subr.bf16.mxu0 %v5265
        %6090 = vmatpush1.bf16.msra.mxu0 %v5264
        %6091 = vmatprep.subr.bf16.mxu0 %v5277
        %6092 = vmatpush1.bf16.msra.mxu0 %v5276
        %6093 = vmatprep.subr.bf16.mxu0 %v5289
        %6094 = vmatpush1.bf16.msra.mxu0 %v5288
        %6095 = vmatprep.subr.bf16.mxu0 %v5301
        %6096 = vmatpush1.bf16.msra.mxu0 %v5300
        %6097 = vmatprep.subr.bf16.mxu0 %v5313
        %6098 = vmatpush1.bf16.msra.mxu0 %v5312
        %6099 = vmatprep.subr.bf16.mxu0 %v5325
        %6100 = vmatpush1.bf16.msra.mxu0 %v5324
        %6101 = vmatprep.subr.bf16.mxu0 %v5337
        %6102 = vmatpush1.bf16.msra.mxu0 %v5336
        %6103 = vmatprep.subr.bf16.mxu0 %v5349
        %6104 = vmatpush1.bf16.msra.mxu0 %v5348
        %6105 = vmatprep.subr.bf16.mxu0 0
        %6106 = vmatpush1.bf16.msra.mxu0 0
        %6107 = vmatprep.subr.bf16.mxu0 0
        %6108 = vmatpush1.bf16.msra.mxu0 0
        %6109 = vmatprep.subr.bf16.mxu0 0
        %6110 = vmatpush1.bf16.msra.mxu0 0
        %6111 = vmatprep.subr.bf16.mxu0 0
        %6112 = vmatpush1.bf16.msra.mxu0 0
        %6113 = vmatprep.subr.bf16.mxu0 0
        %6114 = vmatpush1.bf16.msra.mxu0 0
        %6115 = vmatprep.subr.bf16.mxu0 0
        %6116 = vmatpush1.bf16.msra.mxu0 0
        %6117 = vmatprep.subr.bf16.mxu0 0
        %6118 = vmatpush1.bf16.msra.mxu0 0
        %6119 = vmatprep.subr.bf16.mxu0 0
        %6120 = vmatpush1.bf16.msra.mxu0 0
        %6121 = vmatprep.mubr.bf16.mxu0 0
        %6122 = vmatmul.mubr.bf16.gmra.mrb[0].mxu0 %v3845
        %v6123 = vpop.f32.mrb[0].mxu0
        %v6124 = vadd.f32 %v6083, %v6123
        %v6125 = vpop.f32.mrb[0].mxu0
        %v6126 = vadd.f32 %v6085, %v6125
        %v6127 = vpop.f32.mrb[0].mxu0
        %v6128 = vpop.f32.mrb[0].mxu0
        %6129 = vdwg.mxu0
        %v6130 = vmax.f32 %v5714, 0.0
        %v6131 = vmax.f32 %v5716, 0.0
        %v6132 = vmax.f32 %v5796, 0.0
        %v6133 = vmax.f32 %v5798, 0.0
        %v6134 = vmax.f32 %v5878, 0.0
        %v6135 = vmax.f32 %v5880, 0.0
        %v6136 = vmax.f32 %v5960, 0.0
        %v6137 = vmax.f32 %v5962, 0.0
        %v6138 = vmax.f32 %v6042, 0.0
        %v6139 = vmax.f32 %v6044, 0.0
        %v6140 = vmax.f32 %v6124, 0.0
        %v6141 = vmax.f32 %v6126, 0.0
        %v6142 = vpack.c.bf16 %v6130, %v6130
        %v6143 = vpack.c.bf16 %v6131, %v6131
        %v6144 = vpack.c.bf16 %v6132, %v6132
        %v6145 = vpack.c.bf16 %v6133, %v6133
        %v6146 = vpack.c.bf16 %v6134, %v6134
        %v6147 = vpack.c.bf16 %v6135, %v6135
        %v6148 = vpack.c.bf16 %v6136, %v6136
        %v6149 = vpack.c.bf16 %v6137, %v6137
        %v6150 = vpack.c.bf16 %v6138, %v6138
        %v6151 = vpack.c.bf16 %v6139, %v6139
        %v6152 = vpack.c.bf16 %v6140, %v6140
        %v6153 = vpack.c.bf16 %v6141, %v6141
        %v6154 = vld [vmem:[#allocation20] sm:$0xff]
        %v6155 = vld [vmem:[#allocation20 + $0x8] sm:$0xf]
        %v6156 = vld [vmem:[#allocation20 + $0xc] sm:$0xff]
        %v6157 = vld [vmem:[#allocation20 + $0x14] sm:$0xf]
        %v6158 = vld [vmem:[#allocation20 + $0x18] sm:$0xff]
        %v6159 = vld [vmem:[#allocation20 + $0x20] sm:$0xf]
        %v6160 = vld [vmem:[#allocation20 + $0x24] sm:$0xff]
        %v6161 = vld [vmem:[#allocation20 + $0x2c] sm:$0xf]
        %v6162 = vld [vmem:[#allocation20 + $0x30] sm:$0xff]
        %v6163 = vld [vmem:[#allocation20 + $0x38] sm:$0xf]
        %v6164 = vld [vmem:[#allocation20 + $0x3c] sm:$0xff]
        %v6165 = vld [vmem:[#allocation20 + $0x44] sm:$0xf]
        %v6166 = vld [vmem:[#allocation20 + $0x48] sm:$0xff]
        %v6167 = vld [vmem:[#allocation20 + $0x50] sm:$0xf]
        %v6168 = vld [vmem:[#allocation20 + $0x54] sm:$0xff]
        %v6169 = vld [vmem:[#allocation20 + $0x5c] sm:$0xf]
        %v6170 = vld [vmem:[#allocation20 + $0x60] sm:$0xff]
        %v6171 = vld [vmem:[#allocation20 + $0x68] sm:$0xf]
        %v6172 = vld [vmem:[#allocation20 + $0x6c] sm:$0xff]
        %v6173 = vld [vmem:[#allocation20 + $0x74] sm:$0xf]
        %v6174 = vld [vmem:[#allocation20 + $0x78] sm:$0xff]
        %v6175 = vld [vmem:[#allocation20 + $0x80] sm:$0xf]
        %v6176 = vld [vmem:[#allocation20 + $0x84] sm:$0xff]
        %v6177 = vld [vmem:[#allocation20 + $0x8c] sm:$0xf]
        %v6178 = vld [vmem:[#allocation20 + $0x90] sm:$0xff]
        %v6179 = vld [vmem:[#allocation20 + $0x98] sm:$0xf]
        %v6180 = vld [vmem:[#allocation20 + $0x9c] sm:$0xff]
        %v6181 = vld [vmem:[#allocation20 + $0xa4] sm:$0xf]
        %v6182 = vld [vmem:[#allocation20 + $0xa8] sm:$0xff]
        %v6183 = vld [vmem:[#allocation20 + $0xb0] sm:$0xf]
        %v6184 = vld [vmem:[#allocation20 + $0xb4] sm:$0xff]
        %v6185 = vld [vmem:[#allocation20 + $0xbc] sm:$0xf]
        %v6186 = vld [vmem:[#allocation20 + $0xc0] sm:$0xff]
        %v6187 = vld [vmem:[#allocation20 + $0xc8] sm:$0xf]
        %v6188 = vld [vmem:[#allocation20 + $0xcc] sm:$0xff]
        %v6189 = vld [vmem:[#allocation20 + $0xd4] sm:$0xf]
        %v6190 = vld [vmem:[#allocation20 + $0xd8] sm:$0xff]
        %v6191 = vld [vmem:[#allocation20 + $0xe0] sm:$0xf]
        %v6192 = vld [vmem:[#allocation20 + $0xe4] sm:$0xff]
        %v6193 = vld [vmem:[#allocation20 + $0xec] sm:$0xf]
        %v6194 = vld [vmem:[#allocation20 + $0xf0] sm:$0xff]
        %v6195 = vld [vmem:[#allocation20 + $0xf8] sm:$0xf]
        %v6196 = vld [vmem:[#allocation20 + $0xfc] sm:$0xff]
        %v6197 = vld [vmem:[#allocation20 + $0x104] sm:$0xf]
        %v6198 = vld [vmem:[#allocation20 + $0x108] sm:$0xff]
        %v6199 = vld [vmem:[#allocation20 + $0x110] sm:$0xf]
        %v6200 = vld [vmem:[#allocation20 + $0x114] sm:$0xff]
        %v6201 = vld [vmem:[#allocation20 + $0x11c] sm:$0xf]
        %v6202 = vld [vmem:[#allocation20 + $0x120] sm:$0xff]
        %v6203 = vld [vmem:[#allocation20 + $0x128] sm:$0xf]
        %v6204 = vld [vmem:[#allocation20 + $0x12c] sm:$0xff]
        %v6205 = vld [vmem:[#allocation20 + $0x134] sm:$0xf]
        %v6206 = vld [vmem:[#allocation20 + $0x138] sm:$0xff]
        %v6207 = vld [vmem:[#allocation20 + $0x140] sm:$0xf]
        %v6208 = vld [vmem:[#allocation20 + $0x144] sm:$0xff]
        %v6209 = vld [vmem:[#allocation20 + $0x14c] sm:$0xf]
        %v6210 = vld [vmem:[#allocation20 + $0x150] sm:$0xff]
        %v6211 = vld [vmem:[#allocation20 + $0x158] sm:$0xf]
        %v6212 = vld [vmem:[#allocation20 + $0x15c] sm:$0xff]
        %v6213 = vld [vmem:[#allocation20 + $0x164] sm:$0xf]
        %v6214 = vld [vmem:[#allocation20 + $0x168] sm:$0xff]
        %v6215 = vld [vmem:[#allocation20 + $0x170] sm:$0xf]
        %v6216 = vld [vmem:[#allocation20 + $0x174] sm:$0xff]
        %v6217 = vld [vmem:[#allocation20 + $0x17c] sm:$0xf]
        %v6218 = vld [vmem:[#allocation20 + $0x180] sm:$0xff]
        %v6219 = vld [vmem:[#allocation20 + $0x188] sm:$0xf]
        %v6220 = vld [vmem:[#allocation20 + $0x18c] sm:$0xff]
        %v6221 = vld [vmem:[#allocation20 + $0x194] sm:$0xf]
        %v6222 = vld [vmem:[#allocation20 + $0x198] sm:$0xff]
        %v6223 = vld [vmem:[#allocation20 + $0x1a0] sm:$0xf]
        %v6224 = vld [vmem:[#allocation20 + $0x1a4] sm:$0xff]
        %v6225 = vld [vmem:[#allocation20 + $0x1ac] sm:$0xf]
        %v6226 = vld [vmem:[#allocation20 + $0x1b0] sm:$0xff]
        %v6227 = vld [vmem:[#allocation20 + $0x1b8] sm:$0xf]
        %v6228 = vld [vmem:[#allocation20 + $0x1bc] sm:$0xff]
        %v6229 = vld [vmem:[#allocation20 + $0x1c4] sm:$0xf]
        %v6230 = vld [vmem:[#allocation20 + $0x1c8] sm:$0xff]
        %v6231 = vld [vmem:[#allocation20 + $0x1d0] sm:$0xf]
        %v6232 = vld [vmem:[#allocation20 + $0x1d4] sm:$0xff]
        %v6233 = vld [vmem:[#allocation20 + $0x1dc] sm:$0xf]
        %v6234 = vld [vmem:[#allocation20 + $0x1e0] sm:$0xff]
        %v6235 = vld [vmem:[#allocation20 + $0x1e8] sm:$0xf]
        %v6236 = vld [vmem:[#allocation20 + $0x1ec] sm:$0xff]
        %v6237 = vld [vmem:[#allocation20 + $0x1f4] sm:$0xf]
        %v6238 = vld [vmem:[#allocation20 + $0x1f8] sm:$0xff]
        %v6239 = vld [vmem:[#allocation20 + $0x200] sm:$0xf]
        %v6240 = vld [vmem:[#allocation20 + $0x204] sm:$0xff]
        %v6241 = vld [vmem:[#allocation20 + $0x20c] sm:$0xf]
        %v6242 = vld [vmem:[#allocation20 + $0x210] sm:$0xff]
        %v6243 = vld [vmem:[#allocation20 + $0x218] sm:$0xf]
        %v6244 = vld [vmem:[#allocation20 + $0x21c] sm:$0xff]
        %v6245 = vld [vmem:[#allocation20 + $0x224] sm:$0xf]
        %v6246 = vld [vmem:[#allocation20 + $0x228] sm:$0xff]
        %v6247 = vld [vmem:[#allocation20 + $0x230] sm:$0xf]
        %v6248 = vld [vmem:[#allocation20 + $0x234] sm:$0xff]
        %v6249 = vld [vmem:[#allocation20 + $0x23c] sm:$0xf]
        %v6250 = vld [vmem:[#allocation20 + $0x240] sm:$0xff]
        %v6251 = vld [vmem:[#allocation20 + $0x248] sm:$0xf]
        %v6252 = vld [vmem:[#allocation20 + $0x24c] sm:$0xff]
        %v6253 = vld [vmem:[#allocation20 + $0x254] sm:$0xf]
        %v6254 = vld [vmem:[#allocation20 + $0x258] sm:$0xff]
        %v6255 = vld [vmem:[#allocation20 + $0x260] sm:$0xf]
        %v6256 = vld [vmem:[#allocation20 + $0x264] sm:$0xff]
        %v6257 = vld [vmem:[#allocation20 + $0x26c] sm:$0xf]
        %v6258 = vld [vmem:[#allocation20 + $0x270] sm:$0xff]
        %v6259 = vld [vmem:[#allocation20 + $0x278] sm:$0xf]
        %v6260 = vld [vmem:[#allocation20 + $0x27c] sm:$0xff]
        %v6261 = vld [vmem:[#allocation20 + $0x284] sm:$0xf]
        %v6262 = vld [vmem:[#allocation20 + $0x288] sm:$0xff]
        %v6263 = vld [vmem:[#allocation20 + $0x290] sm:$0xf]
        %v6264 = vld [vmem:[#allocation20 + $0x294] sm:$0xff]
        %v6265 = vld [vmem:[#allocation20 + $0x29c] sm:$0xf]
        %v6266 = vld [vmem:[#allocation20 + $0x2a0] sm:$0xff]
        %v6267 = vld [vmem:[#allocation20 + $0x2a8] sm:$0xf]
        %v6268 = vld [vmem:[#allocation20 + $0x2ac] sm:$0xff]
        %v6269 = vld [vmem:[#allocation20 + $0x2b4] sm:$0xf]
        %v6270 = vld [vmem:[#allocation20 + $0x2b8] sm:$0xff]
        %v6271 = vld [vmem:[#allocation20 + $0x2c0] sm:$0xf]
        %v6272 = vld [vmem:[#allocation20 + $0x2c4] sm:$0xff]
        %v6273 = vld [vmem:[#allocation20 + $0x2cc] sm:$0xf]
        %v6274 = vld [vmem:[#allocation20 + $0x2d0] sm:$0xff]
        %v6275 = vld [vmem:[#allocation20 + $0x2d8] sm:$0xf]
        %v6276 = vld [vmem:[#allocation20 + $0x2dc] sm:$0xff]
        %v6277 = vld [vmem:[#allocation20 + $0x2e4] sm:$0xf]
        %v6278 = vld [vmem:[#allocation20 + $0x2e8] sm:$0xff]
        %v6279 = vld [vmem:[#allocation20 + $0x2f0] sm:$0xf]
        %v6280 = vld [vmem:[#allocation20 + $0x2f4] sm:$0xff]
        %v6281 = vld [vmem:[#allocation20 + $0x2fc] sm:$0xf]
        %v6282 = vld [vmem:[#allocation20 + $0x300] sm:$0xff]
        %v6283 = vld [vmem:[#allocation20 + $0x308] sm:$0xf]
        %v6284 = vld [vmem:[#allocation20 + $0x30c] sm:$0xff]
        %v6285 = vld [vmem:[#allocation20 + $0x314] sm:$0xf]
        %v6286 = vld [vmem:[#allocation20 + $0x318] sm:$0xff]
        %v6287 = vld [vmem:[#allocation20 + $0x320] sm:$0xf]
        %v6288 = vld [vmem:[#allocation20 + $0x324] sm:$0xff]
        %v6289 = vld [vmem:[#allocation20 + $0x32c] sm:$0xf]
        %v6290 = vld [vmem:[#allocation20 + $0x330] sm:$0xff]
        %v6291 = vld [vmem:[#allocation20 + $0x338] sm:$0xf]
        %v6292 = vld [vmem:[#allocation20 + $0x33c] sm:$0xff]
        %v6293 = vld [vmem:[#allocation20 + $0x344] sm:$0xf]
        %v6294 = vld [vmem:[#allocation20 + $0x348] sm:$0xff]
        %v6295 = vld [vmem:[#allocation20 + $0x350] sm:$0xf]
        %v6296 = vld [vmem:[#allocation20 + $0x354] sm:$0xff]
        %v6297 = vld [vmem:[#allocation20 + $0x35c] sm:$0xf]
        %v6298 = vld [vmem:[#allocation20 + $0x360] sm:$0xff]
        %v6299 = vld [vmem:[#allocation20 + $0x368] sm:$0xf]
        %v6300 = vld [vmem:[#allocation20 + $0x36c] sm:$0xff]
        %v6301 = vld [vmem:[#allocation20 + $0x374] sm:$0xf]
        %v6302 = vld [vmem:[#allocation20 + $0x378] sm:$0xff]
        %v6303 = vld [vmem:[#allocation20 + $0x380] sm:$0xf]
        %v6304 = vld [vmem:[#allocation20 + $0x384] sm:$0xff]
        %v6305 = vld [vmem:[#allocation20 + $0x38c] sm:$0xf]
        %v6306 = vld [vmem:[#allocation20 + $0x390] sm:$0xff]
        %v6307 = vld [vmem:[#allocation20 + $0x398] sm:$0xf]
        %v6308 = vld [vmem:[#allocation20 + $0x39c] sm:$0xff]
        %v6309 = vld [vmem:[#allocation20 + $0x3a4] sm:$0xf]
        %v6310 = vld [vmem:[#allocation20 + $0x3a8] sm:$0xff]
        %v6311 = vld [vmem:[#allocation20 + $0x3b0] sm:$0xf]
        %v6312 = vld [vmem:[#allocation20 + $0x3b4] sm:$0xff]
        %v6313 = vld [vmem:[#allocation20 + $0x3bc] sm:$0xf]
        %v6314 = vld [vmem:[#allocation20 + $0x3c0] sm:$0xff]
        %v6315 = vld [vmem:[#allocation20 + $0x3c8] sm:$0xf]
        %v6316 = vld [vmem:[#allocation20 + $0x3cc] sm:$0xff]
        %v6317 = vld [vmem:[#allocation20 + $0x3d4] sm:$0xf]
        %v6318 = vld [vmem:[#allocation20 + $0x3d8] sm:$0xff]
        %v6319 = vld [vmem:[#allocation20 + $0x3e0] sm:$0xf]
        %v6320 = vld [vmem:[#allocation20 + $0x3e4] sm:$0xff]
        %v6321 = vld [vmem:[#allocation20 + $0x3ec] sm:$0xf]
        %v6322 = vld [vmem:[#allocation20 + $0x3f0] sm:$0xff]
        %v6323 = vld [vmem:[#allocation20 + $0x3f8] sm:$0xf]
        %v6324 = vld [vmem:[#allocation20 + $0x3fc] sm:$0xff]
        %v6325 = vld [vmem:[#allocation20 + $0x404] sm:$0xf]
        %v6326 = vld [vmem:[#allocation20 + $0x408] sm:$0xff]
        %v6327 = vld [vmem:[#allocation20 + $0x410] sm:$0xf]
        %v6328 = vld [vmem:[#allocation20 + $0x414] sm:$0xff]
        %v6329 = vld [vmem:[#allocation20 + $0x41c] sm:$0xf]
        %v6330 = vld [vmem:[#allocation20 + $0x420] sm:$0xff]
        %v6331 = vld [vmem:[#allocation20 + $0x428] sm:$0xf]
        %v6332 = vld [vmem:[#allocation20 + $0x42c] sm:$0xff]
        %v6333 = vld [vmem:[#allocation20 + $0x434] sm:$0xf]
        %v6334 = vld [vmem:[#allocation20 + $0x438] sm:$0xff]
        %v6335 = vld [vmem:[#allocation20 + $0x440] sm:$0xf]
        %v6336 = vld [vmem:[#allocation20 + $0x444] sm:$0xff]
        %v6337 = vld [vmem:[#allocation20 + $0x44c] sm:$0xf]
        %v6338 = vld [vmem:[#allocation20 + $0x450] sm:$0xff]
        %v6339 = vld [vmem:[#allocation20 + $0x458] sm:$0xf]
        %v6340 = vld [vmem:[#allocation20 + $0x45c] sm:$0xff]
        %v6341 = vld [vmem:[#allocation20 + $0x464] sm:$0xf]
        %v6342 = vld [vmem:[#allocation20 + $0x468] sm:$0xff]
        %v6343 = vld [vmem:[#allocation20 + $0x470] sm:$0xf]
        %v6344 = vld [vmem:[#allocation20 + $0x474] sm:$0xff]
        %v6345 = vld [vmem:[#allocation20 + $0x47c] sm:$0xf]
        %v6346 = vld [vmem:[#allocation20 + $0x480] sm:$0xff]
        %v6347 = vld [vmem:[#allocation20 + $0x488] sm:$0xf]
        %v6348 = vld [vmem:[#allocation20 + $0x48c] sm:$0xff]
        %v6349 = vld [vmem:[#allocation20 + $0x494] sm:$0xf]
        %v6350 = vld [vmem:[#allocation20 + $0x498] sm:$0xff]
        %v6351 = vld [vmem:[#allocation20 + $0x4a0] sm:$0xf]
        %v6352 = vld [vmem:[#allocation20 + $0x4a4] sm:$0xff]
        %v6353 = vld [vmem:[#allocation20 + $0x4ac] sm:$0xf]
        %v6354 = vld [vmem:[#allocation20 + $0x4b0] sm:$0xff]
        %v6355 = vld [vmem:[#allocation20 + $0x4b8] sm:$0xf]
        %v6356 = vld [vmem:[#allocation20 + $0x4bc] sm:$0xff]
        %v6357 = vld [vmem:[#allocation20 + $0x4c4] sm:$0xf]
        %v6358 = vld [vmem:[#allocation20 + $0x4c8] sm:$0xff]
        %v6359 = vld [vmem:[#allocation20 + $0x4d0] sm:$0xf]
        %v6360 = vld [vmem:[#allocation20 + $0x4d4] sm:$0xff]
        %v6361 = vld [vmem:[#allocation20 + $0x4dc] sm:$0xf]
        %v6362 = vld [vmem:[#allocation20 + $0x4e0] sm:$0xff]
        %v6363 = vld [vmem:[#allocation20 + $0x4e8] sm:$0xf]
        %v6364 = vld [vmem:[#allocation20 + $0x4ec] sm:$0xff]
        %v6365 = vld [vmem:[#allocation20 + $0x4f4] sm:$0xf]
        %v6366 = vld [vmem:[#allocation20 + $0x4f8] sm:$0xff]
        %v6367 = vld [vmem:[#allocation20 + $0x500] sm:$0xf]
        %v6368 = vld [vmem:[#allocation20 + $0x504] sm:$0xff]
        %v6369 = vld [vmem:[#allocation20 + $0x50c] sm:$0xf]
        %v6370 = vld [vmem:[#allocation20 + $0x510] sm:$0xff]
        %v6371 = vld [vmem:[#allocation20 + $0x518] sm:$0xf]
        %v6372 = vld [vmem:[#allocation20 + $0x51c] sm:$0xff]
        %v6373 = vld [vmem:[#allocation20 + $0x524] sm:$0xf]
        %v6374 = vld [vmem:[#allocation20 + $0x528] sm:$0xff]
        %v6375 = vld [vmem:[#allocation20 + $0x530] sm:$0xf]
        %v6376 = vld [vmem:[#allocation20 + $0x534] sm:$0xff]
        %v6377 = vld [vmem:[#allocation20 + $0x53c] sm:$0xf]
        %v6378 = vld [vmem:[#allocation20 + $0x540] sm:$0xff]
        %v6379 = vld [vmem:[#allocation20 + $0x548] sm:$0xf]
        %v6380 = vld [vmem:[#allocation20 + $0x54c] sm:$0xff]
        %v6381 = vld [vmem:[#allocation20 + $0x554] sm:$0xf]
        %v6382 = vld [vmem:[#allocation20 + $0x558] sm:$0xff]
        %v6383 = vld [vmem:[#allocation20 + $0x560] sm:$0xf]
        %v6384 = vld [vmem:[#allocation20 + $0x564] sm:$0xff]
        %v6385 = vld [vmem:[#allocation20 + $0x56c] sm:$0xf]
        %v6386 = vld [vmem:[#allocation20 + $0x570] sm:$0xff]
        %v6387 = vld [vmem:[#allocation20 + $0x578] sm:$0xf]
        %v6388 = vld [vmem:[#allocation20 + $0x57c] sm:$0xff]
        %v6389 = vld [vmem:[#allocation20 + $0x584] sm:$0xf]
        %v6390 = vld [vmem:[#allocation20 + $0x588] sm:$0xff]
        %v6391 = vld [vmem:[#allocation20 + $0x590] sm:$0xf]
        %v6392 = vld [vmem:[#allocation20 + $0x594] sm:$0xff]
        %v6393 = vld [vmem:[#allocation20 + $0x59c] sm:$0xf]
        %v6394 = vld [vmem:[#allocation20 + $0x5a0] sm:$0xff]
        %v6395 = vld [vmem:[#allocation20 + $0x5a8] sm:$0xf]
        %v6396 = vld [vmem:[#allocation20 + $0x5ac] sm:$0xff]
        %v6397 = vld [vmem:[#allocation20 + $0x5b4] sm:$0xf]
        %v6398 = vld [vmem:[#allocation20 + $0x5b8] sm:$0xff]
        %v6399 = vld [vmem:[#allocation20 + $0x5c0] sm:$0xf]
        %v6400 = vld [vmem:[#allocation20 + $0x5c4] sm:$0xff]
        %v6401 = vld [vmem:[#allocation20 + $0x5cc] sm:$0xf]
        %v6402 = vld [vmem:[#allocation20 + $0x5d0] sm:$0xff]
        %v6403 = vld [vmem:[#allocation20 + $0x5d8] sm:$0xf]
        %v6404 = vld [vmem:[#allocation20 + $0x5dc] sm:$0xff]
        %v6405 = vld [vmem:[#allocation20 + $0x5e4] sm:$0xf]
        %v6406 = vld [vmem:[#allocation20 + $0x5e8] sm:$0xff]
        %v6407 = vld [vmem:[#allocation20 + $0x5f0] sm:$0xf]
        %v6408 = vld [vmem:[#allocation20 + $0x5f4] sm:$0xff]
        %v6409 = vld [vmem:[#allocation20 + $0x5fc] sm:$0xf]
        %v6410 = vld [vmem:[#allocation20 + $0x600] sm:$0xff]
        %v6411 = vld [vmem:[#allocation20 + $0x608] sm:$0xf]
        %v6412 = vld [vmem:[#allocation20 + $0x60c] sm:$0xff]
        %v6413 = vld [vmem:[#allocation20 + $0x614] sm:$0xf]
        %v6414 = vld [vmem:[#allocation20 + $0x618] sm:$0xff]
        %v6415 = vld [vmem:[#allocation20 + $0x620] sm:$0xf]
        %v6416 = vld [vmem:[#allocation20 + $0x624] sm:$0xff]
        %v6417 = vld [vmem:[#allocation20 + $0x62c] sm:$0xf]
        %v6418 = vld [vmem:[#allocation20 + $0x630] sm:$0xff]
        %v6419 = vld [vmem:[#allocation20 + $0x638] sm:$0xf]
        %v6420 = vld [vmem:[#allocation20 + $0x63c] sm:$0xff]
        %v6421 = vld [vmem:[#allocation20 + $0x644] sm:$0xf]
        %v6422 = vld [vmem:[#allocation20 + $0x648] sm:$0xff]
        %v6423 = vld [vmem:[#allocation20 + $0x650] sm:$0xf]
        %v6424 = vld [vmem:[#allocation20 + $0x654] sm:$0xff]
        %v6425 = vld [vmem:[#allocation20 + $0x65c] sm:$0xf]
        %v6426 = vld [vmem:[#allocation20 + $0x660] sm:$0xff]
        %v6427 = vld [vmem:[#allocation20 + $0x668] sm:$0xf]
        %v6428 = vld [vmem:[#allocation20 + $0x66c] sm:$0xff]
        %v6429 = vld [vmem:[#allocation20 + $0x674] sm:$0xf]
        %v6430 = vld [vmem:[#allocation20 + $0x678] sm:$0xff]
        %v6431 = vld [vmem:[#allocation20 + $0x680] sm:$0xf]
        %v6432 = vld [vmem:[#allocation20 + $0x684] sm:$0xff]
        %v6433 = vld [vmem:[#allocation20 + $0x68c] sm:$0xf]
        %v6434 = vld [vmem:[#allocation20 + $0x690] sm:$0xff]
        %v6435 = vld [vmem:[#allocation20 + $0x698] sm:$0xf]
        %v6436 = vld [vmem:[#allocation20 + $0x69c] sm:$0xff]
        %v6437 = vld [vmem:[#allocation20 + $0x6a4] sm:$0xf]
        %v6438 = vld [vmem:[#allocation20 + $0x6a8] sm:$0xff]
        %v6439 = vld [vmem:[#allocation20 + $0x6b0] sm:$0xf]
        %v6440 = vld [vmem:[#allocation20 + $0x6b4] sm:$0xff]
        %v6441 = vld [vmem:[#allocation20 + $0x6bc] sm:$0xf]
        %v6442 = vld [vmem:[#allocation20 + $0x6c0] sm:$0xff]
        %v6443 = vld [vmem:[#allocation20 + $0x6c8] sm:$0xf]
        %v6444 = vld [vmem:[#allocation20 + $0x6cc] sm:$0xff]
        %v6445 = vld [vmem:[#allocation20 + $0x6d4] sm:$0xf]
        %v6446 = vld [vmem:[#allocation20 + $0x6d8] sm:$0xff]
        %v6447 = vld [vmem:[#allocation20 + $0x6e0] sm:$0xf]
        %v6448 = vld [vmem:[#allocation20 + $0x6e4] sm:$0xff]
        %v6449 = vld [vmem:[#allocation20 + $0x6ec] sm:$0xf]
        %v6450 = vld [vmem:[#allocation20 + $0x6f0] sm:$0xff]
        %v6451 = vld [vmem:[#allocation20 + $0x6f8] sm:$0xf]
        %v6452 = vld [vmem:[#allocation20 + $0x6fc] sm:$0xff]
        %v6453 = vld [vmem:[#allocation20 + $0x704] sm:$0xf]
        %v6454 = vld [vmem:[#allocation20 + $0x708] sm:$0xff]
        %v6455 = vld [vmem:[#allocation20 + $0x710] sm:$0xf]
        %v6456 = vld [vmem:[#allocation20 + $0x714] sm:$0xff]
        %v6457 = vld [vmem:[#allocation20 + $0x71c] sm:$0xf]
        %v6458 = vld [vmem:[#allocation20 + $0x720] sm:$0xff]
        %v6459 = vld [vmem:[#allocation20 + $0x728] sm:$0xf]
        %v6460 = vld [vmem:[#allocation20 + $0x72c] sm:$0xff]
        %v6461 = vld [vmem:[#allocation20 + $0x734] sm:$0xf]
        %v6462 = vld [vmem:[#allocation20 + $0x738] sm:$0xff]
        %v6463 = vld [vmem:[#allocation20 + $0x740] sm:$0xf]
        %v6464 = vld [vmem:[#allocation20 + $0x744] sm:$0xff]
        %v6465 = vld [vmem:[#allocation20 + $0x74c] sm:$0xf]
        %v6466 = vld [vmem:[#allocation20 + $0x750] sm:$0xff]
        %v6467 = vld [vmem:[#allocation20 + $0x758] sm:$0xf]
        %v6468 = vld [vmem:[#allocation20 + $0x75c] sm:$0xff]
        %v6469 = vld [vmem:[#allocation20 + $0x764] sm:$0xf]
        %v6470 = vld [vmem:[#allocation20 + $0x768] sm:$0xff]
        %v6471 = vld [vmem:[#allocation20 + $0x770] sm:$0xf]
        %v6472 = vld [vmem:[#allocation20 + $0x774] sm:$0xff]
        %v6473 = vld [vmem:[#allocation20 + $0x77c] sm:$0xf]
        %v6474 = vld [vmem:[#allocation20 + $0x780] sm:$0xff]
        %v6475 = vld [vmem:[#allocation20 + $0x788] sm:$0xf]
        %v6476 = vld [vmem:[#allocation20 + $0x78c] sm:$0xff]
        %v6477 = vld [vmem:[#allocation20 + $0x794] sm:$0xf]
        %v6478 = vld [vmem:[#allocation20 + $0x798] sm:$0xff]
        %v6479 = vld [vmem:[#allocation20 + $0x7a0] sm:$0xf]
        %v6480 = vld [vmem:[#allocation20 + $0x7a4] sm:$0xff]
        %v6481 = vld [vmem:[#allocation20 + $0x7ac] sm:$0xf]
        %v6482 = vld [vmem:[#allocation20 + $0x7b0] sm:$0xff]
        %v6483 = vld [vmem:[#allocation20 + $0x7b8] sm:$0xf]
        %v6484 = vld [vmem:[#allocation20 + $0x7bc] sm:$0xff]
        %v6485 = vld [vmem:[#allocation20 + $0x7c4] sm:$0xf]
        %v6486 = vld [vmem:[#allocation20 + $0x7c8] sm:$0xff]
        %v6487 = vld [vmem:[#allocation20 + $0x7d0] sm:$0xf]
        %v6488 = vld [vmem:[#allocation20 + $0x7d4] sm:$0xff]
        %v6489 = vld [vmem:[#allocation20 + $0x7dc] sm:$0xf]
        %v6490 = vld [vmem:[#allocation20 + $0x7e0] sm:$0xff]
        %v6491 = vld [vmem:[#allocation20 + $0x7e8] sm:$0xf]
        %v6492 = vld [vmem:[#allocation20 + $0x7ec] sm:$0xff]
        %v6493 = vld [vmem:[#allocation20 + $0x7f4] sm:$0xf]
        %v6494 = vld [vmem:[#allocation20 + $0x7f8] sm:$0xff]
        %v6495 = vld [vmem:[#allocation20 + $0x800] sm:$0xf]
        %v6496 = vld [vmem:[#allocation20 + $0x804] sm:$0xff]
        %v6497 = vld [vmem:[#allocation20 + $0x80c] sm:$0xf]
        %v6498 = vld [vmem:[#allocation20 + $0x810] sm:$0xff]
        %v6499 = vld [vmem:[#allocation20 + $0x818] sm:$0xf]
        %v6500 = vld [vmem:[#allocation20 + $0x81c] sm:$0xff]
        %v6501 = vld [vmem:[#allocation20 + $0x824] sm:$0xf]
        %v6502 = vld [vmem:[#allocation20 + $0x828] sm:$0xff]
        %v6503 = vld [vmem:[#allocation20 + $0x830] sm:$0xf]
        %v6504 = vld [vmem:[#allocation20 + $0x834] sm:$0xff]
        %v6505 = vld [vmem:[#allocation20 + $0x83c] sm:$0xf]
        %v6506 = vld [vmem:[#allocation20 + $0x840] sm:$0xff]
        %v6507 = vld [vmem:[#allocation20 + $0x848] sm:$0xf]
        %v6508 = vld [vmem:[#allocation20 + $0x84c] sm:$0xff]
        %v6509 = vld [vmem:[#allocation20 + $0x854] sm:$0xf]
        %v6510 = vld [vmem:[#allocation20 + $0x858] sm:$0xff]
        %v6511 = vld [vmem:[#allocation20 + $0x860] sm:$0xf]
        %v6512 = vld [vmem:[#allocation20 + $0x864] sm:$0xff]
        %v6513 = vld [vmem:[#allocation20 + $0x86c] sm:$0xf]
        %v6514 = vld [vmem:[#allocation20 + $0x870] sm:$0xff]
        %v6515 = vld [vmem:[#allocation20 + $0x878] sm:$0xf]
        %v6516 = vld [vmem:[#allocation20 + $0x87c] sm:$0xff]
        %v6517 = vld [vmem:[#allocation20 + $0x884] sm:$0xf]
        %v6518 = vld [vmem:[#allocation20 + $0x888] sm:$0xff]
        %v6519 = vld [vmem:[#allocation20 + $0x890] sm:$0xf]
        %v6520 = vld [vmem:[#allocation20 + $0x894] sm:$0xff]
        %v6521 = vld [vmem:[#allocation20 + $0x89c] sm:$0xf]
        %v6522 = vld [vmem:[#allocation20 + $0x8a0] sm:$0xff]
        %v6523 = vld [vmem:[#allocation20 + $0x8a8] sm:$0xf]
        %v6524 = vld [vmem:[#allocation20 + $0x8ac] sm:$0xff]
        %v6525 = vld [vmem:[#allocation20 + $0x8b4] sm:$0xf]
        %v6526 = vld [vmem:[#allocation20 + $0x8b8] sm:$0xff]
        %v6527 = vld [vmem:[#allocation20 + $0x8c0] sm:$0xf]
        %v6528 = vld [vmem:[#allocation20 + $0x8c4] sm:$0xff]
        %v6529 = vld [vmem:[#allocation20 + $0x8cc] sm:$0xf]
        %v6530 = vld [vmem:[#allocation20 + $0x8d0] sm:$0xff]
        %v6531 = vld [vmem:[#allocation20 + $0x8d8] sm:$0xf]
        %v6532 = vld [vmem:[#allocation20 + $0x8dc] sm:$0xff]
        %v6533 = vld [vmem:[#allocation20 + $0x8e4] sm:$0xf]
        %v6534 = vld [vmem:[#allocation20 + $0x8e8] sm:$0xff]
        %v6535 = vld [vmem:[#allocation20 + $0x8f0] sm:$0xf]
        %v6536 = vld [vmem:[#allocation20 + $0x8f4] sm:$0xff]
        %v6537 = vld [vmem:[#allocation20 + $0x8fc] sm:$0xf]
        %v6538 = vld [vmem:[#allocation21] sm:$0x7]
        %v6540 = vlaneseq
        %v6541 = vshrl.u32 %v6540, 7
        %v6542 = vsub.s32 0, %v6541
        %v6543 = vrot.slane %v6538, %v6542
        %v6544 = vlaneseq
        %v6545 = vshrl.u32 %v6544, 7
        %v6546 = vsub.s32 1, %v6545
        %v6547 = vrot.slane %v6538, %v6546
        %v6548 = vlaneseq
        %v6549 = vshrl.u32 %v6548, 7
        %v6550 = vsub.s32 2, %v6549
        %v6551 = vrot.slane %v6538, %v6550
        %v6939 = vunpack.c.l.b16 %v6154
        %v6940 = vunpack.c.h.b16 %v6154
        %v6941 = vunpack.c.l.b16 %v6155
        %v6942 = vunpack.c.l.b16 %v6156
        %v6943 = vunpack.c.h.b16 %v6156
        %v6944 = vunpack.c.l.b16 %v6157
        %v6945 = vunpack.c.l.b16 %v6158
        %v6946 = vunpack.c.h.b16 %v6158
        %v6947 = vunpack.c.l.b16 %v6159
        %v6948 = vunpack.c.l.b16 %v6160
        %v6949 = vunpack.c.h.b16 %v6160
        %v6950 = vunpack.c.l.b16 %v6161
        %v6951 = vunpack.c.l.b16 %v6162
        %v6952 = vunpack.c.h.b16 %v6162
        %v6953 = vunpack.c.l.b16 %v6163
        %v6954 = vunpack.c.l.b16 %v6164
        %v6955 = vunpack.c.h.b16 %v6164
        %v6956 = vunpack.c.l.b16 %v6165
        %v6957 = vunpack.c.l.b16 %v6166
        %v6958 = vunpack.c.h.b16 %v6166
        %v6959 = vunpack.c.l.b16 %v6167
        %v6960 = vunpack.c.l.b16 %v6168
        %v6961 = vunpack.c.h.b16 %v6168
        %v6962 = vunpack.c.l.b16 %v6169
        %v6963 = vunpack.c.l.b16 %v6170
        %v6964 = vunpack.c.h.b16 %v6170
        %v6965 = vunpack.c.l.b16 %v6171
        %v6966 = vunpack.c.l.b16 %v6172
        %v6967 = vunpack.c.h.b16 %v6172
        %v6968 = vunpack.c.l.b16 %v6173
        %v6969 = vunpack.c.l.b16 %v6174
        %v6970 = vunpack.c.h.b16 %v6174
        %v6971 = vunpack.c.l.b16 %v6175
        %v6972 = vunpack.c.l.b16 %v6176
        %v6973 = vunpack.c.h.b16 %v6176
        %v6974 = vunpack.c.l.b16 %v6177
        %v6975 = vunpack.c.l.b16 %v6178
        %v6976 = vunpack.c.h.b16 %v6178
        %v6977 = vunpack.c.l.b16 %v6179
        %v6978 = vunpack.c.l.b16 %v6180
        %v6979 = vunpack.c.h.b16 %v6180
        %v6980 = vunpack.c.l.b16 %v6181
        %v6981 = vunpack.c.l.b16 %v6182
        %v6982 = vunpack.c.h.b16 %v6182
        %v6983 = vunpack.c.l.b16 %v6183
        %v6984 = vunpack.c.l.b16 %v6184
        %v6985 = vunpack.c.h.b16 %v6184
        %v6986 = vunpack.c.l.b16 %v6185
        %v6987 = vunpack.c.l.b16 %v6186
        %v6988 = vunpack.c.h.b16 %v6186
        %v6989 = vunpack.c.l.b16 %v6187
        %v6990 = vunpack.c.l.b16 %v6188
        %v6991 = vunpack.c.h.b16 %v6188
        %v6992 = vunpack.c.l.b16 %v6189
        %v6993 = vunpack.c.l.b16 %v6190
        %v6994 = vunpack.c.h.b16 %v6190
        %v6995 = vunpack.c.l.b16 %v6191
        %v6996 = vunpack.c.l.b16 %v6192
        %v6997 = vunpack.c.h.b16 %v6192
        %v6998 = vunpack.c.l.b16 %v6193
        %v6999 = vunpack.c.l.b16 %v6194
        %v7000 = vunpack.c.h.b16 %v6194
        %v7001 = vunpack.c.l.b16 %v6195
        %v7002 = vunpack.c.l.b16 %v6196
        %v7003 = vunpack.c.h.b16 %v6196
        %v7004 = vunpack.c.l.b16 %v6197
        %v7005 = vunpack.c.l.b16 %v6198
        %v7006 = vunpack.c.h.b16 %v6198
        %v7007 = vunpack.c.l.b16 %v6199
        %v7008 = vunpack.c.l.b16 %v6200
        %v7009 = vunpack.c.h.b16 %v6200
        %v7010 = vunpack.c.l.b16 %v6201
        %v7011 = vunpack.c.l.b16 %v6202
        %v7012 = vunpack.c.h.b16 %v6202
        %v7013 = vunpack.c.l.b16 %v6203
        %v7014 = vunpack.c.l.b16 %v6204
        %v7015 = vunpack.c.h.b16 %v6204
        %v7016 = vunpack.c.l.b16 %v6205
        %v7017 = vunpack.c.l.b16 %v6206
        %v7018 = vunpack.c.h.b16 %v6206
        %v7019 = vunpack.c.l.b16 %v6207
        %v7020 = vunpack.c.l.b16 %v6208
        %v7021 = vunpack.c.h.b16 %v6208
        %v7022 = vunpack.c.l.b16 %v6209
        %v7023 = vunpack.c.l.b16 %v6210
        %v7024 = vunpack.c.h.b16 %v6210
        %v7025 = vunpack.c.l.b16 %v6211
        %v7026 = vunpack.c.l.b16 %v6212
        %v7027 = vunpack.c.h.b16 %v6212
        %v7028 = vunpack.c.l.b16 %v6213
        %v7029 = vunpack.c.l.b16 %v6214
        %v7030 = vunpack.c.h.b16 %v6214
        %v7031 = vunpack.c.l.b16 %v6215
        %v7032 = vunpack.c.l.b16 %v6216
        %v7033 = vunpack.c.h.b16 %v6216
        %v7034 = vunpack.c.l.b16 %v6217
        %v7035 = vunpack.c.l.b16 %v6218
        %v7036 = vunpack.c.h.b16 %v6218
        %v7037 = vunpack.c.l.b16 %v6219
        %v7038 = vunpack.c.l.b16 %v6220
        %v7039 = vunpack.c.h.b16 %v6220
        %v7040 = vunpack.c.l.b16 %v6221
        %v7041 = vunpack.c.l.b16 %v6222
        %v7042 = vunpack.c.h.b16 %v6222
        %v7043 = vunpack.c.l.b16 %v6223
        %v7044 = vunpack.c.l.b16 %v6224
        %v7045 = vunpack.c.h.b16 %v6224
        %v7046 = vunpack.c.l.b16 %v6225
        %v7047 = vunpack.c.l.b16 %v6226
        %v7048 = vunpack.c.h.b16 %v6226
        %v7049 = vunpack.c.l.b16 %v6227
        %v7050 = vunpack.c.l.b16 %v6228
        %v7051 = vunpack.c.h.b16 %v6228
        %v7052 = vunpack.c.l.b16 %v6229
        %v7053 = vunpack.c.l.b16 %v6230
        %v7054 = vunpack.c.h.b16 %v6230
        %v7055 = vunpack.c.l.b16 %v6231
        %v7056 = vunpack.c.l.b16 %v6232
        %v7057 = vunpack.c.h.b16 %v6232
        %v7058 = vunpack.c.l.b16 %v6233
        %v7059 = vunpack.c.l.b16 %v6234
        %v7060 = vunpack.c.h.b16 %v6234
        %v7061 = vunpack.c.l.b16 %v6235
        %v7062 = vunpack.c.l.b16 %v6236
        %v7063 = vunpack.c.h.b16 %v6236
        %v7064 = vunpack.c.l.b16 %v6237
        %v7065 = vunpack.c.l.b16 %v6238
        %v7066 = vunpack.c.h.b16 %v6238
        %v7067 = vunpack.c.l.b16 %v6239
        %v7068 = vunpack.c.l.b16 %v6240
        %v7069 = vunpack.c.h.b16 %v6240
        %v7070 = vunpack.c.l.b16 %v6241
        %v7071 = vunpack.c.l.b16 %v6242
        %v7072 = vunpack.c.h.b16 %v6242
        %v7073 = vunpack.c.l.b16 %v6243
        %v7074 = vunpack.c.l.b16 %v6244
        %v7075 = vunpack.c.h.b16 %v6244
        %v7076 = vunpack.c.l.b16 %v6245
        %v7077 = vunpack.c.l.b16 %v6246
        %v7078 = vunpack.c.h.b16 %v6246
        %v7079 = vunpack.c.l.b16 %v6247
        %v7080 = vunpack.c.l.b16 %v6248
        %v7081 = vunpack.c.h.b16 %v6248
        %v7082 = vunpack.c.l.b16 %v6249
        %v7083 = vunpack.c.l.b16 %v6250
        %v7084 = vunpack.c.h.b16 %v6250
        %v7085 = vunpack.c.l.b16 %v6251
        %v7086 = vunpack.c.l.b16 %v6252
        %v7087 = vunpack.c.h.b16 %v6252
        %v7088 = vunpack.c.l.b16 %v6253
        %v7089 = vunpack.c.l.b16 %v6254
        %v7090 = vunpack.c.h.b16 %v6254
        %v7091 = vunpack.c.l.b16 %v6255
        %v7092 = vunpack.c.l.b16 %v6256
        %v7093 = vunpack.c.h.b16 %v6256
        %v7094 = vunpack.c.l.b16 %v6257
        %v7095 = vunpack.c.l.b16 %v6258
        %v7096 = vunpack.c.h.b16 %v6258
        %v7097 = vunpack.c.l.b16 %v6259
        %v7098 = vunpack.c.l.b16 %v6260
        %v7099 = vunpack.c.h.b16 %v6260
        %v7100 = vunpack.c.l.b16 %v6261
        %v7101 = vunpack.c.l.b16 %v6262
        %v7102 = vunpack.c.h.b16 %v6262
        %v7103 = vunpack.c.l.b16 %v6263
        %v7104 = vunpack.c.l.b16 %v6264
        %v7105 = vunpack.c.h.b16 %v6264
        %v7106 = vunpack.c.l.b16 %v6265
        %v7107 = vunpack.c.l.b16 %v6266
        %v7108 = vunpack.c.h.b16 %v6266
        %v7109 = vunpack.c.l.b16 %v6267
        %v7110 = vunpack.c.l.b16 %v6268
        %v7111 = vunpack.c.h.b16 %v6268
        %v7112 = vunpack.c.l.b16 %v6269
        %v7113 = vunpack.c.l.b16 %v6270
        %v7114 = vunpack.c.h.b16 %v6270
        %v7115 = vunpack.c.l.b16 %v6271
        %v7116 = vunpack.c.l.b16 %v6272
        %v7117 = vunpack.c.h.b16 %v6272
        %v7118 = vunpack.c.l.b16 %v6273
        %v7119 = vunpack.c.l.b16 %v6274
        %v7120 = vunpack.c.h.b16 %v6274
        %v7121 = vunpack.c.l.b16 %v6275
        %v7122 = vunpack.c.l.b16 %v6276
        %v7123 = vunpack.c.h.b16 %v6276
        %v7124 = vunpack.c.l.b16 %v6277
        %v7125 = vunpack.c.l.b16 %v6278
        %v7126 = vunpack.c.h.b16 %v6278
        %v7127 = vunpack.c.l.b16 %v6279
        %v7128 = vunpack.c.l.b16 %v6280
        %v7129 = vunpack.c.h.b16 %v6280
        %v7130 = vunpack.c.l.b16 %v6281
        %v7131 = vunpack.c.l.b16 %v6282
        %v7132 = vunpack.c.h.b16 %v6282
        %v7133 = vunpack.c.l.b16 %v6283
        %v7134 = vunpack.c.l.b16 %v6284
        %v7135 = vunpack.c.h.b16 %v6284
        %v7136 = vunpack.c.l.b16 %v6285
        %v7137 = vunpack.c.l.b16 %v6286
        %v7138 = vunpack.c.h.b16 %v6286
        %v7139 = vunpack.c.l.b16 %v6287
        %v7140 = vunpack.c.l.b16 %v6288
        %v7141 = vunpack.c.h.b16 %v6288
        %v7142 = vunpack.c.l.b16 %v6289
        %v7143 = vunpack.c.l.b16 %v6290
        %v7144 = vunpack.c.h.b16 %v6290
        %v7145 = vunpack.c.l.b16 %v6291
        %v7146 = vunpack.c.l.b16 %v6292
        %v7147 = vunpack.c.h.b16 %v6292
        %v7148 = vunpack.c.l.b16 %v6293
        %v7149 = vunpack.c.l.b16 %v6294
        %v7150 = vunpack.c.h.b16 %v6294
        %v7151 = vunpack.c.l.b16 %v6295
        %v7152 = vunpack.c.l.b16 %v6296
        %v7153 = vunpack.c.h.b16 %v6296
        %v7154 = vunpack.c.l.b16 %v6297
        %v7155 = vunpack.c.l.b16 %v6298
        %v7156 = vunpack.c.h.b16 %v6298
        %v7157 = vunpack.c.l.b16 %v6299
        %v7158 = vunpack.c.l.b16 %v6300
        %v7159 = vunpack.c.h.b16 %v6300
        %v7160 = vunpack.c.l.b16 %v6301
        %v7161 = vunpack.c.l.b16 %v6302
        %v7162 = vunpack.c.h.b16 %v6302
        %v7163 = vunpack.c.l.b16 %v6303
        %v7164 = vunpack.c.l.b16 %v6304
        %v7165 = vunpack.c.h.b16 %v6304
        %v7166 = vunpack.c.l.b16 %v6305
        %v7167 = vunpack.c.l.b16 %v6306
        %v7168 = vunpack.c.h.b16 %v6306
        %v7169 = vunpack.c.l.b16 %v6307
        %v7170 = vunpack.c.l.b16 %v6308
        %v7171 = vunpack.c.h.b16 %v6308
        %v7172 = vunpack.c.l.b16 %v6309
        %v7173 = vunpack.c.l.b16 %v6310
        %v7174 = vunpack.c.h.b16 %v6310
        %v7175 = vunpack.c.l.b16 %v6311
        %v7176 = vunpack.c.l.b16 %v6312
        %v7177 = vunpack.c.h.b16 %v6312
        %v7178 = vunpack.c.l.b16 %v6313
        %v7179 = vunpack.c.l.b16 %v6314
        %v7180 = vunpack.c.h.b16 %v6314
        %v7181 = vunpack.c.l.b16 %v6315
        %v7182 = vunpack.c.l.b16 %v6316
        %v7183 = vunpack.c.h.b16 %v6316
        %v7184 = vunpack.c.l.b16 %v6317
        %v7185 = vunpack.c.l.b16 %v6318
        %v7186 = vunpack.c.h.b16 %v6318
        %v7187 = vunpack.c.l.b16 %v6319
        %v7188 = vunpack.c.l.b16 %v6320
        %v7189 = vunpack.c.h.b16 %v6320
        %v7190 = vunpack.c.l.b16 %v6321
        %v7191 = vunpack.c.l.b16 %v6322
        %v7192 = vunpack.c.h.b16 %v6322
        %v7193 = vunpack.c.l.b16 %v6323
        %v7194 = vunpack.c.l.b16 %v6324
        %v7195 = vunpack.c.h.b16 %v6324
        %v7196 = vunpack.c.l.b16 %v6325
        %v7197 = vunpack.c.l.b16 %v6326
        %v7198 = vunpack.c.h.b16 %v6326
        %v7199 = vunpack.c.l.b16 %v6327
        %v7200 = vunpack.c.l.b16 %v6328
        %v7201 = vunpack.c.h.b16 %v6328
        %v7202 = vunpack.c.l.b16 %v6329
        %v7203 = vunpack.c.l.b16 %v6330
        %v7204 = vunpack.c.h.b16 %v6330
        %v7205 = vunpack.c.l.b16 %v6331
        %v7206 = vunpack.c.l.b16 %v6332
        %v7207 = vunpack.c.h.b16 %v6332
        %v7208 = vunpack.c.l.b16 %v6333
        %v7209 = vunpack.c.l.b16 %v6334
        %v7210 = vunpack.c.h.b16 %v6334
        %v7211 = vunpack.c.l.b16 %v6335
        %v7212 = vunpack.c.l.b16 %v6336
        %v7213 = vunpack.c.h.b16 %v6336
        %v7214 = vunpack.c.l.b16 %v6337
        %v7215 = vunpack.c.l.b16 %v6338
        %v7216 = vunpack.c.h.b16 %v6338
        %v7217 = vunpack.c.l.b16 %v6339
        %v7218 = vunpack.c.l.b16 %v6340
        %v7219 = vunpack.c.h.b16 %v6340
        %v7220 = vunpack.c.l.b16 %v6341
        %v7221 = vunpack.c.l.b16 %v6342
        %v7222 = vunpack.c.h.b16 %v6342
        %v7223 = vunpack.c.l.b16 %v6343
        %v7224 = vunpack.c.l.b16 %v6344
        %v7225 = vunpack.c.h.b16 %v6344
        %v7226 = vunpack.c.l.b16 %v6345
        %v7227 = vunpack.c.l.b16 %v6346
        %v7228 = vunpack.c.h.b16 %v6346
        %v7229 = vunpack.c.l.b16 %v6347
        %v7230 = vunpack.c.l.b16 %v6348
        %v7231 = vunpack.c.h.b16 %v6348
        %v7232 = vunpack.c.l.b16 %v6349
        %v7233 = vunpack.c.l.b16 %v6350
        %v7234 = vunpack.c.h.b16 %v6350
        %v7235 = vunpack.c.l.b16 %v6351
        %v7236 = vunpack.c.l.b16 %v6352
        %v7237 = vunpack.c.h.b16 %v6352
        %v7238 = vunpack.c.l.b16 %v6353
        %v7239 = vunpack.c.l.b16 %v6354
        %v7240 = vunpack.c.h.b16 %v6354
        %v7241 = vunpack.c.l.b16 %v6355
        %v7242 = vunpack.c.l.b16 %v6356
        %v7243 = vunpack.c.h.b16 %v6356
        %v7244 = vunpack.c.l.b16 %v6357
        %v7245 = vunpack.c.l.b16 %v6358
        %v7246 = vunpack.c.h.b16 %v6358
        %v7247 = vunpack.c.l.b16 %v6359
        %v7248 = vunpack.c.l.b16 %v6360
        %v7249 = vunpack.c.h.b16 %v6360
        %v7250 = vunpack.c.l.b16 %v6361
        %v7251 = vunpack.c.l.b16 %v6362
        %v7252 = vunpack.c.h.b16 %v6362
        %v7253 = vunpack.c.l.b16 %v6363
        %v7254 = vunpack.c.l.b16 %v6364
        %v7255 = vunpack.c.h.b16 %v6364
        %v7256 = vunpack.c.l.b16 %v6365
        %v7257 = vunpack.c.l.b16 %v6366
        %v7258 = vunpack.c.h.b16 %v6366
        %v7259 = vunpack.c.l.b16 %v6367
        %v7260 = vunpack.c.l.b16 %v6368
        %v7261 = vunpack.c.h.b16 %v6368
        %v7262 = vunpack.c.l.b16 %v6369
        %v7263 = vunpack.c.l.b16 %v6370
        %v7264 = vunpack.c.h.b16 %v6370
        %v7265 = vunpack.c.l.b16 %v6371
        %v7266 = vunpack.c.l.b16 %v6372
        %v7267 = vunpack.c.h.b16 %v6372
        %v7268 = vunpack.c.l.b16 %v6373
        %v7269 = vunpack.c.l.b16 %v6374
        %v7270 = vunpack.c.h.b16 %v6374
        %v7271 = vunpack.c.l.b16 %v6375
        %v7272 = vunpack.c.l.b16 %v6376
        %v7273 = vunpack.c.h.b16 %v6376
        %v7274 = vunpack.c.l.b16 %v6377
        %v7275 = vunpack.c.l.b16 %v6378
        %v7276 = vunpack.c.h.b16 %v6378
        %v7277 = vunpack.c.l.b16 %v6379
        %v7278 = vunpack.c.l.b16 %v6380
        %v7279 = vunpack.c.h.b16 %v6380
        %v7280 = vunpack.c.l.b16 %v6381
        %v7281 = vunpack.c.l.b16 %v6382
        %v7282 = vunpack.c.h.b16 %v6382
        %v7283 = vunpack.c.l.b16 %v6383
        %v7284 = vunpack.c.l.b16 %v6384
        %v7285 = vunpack.c.h.b16 %v6384
        %v7286 = vunpack.c.l.b16 %v6385
        %v7287 = vunpack.c.l.b16 %v6386
        %v7288 = vunpack.c.h.b16 %v6386
        %v7289 = vunpack.c.l.b16 %v6387
        %v7290 = vunpack.c.l.b16 %v6388
        %v7291 = vunpack.c.h.b16 %v6388
        %v7292 = vunpack.c.l.b16 %v6389
        %v7293 = vunpack.c.l.b16 %v6390
        %v7294 = vunpack.c.h.b16 %v6390
        %v7295 = vunpack.c.l.b16 %v6391
        %v7296 = vunpack.c.l.b16 %v6392
        %v7297 = vunpack.c.h.b16 %v6392
        %v7298 = vunpack.c.l.b16 %v6393
        %v7299 = vunpack.c.l.b16 %v6394
        %v7300 = vunpack.c.h.b16 %v6394
        %v7301 = vunpack.c.l.b16 %v6395
        %v7302 = vunpack.c.l.b16 %v6396
        %v7303 = vunpack.c.h.b16 %v6396
        %v7304 = vunpack.c.l.b16 %v6397
        %v7305 = vunpack.c.l.b16 %v6398
        %v7306 = vunpack.c.h.b16 %v6398
        %v7307 = vunpack.c.l.b16 %v6399
        %v7308 = vunpack.c.l.b16 %v6400
        %v7309 = vunpack.c.h.b16 %v6400
        %v7310 = vunpack.c.l.b16 %v6401
        %v7311 = vunpack.c.l.b16 %v6402
        %v7312 = vunpack.c.h.b16 %v6402
        %v7313 = vunpack.c.l.b16 %v6403
        %v7314 = vunpack.c.l.b16 %v6404
        %v7315 = vunpack.c.h.b16 %v6404
        %v7316 = vunpack.c.l.b16 %v6405
        %v7317 = vunpack.c.l.b16 %v6406
        %v7318 = vunpack.c.h.b16 %v6406
        %v7319 = vunpack.c.l.b16 %v6407
        %v7320 = vunpack.c.l.b16 %v6408
        %v7321 = vunpack.c.h.b16 %v6408
        %v7322 = vunpack.c.l.b16 %v6409
        %v7323 = vunpack.c.l.b16 %v6410
        %v7324 = vunpack.c.h.b16 %v6410
        %v7325 = vunpack.c.l.b16 %v6411
        %v7326 = vunpack.c.l.b16 %v6412
        %v7327 = vunpack.c.h.b16 %v6412
        %v7328 = vunpack.c.l.b16 %v6413
        %v7329 = vunpack.c.l.b16 %v6414
        %v7330 = vunpack.c.h.b16 %v6414
        %v7331 = vunpack.c.l.b16 %v6415
        %v7332 = vunpack.c.l.b16 %v6416
        %v7333 = vunpack.c.h.b16 %v6416
        %v7334 = vunpack.c.l.b16 %v6417
        %v7335 = vunpack.c.l.b16 %v6418
        %v7336 = vunpack.c.h.b16 %v6418
        %v7337 = vunpack.c.l.b16 %v6419
        %v7338 = vunpack.c.l.b16 %v6420
        %v7339 = vunpack.c.h.b16 %v6420
        %v7340 = vunpack.c.l.b16 %v6421
        %v7341 = vunpack.c.l.b16 %v6422
        %v7342 = vunpack.c.h.b16 %v6422
        %v7343 = vunpack.c.l.b16 %v6423
        %v7344 = vunpack.c.l.b16 %v6424
        %v7345 = vunpack.c.h.b16 %v6424
        %v7346 = vunpack.c.l.b16 %v6425
        %v7347 = vunpack.c.l.b16 %v6426
        %v7348 = vunpack.c.h.b16 %v6426
        %v7349 = vunpack.c.l.b16 %v6427
        %v7350 = vunpack.c.l.b16 %v6428
        %v7351 = vunpack.c.h.b16 %v6428
        %v7352 = vunpack.c.l.b16 %v6429
        %v7353 = vunpack.c.l.b16 %v6430
        %v7354 = vunpack.c.h.b16 %v6430
        %v7355 = vunpack.c.l.b16 %v6431
        %v7356 = vunpack.c.l.b16 %v6432
        %v7357 = vunpack.c.h.b16 %v6432
        %v7358 = vunpack.c.l.b16 %v6433
        %v7359 = vunpack.c.l.b16 %v6434
        %v7360 = vunpack.c.h.b16 %v6434
        %v7361 = vunpack.c.l.b16 %v6435
        %v7362 = vunpack.c.l.b16 %v6436
        %v7363 = vunpack.c.h.b16 %v6436
        %v7364 = vunpack.c.l.b16 %v6437
        %v7365 = vunpack.c.l.b16 %v6438
        %v7366 = vunpack.c.h.b16 %v6438
        %v7367 = vunpack.c.l.b16 %v6439
        %v7368 = vunpack.c.l.b16 %v6440
        %v7369 = vunpack.c.h.b16 %v6440
        %v7370 = vunpack.c.l.b16 %v6441
        %v7371 = vunpack.c.l.b16 %v6442
        %v7372 = vunpack.c.h.b16 %v6442
        %v7373 = vunpack.c.l.b16 %v6443
        %v7374 = vunpack.c.l.b16 %v6444
        %v7375 = vunpack.c.h.b16 %v6444
        %v7376 = vunpack.c.l.b16 %v6445
        %v7377 = vunpack.c.l.b16 %v6446
        %v7378 = vunpack.c.h.b16 %v6446
        %v7379 = vunpack.c.l.b16 %v6447
        %v7380 = vunpack.c.l.b16 %v6448
        %v7381 = vunpack.c.h.b16 %v6448
        %v7382 = vunpack.c.l.b16 %v6449
        %v7383 = vunpack.c.l.b16 %v6450
        %v7384 = vunpack.c.h.b16 %v6450
        %v7385 = vunpack.c.l.b16 %v6451
        %v7386 = vunpack.c.l.b16 %v6452
        %v7387 = vunpack.c.h.b16 %v6452
        %v7388 = vunpack.c.l.b16 %v6453
        %v7389 = vunpack.c.l.b16 %v6454
        %v7390 = vunpack.c.h.b16 %v6454
        %v7391 = vunpack.c.l.b16 %v6455
        %v7392 = vunpack.c.l.b16 %v6456
        %v7393 = vunpack.c.h.b16 %v6456
        %v7394 = vunpack.c.l.b16 %v6457
        %v7395 = vunpack.c.l.b16 %v6458
        %v7396 = vunpack.c.h.b16 %v6458
        %v7397 = vunpack.c.l.b16 %v6459
        %v7398 = vunpack.c.l.b16 %v6460
        %v7399 = vunpack.c.h.b16 %v6460
        %v7400 = vunpack.c.l.b16 %v6461
        %v7401 = vunpack.c.l.b16 %v6462
        %v7402 = vunpack.c.h.b16 %v6462
        %v7403 = vunpack.c.l.b16 %v6463
        %v7404 = vunpack.c.l.b16 %v6464
        %v7405 = vunpack.c.h.b16 %v6464
        %v7406 = vunpack.c.l.b16 %v6465
        %v7407 = vunpack.c.l.b16 %v6466
        %v7408 = vunpack.c.h.b16 %v6466
        %v7409 = vunpack.c.l.b16 %v6467
        %v7410 = vunpack.c.l.b16 %v6468
        %v7411 = vunpack.c.h.b16 %v6468
        %v7412 = vunpack.c.l.b16 %v6469
        %v7413 = vunpack.c.l.b16 %v6470
        %v7414 = vunpack.c.h.b16 %v6470
        %v7415 = vunpack.c.l.b16 %v6471
        %v7416 = vunpack.c.l.b16 %v6472
        %v7417 = vunpack.c.h.b16 %v6472
        %v7418 = vunpack.c.l.b16 %v6473
        %v7419 = vunpack.c.l.b16 %v6474
        %v7420 = vunpack.c.h.b16 %v6474
        %v7421 = vunpack.c.l.b16 %v6475
        %v7422 = vunpack.c.l.b16 %v6476
        %v7423 = vunpack.c.h.b16 %v6476
        %v7424 = vunpack.c.l.b16 %v6477
        %v7425 = vunpack.c.l.b16 %v6478
        %v7426 = vunpack.c.h.b16 %v6478
        %v7427 = vunpack.c.l.b16 %v6479
        %v7428 = vunpack.c.l.b16 %v6480
        %v7429 = vunpack.c.h.b16 %v6480
        %v7430 = vunpack.c.l.b16 %v6481
        %v7431 = vunpack.c.l.b16 %v6482
        %v7432 = vunpack.c.h.b16 %v6482
        %v7433 = vunpack.c.l.b16 %v6483
        %v7434 = vunpack.c.l.b16 %v6484
        %v7435 = vunpack.c.h.b16 %v6484
        %v7436 = vunpack.c.l.b16 %v6485
        %v7437 = vunpack.c.l.b16 %v6486
        %v7438 = vunpack.c.h.b16 %v6486
        %v7439 = vunpack.c.l.b16 %v6487
        %v7440 = vunpack.c.l.b16 %v6488
        %v7441 = vunpack.c.h.b16 %v6488
        %v7442 = vunpack.c.l.b16 %v6489
        %v7443 = vunpack.c.l.b16 %v6490
        %v7444 = vunpack.c.h.b16 %v6490
        %v7445 = vunpack.c.l.b16 %v6491
        %v7446 = vunpack.c.l.b16 %v6492
        %v7447 = vunpack.c.h.b16 %v6492
        %v7448 = vunpack.c.l.b16 %v6493
        %v7449 = vunpack.c.l.b16 %v6494
        %v7450 = vunpack.c.h.b16 %v6494
        %v7451 = vunpack.c.l.b16 %v6495
        %v7452 = vunpack.c.l.b16 %v6496
        %v7453 = vunpack.c.h.b16 %v6496
        %v7454 = vunpack.c.l.b16 %v6497
        %v7455 = vunpack.c.l.b16 %v6498
        %v7456 = vunpack.c.h.b16 %v6498
        %v7457 = vunpack.c.l.b16 %v6499
        %v7458 = vunpack.c.l.b16 %v6500
        %v7459 = vunpack.c.h.b16 %v6500
        %v7460 = vunpack.c.l.b16 %v6501
        %v7461 = vunpack.c.l.b16 %v6502
        %v7462 = vunpack.c.h.b16 %v6502
        %v7463 = vunpack.c.l.b16 %v6503
        %v7464 = vunpack.c.l.b16 %v6504
        %v7465 = vunpack.c.h.b16 %v6504
        %v7466 = vunpack.c.l.b16 %v6505
        %v7467 = vunpack.c.l.b16 %v6506
        %v7468 = vunpack.c.h.b16 %v6506
        %v7469 = vunpack.c.l.b16 %v6507
        %v7470 = vunpack.c.l.b16 %v6508
        %v7471 = vunpack.c.h.b16 %v6508
        %v7472 = vunpack.c.l.b16 %v6509
        %v7473 = vunpack.c.l.b16 %v6510
        %v7474 = vunpack.c.h.b16 %v6510
        %v7475 = vunpack.c.l.b16 %v6511
        %v7476 = vunpack.c.l.b16 %v6512
        %v7477 = vunpack.c.h.b16 %v6512
        %v7478 = vunpack.c.l.b16 %v6513
        %v7479 = vunpack.c.l.b16 %v6514
        %v7480 = vunpack.c.h.b16 %v6514
        %v7481 = vunpack.c.l.b16 %v6515
        %v7482 = vunpack.c.l.b16 %v6516
        %v7483 = vunpack.c.h.b16 %v6516
        %v7484 = vunpack.c.l.b16 %v6517
        %v7485 = vunpack.c.l.b16 %v6518
        %v7486 = vunpack.c.h.b16 %v6518
        %v7487 = vunpack.c.l.b16 %v6519
        %v7488 = vunpack.c.l.b16 %v6520
        %v7489 = vunpack.c.h.b16 %v6520
        %v7490 = vunpack.c.l.b16 %v6521
        %v7491 = vunpack.c.l.b16 %v6522
        %v7492 = vunpack.c.h.b16 %v6522
        %v7493 = vunpack.c.l.b16 %v6523
        %v7494 = vunpack.c.l.b16 %v6524
        %v7495 = vunpack.c.h.b16 %v6524
        %v7496 = vunpack.c.l.b16 %v6525
        %v7497 = vunpack.c.l.b16 %v6526
        %v7498 = vunpack.c.h.b16 %v6526
        %v7499 = vunpack.c.l.b16 %v6527
        %v7500 = vunpack.c.l.b16 %v6528
        %v7501 = vunpack.c.h.b16 %v6528
        %v7502 = vunpack.c.l.b16 %v6529
        %v7503 = vunpack.c.l.b16 %v6530
        %v7504 = vunpack.c.h.b16 %v6530
        %v7505 = vunpack.c.l.b16 %v6531
        %v7506 = vunpack.c.l.b16 %v6532
        %v7507 = vunpack.c.h.b16 %v6532
        %v7508 = vunpack.c.l.b16 %v6533
        %v7509 = vunpack.c.l.b16 %v6534
        %v7510 = vunpack.c.h.b16 %v6534
        %v7511 = vunpack.c.l.b16 %v6535
        %v7512 = vunpack.c.l.b16 %v6536
        %v7513 = vunpack.c.h.b16 %v6536
        %v7514 = vunpack.c.l.b16 %v6537
        %v7515 = vpack.c.b16 %v6942, %v6939
        %v7516 = vpack.c.b16 %v6943, %v6940
        %v7517 = vpack.c.b16 %v6944, %v6941
        %v7518 = vpack.c.b16 %v6948, %v6945
        %v7519 = vpack.c.b16 %v6949, %v6946
        %v7520 = vpack.c.b16 %v6950, %v6947
        %v7521 = vpack.c.b16 %v6954, %v6951
        %v7522 = vpack.c.b16 %v6955, %v6952
        %v7523 = vpack.c.b16 %v6956, %v6953
        %v7524 = vpack.c.b16 %v6960, %v6957
        %v7525 = vpack.c.b16 %v6961, %v6958
        %v7526 = vpack.c.b16 %v6962, %v6959
        %v7527 = vpack.c.b16 %v6966, %v6963
        %v7528 = vpack.c.b16 %v6967, %v6964
        %v7529 = vpack.c.b16 %v6968, %v6965
        %v7530 = vpack.c.b16 %v6972, %v6969
        %v7531 = vpack.c.b16 %v6973, %v6970
        %v7532 = vpack.c.b16 %v6974, %v6971
        %v7533 = vpack.c.b16 %v6978, %v6975
        %v7534 = vpack.c.b16 %v6979, %v6976
        %v7535 = vpack.c.b16 %v6980, %v6977
        %v7536 = vpack.c.b16 %v6984, %v6981
        %v7537 = vpack.c.b16 %v6985, %v6982
        %v7538 = vpack.c.b16 %v6986, %v6983
        %v7539 = vpack.c.b16 %v6990, %v6987
        %v7540 = vpack.c.b16 %v6991, %v6988
        %v7541 = vpack.c.b16 %v6992, %v6989
        %v7542 = vpack.c.b16 %v6996, %v6993
        %v7543 = vpack.c.b16 %v6997, %v6994
        %v7544 = vpack.c.b16 %v6998, %v6995
        %v7545 = vpack.c.b16 %v7002, %v6999
        %v7546 = vpack.c.b16 %v7003, %v7000
        %v7547 = vpack.c.b16 %v7004, %v7001
        %v7548 = vpack.c.b16 %v7008, %v7005
        %v7549 = vpack.c.b16 %v7009, %v7006
        %v7550 = vpack.c.b16 %v7010, %v7007
        %v7551 = vpack.c.b16 %v7014, %v7011
        %v7552 = vpack.c.b16 %v7015, %v7012
        %v7553 = vpack.c.b16 %v7016, %v7013
        %v7554 = vpack.c.b16 %v7020, %v7017
        %v7555 = vpack.c.b16 %v7021, %v7018
        %v7556 = vpack.c.b16 %v7022, %v7019
        %v7557 = vpack.c.b16 %v7026, %v7023
        %v7558 = vpack.c.b16 %v7027, %v7024
        %v7559 = vpack.c.b16 %v7028, %v7025
        %v7560 = vpack.c.b16 %v7032, %v7029
        %v7561 = vpack.c.b16 %v7033, %v7030
        %v7562 = vpack.c.b16 %v7034, %v7031
        %v7563 = vpack.c.b16 %v7038, %v7035
        %v7564 = vpack.c.b16 %v7039, %v7036
        %v7565 = vpack.c.b16 %v7040, %v7037
        %v7566 = vpack.c.b16 %v7044, %v7041
        %v7567 = vpack.c.b16 %v7045, %v7042
        %v7568 = vpack.c.b16 %v7046, %v7043
        %v7569 = vpack.c.b16 %v7050, %v7047
        %v7570 = vpack.c.b16 %v7051, %v7048
        %v7571 = vpack.c.b16 %v7052, %v7049
        %v7572 = vpack.c.b16 %v7056, %v7053
        %v7573 = vpack.c.b16 %v7057, %v7054
        %v7574 = vpack.c.b16 %v7058, %v7055
        %v7575 = vpack.c.b16 %v7062, %v7059
        %v7576 = vpack.c.b16 %v7063, %v7060
        %v7577 = vpack.c.b16 %v7064, %v7061
        %v7578 = vpack.c.b16 %v7068, %v7065
        %v7579 = vpack.c.b16 %v7069, %v7066
        %v7580 = vpack.c.b16 %v7070, %v7067
        %v7581 = vpack.c.b16 %v7074, %v7071
        %v7582 = vpack.c.b16 %v7075, %v7072
        %v7583 = vpack.c.b16 %v7076, %v7073
        %v7584 = vpack.c.b16 %v7080, %v7077
        %v7585 = vpack.c.b16 %v7081, %v7078
        %v7586 = vpack.c.b16 %v7082, %v7079
        %v7587 = vpack.c.b16 %v7086, %v7083
        %v7588 = vpack.c.b16 %v7087, %v7084
        %v7589 = vpack.c.b16 %v7088, %v7085
        %v7590 = vpack.c.b16 %v7092, %v7089
        %v7591 = vpack.c.b16 %v7093, %v7090
        %v7592 = vpack.c.b16 %v7094, %v7091
        %v7593 = vpack.c.b16 %v7098, %v7095
        %v7594 = vpack.c.b16 %v7099, %v7096
        %v7595 = vpack.c.b16 %v7100, %v7097
        %v7596 = vpack.c.b16 %v7104, %v7101
        %v7597 = vpack.c.b16 %v7105, %v7102
        %v7598 = vpack.c.b16 %v7106, %v7103
        %v7599 = vpack.c.b16 %v7110, %v7107
        %v7600 = vpack.c.b16 %v7111, %v7108
        %v7601 = vpack.c.b16 %v7112, %v7109
        %v7602 = vpack.c.b16 %v7116, %v7113
        %v7603 = vpack.c.b16 %v7117, %v7114
        %v7604 = vpack.c.b16 %v7118, %v7115
        %v7605 = vpack.c.b16 %v7122, %v7119
        %v7606 = vpack.c.b16 %v7123, %v7120
        %v7607 = vpack.c.b16 %v7124, %v7121
        %v7608 = vpack.c.b16 %v7128, %v7125
        %v7609 = vpack.c.b16 %v7129, %v7126
        %v7610 = vpack.c.b16 %v7130, %v7127
        %v7611 = vpack.c.b16 %v7134, %v7131
        %v7612 = vpack.c.b16 %v7135, %v7132
        %v7613 = vpack.c.b16 %v7136, %v7133
        %v7614 = vpack.c.b16 %v7140, %v7137
        %v7615 = vpack.c.b16 %v7141, %v7138
        %v7616 = vpack.c.b16 %v7142, %v7139
        %v7617 = vpack.c.b16 %v7146, %v7143
        %v7618 = vpack.c.b16 %v7147, %v7144
        %v7619 = vpack.c.b16 %v7148, %v7145
        %v7620 = vpack.c.b16 %v7152, %v7149
        %v7621 = vpack.c.b16 %v7153, %v7150
        %v7622 = vpack.c.b16 %v7154, %v7151
        %v7623 = vpack.c.b16 %v7158, %v7155
        %v7624 = vpack.c.b16 %v7159, %v7156
        %v7625 = vpack.c.b16 %v7160, %v7157
        %v7626 = vpack.c.b16 %v7164, %v7161
        %v7627 = vpack.c.b16 %v7165, %v7162
        %v7628 = vpack.c.b16 %v7166, %v7163
        %v7629 = vpack.c.b16 %v7170, %v7167
        %v7630 = vpack.c.b16 %v7171, %v7168
        %v7631 = vpack.c.b16 %v7172, %v7169
        %v7632 = vpack.c.b16 %v7176, %v7173
        %v7633 = vpack.c.b16 %v7177, %v7174
        %v7634 = vpack.c.b16 %v7178, %v7175
        %v7635 = vpack.c.b16 %v7182, %v7179
        %v7636 = vpack.c.b16 %v7183, %v7180
        %v7637 = vpack.c.b16 %v7184, %v7181
        %v7638 = vpack.c.b16 %v7188, %v7185
        %v7639 = vpack.c.b16 %v7189, %v7186
        %v7640 = vpack.c.b16 %v7190, %v7187
        %v7641 = vpack.c.b16 %v7194, %v7191
        %v7642 = vpack.c.b16 %v7195, %v7192
        %v7643 = vpack.c.b16 %v7196, %v7193
        %v7644 = vpack.c.b16 %v7200, %v7197
        %v7645 = vpack.c.b16 %v7201, %v7198
        %v7646 = vpack.c.b16 %v7202, %v7199
        %v7647 = vpack.c.b16 %v7206, %v7203
        %v7648 = vpack.c.b16 %v7207, %v7204
        %v7649 = vpack.c.b16 %v7208, %v7205
        %v7650 = vpack.c.b16 %v7212, %v7209
        %v7651 = vpack.c.b16 %v7213, %v7210
        %v7652 = vpack.c.b16 %v7214, %v7211
        %v7653 = vpack.c.b16 %v7218, %v7215
        %v7654 = vpack.c.b16 %v7219, %v7216
        %v7655 = vpack.c.b16 %v7220, %v7217
        %v7656 = vpack.c.b16 %v7224, %v7221
        %v7657 = vpack.c.b16 %v7225, %v7222
        %v7658 = vpack.c.b16 %v7226, %v7223
        %v7659 = vpack.c.b16 %v7230, %v7227
        %v7660 = vpack.c.b16 %v7231, %v7228
        %v7661 = vpack.c.b16 %v7232, %v7229
        %v7662 = vpack.c.b16 %v7236, %v7233
        %v7663 = vpack.c.b16 %v7237, %v7234
        %v7664 = vpack.c.b16 %v7238, %v7235
        %v7665 = vpack.c.b16 %v7242, %v7239
        %v7666 = vpack.c.b16 %v7243, %v7240
        %v7667 = vpack.c.b16 %v7244, %v7241
        %v7668 = vpack.c.b16 %v7248, %v7245
        %v7669 = vpack.c.b16 %v7249, %v7246
        %v7670 = vpack.c.b16 %v7250, %v7247
        %v7671 = vpack.c.b16 %v7254, %v7251
        %v7672 = vpack.c.b16 %v7255, %v7252
        %v7673 = vpack.c.b16 %v7256, %v7253
        %v7674 = vpack.c.b16 %v7260, %v7257
        %v7675 = vpack.c.b16 %v7261, %v7258
        %v7676 = vpack.c.b16 %v7262, %v7259
        %v7677 = vpack.c.b16 %v7266, %v7263
        %v7678 = vpack.c.b16 %v7267, %v7264
        %v7679 = vpack.c.b16 %v7268, %v7265
        %v7680 = vpack.c.b16 %v7272, %v7269
        %v7681 = vpack.c.b16 %v7273, %v7270
        %v7682 = vpack.c.b16 %v7274, %v7271
        %v7683 = vpack.c.b16 %v7278, %v7275
        %v7684 = vpack.c.b16 %v7279, %v7276
        %v7685 = vpack.c.b16 %v7280, %v7277
        %v7686 = vpack.c.b16 %v7284, %v7281
        %v7687 = vpack.c.b16 %v7285, %v7282
        %v7688 = vpack.c.b16 %v7286, %v7283
        %v7689 = vpack.c.b16 %v7290, %v7287
        %v7690 = vpack.c.b16 %v7291, %v7288
        %v7691 = vpack.c.b16 %v7292, %v7289
        %v7692 = vpack.c.b16 %v7296, %v7293
        %v7693 = vpack.c.b16 %v7297, %v7294
        %v7694 = vpack.c.b16 %v7298, %v7295
        %v7695 = vpack.c.b16 %v7302, %v7299
        %v7696 = vpack.c.b16 %v7303, %v7300
        %v7697 = vpack.c.b16 %v7304, %v7301
        %v7698 = vpack.c.b16 %v7308, %v7305
        %v7699 = vpack.c.b16 %v7309, %v7306
        %v7700 = vpack.c.b16 %v7310, %v7307
        %v7701 = vpack.c.b16 %v7314, %v7311
        %v7702 = vpack.c.b16 %v7315, %v7312
        %v7703 = vpack.c.b16 %v7316, %v7313
        %v7704 = vpack.c.b16 %v7320, %v7317
        %v7705 = vpack.c.b16 %v7321, %v7318
        %v7706 = vpack.c.b16 %v7322, %v7319
        %v7707 = vpack.c.b16 %v7326, %v7323
        %v7708 = vpack.c.b16 %v7327, %v7324
        %v7709 = vpack.c.b16 %v7328, %v7325
        %v7710 = vpack.c.b16 %v7332, %v7329
        %v7711 = vpack.c.b16 %v7333, %v7330
        %v7712 = vpack.c.b16 %v7334, %v7331
        %v7713 = vpack.c.b16 %v7338, %v7335
        %v7714 = vpack.c.b16 %v7339, %v7336
        %v7715 = vpack.c.b16 %v7340, %v7337
        %v7716 = vpack.c.b16 %v7344, %v7341
        %v7717 = vpack.c.b16 %v7345, %v7342
        %v7718 = vpack.c.b16 %v7346, %v7343
        %v7719 = vpack.c.b16 %v7350, %v7347
        %v7720 = vpack.c.b16 %v7351, %v7348
        %v7721 = vpack.c.b16 %v7352, %v7349
        %v7722 = vpack.c.b16 %v7356, %v7353
        %v7723 = vpack.c.b16 %v7357, %v7354
        %v7724 = vpack.c.b16 %v7358, %v7355
        %v7725 = vpack.c.b16 %v7362, %v7359
        %v7726 = vpack.c.b16 %v7363, %v7360
        %v7727 = vpack.c.b16 %v7364, %v7361
        %v7728 = vpack.c.b16 %v7368, %v7365
        %v7729 = vpack.c.b16 %v7369, %v7366
        %v7730 = vpack.c.b16 %v7370, %v7367
        %v7731 = vpack.c.b16 %v7374, %v7371
        %v7732 = vpack.c.b16 %v7375, %v7372
        %v7733 = vpack.c.b16 %v7376, %v7373
        %v7734 = vpack.c.b16 %v7380, %v7377
        %v7735 = vpack.c.b16 %v7381, %v7378
        %v7736 = vpack.c.b16 %v7382, %v7379
        %v7737 = vpack.c.b16 %v7386, %v7383
        %v7738 = vpack.c.b16 %v7387, %v7384
        %v7739 = vpack.c.b16 %v7388, %v7385
        %v7740 = vpack.c.b16 %v7392, %v7389
        %v7741 = vpack.c.b16 %v7393, %v7390
        %v7742 = vpack.c.b16 %v7394, %v7391
        %v7743 = vpack.c.b16 %v7398, %v7395
        %v7744 = vpack.c.b16 %v7399, %v7396
        %v7745 = vpack.c.b16 %v7400, %v7397
        %v7746 = vpack.c.b16 %v7404, %v7401
        %v7747 = vpack.c.b16 %v7405, %v7402
        %v7748 = vpack.c.b16 %v7406, %v7403
        %v7749 = vpack.c.b16 %v7410, %v7407
        %v7750 = vpack.c.b16 %v7411, %v7408
        %v7751 = vpack.c.b16 %v7412, %v7409
        %v7752 = vpack.c.b16 %v7416, %v7413
        %v7753 = vpack.c.b16 %v7417, %v7414
        %v7754 = vpack.c.b16 %v7418, %v7415
        %v7755 = vpack.c.b16 %v7422, %v7419
        %v7756 = vpack.c.b16 %v7423, %v7420
        %v7757 = vpack.c.b16 %v7424, %v7421
        %v7758 = vpack.c.b16 %v7428, %v7425
        %v7759 = vpack.c.b16 %v7429, %v7426
        %v7760 = vpack.c.b16 %v7430, %v7427
        %v7761 = vpack.c.b16 %v7434, %v7431
        %v7762 = vpack.c.b16 %v7435, %v7432
        %v7763 = vpack.c.b16 %v7436, %v7433
        %v7764 = vpack.c.b16 %v7440, %v7437
        %v7765 = vpack.c.b16 %v7441, %v7438
        %v7766 = vpack.c.b16 %v7442, %v7439
        %v7767 = vpack.c.b16 %v7446, %v7443
        %v7768 = vpack.c.b16 %v7447, %v7444
        %v7769 = vpack.c.b16 %v7448, %v7445
        %v7770 = vpack.c.b16 %v7452, %v7449
        %v7771 = vpack.c.b16 %v7453, %v7450
        %v7772 = vpack.c.b16 %v7454, %v7451
        %v7773 = vpack.c.b16 %v7458, %v7455
        %v7774 = vpack.c.b16 %v7459, %v7456
        %v7775 = vpack.c.b16 %v7460, %v7457
        %v7776 = vpack.c.b16 %v7464, %v7461
        %v7777 = vpack.c.b16 %v7465, %v7462
        %v7778 = vpack.c.b16 %v7466, %v7463
        %v7779 = vpack.c.b16 %v7470, %v7467
        %v7780 = vpack.c.b16 %v7471, %v7468
        %v7781 = vpack.c.b16 %v7472, %v7469
        %v7782 = vpack.c.b16 %v7476, %v7473
        %v7783 = vpack.c.b16 %v7477, %v7474
        %v7784 = vpack.c.b16 %v7478, %v7475
        %v7785 = vpack.c.b16 %v7482, %v7479
        %v7786 = vpack.c.b16 %v7483, %v7480
        %v7787 = vpack.c.b16 %v7484, %v7481
        %v7788 = vpack.c.b16 %v7488, %v7485
        %v7789 = vpack.c.b16 %v7489, %v7486
        %v7790 = vpack.c.b16 %v7490, %v7487
        %v7791 = vpack.c.b16 %v7494, %v7491
        %v7792 = vpack.c.b16 %v7495, %v7492
        %v7793 = vpack.c.b16 %v7496, %v7493
        %v7794 = vpack.c.b16 %v7500, %v7497
        %v7795 = vpack.c.b16 %v7501, %v7498
        %v7796 = vpack.c.b16 %v7502, %v7499
        %v7797 = vpack.c.b16 %v7506, %v7503
        %v7798 = vpack.c.b16 %v7507, %v7504
        %v7799 = vpack.c.b16 %v7508, %v7505
        %v7800 = vpack.c.b16 %v7512, %v7509
        %v7801 = vpack.c.b16 %v7513, %v7510
        %v7802 = vpack.c.b16 %v7514, %v7511
        %8091 = vmatprep.subr.bf16.mxu0 %v7516
        %8092 = vmatpush1.bf16.msra.mxu0 %v7515
        %8093 = vmatprep.subr.bf16.mxu0 %v7519
        %8094 = vmatpush1.bf16.msra.mxu0 %v7518
        %8095 = vmatprep.subr.bf16.mxu0 %v7522
        %8096 = vmatpush1.bf16.msra.mxu0 %v7521
        %8097 = vmatprep.subr.bf16.mxu0 %v7525
        %8098 = vmatpush1.bf16.msra.mxu0 %v7524
        %8099 = vmatprep.subr.bf16.mxu0 %v7528
        %8100 = vmatpush1.bf16.msra.mxu0 %v7527
        %8101 = vmatprep.subr.bf16.mxu0 %v7531
        %8102 = vmatpush1.bf16.msra.mxu0 %v7530
        %8103 = vmatprep.subr.bf16.mxu0 %v7534
        %8104 = vmatpush1.bf16.msra.mxu0 %v7533
        %8105 = vmatprep.subr.bf16.mxu0 %v7537
        %8106 = vmatpush1.bf16.msra.mxu0 %v7536
        %8107 = vmatprep.subr.bf16.mxu0 %v7540
        %8108 = vmatpush1.bf16.msra.mxu0 %v7539
        %8109 = vmatprep.subr.bf16.mxu0 %v7543
        %8110 = vmatpush1.bf16.msra.mxu0 %v7542
        %8111 = vmatprep.subr.bf16.mxu0 %v7546
        %8112 = vmatpush1.bf16.msra.mxu0 %v7545
        %8113 = vmatprep.subr.bf16.mxu0 %v7549
        %8114 = vmatpush1.bf16.msra.mxu0 %v7548
        %8115 = vmatprep.subr.bf16.mxu0 %v7552
        %8116 = vmatpush1.bf16.msra.mxu0 %v7551
        %8117 = vmatprep.subr.bf16.mxu0 %v7555
        %8118 = vmatpush1.bf16.msra.mxu0 %v7554
        %8119 = vmatprep.subr.bf16.mxu0 %v7558
        %8120 = vmatpush1.bf16.msra.mxu0 %v7557
        %8121 = vmatprep.subr.bf16.mxu0 %v7561
        %8122 = vmatpush1.bf16.msra.mxu0 %v7560
        %8123 = vmatprep.mubr.bf16.mxu0 %v6143
        %8124 = vmatmul.mubr.bf16.gmra.mrb[0].mxu0 %v6142
        %v8125 = vpop.f32.mrb[0].mxu0
        %v8126 = vadd.f32 %v6543, %v8125
        %v8127 = vpop.f32.mrb[0].mxu0
        %v8128 = vadd.f32 %v6547, %v8127
        %v8129 = vpop.f32.mrb[0].mxu0
        %v8130 = vpop.f32.mrb[0].mxu0
        %8131 = vdwg.mxu0
        %8132 = vmatprep.subr.bf16.mxu0 %v7564
        %8133 = vmatpush1.bf16.msra.mxu0 %v7563
        %8134 = vmatprep.subr.bf16.mxu0 %v7567
        %8135 = vmatpush1.bf16.msra.mxu0 %v7566
        %8136 = vmatprep.subr.bf16.mxu0 %v7570
        %8137 = vmatpush1.bf16.msra.mxu0 %v7569
        %8138 = vmatprep.subr.bf16.mxu0 %v7573
        %8139 = vmatpush1.bf16.msra.mxu0 %v7572
        %8140 = vmatprep.subr.bf16.mxu0 %v7576
        %8141 = vmatpush1.bf16.msra.mxu0 %v7575
        %8142 = vmatprep.subr.bf16.mxu0 %v7579
        %8143 = vmatpush1.bf16.msra.mxu0 %v7578
        %8144 = vmatprep.subr.bf16.mxu0 %v7582
        %8145 = vmatpush1.bf16.msra.mxu0 %v7581
        %8146 = vmatprep.subr.bf16.mxu0 %v7585
        %8147 = vmatpush1.bf16.msra.mxu0 %v7584
        %8148 = vmatprep.subr.bf16.mxu0 %v7588
        %8149 = vmatpush1.bf16.msra.mxu0 %v7587
        %8150 = vmatprep.subr.bf16.mxu0 %v7591
        %8151 = vmatpush1.bf16.msra.mxu0 %v7590
        %8152 = vmatprep.subr.bf16.mxu0 %v7594
        %8153 = vmatpush1.bf16.msra.mxu0 %v7593
        %8154 = vmatprep.subr.bf16.mxu0 %v7597
        %8155 = vmatpush1.bf16.msra.mxu0 %v7596
        %8156 = vmatprep.subr.bf16.mxu0 %v7600
        %8157 = vmatpush1.bf16.msra.mxu0 %v7599
        %8158 = vmatprep.subr.bf16.mxu0 %v7603
        %8159 = vmatpush1.bf16.msra.mxu0 %v7602
        %8160 = vmatprep.subr.bf16.mxu0 %v7606
        %8161 = vmatpush1.bf16.msra.mxu0 %v7605
        %8162 = vmatprep.subr.bf16.mxu0 %v7609
        %8163 = vmatpush1.bf16.msra.mxu0 %v7608
        %8164 = vmatprep.mubr.bf16.mxu0 %v6145
        %8165 = vmatmul.mubr.bf16.gmra.mrb[0].mxu0 %v6144
        %v8166 = vpop.f32.mrb[0].mxu0
        %v8167 = vadd.f32 %v8126, %v8166
        %v8168 = vpop.f32.mrb[0].mxu0
        %v8169 = vadd.f32 %v8128, %v8168
        %v8170 = vpop.f32.mrb[0].mxu0
        %v8171 = vpop.f32.mrb[0].mxu0
        %8172 = vdwg.mxu0
        %8173 = vmatprep.subr.bf16.mxu0 %v7612
        %8174 = vmatpush1.bf16.msra.mxu0 %v7611
        %8175 = vmatprep.subr.bf16.mxu0 %v7615
        %8176 = vmatpush1.bf16.msra.mxu0 %v7614
        %8177 = vmatprep.subr.bf16.mxu0 %v7618
        %8178 = vmatpush1.bf16.msra.mxu0 %v7617
        %8179 = vmatprep.subr.bf16.mxu0 %v7621
        %8180 = vmatpush1.bf16.msra.mxu0 %v7620
        %8181 = vmatprep.subr.bf16.mxu0 %v7624
        %8182 = vmatpush1.bf16.msra.mxu0 %v7623
        %8183 = vmatprep.subr.bf16.mxu0 %v7627
        %8184 = vmatpush1.bf16.msra.mxu0 %v7626
        %8185 = vmatprep.subr.bf16.mxu0 %v7630
        %8186 = vmatpush1.bf16.msra.mxu0 %v7629
        %8187 = vmatprep.subr.bf16.mxu0 %v7633
        %8188 = vmatpush1.bf16.msra.mxu0 %v7632
        %8189 = vmatprep.subr.bf16.mxu0 %v7636
        %8190 = vmatpush1.bf16.msra.mxu0 %v7635
        %8191 = vmatprep.subr.bf16.mxu0 %v7639
        %8192 = vmatpush1.bf16.msra.mxu0 %v7638
        %8193 = vmatprep.subr.bf16.mxu0 %v7642
        %8194 = vmatpush1.bf16.msra.mxu0 %v7641
        %8195 = vmatprep.subr.bf16.mxu0 %v7645
        %8196 = vmatpush1.bf16.msra.mxu0 %v7644
        %8197 = vmatprep.subr.bf16.mxu0 %v7648
        %8198 = vmatpush1.bf16.msra.mxu0 %v7647
        %8199 = vmatprep.subr.bf16.mxu0 %v7651
        %8200 = vmatpush1.bf16.msra.mxu0 %v7650
        %8201 = vmatprep.subr.bf16.mxu0 %v7654
        %8202 = vmatpush1.bf16.msra.mxu0 %v7653
        %8203 = vmatprep.subr.bf16.mxu0 %v7657
        %8204 = vmatpush1.bf16.msra.mxu0 %v7656
        %8205 = vmatprep.mubr.bf16.mxu0 %v6147
        %8206 = vmatmul.mubr.bf16.gmra.mrb[0].mxu0 %v6146
        %v8207 = vpop.f32.mrb[0].mxu0
        %v8208 = vadd.f32 %v8167, %v8207
        %v8209 = vpop.f32.mrb[0].mxu0
        %v8210 = vadd.f32 %v8169, %v8209
        %v8211 = vpop.f32.mrb[0].mxu0
        %v8212 = vpop.f32.mrb[0].mxu0
        %8213 = vdwg.mxu0
        %8214 = vmatprep.subr.bf16.mxu0 %v7660
        %8215 = vmatpush1.bf16.msra.mxu0 %v7659
        %8216 = vmatprep.subr.bf16.mxu0 %v7663
        %8217 = vmatpush1.bf16.msra.mxu0 %v7662
        %8218 = vmatprep.subr.bf16.mxu0 %v7666
        %8219 = vmatpush1.bf16.msra.mxu0 %v7665
        %8220 = vmatprep.subr.bf16.mxu0 %v7669
        %8221 = vmatpush1.bf16.msra.mxu0 %v7668
        %8222 = vmatprep.subr.bf16.mxu0 %v7672
        %8223 = vmatpush1.bf16.msra.mxu0 %v7671
        %8224 = vmatprep.subr.bf16.mxu0 %v7675
        %8225 = vmatpush1.bf16.msra.mxu0 %v7674
        %8226 = vmatprep.subr.bf16.mxu0 %v7678
        %8227 = vmatpush1.bf16.msra.mxu0 %v7677
        %8228 = vmatprep.subr.bf16.mxu0 %v7681
        %8229 = vmatpush1.bf16.msra.mxu0 %v7680
        %8230 = vmatprep.subr.bf16.mxu0 %v7684
        %8231 = vmatpush1.bf16.msra.mxu0 %v7683
        %8232 = vmatprep.subr.bf16.mxu0 %v7687
        %8233 = vmatpush1.bf16.msra.mxu0 %v7686
        %8234 = vmatprep.subr.bf16.mxu0 %v7690
        %8235 = vmatpush1.bf16.msra.mxu0 %v7689
        %8236 = vmatprep.subr.bf16.mxu0 %v7693
        %8237 = vmatpush1.bf16.msra.mxu0 %v7692
        %8238 = vmatprep.subr.bf16.mxu0 %v7696
        %8239 = vmatpush1.bf16.msra.mxu0 %v7695
        %8240 = vmatprep.subr.bf16.mxu0 %v7699
        %8241 = vmatpush1.bf16.msra.mxu0 %v7698
        %8242 = vmatprep.subr.bf16.mxu0 %v7702
        %8243 = vmatpush1.bf16.msra.mxu0 %v7701
        %8244 = vmatprep.subr.bf16.mxu0 %v7705
        %8245 = vmatpush1.bf16.msra.mxu0 %v7704
        %8246 = vmatprep.mubr.bf16.mxu0 %v6149
        %8247 = vmatmul.mubr.bf16.gmra.mrb[0].mxu0 %v6148
        %v8248 = vpop.f32.mrb[0].mxu0
        %v8249 = vadd.f32 %v8208, %v8248
        %v8250 = vpop.f32.mrb[0].mxu0
        %v8251 = vadd.f32 %v8210, %v8250
        %v8252 = vpop.f32.mrb[0].mxu0
        %v8253 = vpop.f32.mrb[0].mxu0
        %8254 = vdwg.mxu0
        %8255 = vmatprep.subr.bf16.mxu0 %v7708
        %8256 = vmatpush1.bf16.msra.mxu0 %v7707
        %8257 = vmatprep.subr.bf16.mxu0 %v7711
        %8258 = vmatpush1.bf16.msra.mxu0 %v7710
        %8259 = vmatprep.subr.bf16.mxu0 %v7714
        %8260 = vmatpush1.bf16.msra.mxu0 %v7713
        %8261 = vmatprep.subr.bf16.mxu0 %v7717
        %8262 = vmatpush1.bf16.msra.mxu0 %v7716
        %8263 = vmatprep.subr.bf16.mxu0 %v7720
        %8264 = vmatpush1.bf16.msra.mxu0 %v7719
        %8265 = vmatprep.subr.bf16.mxu0 %v7723
        %8266 = vmatpush1.bf16.msra.mxu0 %v7722
        %8267 = vmatprep.subr.bf16.mxu0 %v7726
        %8268 = vmatpush1.bf16.msra.mxu0 %v7725
        %8269 = vmatprep.subr.bf16.mxu0 %v7729
        %8270 = vmatpush1.bf16.msra.mxu0 %v7728
        %8271 = vmatprep.subr.bf16.mxu0 %v7732
        %8272 = vmatpush1.bf16.msra.mxu0 %v7731
        %8273 = vmatprep.subr.bf16.mxu0 %v7735
        %8274 = vmatpush1.bf16.msra.mxu0 %v7734
        %8275 = vmatprep.subr.bf16.mxu0 %v7738
        %8276 = vmatpush1.bf16.msra.mxu0 %v7737
        %8277 = vmatprep.subr.bf16.mxu0 %v7741
        %8278 = vmatpush1.bf16.msra.mxu0 %v7740
        %8279 = vmatprep.subr.bf16.mxu0 %v7744
        %8280 = vmatpush1.bf16.msra.mxu0 %v7743
        %8281 = vmatprep.subr.bf16.mxu0 %v7747
        %8282 = vmatpush1.bf16.msra.mxu0 %v7746
        %8283 = vmatprep.subr.bf16.mxu0 %v7750
        %8284 = vmatpush1.bf16.msra.mxu0 %v7749
        %8285 = vmatprep.subr.bf16.mxu0 %v7753
        %8286 = vmatpush1.bf16.msra.mxu0 %v7752
        %8287 = vmatprep.mubr.bf16.mxu0 %v6151
        %8288 = vmatmul.mubr.bf16.gmra.mrb[0].mxu0 %v6150
        %v8289 = vpop.f32.mrb[0].mxu0
        %v8290 = vadd.f32 %v8249, %v8289
        %v8291 = vpop.f32.mrb[0].mxu0
        %v8292 = vadd.f32 %v8251, %v8291
        %v8293 = vpop.f32.mrb[0].mxu0
        %v8294 = vpop.f32.mrb[0].mxu0
        %8295 = vdwg.mxu0
        %8296 = vmatprep.subr.bf16.mxu0 %v7756
        %8297 = vmatpush1.bf16.msra.mxu0 %v7755
        %8298 = vmatprep.subr.bf16.mxu0 %v7759
        %8299 = vmatpush1.bf16.msra.mxu0 %v7758
        %8300 = vmatprep.subr.bf16.mxu0 %v7762
        %8301 = vmatpush1.bf16.msra.mxu0 %v7761
        %8302 = vmatprep.subr.bf16.mxu0 %v7765
        %8303 = vmatpush1.bf16.msra.mxu0 %v7764
        %8304 = vmatprep.subr.bf16.mxu0 %v7768
        %8305 = vmatpush1.bf16.msra.mxu0 %v7767
        %8306 = vmatprep.subr.bf16.mxu0 %v7771
        %8307 = vmatpush1.bf16.msra.mxu0 %v7770
        %8308 = vmatprep.subr.bf16.mxu0 %v7774
        %8309 = vmatpush1.bf16.msra.mxu0 %v7773
        %8310 = vmatprep.subr.bf16.mxu0 %v7777
        %8311 = vmatpush1.bf16.msra.mxu0 %v7776
        %8312 = vmatprep.subr.bf16.mxu0 %v7780
        %8313 = vmatpush1.bf16.msra.mxu0 %v7779
        %8314 = vmatprep.subr.bf16.mxu0 %v7783
        %8315 = vmatpush1.bf16.msra.mxu0 %v7782
        %8316 = vmatprep.subr.bf16.mxu0 %v7786
        %8317 = vmatpush1.bf16.msra.mxu0 %v7785
        %8318 = vmatprep.subr.bf16.mxu0 %v7789
        %8319 = vmatpush1.bf16.msra.mxu0 %v7788
        %8320 = vmatprep.subr.bf16.mxu0 %v7792
        %8321 = vmatpush1.bf16.msra.mxu0 %v7791
        %8322 = vmatprep.subr.bf16.mxu0 %v7795
        %8323 = vmatpush1.bf16.msra.mxu0 %v7794
        %8324 = vmatprep.subr.bf16.mxu0 %v7798
        %8325 = vmatpush1.bf16.msra.mxu0 %v7797
        %8326 = vmatprep.subr.bf16.mxu0 %v7801
        %8327 = vmatpush1.bf16.msra.mxu0 %v7800
        %8328 = vmatprep.mubr.bf16.mxu0 %v6153
        %8329 = vmatmul.mubr.bf16.gmra.mrb[0].mxu0 %v6152
        %v8330 = vpop.f32.mrb[0].mxu0
        %v8331 = vadd.f32 %v8290, %v8330
        %v8332 = vpop.f32.mrb[0].mxu0
        %v8333 = vadd.f32 %v8292, %v8332
        %v8334 = vpop.f32.mrb[0].mxu0
        %v8335 = vpop.f32.mrb[0].mxu0
        %8336 = vdwg.mxu0
        %8337 = vmatprep.subr.bf16.mxu0 0
        %8338 = vmatpush1.bf16.msra.mxu0 %v7517
        %8339 = vmatprep.subr.bf16.mxu0 0
        %8340 = vmatpush1.bf16.msra.mxu0 %v7520
        %8341 = vmatprep.subr.bf16.mxu0 0
        %8342 = vmatpush1.bf16.msra.mxu0 %v7523
        %8343 = vmatprep.subr.bf16.mxu0 0
        %8344 = vmatpush1.bf16.msra.mxu0 %v7526
        %8345 = vmatprep.subr.bf16.mxu0 0
        %8346 = vmatpush1.bf16.msra.mxu0 %v7529
        %8347 = vmatprep.subr.bf16.mxu0 0
        %8348 = vmatpush1.bf16.msra.mxu0 %v7532
        %8349 = vmatprep.subr.bf16.mxu0 0
        %8350 = vmatpush1.bf16.msra.mxu0 %v7535
        %8351 = vmatprep.subr.bf16.mxu0 0
        %8352 = vmatpush1.bf16.msra.mxu0 %v7538
        %8353 = vmatprep.subr.bf16.mxu0 0
        %8354 = vmatpush1.bf16.msra.mxu0 %v7541
        %8355 = vmatprep.subr.bf16.mxu0 0
        %8356 = vmatpush1.bf16.msra.mxu0 %v7544
        %8357 = vmatprep.subr.bf16.mxu0 0
        %8358 = vmatpush1.bf16.msra.mxu0 %v7547
        %8359 = vmatprep.subr.bf16.mxu0 0
        %8360 = vmatpush1.bf16.msra.mxu0 %v7550
        %8361 = vmatprep.subr.bf16.mxu0 0
        %8362 = vmatpush1.bf16.msra.mxu0 %v7553
        %8363 = vmatprep.subr.bf16.mxu0 0
        %8364 = vmatpush1.bf16.msra.mxu0 %v7556
        %8365 = vmatprep.subr.bf16.mxu0 0
        %8366 = vmatpush1.bf16.msra.mxu0 %v7559
        %8367 = vmatprep.subr.bf16.mxu0 0
        %8368 = vmatpush1.bf16.msra.mxu0 %v7562
        %8369 = vmatprep.mubr.bf16.mxu0 %v6143
        %8370 = vmatmul.mubr.bf16.gmra.mrb[0].mxu0 %v6142
        %v8371 = vpop.f32.mrb[0].mxu0
        %v8372 = vadd.f32 %v6551, %v8371
        %v8373 = vpop.f32.mrb[0].mxu0
        %v8374 = vpop.f32.mrb[0].mxu0
        %v8375 = vpop.f32.mrb[0].mxu0
        %8376 = vdwg.mxu0
        %8377 = vmatprep.subr.bf16.mxu0 0
        %8378 = vmatpush1.bf16.msra.mxu0 %v7565
        %8379 = vmatprep.subr.bf16.mxu0 0
        %8380 = vmatpush1.bf16.msra.mxu0 %v7568
        %8381 = vmatprep.subr.bf16.mxu0 0
        %8382 = vmatpush1.bf16.msra.mxu0 %v7571
        %8383 = vmatprep.subr.bf16.mxu0 0
        %8384 = vmatpush1.bf16.msra.mxu0 %v7574
        %8385 = vmatprep.subr.bf16.mxu0 0
        %8386 = vmatpush1.bf16.msra.mxu0 %v7577
        %8387 = vmatprep.subr.bf16.mxu0 0
        %8388 = vmatpush1.bf16.msra.mxu0 %v7580
        %8389 = vmatprep.subr.bf16.mxu0 0
        %8390 = vmatpush1.bf16.msra.mxu0 %v7583
        %8391 = vmatprep.subr.bf16.mxu0 0
        %8392 = vmatpush1.bf16.msra.mxu0 %v7586
        %8393 = vmatprep.subr.bf16.mxu0 0
        %8394 = vmatpush1.bf16.msra.mxu0 %v7589
        %8395 = vmatprep.subr.bf16.mxu0 0
        %8396 = vmatpush1.bf16.msra.mxu0 %v7592
        %8397 = vmatprep.subr.bf16.mxu0 0
        %8398 = vmatpush1.bf16.msra.mxu0 %v7595
        %8399 = vmatprep.subr.bf16.mxu0 0
        %8400 = vmatpush1.bf16.msra.mxu0 %v7598
        %8401 = vmatprep.subr.bf16.mxu0 0
        %8402 = vmatpush1.bf16.msra.mxu0 %v7601
        %8403 = vmatprep.subr.bf16.mxu0 0
        %8404 = vmatpush1.bf16.msra.mxu0 %v7604
        %8405 = vmatprep.subr.bf16.mxu0 0
        %8406 = vmatpush1.bf16.msra.mxu0 %v7607
        %8407 = vmatprep.subr.bf16.mxu0 0
        %8408 = vmatpush1.bf16.msra.mxu0 %v7610
        %8409 = vmatprep.mubr.bf16.mxu0 %v6145
        %8410 = vmatmul.mubr.bf16.gmra.mrb[0].mxu0 %v6144
        %v8411 = vpop.f32.mrb[0].mxu0
        %v8412 = vadd.f32 %v8372, %v8411
        %v8413 = vpop.f32.mrb[0].mxu0
        %v8414 = vpop.f32.mrb[0].mxu0
        %v8415 = vpop.f32.mrb[0].mxu0
        %8416 = vdwg.mxu0
        %8417 = vmatprep.subr.bf16.mxu0 0
        %8418 = vmatpush1.bf16.msra.mxu0 %v7613
        %8419 = vmatprep.subr.bf16.mxu0 0
        %8420 = vmatpush1.bf16.msra.mxu0 %v7616
        %8421 = vmatprep.subr.bf16.mxu0 0
        %8422 = vmatpush1.bf16.msra.mxu0 %v7619
        %8423 = vmatprep.subr.bf16.mxu0 0
        %8424 = vmatpush1.bf16.msra.mxu0 %v7622
        %8425 = vmatprep.subr.bf16.mxu0 0
        %8426 = vmatpush1.bf16.msra.mxu0 %v7625
        %8427 = vmatprep.subr.bf16.mxu0 0
        %8428 = vmatpush1.bf16.msra.mxu0 %v7628
        %8429 = vmatprep.subr.bf16.mxu0 0
        %8430 = vmatpush1.bf16.msra.mxu0 %v7631
        %8431 = vmatprep.subr.bf16.mxu0 0
        %8432 = vmatpush1.bf16.msra.mxu0 %v7634
        %8433 = vmatprep.subr.bf16.mxu0 0
        %8434 = vmatpush1.bf16.msra.mxu0 %v7637
        %8435 = vmatprep.subr.bf16.mxu0 0
        %8436 = vmatpush1.bf16.msra.mxu0 %v7640
        %8437 = vmatprep.subr.bf16.mxu0 0
        %8438 = vmatpush1.bf16.msra.mxu0 %v7643
        %8439 = vmatprep.subr.bf16.mxu0 0
        %8440 = vmatpush1.bf16.msra.mxu0 %v7646
        %8441 = vmatprep.subr.bf16.mxu0 0
        %8442 = vmatpush1.bf16.msra.mxu0 %v7649
        %8443 = vmatprep.subr.bf16.mxu0 0
        %8444 = vmatpush1.bf16.msra.mxu0 %v7652
        %8445 = vmatprep.subr.bf16.mxu0 0
        %8446 = vmatpush1.bf16.msra.mxu0 %v7655
        %8447 = vmatprep.subr.bf16.mxu0 0
        %8448 = vmatpush1.bf16.msra.mxu0 %v7658
        %8449 = vmatprep.mubr.bf16.mxu0 %v6147
        %8450 = vmatmul.mubr.bf16.gmra.mrb[0].mxu0 %v6146
        %v8451 = vpop.f32.mrb[0].mxu0
        %v8452 = vadd.f32 %v8412, %v8451
        %v8453 = vpop.f32.mrb[0].mxu0
        %v8454 = vpop.f32.mrb[0].mxu0
        %v8455 = vpop.f32.mrb[0].mxu0
        %8456 = vdwg.mxu0
        %8457 = vmatprep.subr.bf16.mxu0 0
        %8458 = vmatpush1.bf16.msra.mxu0 %v7661
        %8459 = vmatprep.subr.bf16.mxu0 0
        %8460 = vmatpush1.bf16.msra.mxu0 %v7664
        %8461 = vmatprep.subr.bf16.mxu0 0
        %8462 = vmatpush1.bf16.msra.mxu0 %v7667
        %8463 = vmatprep.subr.bf16.mxu0 0
        %8464 = vmatpush1.bf16.msra.mxu0 %v7670
        %8465 = vmatprep.subr.bf16.mxu0 0
        %8466 = vmatpush1.bf16.msra.mxu0 %v7673
        %8467 = vmatprep.subr.bf16.mxu0 0
        %8468 = vmatpush1.bf16.msra.mxu0 %v7676
        %8469 = vmatprep.subr.bf16.mxu0 0
        %8470 = vmatpush1.bf16.msra.mxu0 %v7679
        %8471 = vmatprep.subr.bf16.mxu0 0
        %8472 = vmatpush1.bf16.msra.mxu0 %v7682
        %8473 = vmatprep.subr.bf16.mxu0 0
        %8474 = vmatpush1.bf16.msra.mxu0 %v7685
        %8475 = vmatprep.subr.bf16.mxu0 0
        %8476 = vmatpush1.bf16.msra.mxu0 %v7688
        %8477 = vmatprep.subr.bf16.mxu0 0
        %8478 = vmatpush1.bf16.msra.mxu0 %v7691
        %8479 = vmatprep.subr.bf16.mxu0 0
        %8480 = vmatpush1.bf16.msra.mxu0 %v7694
        %8481 = vmatprep.subr.bf16.mxu0 0
        %8482 = vmatpush1.bf16.msra.mxu0 %v7697
        %8483 = vmatprep.subr.bf16.mxu0 0
        %8484 = vmatpush1.bf16.msra.mxu0 %v7700
        %8485 = vmatprep.subr.bf16.mxu0 0
        %8486 = vmatpush1.bf16.msra.mxu0 %v7703
        %8487 = vmatprep.subr.bf16.mxu0 0
        %8488 = vmatpush1.bf16.msra.mxu0 %v7706
        %8489 = vmatprep.mubr.bf16.mxu0 %v6149
        %8490 = vmatmul.mubr.bf16.gmra.mrb[0].mxu0 %v6148
        %v8491 = vpop.f32.mrb[0].mxu0
        %v8492 = vadd.f32 %v8452, %v8491
        %v8493 = vpop.f32.mrb[0].mxu0
        %v8494 = vpop.f32.mrb[0].mxu0
        %v8495 = vpop.f32.mrb[0].mxu0
        %8496 = vdwg.mxu0
        %8497 = vmatprep.subr.bf16.mxu0 0
        %8498 = vmatpush1.bf16.msra.mxu0 %v7709
        %8499 = vmatprep.subr.bf16.mxu0 0
        %8500 = vmatpush1.bf16.msra.mxu0 %v7712
        %8501 = vmatprep.subr.bf16.mxu0 0
        %8502 = vmatpush1.bf16.msra.mxu0 %v7715
        %8503 = vmatprep.subr.bf16.mxu0 0
        %8504 = vmatpush1.bf16.msra.mxu0 %v7718
        %8505 = vmatprep.subr.bf16.mxu0 0
        %8506 = vmatpush1.bf16.msra.mxu0 %v7721
        %8507 = vmatprep.subr.bf16.mxu0 0
        %8508 = vmatpush1.bf16.msra.mxu0 %v7724
        %8509 = vmatprep.subr.bf16.mxu0 0
        %8510 = vmatpush1.bf16.msra.mxu0 %v7727
        %8511 = vmatprep.subr.bf16.mxu0 0
        %8512 = vmatpush1.bf16.msra.mxu0 %v7730
        %8513 = vmatprep.subr.bf16.mxu0 0
        %8514 = vmatpush1.bf16.msra.mxu0 %v7733
        %8515 = vmatprep.subr.bf16.mxu0 0
        %8516 = vmatpush1.bf16.msra.mxu0 %v7736
        %8517 = vmatprep.subr.bf16.mxu0 0
        %8518 = vmatpush1.bf16.msra.mxu0 %v7739
        %8519 = vmatprep.subr.bf16.mxu0 0
        %8520 = vmatpush1.bf16.msra.mxu0 %v7742
        %8521 = vmatprep.subr.bf16.mxu0 0
        %8522 = vmatpush1.bf16.msra.mxu0 %v7745
        %8523 = vmatprep.subr.bf16.mxu0 0
        %8524 = vmatpush1.bf16.msra.mxu0 %v7748
        %8525 = vmatprep.subr.bf16.mxu0 0
        %8526 = vmatpush1.bf16.msra.mxu0 %v7751
        %8527 = vmatprep.subr.bf16.mxu0 0
        %8528 = vmatpush1.bf16.msra.mxu0 %v7754
        %8529 = vmatprep.mubr.bf16.mxu0 %v6151
        %8530 = vmatmul.mubr.bf16.gmra.mrb[0].mxu0 %v6150
        %v8531 = vpop.f32.mrb[0].mxu0
        %v8532 = vadd.f32 %v8492, %v8531
        %v8533 = vpop.f32.mrb[0].mxu0
        %v8534 = vpop.f32.mrb[0].mxu0
        %v8535 = vpop.f32.mrb[0].mxu0
        %8536 = vdwg.mxu0
        %8537 = vmatprep.subr.bf16.mxu0 0
        %8538 = vmatpush1.bf16.msra.mxu0 %v7757
        %8539 = vmatprep.subr.bf16.mxu0 0
        %8540 = vmatpush1.bf16.msra.mxu0 %v7760
        %8541 = vmatprep.subr.bf16.mxu0 0
        %8542 = vmatpush1.bf16.msra.mxu0 %v7763
        %8543 = vmatprep.subr.bf16.mxu0 0
        %8544 = vmatpush1.bf16.msra.mxu0 %v7766
        %8545 = vmatprep.subr.bf16.mxu0 0
        %8546 = vmatpush1.bf16.msra.mxu0 %v7769
        %8547 = vmatprep.subr.bf16.mxu0 0
        %8548 = vmatpush1.bf16.msra.mxu0 %v7772
        %8549 = vmatprep.subr.bf16.mxu0 0
        %8550 = vmatpush1.bf16.msra.mxu0 %v7775
        %8551 = vmatprep.subr.bf16.mxu0 0
        %8552 = vmatpush1.bf16.msra.mxu0 %v7778
        %8553 = vmatprep.subr.bf16.mxu0 0
        %8554 = vmatpush1.bf16.msra.mxu0 %v7781
        %8555 = vmatprep.subr.bf16.mxu0 0
        %8556 = vmatpush1.bf16.msra.mxu0 %v7784
        %8557 = vmatprep.subr.bf16.mxu0 0
        %8558 = vmatpush1.bf16.msra.mxu0 %v7787
        %8559 = vmatprep.subr.bf16.mxu0 0
        %8560 = vmatpush1.bf16.msra.mxu0 %v7790
        %8561 = vmatprep.subr.bf16.mxu0 0
        %8562 = vmatpush1.bf16.msra.mxu0 %v7793
        %8563 = vmatprep.subr.bf16.mxu0 0
        %8564 = vmatpush1.bf16.msra.mxu0 %v7796
        %8565 = vmatprep.subr.bf16.mxu0 0
        %8566 = vmatpush1.bf16.msra.mxu0 %v7799
        %8567 = vmatprep.subr.bf16.mxu0 0
        %8568 = vmatpush1.bf16.msra.mxu0 %v7802
        %8569 = vmatprep.mubr.bf16.mxu0 %v6153
        %8570 = vmatmul.mubr.bf16.gmra.mrb[0].mxu0 %v6152
        %v8571 = vpop.f32.mrb[0].mxu0
        %v8572 = vadd.f32 %v8532, %v8571
        %v8573 = vpop.f32.mrb[0].mxu0
        %v8574 = vpop.f32.mrb[0].mxu0
        %v8575 = vpop.f32.mrb[0].mxu0
        %8576 = vdwg.mxu0
        %v8577 = vadd.f32 %v3840, %v8331
        %v8578 = vadd.f32 %v3841, %v8333
        %v8579 = vadd.f32 %v3842, %v8572
        %8580 = vst [vmem:[%s575] sm:$0xff] %v8577
        %8581 = vst [vmem:[%s575 + $0x8] sm:$0xff] %v8578
        %8582 = vst [vmem:[%s575 + $0x10] sm:$0xff] %v8579
        %s8583 = sand.u32 %s300, 1
        %s8584 = scalar_lea.sflag [#allocation5], %s8583
        %s8585 = sand.u32 %s300, 1
        %s8586 = smul.addr %s8585, 24
        %s8587 = scalar_lea.vmem [#allocation23], %s8586
        // Predicated region
        $region117: #{tpu_custom_call.1} parent=67 // pred_check
          %p8588 = pneg %p310
        $region118: #{tpu_custom_call.1} parent=67 // pred_check_branch
          %8590 = sbr.rel (%p8588) target = $region120
        $region119: #{tpu_custom_call.1} parent=67 // pred_region
          %s8592 = ssub.s32 384, 384
          %8593 = vsyncadd %s8584, %s8592
          %s8594 = smul.addr %s35, 3
          %s8595 = smul.addr %s8594, 128
          %s8596 = scalar_lea.hbm %s12, %s8595
          %s8598 = sshll.u32 %s8587, 4
          %s8599 = int_to_ptr.vmem [resolvable:$true] %s8598
          %8601 = dma.vmem_to_hbm [thread:$0]  %s8599, 384, %s8596, %s8584
        $region120: #{tpu_custom_call.1} parent=67 // pred_fallthru
          _
      $region68: #{tpu_custom_call.1} parent=5 // pred_fallthru
        _
      %p8602 = scmp.le.s32.totalorder 2, %s30
      // Predicated region
      $region121: #{tpu_custom_call.1} parent=5 // pred_check
        %p8603 = pneg %p8602
      $region122: #{tpu_custom_call.1} parent=5 // pred_check_branch
        %8605 = sbr.rel (%p8603) target = $region124
      $region123: #{tpu_custom_call.1} parent=5 // pred_region
        %s8606 = ssub.s32 %s30, 2
        // Predicated region
        $region125: #{tpu_custom_call.1} parent=123 // pred_check
          %p8607 = pneg %p316
        $region126: #{tpu_custom_call.1} parent=123 // pred_check_branch
          %8609 = sbr.rel (%p8607) target = $region128
        $region127: #{tpu_custom_call.1} parent=123 // pred_region
          %s8610 = sand.u32 %s301, 1
          %s8611 = scalar_lea.sflag [#allocation5], %s8610
          %s8612 = sand.u32 %s301, 1
          %s8613 = smul.addr %s8612, 24
          %s8614 = scalar_lea.vmem [#allocation23], %s8613
          %8615 = dma.done %s8611, 384
        $region128: #{tpu_custom_call.1} parent=123 // pred_fallthru
          _
      $region124: #{tpu_custom_call.1} parent=5 // pred_fallthru
        _
    $region6: #{tpu_custom_call.1} parent=1 // loop_footer
      %s34 = sadd.s32 1, %s30
    $region7: #{tpu_custom_call.1} parent=1 // loop_footer_branch
      %29 = sbr.rel target = $region3
    $region8: #{tpu_custom_call.1} parent=1 // loop_exit
      _
    %8616 = vsyncpa [#allocation4], 1
    %s8617 = scalar_lea.sflag [#allocation4], 1
    %8618 = vsyncpa %s8617, 1
    %8619 = vsyncpa [#allocation7], 1
    %8620 = vsyncpa [#allocation10], 1
    %8621 = vsyncpa [#allocation13], 1
    %8622 = vsyncpa [#allocation16], 1
    %8623 = vsyncpa [#allocation19], 1
    %8624 = vsyncpa [#allocation22], 1
    %8625 = vsyncpa [#allocation5], 1
    %s8626 = scalar_lea.sflag [#allocation5], 1
    %8627 = vsyncpa %s8626, 1

</llo_original>
